<compile_context>
chip_gen: v5e
topology: v5e:2x2
jax: 0.10.0
libtpu: 0.0.40
codegen_flags: <defaults>
</compile_context>

<pallas_src>
import functools

import jax
import jax.numpy as jnp
from jax.experimental import pallas as pl
from jax.experimental.pallas import tpu as pltpu

BN_EPS = 1e-5
ACT_DTYPE = jnp.bfloat16   # internal activation / MXU operand dtype


def _round_up(x, m):
    return (x + m - 1) // m * m


# ---------------------------------------------------------------------------
# Pallas kernels
# ---------------------------------------------------------------------------

def _mm_fast_kernel(a_ref, b_ref, scale_ref, shift_ref, o_ref, *, relu):
    """Single-K-block fast path: dot -> affine -> relu -> store (no scratch)."""
    y = jnp.dot(a_ref[...], b_ref[...], preferred_element_type=jnp.float32)
    y = y * scale_ref[...] + shift_ref[...]
    if relu:
        y = jnp.maximum(y, 0.0)
    o_ref[...] = y.astype(o_ref.dtype)


def _mm_fast_res_kernel(a_ref, b_ref, scale_ref, shift_ref, res_ref, o_ref,
                        *, relu):
    y = jnp.dot(a_ref[...], b_ref[...], preferred_element_type=jnp.float32)
    y = y * scale_ref[...] + shift_ref[...] + res_ref[...].astype(jnp.float32)
    if relu:
        y = jnp.maximum(y, 0.0)
    o_ref[...] = y.astype(o_ref.dtype)


def _mm_acc_kernel(a_ref, b_ref, scale_ref, shift_ref, o_ref, acc_ref, *, relu):
    """General multi-K accumulator path (not hit by ERFNet's channel counts)."""
    @pl.when(pl.program_id(1) == 0)
    def _():
        acc_ref[...] = jnp.zeros_like(acc_ref)

    acc_ref[...] += jnp.dot(a_ref[...], b_ref[...],
                            preferred_element_type=jnp.float32)

    @pl.when(pl.program_id(1) == pl.num_programs(1) - 1)
    def _():
        y = acc_ref[...] * scale_ref[...] + shift_ref[...]
        if relu:
            y = jnp.maximum(y, 0.0)
        o_ref[...] = y.astype(o_ref.dtype)


def _mm_acc_res_kernel(a_ref, b_ref, scale_ref, shift_ref, res_ref, o_ref,
                       acc_ref, *, relu):
    @pl.when(pl.program_id(1) == 0)
    def _():
        acc_ref[...] = jnp.zeros_like(acc_ref)

    acc_ref[...] += jnp.dot(a_ref[...], b_ref[...],
                            preferred_element_type=jnp.float32)

    @pl.when(pl.program_id(1) == pl.num_programs(1) - 1)
    def _():
        y = (acc_ref[...] * scale_ref[...] + shift_ref[...]
             + res_ref[...].astype(jnp.float32))
        if relu:
            y = jnp.maximum(y, 0.0)
        o_ref[...] = y.astype(o_ref.dtype)


# ---------------------------------------------------------------------------
# Tiling helpers
# ---------------------------------------------------------------------------

def _choose_tm(m):
    """M-tile: lane-dense, >=2 blocks when possible (v7x dual-TC megacore),
    prefer an exact divisor of M (avoids a padded copy of the A matrix)."""
    if m <= 16:
        return max(m, 1)                       # single full-extent block
    if m >= 16384:
        cap = 2048
    elif m >= 4096:
        cap = 1024
    else:
        cap = 512
    # ensure at least 2 M-blocks so both v7x TensorCores get work
    cap = min(cap, max(16, _round_up((m + 1) // 2, 16)))
    t = (cap // 16) * 16
    while t >= 16:
        if m % t == 0:                         # exact divisor -> no M padding
            return t
        t -= 16
    return cap                                 # fallback: M gets zero-padded


def _pad2d(x, rows, cols, dtype):
    """Zero-pad (and cast) only when actually needed; otherwise pass through."""
    xr, xc = x.shape
    if (xr, xc) == (rows, cols):
        return x.astype(dtype)
    return jnp.zeros((rows, cols), dtype).at[:xr, :xc].set(x.astype(dtype))


def _pad_row(v, cols):
    v = v.astype(jnp.float32)
    if v.shape[0] == cols:
        return v.reshape(1, cols)
    return jnp.zeros((1, cols), jnp.float32).at[0, :v.shape[0]].set(v)


# ---------------------------------------------------------------------------
# Fused matmul + affine (+ residual) (+ ReLU)
# ---------------------------------------------------------------------------

def matmul_affine(a, b, scale, shift, residual=None, relu=False,
                  out_dtype=ACT_DTYPE):
    """C = relu?((A @ B) * scale + shift [+ residual]);  A:(M,K)  B:(K,N).

    bf16 MXU operands, f32 accumulation + epilogue.  Single-K fast path
    (ERFNet's K <= 576) with a 1-D "parallel" grid over M tiles.
    """
    m, k = a.shape
    kb, n = b.shape
    assert kb == k

    # N: exact (lane = full extent) when a multiple of 64, else pad to 128.
    np_ = n if (n % 64 == 0) else _round_up(n, 128)

    # K: single block rounded to the bf16 sublane multiple (16).
    max_single_k = 2048
    if k <= max_single_k:
        kp = _round_up(k, 16)
        tk = kp
    else:
        tk = 512
        kp = _round_up(k, tk)
    num_k = kp // tk

    tm = _choose_tm(m)
    mp = _round_up(m, tm)
    num_m = mp // tm

    a_p = _pad2d(a, mp, kp, ACT_DTYPE)
    b_p = _pad2d(b, kp, np_, ACT_DTYPE)
    sc = _pad_row(scale, np_)
    sh = _pad_row(shift, np_)

    out_bytes = mp * np_ * jnp.dtype(out_dtype).itemsize

    if num_k == 1:
        in_specs = [
            pl.BlockSpec((tm, kp), lambda i: (i, 0)),
            pl.BlockSpec((kp, np_), lambda i: (0, 0)),
            pl.BlockSpec((1, np_), lambda i: (0, 0)),
            pl.BlockSpec((1, np_), lambda i: (0, 0)),
        ]
        inputs = [a_p, b_p, sc, sh]
        if residual is None:
            kernel = functools.partial(_mm_fast_kernel, relu=relu)
            res_bytes = 0
        else:
            r_p = _pad2d(residual, mp, np_, ACT_DTYPE)
            in_specs.append(pl.BlockSpec((tm, np_), lambda i: (i, 0)))
            inputs.append(r_p)
            kernel = functools.partial(_mm_fast_res_kernel, relu=relu)
            res_bytes = r_p.size * 2

        cost = pl.CostEstimate(
            flops=2 * mp * np_ * kp, transcendentals=0,
            bytes_accessed=a_p.size * 2 + b_p.size * 2 + out_bytes + res_bytes)

        out = pl.pallas_call(
            kernel,
            out_shape=jax.ShapeDtypeStruct((mp, np_), out_dtype),
            grid=(num_m,),
            in_specs=in_specs,
            out_specs=pl.BlockSpec((tm, np_), lambda i: (i, 0)),
            compiler_params=pltpu.CompilerParams(
                dimension_semantics=("parallel",)),
            cost_estimate=cost,
        )(*inputs)
    else:
        # General accumulator path (kept for K > 2048; unused by ERFNet).
        in_specs = [
            pl.BlockSpec((tm, tk), lambda i, kk: (i, kk)),
            pl.BlockSpec((tk, np_), lambda i, kk: (kk, 0)),
            pl.BlockSpec((1, np_), lambda i, kk: (0, 0)),
            pl.BlockSpec((1, np_), lambda i, kk: (0, 0)),
        ]
        inputs = [a_p, b_p, sc, sh]
        if residual is None:
            kernel = functools.partial(_mm_acc_kernel, relu=relu)
            res_bytes = 0
        else:
            r_p = _pad2d(residual, mp, np_, ACT_DTYPE)
            in_specs.append(pl.BlockSpec((tm, np_), lambda i, kk: (i, 0)))
            inputs.append(r_p)
            kernel = functools.partial(_mm_acc_res_kernel, relu=relu)
            res_bytes = r_p.size * 2

        cost = pl.CostEstimate(
            flops=2 * mp * np_ * kp, transcendentals=0,
            bytes_accessed=(a_p.size * 2 + b_p.size * 2 * num_m
                            + out_bytes + res_bytes))

        out = pl.pallas_call(
            kernel,
            out_shape=jax.ShapeDtypeStruct((mp, np_), out_dtype),
            grid=(num_m, num_k),
            in_specs=in_specs,
            out_specs=pl.BlockSpec((tm, np_), lambda i, kk: (i, 0)),
            scratch_shapes=[pltpu.VMEM((tm, np_), jnp.float32)],
            compiler_params=pltpu.CompilerParams(
                dimension_semantics=("parallel", "arbitrary")),
            cost_estimate=cost,
        )(*inputs)

    if mp != m or np_ != n:
        out = out[:m, :n]
    return out


# ---------------------------------------------------------------------------
# Glue: patch gathers / weight-layout helpers (data movement only, plain JAX)
# ---------------------------------------------------------------------------

def im2col_conv3x3_s2(x):
    """3x3 conv, stride 2, pad 1 (even H, W)."""
    n, h, w, c = x.shape
    ho, wo = h // 2, w // 2
    xp = jnp.pad(x, ((0, 0), (1, 1), (1, 1), (0, 0)))
    cols = []
    for kh in range(3):
        for kw in range(3):
            cols.append(xp[:, kh:kh + 2 * ho:2, kw:kw + 2 * wo:2, :])
    patches = jnp.stack(cols, axis=3)  # (n, ho, wo, 9, c)
    return patches.reshape(n * ho * wo, 9 * c), (ho, wo)


def im2col_1d(x, k, dilation, padding, axis):
    """Asymmetric conv: axis=1 -> (k,1) kernel over H; axis=2 -> (1,k) over W."""
    pad_cfg = [(0, 0)] * 4
    pad_cfg[axis] = (padding, padding)
    xp = jnp.pad(x, pad_cfg)
    size = x.shape[axis]
    cols = []
    for t in range(k):
        start = t * dilation
        if axis == 1:
            cols.append(xp[:, start:start + size, :, :])
        else:
            cols.append(xp[:, :, start:start + size, :])
    patches = jnp.stack(cols, axis=3)  # (n, h, w, k, c)
    n, h, w, c = x.shape
    return patches.reshape(n * h * w, k * c)


def deconv_phase_patches(x):
    """4-phase (sub-pixel) operand for ConvTranspose2d(3, s=2, p=1, op=1):
    per output "super-pixel" the taps are x[i,j], x[i,j+1], x[i+1,j], x[i+1,j+1]."""
    n, h, w, c = x.shape
    xp = jnp.pad(x, ((0, 0), (0, 1), (0, 1), (0, 0)))
    p00 = x
    p01 = xp[:, :h, 1:1 + w, :]
    p10 = xp[:, 1:1 + h, :w, :]
    p11 = xp[:, 1:1 + h, 1:1 + w, :]
    patches = jnp.concatenate([p00, p01, p10, p11], axis=-1)  # (n,h,w,4c)
    return patches.reshape(n * h * w, 4 * c)


def conv3x3_wmat(w):        # torch (Cout, Cin, 3, 3) -> (9*Cin, Cout)
    return jnp.transpose(w, (2, 3, 1, 0)).reshape(-1, w.shape[0])


def asym_h_wmat(w):         # torch (C, C, k, 1) -> (k*C, C)
    return jnp.transpose(w[:, :, :, 0], (2, 1, 0)).reshape(-1, w.shape[0])


def asym_w_wmat(w):         # torch (C, C, 1, k) -> (k*C, C)
    return jnp.transpose(w[:, :, 0, :], (2, 1, 0)).reshape(-1, w.shape[0])


def deconv_phase_wmat(w):
    """torch ConvTranspose weight (Cin, Cout, 3, 3) -> (4*Cin, 4*Cout) phase mat.

    Tap order (K blocks):   [x(i,j), x(i,j+1), x(i+1,j), x(i+1,j+1)]
    Phase order (N blocks): [(dy,dx)=(0,0),(0,1),(1,0),(1,1)]
    """
    cin, cout = w.shape[0], w.shape[1]
    mat = jnp.zeros((4 * cin, 4 * cout), jnp.float32)
    assignments = [
        (0, 0, 1, 1),                                              # even/even
        (0, 1, 1, 2), (1, 1, 1, 0),                                # even/odd
        (0, 2, 2, 1), (2, 2, 0, 1),                                # odd /even
        (0, 3, 2, 2), (1, 3, 2, 0), (2, 3, 0, 2), (3, 3, 0, 0),    # odd /odd
    ]
    for tap, ph, ky, kx in assignments:
        mat = mat.at[tap * cin:(tap + 1) * cin,
                     ph * cout:(ph + 1) * cout].set(w[:, :, ky, kx])
    return mat


def bn_fold(bn, conv_bias=None):
    """Fold eval-mode BatchNorm (and preceding conv bias) into (scale, shift)."""
    s = bn["gamma"] / jnp.sqrt(bn["var"] + BN_EPS)
    if conv_bias is None:
        t = bn["beta"] - bn["mean"] * s
    else:
        t = (conv_bias - bn["mean"]) * s + bn["beta"]
    return s, t


# ---------------------------------------------------------------------------
# ERFNet building blocks
# ---------------------------------------------------------------------------

def mixdown_forward(x, u):
    """ENetMixDownBlock: concat(conv3x3 s2, maxpool2) -> BN -> ReLU (fused)."""
    n, h, w, cin = x.shape
    assert h % 2 == 0 and w % 2 == 0, "mixdown assumes even spatial size"
    cout = u["cout"]
    cc = cout - cin
    s_all, t_all = bn_fold(u["bn"])

    # Conv branch: bias + BN (channels [:cc]) + ReLU fused into matmul epilogue.
    a, (ho, wo) = im2col_conv3x3_s2(x)
    sc_conv = s_all[:cc]
    sh_conv = (u["b"] - u["bn"]["mean"][:cc]) * sc_conv + u["bn"]["beta"][:cc]
    y_conv = matmul_affine(a, conv3x3_wmat(u["w"]), sc_conv, sh_conv,
                           relu=True).reshape(n, ho, wo, cc)

    # Pool branch: 2x2 max + BN + ReLU on <=64 channels — tiny VPU work, left to
    # XLA rather than a lane-padded Pallas kernel.
    xw = x.reshape(n, ho, 2, wo, 2, cin)
    y_pool = jnp.max(xw, axis=(2, 4)).astype(jnp.float32)
    y_pool = jnp.maximum(y_pool * s_all[cc:] + t_all[cc:], 0.0).astype(ACT_DTYPE)

    return jnp.concatenate([y_conv, y_pool], axis=-1)


def deconv_forward(x, u):
    """deconv3x3_block: ConvTranspose2d(3, s=2, p=1, op=1) -> BN -> ReLU,
    lowered as a 4-phase sub-pixel matmul + pixel shuffle."""
    n, h, w, c = x.shape
    cout = u["cout"]
    a = deconv_phase_patches(x)                        # (n*h*w, 4c)
    s, t = bn_fold(u["bn"], u["b"])
    y = matmul_affine(a, deconv_phase_wmat(u["w"]),
                      jnp.tile(s, 4), jnp.tile(t, 4), relu=True)
    y = y.reshape(n, h, w, 2, 2, cout)
    y = jnp.transpose(y, (0, 1, 3, 2, 4, 5)).reshape(n, 2 * h, 2 * w, cout)
    return y


def fcu_forward(x, u):
    """Factorized convolution unit."""
    n, h, w, c = x.shape
    d = u["dilation"]
    identity = x.reshape(n * h * w, c)
    ones = jnp.ones((c,), jnp.float32)
    # conv1: (3x1) conv+bias+ReLU; (1x3) conv+bias+BN+ReLU
    a = im2col_1d(x, 3, 1, 1, axis=1)
    x1 = matmul_affine(a, asym_h_wmat(u["w1h"]), ones, u["b1h"],
                       relu=True).reshape(n, h, w, c)
    a = im2col_1d(x1, 3, 1, 1, axis=2)
    s, t = bn_fold(u["bn1"], u["b1w"])
    x1 = matmul_affine(a, asym_w_wmat(u["w1w"]), s, t,
                       relu=True).reshape(n, h, w, c)
    # conv2 (dilated): (3x1) conv+bias+ReLU; (1x3) conv+bias+BN, +identity, ReLU
    a = im2col_1d(x1, 3, d, d, axis=1)
    x2 = matmul_affine(a, asym_h_wmat(u["w2h"]), ones, u["b2h"],
                       relu=True).reshape(n, h, w, c)
    a = im2col_1d(x2, 3, d, d, axis=2)
    s, t = bn_fold(u["bn2"], u["b2w"])
    # TODO(synk): nn.Dropout is identity here (eval-mode / inference semantics).
    y = matmul_affine(a, asym_w_wmat(u["w2w"]), s, t, residual=identity,
                      relu=True)
    return y.reshape(n, h, w, c)


def head_forward(x, head, num_classes):
    """ConvTranspose2d(k=2, s=2, p=0) with bias (pixel-shuffle matmul)."""
    n, h, w, c = x.shape
    a = x.reshape(n * h * w, c)
    wmat = jnp.transpose(head["w"], (0, 2, 3, 1)).reshape(c, 4 * num_classes)
    shift = jnp.tile(head["b"], 4)
    y = matmul_affine(a, wmat, jnp.ones((4 * num_classes,), jnp.float32), shift,
                      relu=False, out_dtype=jnp.float32)
    y = y.reshape(n, h, w, 2, 2, num_classes)
    y = jnp.transpose(y, (0, 1, 3, 2, 4, 5)).reshape(n, 2 * h, 2 * w, num_classes)
    return y


def erfnet_forward(x_nchw, model):
    x = jnp.transpose(x_nchw, (0, 2, 3, 1)).astype(ACT_DTYPE)   # NCHW -> NHWC
    for u in model["units"]:
        if u["type"] == "mixdown":
            x = mixdown_forward(x, u)
        elif u["type"] == "deconv":
            x = deconv_forward(x, u)
        else:
            x = fcu_forward(x, u)
    y = head_forward(x, model["head"], model["num_classes"])
    return jnp.transpose(y, (0, 3, 1, 2)).astype(jnp.float32)    # NHWC -> NCHW


# ---------------------------------------------------------------------------
# Deterministic parameter initialization (synthetic weights, PyTorch layouts)
# ---------------------------------------------------------------------------

class ParamGen:
    def __init__(self, key):
        self._key = key

    def normal(self, shape, scale=0.1):
        self._key, sub = jax.random.split(self._key)
        return scale * jax.random.normal(sub, shape, jnp.float32)

    def bn(self, c):
        return dict(gamma=1.0 + self.normal((c,)),
                    beta=self.normal((c,)),
                    mean=self.normal((c,)),
                    var=1.0 + jnp.square(self.normal((c,))))


def build_erfnet(key, in_channels=3, num_classes=19):
    pg = ParamGen(key)
    downs = [1, 1, 1, 0, 0]
    channels = [16, 64, 128, 64, 16]
    dilations = [[1],
                 [1, 1, 1, 1, 1, 1],
                 [1, 2, 4, 8, 16, 2, 4, 8, 16],
                 [1, 1, 1],
                 [1, 1, 1]]
    units = []
    cin = in_channels
    for i, cout in enumerate(channels):
        for j, d in enumerate(dilations[i]):
            if j == 0:
                if downs[i]:
                    cc = cout - cin
                    units.append(dict(type="mixdown", cin=cin, cout=cout,
                                      w=pg.normal((cc, cin, 3, 3)),
                                      b=pg.normal((cc,)),
                                      bn=pg.bn(cout)))
                else:
                    units.append(dict(type="deconv", cin=cin, cout=cout,
                                      w=pg.normal((cin, cout, 3, 3)),
                                      b=pg.normal((cout,)),
                                      bn=pg.bn(cout)))
            else:
                c = cin  # == cout after the first unit of the stage
                units.append(dict(type="fcu", c=c, dilation=d,
                                  w1h=pg.normal((c, c, 3, 1)), b1h=pg.normal((c,)),
                                  w1w=pg.normal((c, c, 1, 3)), b1w=pg.normal((c,)),
                                  bn1=pg.bn(c),
                                  w2h=pg.normal((c, c, 3, 1)), b2h=pg.normal((c,)),
                                  w2w=pg.normal((c, c, 1, 3)), b2w=pg.normal((c,)),
                                  bn2=pg.bn(c)))
            cin = cout
    head = dict(w=pg.normal((cin, num_classes, 2, 2)), b=pg.normal((num_classes,)))
    return dict(units=units, head=head, num_classes=num_classes)


# ---------------------------------------------------------------------------

if __name__ == "__main__":
    key = jax.random.PRNGKey(0)
    pkey, xkey = jax.random.split(key)
    num_classes = 19
    model = build_erfnet(pkey, in_channels=3, num_classes=num_classes)

    # Small input consistent with ERFNet's /8 encoder + x8 decoder+head.
    x = jax.random.normal(xkey, (2, 3, 32, 32), jnp.float32)

    fwd = jax.jit(lambda inp: erfnet_forward(inp, model))
    out = fwd(x)
    out = jax.block_until_ready(out)
    assert out.shape == (2, num_classes, 32, 32), out.shape
    assert bool(jnp.all(jnp.isfinite(out)))
    print("KERNEL_OK")
</pallas_src>

<mosaic_0001>
module attributes {stable_mosaic.version = 11 : i64} {
  func.func @_mm_fast_kernel(%arg0: i32, %arg1: memref<256x32xbf16, #tpu.memory_space<vmem>>, %arg2: memref<32x128xbf16, #tpu.memory_space<vmem>>, %arg3: memref<1x128xf32, #tpu.memory_space<vmem>>, %arg4: memref<1x128xf32, #tpu.memory_space<vmem>>, %arg5: memref<256x128xbf16, #tpu.memory_space<vmem>>) attributes {dimension_semantics = [#tpu.dimension_semantics<parallel>], iteration_bounds = array<i64: 2>, scalar_prefetch = 0 : i64, scratch_operands = 0 : i64, tpu.core_type = #tpu.core_type<tc>, window_params = [{transform_indices = @transform_0, window_bounds = array<i64: 256, 32>}, {pipeline_mode = #tpu.pipeline_mode<synchronous>, transform_indices = @transform_1, window_bounds = array<i64: 32, 128>}, {pipeline_mode = #tpu.pipeline_mode<synchronous>, transform_indices = @transform_2, window_bounds = array<i64: 1, 128>}, {pipeline_mode = #tpu.pipeline_mode<synchronous>, transform_indices = @transform_3, window_bounds = array<i64: 1, 128>}, {transform_indices = @transform_4, window_bounds = array<i64: 256, 128>}]} {
    %c0 = arith.constant 0 : index
    %c0_0 = arith.constant 0 : index
    %0 = vector.load %arg1[%c0, %c0_0] : memref<256x32xbf16, #tpu.memory_space<vmem>>, vector<256x32xbf16>
    %c0_1 = arith.constant 0 : index
    %c0_2 = arith.constant 0 : index
    %1 = vector.load %arg2[%c0_1, %c0_2] : memref<32x128xbf16, #tpu.memory_space<vmem>>, vector<32x128xbf16>
    %cst = arith.constant dense<0.000000e+00> : vector<256x128xf32>
    %2 = tpu.matmul %0, %1, %cst {dimension_numbers = #tpu.dot_dimension_numbers<[1], [0], [0], [1], [0, 0, 1, 1], [], []>} : vector<256x32xbf16>, vector<32x128xbf16>, vector<256x128xf32> -> vector<256x128xf32>
    %c0_3 = arith.constant 0 : index
    %c0_4 = arith.constant 0 : index
    %3 = vector.load %arg3[%c0_3, %c0_4] : memref<1x128xf32, #tpu.memory_space<vmem>>, vector<1x128xf32>
    %4 = vector.broadcast %3 : vector<1x128xf32> to vector<256x128xf32>
    %5 = arith.mulf %2, %4 : vector<256x128xf32>
    %c0_5 = arith.constant 0 : index
    %c0_6 = arith.constant 0 : index
    %6 = vector.load %arg4[%c0_5, %c0_6] : memref<1x128xf32, #tpu.memory_space<vmem>>, vector<1x128xf32>
    %7 = vector.broadcast %6 : vector<1x128xf32> to vector<256x128xf32>
    %8 = arith.addf %5, %7 : vector<256x128xf32>
    %cst_7 = arith.constant 0.000000e+00 : f32
    %9 = vector.broadcast %cst_7 : f32 to vector<256x128xf32>
    %10 = arith.maximumf %8, %9 : vector<256x128xf32>
    %11 = arith.truncf %10 : vector<256x128xf32> to vector<256x128xbf16>
    %c0_8 = arith.constant 0 : index
    %c0_9 = arith.constant 0 : index
    %12 = vector.load %arg5[%c0_8, %c0_9] : memref<256x128xbf16, #tpu.memory_space<vmem>>, vector<256x128xbf16>
    tpu.vector_store %arg5[%c0_8, %c0_9], %11 {strides = array<i32>} : memref<256x128xbf16, #tpu.memory_space<vmem>>, vector<256x128xbf16>,
    return
  }
  func.func @transform_0(%arg0: i32) -> (i32, i32) {
    %c0_i32 = arith.constant 0 : i32
    %c0_i32_0 = arith.constant 0 : i32
    return %arg0, %c0_i32 : i32, i32
  }
  func.func @transform_1(%arg0: i32) -> (i32, i32) {
    %c0_i32 = arith.constant 0 : i32
    %c0_i32_0 = arith.constant 0 : i32
    %c0_i32_1 = arith.constant 0 : i32
    return %c0_i32, %c0_i32_0 : i32, i32
  }
  func.func @transform_2(%arg0: i32) -> (i32, i32) {
    %c0_i32 = arith.constant 0 : i32
    %c0_i32_0 = arith.constant 0 : i32
    %c0_i32_1 = arith.constant 0 : i32
    return %c0_i32, %c0_i32_0 : i32, i32
  }
  func.func @transform_3(%arg0: i32) -> (i32, i32) {
    %c0_i32 = arith.constant 0 : i32
    %c0_i32_0 = arith.constant 0 : i32
    %c0_i32_1 = arith.constant 0 : i32
    return %c0_i32, %c0_i32_0 : i32, i32
  }
  func.func @transform_4(%arg0: i32) -> (i32, i32) {
    %c0_i32 = arith.constant 0 : i32
    %c0_i32_0 = arith.constant 0 : i32
    return %arg0, %c0_i32 : i32, i32
  }
}

module attributes {stable_mosaic.version = 11 : i64} {
  func.func @_mm_fast_kernel(%arg0: i32, %arg1: memref<64x144xbf16, #tpu.memory_space<vmem>>, %arg2: memref<144x128xbf16, #tpu.memory_space<vmem>>, %arg3: memref<1x128xf32, #tpu.memory_space<vmem>>, %arg4: memref<1x128xf32, #tpu.memory_space<vmem>>, %arg5: memref<64x128xbf16, #tpu.memory_space<vmem>>) attributes {dimension_semantics = [#tpu.dimension_semantics<parallel>], iteration_bounds = array<i64: 2>, scalar_prefetch = 0 : i64, scratch_operands = 0 : i64, tpu.core_type = #tpu.core_type<tc>, window_params = [{transform_indices = @transform_0, window_bounds = array<i64: 64, 144>}, {pipeline_mode = #tpu.pipeline_mode<synchronous>, transform_indices = @transform_1, window_bounds = array<i64: 144, 128>}, {pipeline_mode = #tpu.pipeline_mode<synchronous>, transform_indices = @transform_2, window_bounds = array<i64: 1, 128>}, {pipeline_mode = #tpu.pipeline_mode<synchronous>, transform_indices = @transform_3, window_bounds = array<i64: 1, 128>}, {transform_indices = @transform_4, window_bounds = array<i64: 64, 128>}]} {
    %c0 = arith.constant 0 : index
    %c0_0 = arith.constant 0 : index
    %0 = vector.load %arg1[%c0, %c0_0] : memref<64x144xbf16, #tpu.memory_space<vmem>>, vector<64x144xbf16>
    %c0_1 = arith.constant 0 : index
    %c0_2 = arith.constant 0 : index
    %1 = vector.load %arg2[%c0_1, %c0_2] : memref<144x128xbf16, #tpu.memory_space<vmem>>, vector<144x128xbf16>
    %cst = arith.constant dense<0.000000e+00> : vector<64x128xf32>
    %2 = tpu.matmul %0, %1, %cst {dimension_numbers = #tpu.dot_dimension_numbers<[1], [0], [0], [1], [0, 0, 1, 1], [], []>} : vector<64x144xbf16>, vector<144x128xbf16>, vector<64x128xf32> -> vector<64x128xf32>
    %c0_3 = arith.constant 0 : index
    %c0_4 = arith.constant 0 : index
    %3 = vector.load %arg3[%c0_3, %c0_4] : memref<1x128xf32, #tpu.memory_space<vmem>>, vector<1x128xf32>
    %4 = vector.broadcast %3 : vector<1x128xf32> to vector<64x128xf32>
    %5 = arith.mulf %2, %4 : vector<64x128xf32>
    %c0_5 = arith.constant 0 : index
    %c0_6 = arith.constant 0 : index
    %6 = vector.load %arg4[%c0_5, %c0_6] : memref<1x128xf32, #tpu.memory_space<vmem>>, vector<1x128xf32>
    %7 = vector.broadcast %6 : vector<1x128xf32> to vector<64x128xf32>
    %8 = arith.addf %5, %7 : vector<64x128xf32>
    %cst_7 = arith.constant 0.000000e+00 : f32
    %9 = vector.broadcast %cst_7 : f32 to vector<64x128xf32>
    %10 = arith.maximumf %8, %9 : vector<64x128xf32>
    %11 = arith.truncf %10 : vector<64x128xf32> to vector<64x128xbf16>
    %c0_8 = arith.constant 0 : index
    %c0_9 = arith.constant 0 : index
    %12 = vector.load %arg5[%c0_8, %c0_9] : memref<64x128xbf16, #tpu.memory_space<vmem>>, vector<64x128xbf16>
    tpu.vector_store %arg5[%c0_8, %c0_9], %11 {strides = array<i32>} : memref<64x128xbf16, #tpu.memory_space<vmem>>, vector<64x128xbf16>,
    return
  }
  func.func @transform_0(%arg0: i32) -> (i32, i32) {
    %c0_i32 = arith.constant 0 : i32
    %c0_i32_0 = arith.constant 0 : i32
    return %arg0, %c0_i32 : i32, i32
  }
  func.func @transform_1(%arg0: i32) -> (i32, i32) {
    %c0_i32 = arith.constant 0 : i32
    %c0_i32_0 = arith.constant 0 : i32
    %c0_i32_1 = arith.constant 0 : i32
    return %c0_i32, %c0_i32_0 : i32, i32
  }
  func.func @transform_2(%arg0: i32) -> (i32, i32) {
    %c0_i32 = arith.constant 0 : i32
    %c0_i32_0 = arith.constant 0 : i32
    %c0_i32_1 = arith.constant 0 : i32
    return %c0_i32, %c0_i32_0 : i32, i32
  }
  func.func @transform_3(%arg0: i32) -> (i32, i32) {
    %c0_i32 = arith.constant 0 : i32
    %c0_i32_0 = arith.constant 0 : i32
    %c0_i32_1 = arith.constant 0 : i32
    return %c0_i32, %c0_i32_0 : i32, i32
  }
  func.func @transform_4(%arg0: i32) -> (i32, i32) {
    %c0_i32 = arith.constant 0 : i32
    %c0_i32_0 = arith.constant 0 : i32
    return %arg0, %c0_i32 : i32, i32
  }
}

module attributes {stable_mosaic.version = 11 : i64} {
  func.func @_mm_fast_kernel(%arg0: i32, %arg1: memref<64x192xbf16, #tpu.memory_space<vmem>>, %arg2: memref<192x64xbf16, #tpu.memory_space<vmem>>, %arg3: memref<1x64xf32, #tpu.memory_space<vmem>>, %arg4: memref<1x64xf32, #tpu.memory_space<vmem>>, %arg5: memref<64x64xbf16, #tpu.memory_space<vmem>>) attributes {dimension_semantics = [#tpu.dimension_semantics<parallel>], iteration_bounds = array<i64: 2>, scalar_prefetch = 0 : i64, scratch_operands = 0 : i64, tpu.core_type = #tpu.core_type<tc>, window_params = [{transform_indices = @transform_0, window_bounds = array<i64: 64, 192>}, {pipeline_mode = #tpu.pipeline_mode<synchronous>, transform_indices = @transform_1, window_bounds = array<i64: 192, 64>}, {pipeline_mode = #tpu.pipeline_mode<synchronous>, transform_indices = @transform_2, window_bounds = array<i64: 1, 64>}, {pipeline_mode = #tpu.pipeline_mode<synchronous>, transform_indices = @transform_3, window_bounds = array<i64: 1, 64>}, {transform_indices = @transform_4, window_bounds = array<i64: 64, 64>}]} {
    %c0 = arith.constant 0 : index
    %c0_0 = arith.constant 0 : index
    %0 = vector.load %arg1[%c0, %c0_0] : memref<64x192xbf16, #tpu.memory_space<vmem>>, vector<64x192xbf16>
    %c0_1 = arith.constant 0 : index
    %c0_2 = arith.constant 0 : index
    %1 = vector.load %arg2[%c0_1, %c0_2] : memref<192x64xbf16, #tpu.memory_space<vmem>>, vector<192x64xbf16>
    %cst = arith.constant dense<0.000000e+00> : vector<64x64xf32>
    %2 = tpu.matmul %0, %1, %cst {dimension_numbers = #tpu.dot_dimension_numbers<[1], [0], [0], [1], [0, 0, 1, 1], [], []>} : vector<64x192xbf16>, vector<192x64xbf16>, vector<64x64xf32> -> vector<64x64xf32>
    %c0_3 = arith.constant 0 : index
    %c0_4 = arith.constant 0 : index
    %3 = vector.load %arg3[%c0_3, %c0_4] : memref<1x64xf32, #tpu.memory_space<vmem>>, vector<1x64xf32>
    %4 = vector.broadcast %3 : vector<1x64xf32> to vector<64x64xf32>
    %5 = arith.mulf %2, %4 : vector<64x64xf32>
    %c0_5 = arith.constant 0 : index
    %c0_6 = arith.constant 0 : index
    %6 = vector.load %arg4[%c0_5, %c0_6] : memref<1x64xf32, #tpu.memory_space<vmem>>, vector<1x64xf32>
    %7 = vector.broadcast %6 : vector<1x64xf32> to vector<64x64xf32>
    %8 = arith.addf %5, %7 : vector<64x64xf32>
    %cst_7 = arith.constant 0.000000e+00 : f32
    %9 = vector.broadcast %cst_7 : f32 to vector<64x64xf32>
    %10 = arith.maximumf %8, %9 : vector<64x64xf32>
    %11 = arith.truncf %10 : vector<64x64xf32> to vector<64x64xbf16>
    %c0_8 = arith.constant 0 : index
    %c0_9 = arith.constant 0 : index
    %12 = vector.load %arg5[%c0_8, %c0_9] : memref<64x64xbf16, #tpu.memory_space<vmem>>, vector<64x64xbf16>
    tpu.vector_store %arg5[%c0_8, %c0_9], %11 {strides = array<i32>} : memref<64x64xbf16, #tpu.memory_space<vmem>>, vector<64x64xbf16>,
    return
  }
  func.func @transform_0(%arg0: i32) -> (i32, i32) {
    %c0_i32 = arith.constant 0 : i32
    %c0_i32_0 = arith.constant 0 : i32
    return %arg0, %c0_i32 : i32, i32
  }
  func.func @transform_1(%arg0: i32) -> (i32, i32) {
    %c0_i32 = arith.constant 0 : i32
    %c0_i32_0 = arith.constant 0 : i32
    %c0_i32_1 = arith.constant 0 : i32
    return %c0_i32, %c0_i32_0 : i32, i32
  }
  func.func @transform_2(%arg0: i32) -> (i32, i32) {
    %c0_i32 = arith.constant 0 : i32
    %c0_i32_0 = arith.constant 0 : i32
    %c0_i32_1 = arith.constant 0 : i32
    return %c0_i32, %c0_i32_0 : i32, i32
  }
  func.func @transform_3(%arg0: i32) -> (i32, i32) {
    %c0_i32 = arith.constant 0 : i32
    %c0_i32_0 = arith.constant 0 : i32
    %c0_i32_1 = arith.constant 0 : i32
    return %c0_i32, %c0_i32_0 : i32, i32
  }
  func.func @transform_4(%arg0: i32) -> (i32, i32) {
    %c0_i32 = arith.constant 0 : i32
    %c0_i32_0 = arith.constant 0 : i32
    return %arg0, %c0_i32 : i32, i32
  }
}

module attributes {stable_mosaic.version = 11 : i64} {
  func.func @_mm_fast_res_kernel(%arg0: i32, %arg1: memref<64x192xbf16, #tpu.memory_space<vmem>>, %arg2: memref<192x64xbf16, #tpu.memory_space<vmem>>, %arg3: memref<1x64xf32, #tpu.memory_space<vmem>>, %arg4: memref<1x64xf32, #tpu.memory_space<vmem>>, %arg5: memref<64x64xbf16, #tpu.memory_space<vmem>>, %arg6: memref<64x64xbf16, #tpu.memory_space<vmem>>) attributes {dimension_semantics = [#tpu.dimension_semantics<parallel>], iteration_bounds = array<i64: 2>, scalar_prefetch = 0 : i64, scratch_operands = 0 : i64, tpu.core_type = #tpu.core_type<tc>, window_params = [{transform_indices = @transform_0, window_bounds = array<i64: 64, 192>}, {pipeline_mode = #tpu.pipeline_mode<synchronous>, transform_indices = @transform_1, window_bounds = array<i64: 192, 64>}, {pipeline_mode = #tpu.pipeline_mode<synchronous>, transform_indices = @transform_2, window_bounds = array<i64: 1, 64>}, {pipeline_mode = #tpu.pipeline_mode<synchronous>, transform_indices = @transform_3, window_bounds = array<i64: 1, 64>}, {transform_indices = @transform_4, window_bounds = array<i64: 64, 64>}, {transform_indices = @transform_5, window_bounds = array<i64: 64, 64>}]} {
    %c0 = arith.constant 0 : index
    %c0_0 = arith.constant 0 : index
    %0 = vector.load %arg1[%c0, %c0_0] : memref<64x192xbf16, #tpu.memory_space<vmem>>, vector<64x192xbf16>
    %c0_1 = arith.constant 0 : index
    %c0_2 = arith.constant 0 : index
    %1 = vector.load %arg2[%c0_1, %c0_2] : memref<192x64xbf16, #tpu.memory_space<vmem>>, vector<192x64xbf16>
    %cst = arith.constant dense<0.000000e+00> : vector<64x64xf32>
    %2 = tpu.matmul %0, %1, %cst {dimension_numbers = #tpu.dot_dimension_numbers<[1], [0], [0], [1], [0, 0, 1, 1], [], []>} : vector<64x192xbf16>, vector<192x64xbf16>, vector<64x64xf32> -> vector<64x64xf32>
    %c0_3 = arith.constant 0 : index
    %c0_4 = arith.constant 0 : index
    %3 = vector.load %arg3[%c0_3, %c0_4] : memref<1x64xf32, #tpu.memory_space<vmem>>, vector<1x64xf32>
    %4 = vector.broadcast %3 : vector<1x64xf32> to vector<64x64xf32>
    %5 = arith.mulf %2, %4 : vector<64x64xf32>
    %c0_5 = arith.constant 0 : index
    %c0_6 = arith.constant 0 : index
    %6 = vector.load %arg4[%c0_5, %c0_6] : memref<1x64xf32, #tpu.memory_space<vmem>>, vector<1x64xf32>
    %7 = vector.broadcast %6 : vector<1x64xf32> to vector<64x64xf32>
    %8 = arith.addf %5, %7 : vector<64x64xf32>
    %c0_7 = arith.constant 0 : index
    %c0_8 = arith.constant 0 : index
    %9 = vector.load %arg5[%c0_7, %c0_8] : memref<64x64xbf16, #tpu.memory_space<vmem>>, vector<64x64xbf16>
    %10 = arith.extf %9 : vector<64x64xbf16> to vector<64x64xf32>
    %11 = arith.addf %8, %10 : vector<64x64xf32>
    %cst_9 = arith.constant 0.000000e+00 : f32
    %12 = vector.broadcast %cst_9 : f32 to vector<64x64xf32>
    %13 = arith.maximumf %11, %12 : vector<64x64xf32>
    %14 = arith.truncf %13 : vector<64x64xf32> to vector<64x64xbf16>
    %c0_10 = arith.constant 0 : index
    %c0_11 = arith.constant 0 : index
    %15 = vector.load %arg6[%c0_10, %c0_11] : memref<64x64xbf16, #tpu.memory_space<vmem>>, vector<64x64xbf16>
    tpu.vector_store %arg6[%c0_10, %c0_11], %14 {strides = array<i32>} : memref<64x64xbf16, #tpu.memory_space<vmem>>, vector<64x64xbf16>,
    return
  }
  func.func @transform_0(%arg0: i32) -> (i32, i32) {
    %c0_i32 = arith.constant 0 : i32
    %c0_i32_0 = arith.constant 0 : i32
    return %arg0, %c0_i32 : i32, i32
  }
  func.func @transform_1(%arg0: i32) -> (i32, i32) {
    %c0_i32 = arith.constant 0 : i32
    %c0_i32_0 = arith.constant 0 : i32
    %c0_i32_1 = arith.constant 0 : i32
    return %c0_i32, %c0_i32_0 : i32, i32
  }
  func.func @transform_2(%arg0: i32) -> (i32, i32) {
    %c0_i32 = arith.constant 0 : i32
    %c0_i32_0 = arith.constant 0 : i32
    %c0_i32_1 = arith.constant 0 : i32
    return %c0_i32, %c0_i32_0 : i32, i32
  }
  func.func @transform_3(%arg0: i32) -> (i32, i32) {
    %c0_i32 = arith.constant 0 : i32
    %c0_i32_0 = arith.constant 0 : i32
    %c0_i32_1 = arith.constant 0 : i32
    return %c0_i32, %c0_i32_0 : i32, i32
  }
  func.func @transform_4(%arg0: i32) -> (i32, i32) {
    %c0_i32 = arith.constant 0 : i32
    %c0_i32_0 = arith.constant 0 : i32
    return %arg0, %c0_i32 : i32, i32
  }
  func.func @transform_5(%arg0: i32) -> (i32, i32) {
    %c0_i32 = arith.constant 0 : i32
    %c0_i32_0 = arith.constant 0 : i32
    return %arg0, %c0_i32 : i32, i32
  }
}

module attributes {stable_mosaic.version = 11 : i64} {
  func.func @_mm_fast_kernel(%arg0: i32, %arg1: memref<16x576xbf16, #tpu.memory_space<vmem>>, %arg2: memref<576x64xbf16, #tpu.memory_space<vmem>>, %arg3: memref<1x64xf32, #tpu.memory_space<vmem>>, %arg4: memref<1x64xf32, #tpu.memory_space<vmem>>, %arg5: memref<16x64xbf16, #tpu.memory_space<vmem>>) attributes {dimension_semantics = [#tpu.dimension_semantics<parallel>], iteration_bounds = array<i64: 2>, scalar_prefetch = 0 : i64, scratch_operands = 0 : i64, tpu.core_type = #tpu.core_type<tc>, window_params = [{transform_indices = @transform_0, window_bounds = array<i64: 16, 576>}, {pipeline_mode = #tpu.pipeline_mode<synchronous>, transform_indices = @transform_1, window_bounds = array<i64: 576, 64>}, {pipeline_mode = #tpu.pipeline_mode<synchronous>, transform_indices = @transform_2, window_bounds = array<i64: 1, 64>}, {pipeline_mode = #tpu.pipeline_mode<synchronous>, transform_indices = @transform_3, window_bounds = array<i64: 1, 64>}, {transform_indices = @transform_4, window_bounds = array<i64: 16, 64>}]} {
    %c0 = arith.constant 0 : index
    %c0_0 = arith.constant 0 : index
    %0 = vector.load %arg1[%c0, %c0_0] : memref<16x576xbf16, #tpu.memory_space<vmem>>, vector<16x576xbf16>
    %c0_1 = arith.constant 0 : index
    %c0_2 = arith.constant 0 : index
    %1 = vector.load %arg2[%c0_1, %c0_2] : memref<576x64xbf16, #tpu.memory_space<vmem>>, vector<576x64xbf16>
    %cst = arith.constant dense<0.000000e+00> : vector<16x64xf32>
    %2 = tpu.matmul %0, %1, %cst {dimension_numbers = #tpu.dot_dimension_numbers<[1], [0], [0], [1], [0, 0, 1, 1], [], []>} : vector<16x576xbf16>, vector<576x64xbf16>, vector<16x64xf32> -> vector<16x64xf32>
    %c0_3 = arith.constant 0 : index
    %c0_4 = arith.constant 0 : index
    %3 = vector.load %arg3[%c0_3, %c0_4] : memref<1x64xf32, #tpu.memory_space<vmem>>, vector<1x64xf32>
    %4 = vector.broadcast %3 : vector<1x64xf32> to vector<16x64xf32>
    %5 = arith.mulf %2, %4 : vector<16x64xf32>
    %c0_5 = arith.constant 0 : index
    %c0_6 = arith.constant 0 : index
    %6 = vector.load %arg4[%c0_5, %c0_6] : memref<1x64xf32, #tpu.memory_space<vmem>>, vector<1x64xf32>
    %7 = vector.broadcast %6 : vector<1x64xf32> to vector<16x64xf32>
    %8 = arith.addf %5, %7 : vector<16x64xf32>
    %cst_7 = arith.constant 0.000000e+00 : f32
    %9 = vector.broadcast %cst_7 : f32 to vector<16x64xf32>
    %10 = arith.maximumf %8, %9 : vector<16x64xf32>
    %11 = arith.truncf %10 : vector<16x64xf32> to vector<16x64xbf16>
    %c0_8 = arith.constant 0 : index
    %c0_9 = arith.constant 0 : index
    %12 = vector.load %arg5[%c0_8, %c0_9] : memref<16x64xbf16, #tpu.memory_space<vmem>>, vector<16x64xbf16>
    tpu.vector_store %arg5[%c0_8, %c0_9], %11 {strides = array<i32>} : memref<16x64xbf16, #tpu.memory_space<vmem>>, vector<16x64xbf16>,
    return
  }
  func.func @transform_0(%arg0: i32) -> (i32, i32) {
    %c0_i32 = arith.constant 0 : i32
    %c0_i32_0 = arith.constant 0 : i32
    return %arg0, %c0_i32 : i32, i32
  }
  func.func @transform_1(%arg0: i32) -> (i32, i32) {
    %c0_i32 = arith.constant 0 : i32
    %c0_i32_0 = arith.constant 0 : i32
    %c0_i32_1 = arith.constant 0 : i32
    return %c0_i32, %c0_i32_0 : i32, i32
  }
  func.func @transform_2(%arg0: i32) -> (i32, i32) {
    %c0_i32 = arith.constant 0 : i32
    %c0_i32_0 = arith.constant 0 : i32
    %c0_i32_1 = arith.constant 0 : i32
    return %c0_i32, %c0_i32_0 : i32, i32
  }
  func.func @transform_3(%arg0: i32) -> (i32, i32) {
    %c0_i32 = arith.constant 0 : i32
    %c0_i32_0 = arith.constant 0 : i32
    %c0_i32_1 = arith.constant 0 : i32
    return %c0_i32, %c0_i32_0 : i32, i32
  }
  func.func @transform_4(%arg0: i32) -> (i32, i32) {
    %c0_i32 = arith.constant 0 : i32
    %c0_i32_0 = arith.constant 0 : i32
    return %arg0, %c0_i32 : i32, i32
  }
}

module attributes {stable_mosaic.version = 11 : i64} {
  func.func @_mm_fast_kernel(%arg0: i32, %arg1: memref<16x384xbf16, #tpu.memory_space<vmem>>, %arg2: memref<384x128xbf16, #tpu.memory_space<vmem>>, %arg3: memref<1x128xf32, #tpu.memory_space<vmem>>, %arg4: memref<1x128xf32, #tpu.memory_space<vmem>>, %arg5: memref<16x128xbf16, #tpu.memory_space<vmem>>) attributes {dimension_semantics = [#tpu.dimension_semantics<parallel>], iteration_bounds = array<i64: 2>, scalar_prefetch = 0 : i64, scratch_operands = 0 : i64, tpu.core_type = #tpu.core_type<tc>, window_params = [{transform_indices = @transform_0, window_bounds = array<i64: 16, 384>}, {pipeline_mode = #tpu.pipeline_mode<synchronous>, transform_indices = @transform_1, window_bounds = array<i64: 384, 128>}, {pipeline_mode = #tpu.pipeline_mode<synchronous>, transform_indices = @transform_2, window_bounds = array<i64: 1, 128>}, {pipeline_mode = #tpu.pipeline_mode<synchronous>, transform_indices = @transform_3, window_bounds = array<i64: 1, 128>}, {transform_indices = @transform_4, window_bounds = array<i64: 16, 128>}]} {
    %c0 = arith.constant 0 : index
    %c0_0 = arith.constant 0 : index
    %0 = vector.load %arg1[%c0, %c0_0] : memref<16x384xbf16, #tpu.memory_space<vmem>>, vector<16x384xbf16>
    %c0_1 = arith.constant 0 : index
    %c0_2 = arith.constant 0 : index
    %1 = vector.load %arg2[%c0_1, %c0_2] : memref<384x128xbf16, #tpu.memory_space<vmem>>, vector<384x128xbf16>
    %cst = arith.constant dense<0.000000e+00> : vector<16x128xf32>
    %2 = tpu.matmul %0, %1, %cst {dimension_numbers = #tpu.dot_dimension_numbers<[1], [0], [0], [1], [0, 0, 1, 1], [], []>} : vector<16x384xbf16>, vector<384x128xbf16>, vector<16x128xf32> -> vector<16x128xf32>
    %c0_3 = arith.constant 0 : index
    %c0_4 = arith.constant 0 : index
    %3 = vector.load %arg3[%c0_3, %c0_4] : memref<1x128xf32, #tpu.memory_space<vmem>>, vector<1x128xf32>
    %4 = vector.broadcast %3 : vector<1x128xf32> to vector<16x128xf32>
    %5 = arith.mulf %2, %4 : vector<16x128xf32>
    %c0_5 = arith.constant 0 : index
    %c0_6 = arith.constant 0 : index
    %6 = vector.load %arg4[%c0_5, %c0_6] : memref<1x128xf32, #tpu.memory_space<vmem>>, vector<1x128xf32>
    %7 = vector.broadcast %6 : vector<1x128xf32> to vector<16x128xf32>
    %8 = arith.addf %5, %7 : vector<16x128xf32>
    %cst_7 = arith.constant 0.000000e+00 : f32
    %9 = vector.broadcast %cst_7 : f32 to vector<16x128xf32>
    %10 = arith.maximumf %8, %9 : vector<16x128xf32>
    %11 = arith.truncf %10 : vector<16x128xf32> to vector<16x128xbf16>
    %c0_8 = arith.constant 0 : index
    %c0_9 = arith.constant 0 : index
    %12 = vector.load %arg5[%c0_8, %c0_9] : memref<16x128xbf16, #tpu.memory_space<vmem>>, vector<16x128xbf16>
    tpu.vector_store %arg5[%c0_8, %c0_9], %11 {strides = array<i32>} : memref<16x128xbf16, #tpu.memory_space<vmem>>, vector<16x128xbf16>,
    return
  }
  func.func @transform_0(%arg0: i32) -> (i32, i32) {
    %c0_i32 = arith.constant 0 : i32
    %c0_i32_0 = arith.constant 0 : i32
    return %arg0, %c0_i32 : i32, i32
  }
  func.func @transform_1(%arg0: i32) -> (i32, i32) {
    %c0_i32 = arith.constant 0 : i32
    %c0_i32_0 = arith.constant 0 : i32
    %c0_i32_1 = arith.constant 0 : i32
    return %c0_i32, %c0_i32_0 : i32, i32
  }
  func.func @transform_2(%arg0: i32) -> (i32, i32) {
    %c0_i32 = arith.constant 0 : i32
    %c0_i32_0 = arith.constant 0 : i32
    %c0_i32_1 = arith.constant 0 : i32
    return %c0_i32, %c0_i32_0 : i32, i32
  }
  func.func @transform_3(%arg0: i32) -> (i32, i32) {
    %c0_i32 = arith.constant 0 : i32
    %c0_i32_0 = arith.constant 0 : i32
    %c0_i32_1 = arith.constant 0 : i32
    return %c0_i32, %c0_i32_0 : i32, i32
  }
  func.func @transform_4(%arg0: i32) -> (i32, i32) {
    %c0_i32 = arith.constant 0 : i32
    %c0_i32_0 = arith.constant 0 : i32
    return %arg0, %c0_i32 : i32, i32
  }
}

module attributes {stable_mosaic.version = 11 : i64} {
  func.func @_mm_fast_res_kernel(%arg0: i32, %arg1: memref<16x384xbf16, #tpu.memory_space<vmem>>, %arg2: memref<384x128xbf16, #tpu.memory_space<vmem>>, %arg3: memref<1x128xf32, #tpu.memory_space<vmem>>, %arg4: memref<1x128xf32, #tpu.memory_space<vmem>>, %arg5: memref<16x128xbf16, #tpu.memory_space<vmem>>, %arg6: memref<16x128xbf16, #tpu.memory_space<vmem>>) attributes {dimension_semantics = [#tpu.dimension_semantics<parallel>], iteration_bounds = array<i64: 2>, scalar_prefetch = 0 : i64, scratch_operands = 0 : i64, tpu.core_type = #tpu.core_type<tc>, window_params = [{transform_indices = @transform_0, window_bounds = array<i64: 16, 384>}, {pipeline_mode = #tpu.pipeline_mode<synchronous>, transform_indices = @transform_1, window_bounds = array<i64: 384, 128>}, {pipeline_mode = #tpu.pipeline_mode<synchronous>, transform_indices = @transform_2, window_bounds = array<i64: 1, 128>}, {pipeline_mode = #tpu.pipeline_mode<synchronous>, transform_indices = @transform_3, window_bounds = array<i64: 1, 128>}, {transform_indices = @transform_4, window_bounds = array<i64: 16, 128>}, {transform_indices = @transform_5, window_bounds = array<i64: 16, 128>}]} {
    %c0 = arith.constant 0 : index
    %c0_0 = arith.constant 0 : index
    %0 = vector.load %arg1[%c0, %c0_0] : memref<16x384xbf16, #tpu.memory_space<vmem>>, vector<16x384xbf16>
    %c0_1 = arith.constant 0 : index
    %c0_2 = arith.constant 0 : index
    %1 = vector.load %arg2[%c0_1, %c0_2] : memref<384x128xbf16, #tpu.memory_space<vmem>>, vector<384x128xbf16>
    %cst = arith.constant dense<0.000000e+00> : vector<16x128xf32>
    %2 = tpu.matmul %0, %1, %cst {dimension_numbers = #tpu.dot_dimension_numbers<[1], [0], [0], [1], [0, 0, 1, 1], [], []>} : vector<16x384xbf16>, vector<384x128xbf16>, vector<16x128xf32> -> vector<16x128xf32>
    %c0_3 = arith.constant 0 : index
    %c0_4 = arith.constant 0 : index
    %3 = vector.load %arg3[%c0_3, %c0_4] : memref<1x128xf32, #tpu.memory_space<vmem>>, vector<1x128xf32>
    %4 = vector.broadcast %3 : vector<1x128xf32> to vector<16x128xf32>
    %5 = arith.mulf %2, %4 : vector<16x128xf32>
    %c0_5 = arith.constant 0 : index
    %c0_6 = arith.constant 0 : index
    %6 = vector.load %arg4[%c0_5, %c0_6] : memref<1x128xf32, #tpu.memory_space<vmem>>, vector<1x128xf32>
    %7 = vector.broadcast %6 : vector<1x128xf32> to vector<16x128xf32>
    %8 = arith.addf %5, %7 : vector<16x128xf32>
    %c0_7 = arith.constant 0 : index
    %c0_8 = arith.constant 0 : index
    %9 = vector.load %arg5[%c0_7, %c0_8] : memref<16x128xbf16, #tpu.memory_space<vmem>>, vector<16x128xbf16>
    %10 = arith.extf %9 : vector<16x128xbf16> to vector<16x128xf32>
    %11 = arith.addf %8, %10 : vector<16x128xf32>
    %cst_9 = arith.constant 0.000000e+00 : f32
    %12 = vector.broadcast %cst_9 : f32 to vector<16x128xf32>
    %13 = arith.maximumf %11, %12 : vector<16x128xf32>
    %14 = arith.truncf %13 : vector<16x128xf32> to vector<16x128xbf16>
    %c0_10 = arith.constant 0 : index
    %c0_11 = arith.constant 0 : index
    %15 = vector.load %arg6[%c0_10, %c0_11] : memref<16x128xbf16, #tpu.memory_space<vmem>>, vector<16x128xbf16>
    tpu.vector_store %arg6[%c0_10, %c0_11], %14 {strides = array<i32>} : memref<16x128xbf16, #tpu.memory_space<vmem>>, vector<16x128xbf16>,
    return
  }
  func.func @transform_0(%arg0: i32) -> (i32, i32) {
    %c0_i32 = arith.constant 0 : i32
    %c0_i32_0 = arith.constant 0 : i32
    return %arg0, %c0_i32 : i32, i32
  }
  func.func @transform_1(%arg0: i32) -> (i32, i32) {
    %c0_i32 = arith.constant 0 : i32
    %c0_i32_0 = arith.constant 0 : i32
    %c0_i32_1 = arith.constant 0 : i32
    return %c0_i32, %c0_i32_0 : i32, i32
  }
  func.func @transform_2(%arg0: i32) -> (i32, i32) {
    %c0_i32 = arith.constant 0 : i32
    %c0_i32_0 = arith.constant 0 : i32
    %c0_i32_1 = arith.constant 0 : i32
    return %c0_i32, %c0_i32_0 : i32, i32
  }
  func.func @transform_3(%arg0: i32) -> (i32, i32) {
    %c0_i32 = arith.constant 0 : i32
    %c0_i32_0 = arith.constant 0 : i32
    %c0_i32_1 = arith.constant 0 : i32
    return %c0_i32, %c0_i32_0 : i32, i32
  }
  func.func @transform_4(%arg0: i32) -> (i32, i32) {
    %c0_i32 = arith.constant 0 : i32
    %c0_i32_0 = arith.constant 0 : i32
    return %arg0, %c0_i32 : i32, i32
  }
  func.func @transform_5(%arg0: i32) -> (i32, i32) {
    %c0_i32 = arith.constant 0 : i32
    %c0_i32_0 = arith.constant 0 : i32
    return %arg0, %c0_i32 : i32, i32
  }
}

module attributes {stable_mosaic.version = 11 : i64} {
  func.func @_mm_fast_kernel(%arg0: i32, %arg1: memref<16x512xbf16, #tpu.memory_space<vmem>>, %arg2: memref<512x256xbf16, #tpu.memory_space<vmem>>, %arg3: memref<1x256xf32, #tpu.memory_space<vmem>>, %arg4: memref<1x256xf32, #tpu.memory_space<vmem>>, %arg5: memref<16x256xbf16, #tpu.memory_space<vmem>>) attributes {dimension_semantics = [#tpu.dimension_semantics<parallel>], iteration_bounds = array<i64: 2>, scalar_prefetch = 0 : i64, scratch_operands = 0 : i64, tpu.core_type = #tpu.core_type<tc>, window_params = [{transform_indices = @transform_0, window_bounds = array<i64: 16, 512>}, {pipeline_mode = #tpu.pipeline_mode<synchronous>, transform_indices = @transform_1, window_bounds = array<i64: 512, 256>}, {pipeline_mode = #tpu.pipeline_mode<synchronous>, transform_indices = @transform_2, window_bounds = array<i64: 1, 256>}, {pipeline_mode = #tpu.pipeline_mode<synchronous>, transform_indices = @transform_3, window_bounds = array<i64: 1, 256>}, {transform_indices = @transform_4, window_bounds = array<i64: 16, 256>}]} {
    %c0 = arith.constant 0 : index
    %c0_0 = arith.constant 0 : index
    %0 = vector.load %arg1[%c0, %c0_0] : memref<16x512xbf16, #tpu.memory_space<vmem>>, vector<16x512xbf16>
    %c0_1 = arith.constant 0 : index
    %c0_2 = arith.constant 0 : index
    %1 = vector.load %arg2[%c0_1, %c0_2] : memref<512x256xbf16, #tpu.memory_space<vmem>>, vector<512x256xbf16>
    %cst = arith.constant dense<0.000000e+00> : vector<16x256xf32>
    %2 = tpu.matmul %0, %1, %cst {dimension_numbers = #tpu.dot_dimension_numbers<[1], [0], [0], [1], [0, 0, 1, 1], [], []>} : vector<16x512xbf16>, vector<512x256xbf16>, vector<16x256xf32> -> vector<16x256xf32>
    %c0_3 = arith.constant 0 : index
    %c0_4 = arith.constant 0 : index
    %3 = vector.load %arg3[%c0_3, %c0_4] : memref<1x256xf32, #tpu.memory_space<vmem>>, vector<1x256xf32>
    %4 = vector.broadcast %3 : vector<1x256xf32> to vector<16x256xf32>
    %5 = arith.mulf %2, %4 : vector<16x256xf32>
    %c0_5 = arith.constant 0 : index
    %c0_6 = arith.constant 0 : index
    %6 = vector.load %arg4[%c0_5, %c0_6] : memref<1x256xf32, #tpu.memory_space<vmem>>, vector<1x256xf32>
    %7 = vector.broadcast %6 : vector<1x256xf32> to vector<16x256xf32>
    %8 = arith.addf %5, %7 : vector<16x256xf32>
    %cst_7 = arith.constant 0.000000e+00 : f32
    %9 = vector.broadcast %cst_7 : f32 to vector<16x256xf32>
    %10 = arith.maximumf %8, %9 : vector<16x256xf32>
    %11 = arith.truncf %10 : vector<16x256xf32> to vector<16x256xbf16>
    %c0_8 = arith.constant 0 : index
    %c0_9 = arith.constant 0 : index
    %12 = vector.load %arg5[%c0_8, %c0_9] : memref<16x256xbf16, #tpu.memory_space<vmem>>, vector<16x256xbf16>
    tpu.vector_store %arg5[%c0_8, %c0_9], %11 {strides = array<i32>} : memref<16x256xbf16, #tpu.memory_space<vmem>>, vector<16x256xbf16>,
    return
  }
  func.func @transform_0(%arg0: i32) -> (i32, i32) {
    %c0_i32 = arith.constant 0 : i32
    %c0_i32_0 = arith.constant 0 : i32
    return %arg0, %c0_i32 : i32, i32
  }
  func.func @transform_1(%arg0: i32) -> (i32, i32) {
    %c0_i32 = arith.constant 0 : i32
    %c0_i32_0 = arith.constant 0 : i32
    %c0_i32_1 = arith.constant 0 : i32
    return %c0_i32, %c0_i32_0 : i32, i32
  }
  func.func @transform_2(%arg0: i32) -> (i32, i32) {
    %c0_i32 = arith.constant 0 : i32
    %c0_i32_0 = arith.constant 0 : i32
    %c0_i32_1 = arith.constant 0 : i32
    return %c0_i32, %c0_i32_0 : i32, i32
  }
  func.func @transform_3(%arg0: i32) -> (i32, i32) {
    %c0_i32 = arith.constant 0 : i32
    %c0_i32_0 = arith.constant 0 : i32
    %c0_i32_1 = arith.constant 0 : i32
    return %c0_i32, %c0_i32_0 : i32, i32
  }
  func.func @transform_4(%arg0: i32) -> (i32, i32) {
    %c0_i32 = arith.constant 0 : i32
    %c0_i32_0 = arith.constant 0 : i32
    return %arg0, %c0_i32 : i32, i32
  }
}

module attributes {stable_mosaic.version = 11 : i64} {
  func.func @_mm_fast_kernel(%arg0: i32, %arg1: memref<64x256xbf16, #tpu.memory_space<vmem>>, %arg2: memref<256x64xbf16, #tpu.memory_space<vmem>>, %arg3: memref<1x64xf32, #tpu.memory_space<vmem>>, %arg4: memref<1x64xf32, #tpu.memory_space<vmem>>, %arg5: memref<64x64xbf16, #tpu.memory_space<vmem>>) attributes {dimension_semantics = [#tpu.dimension_semantics<parallel>], iteration_bounds = array<i64: 2>, scalar_prefetch = 0 : i64, scratch_operands = 0 : i64, tpu.core_type = #tpu.core_type<tc>, window_params = [{transform_indices = @transform_0, window_bounds = array<i64: 64, 256>}, {pipeline_mode = #tpu.pipeline_mode<synchronous>, transform_indices = @transform_1, window_bounds = array<i64: 256, 64>}, {pipeline_mode = #tpu.pipeline_mode<synchronous>, transform_indices = @transform_2, window_bounds = array<i64: 1, 64>}, {pipeline_mode = #tpu.pipeline_mode<synchronous>, transform_indices = @transform_3, window_bounds = array<i64: 1, 64>}, {transform_indices = @transform_4, window_bounds = array<i64: 64, 64>}]} {
    %c0 = arith.constant 0 : index
    %c0_0 = arith.constant 0 : index
    %0 = vector.load %arg1[%c0, %c0_0] : memref<64x256xbf16, #tpu.memory_space<vmem>>, vector<64x256xbf16>
    %c0_1 = arith.constant 0 : index
    %c0_2 = arith.constant 0 : index
    %1 = vector.load %arg2[%c0_1, %c0_2] : memref<256x64xbf16, #tpu.memory_space<vmem>>, vector<256x64xbf16>
    %cst = arith.constant dense<0.000000e+00> : vector<64x64xf32>
    %2 = tpu.matmul %0, %1, %cst {dimension_numbers = #tpu.dot_dimension_numbers<[1], [0], [0], [1], [0, 0, 1, 1], [], []>} : vector<64x256xbf16>, vector<256x64xbf16>, vector<64x64xf32> -> vector<64x64xf32>
    %c0_3 = arith.constant 0 : index
    %c0_4 = arith.constant 0 : index
    %3 = vector.load %arg3[%c0_3, %c0_4] : memref<1x64xf32, #tpu.memory_space<vmem>>, vector<1x64xf32>
    %4 = vector.broadcast %3 : vector<1x64xf32> to vector<64x64xf32>
    %5 = arith.mulf %2, %4 : vector<64x64xf32>
    %c0_5 = arith.constant 0 : index
    %c0_6 = arith.constant 0 : index
    %6 = vector.load %arg4[%c0_5, %c0_6] : memref<1x64xf32, #tpu.memory_space<vmem>>, vector<1x64xf32>
    %7 = vector.broadcast %6 : vector<1x64xf32> to vector<64x64xf32>
    %8 = arith.addf %5, %7 : vector<64x64xf32>
    %cst_7 = arith.constant 0.000000e+00 : f32
    %9 = vector.broadcast %cst_7 : f32 to vector<64x64xf32>
    %10 = arith.maximumf %8, %9 : vector<64x64xf32>
    %11 = arith.truncf %10 : vector<64x64xf32> to vector<64x64xbf16>
    %c0_8 = arith.constant 0 : index
    %c0_9 = arith.constant 0 : index
    %12 = vector.load %arg5[%c0_8, %c0_9] : memref<64x64xbf16, #tpu.memory_space<vmem>>, vector<64x64xbf16>
    tpu.vector_store %arg5[%c0_8, %c0_9], %11 {strides = array<i32>} : memref<64x64xbf16, #tpu.memory_space<vmem>>, vector<64x64xbf16>,
    return
  }
  func.func @transform_0(%arg0: i32) -> (i32, i32) {
    %c0_i32 = arith.constant 0 : i32
    %c0_i32_0 = arith.constant 0 : i32
    return %arg0, %c0_i32 : i32, i32
  }
  func.func @transform_1(%arg0: i32) -> (i32, i32) {
    %c0_i32 = arith.constant 0 : i32
    %c0_i32_0 = arith.constant 0 : i32
    %c0_i32_1 = arith.constant 0 : i32
    return %c0_i32, %c0_i32_0 : i32, i32
  }
  func.func @transform_2(%arg0: i32) -> (i32, i32) {
    %c0_i32 = arith.constant 0 : i32
    %c0_i32_0 = arith.constant 0 : i32
    %c0_i32_1 = arith.constant 0 : i32
    return %c0_i32, %c0_i32_0 : i32, i32
  }
  func.func @transform_3(%arg0: i32) -> (i32, i32) {
    %c0_i32 = arith.constant 0 : i32
    %c0_i32_0 = arith.constant 0 : i32
    %c0_i32_1 = arith.constant 0 : i32
    return %c0_i32, %c0_i32_0 : i32, i32
  }
  func.func @transform_4(%arg0: i32) -> (i32, i32) {
    %c0_i32 = arith.constant 0 : i32
    %c0_i32_0 = arith.constant 0 : i32
    return %arg0, %c0_i32 : i32, i32
  }
}

module attributes {stable_mosaic.version = 11 : i64} {
  func.func @_mm_fast_kernel(%arg0: i32, %arg1: memref<256x48xbf16, #tpu.memory_space<vmem>>, %arg2: memref<48x128xbf16, #tpu.memory_space<vmem>>, %arg3: memref<1x128xf32, #tpu.memory_space<vmem>>, %arg4: memref<1x128xf32, #tpu.memory_space<vmem>>, %arg5: memref<256x128xbf16, #tpu.memory_space<vmem>>) attributes {dimension_semantics = [#tpu.dimension_semantics<parallel>], iteration_bounds = array<i64: 2>, scalar_prefetch = 0 : i64, scratch_operands = 0 : i64, tpu.core_type = #tpu.core_type<tc>, window_params = [{transform_indices = @transform_0, window_bounds = array<i64: 256, 48>}, {pipeline_mode = #tpu.pipeline_mode<synchronous>, transform_indices = @transform_1, window_bounds = array<i64: 48, 128>}, {pipeline_mode = #tpu.pipeline_mode<synchronous>, transform_indices = @transform_2, window_bounds = array<i64: 1, 128>}, {pipeline_mode = #tpu.pipeline_mode<synchronous>, transform_indices = @transform_3, window_bounds = array<i64: 1, 128>}, {transform_indices = @transform_4, window_bounds = array<i64: 256, 128>}]} {
    %c0 = arith.constant 0 : index
    %c0_0 = arith.constant 0 : index
    %0 = vector.load %arg1[%c0, %c0_0] : memref<256x48xbf16, #tpu.memory_space<vmem>>, vector<256x48xbf16>
    %c0_1 = arith.constant 0 : index
    %c0_2 = arith.constant 0 : index
    %1 = vector.load %arg2[%c0_1, %c0_2] : memref<48x128xbf16, #tpu.memory_space<vmem>>, vector<48x128xbf16>
    %cst = arith.constant dense<0.000000e+00> : vector<256x128xf32>
    %2 = tpu.matmul %0, %1, %cst {dimension_numbers = #tpu.dot_dimension_numbers<[1], [0], [0], [1], [0, 0, 1, 1], [], []>} : vector<256x48xbf16>, vector<48x128xbf16>, vector<256x128xf32> -> vector<256x128xf32>
    %c0_3 = arith.constant 0 : index
    %c0_4 = arith.constant 0 : index
    %3 = vector.load %arg3[%c0_3, %c0_4] : memref<1x128xf32, #tpu.memory_space<vmem>>, vector<1x128xf32>
    %4 = vector.broadcast %3 : vector<1x128xf32> to vector<256x128xf32>
    %5 = arith.mulf %2, %4 : vector<256x128xf32>
    %c0_5 = arith.constant 0 : index
    %c0_6 = arith.constant 0 : index
    %6 = vector.load %arg4[%c0_5, %c0_6] : memref<1x128xf32, #tpu.memory_space<vmem>>, vector<1x128xf32>
    %7 = vector.broadcast %6 : vector<1x128xf32> to vector<256x128xf32>
    %8 = arith.addf %5, %7 : vector<256x128xf32>
    %cst_7 = arith.constant 0.000000e+00 : f32
    %9 = vector.broadcast %cst_7 : f32 to vector<256x128xf32>
    %10 = arith.maximumf %8, %9 : vector<256x128xf32>
    %11 = arith.truncf %10 : vector<256x128xf32> to vector<256x128xbf16>
    %c0_8 = arith.constant 0 : index
    %c0_9 = arith.constant 0 : index
    %12 = vector.load %arg5[%c0_8, %c0_9] : memref<256x128xbf16, #tpu.memory_space<vmem>>, vector<256x128xbf16>
    tpu.vector_store %arg5[%c0_8, %c0_9], %11 {strides = array<i32>} : memref<256x128xbf16, #tpu.memory_space<vmem>>, vector<256x128xbf16>,
    return
  }
  func.func @transform_0(%arg0: i32) -> (i32, i32) {
    %c0_i32 = arith.constant 0 : i32
    %c0_i32_0 = arith.constant 0 : i32
    return %arg0, %c0_i32 : i32, i32
  }
  func.func @transform_1(%arg0: i32) -> (i32, i32) {
    %c0_i32 = arith.constant 0 : i32
    %c0_i32_0 = arith.constant 0 : i32
    %c0_i32_1 = arith.constant 0 : i32
    return %c0_i32, %c0_i32_0 : i32, i32
  }
  func.func @transform_2(%arg0: i32) -> (i32, i32) {
    %c0_i32 = arith.constant 0 : i32
    %c0_i32_0 = arith.constant 0 : i32
    %c0_i32_1 = arith.constant 0 : i32
    return %c0_i32, %c0_i32_0 : i32, i32
  }
  func.func @transform_3(%arg0: i32) -> (i32, i32) {
    %c0_i32 = arith.constant 0 : i32
    %c0_i32_0 = arith.constant 0 : i32
    %c0_i32_1 = arith.constant 0 : i32
    return %c0_i32, %c0_i32_0 : i32, i32
  }
  func.func @transform_4(%arg0: i32) -> (i32, i32) {
    %c0_i32 = arith.constant 0 : i32
    %c0_i32_0 = arith.constant 0 : i32
    return %arg0, %c0_i32 : i32, i32
  }
}

module attributes {stable_mosaic.version = 11 : i64} {
  func.func @_mm_fast_res_kernel(%arg0: i32, %arg1: memref<256x48xbf16, #tpu.memory_space<vmem>>, %arg2: memref<48x128xbf16, #tpu.memory_space<vmem>>, %arg3: memref<1x128xf32, #tpu.memory_space<vmem>>, %arg4: memref<1x128xf32, #tpu.memory_space<vmem>>, %arg5: memref<256x128xbf16, #tpu.memory_space<vmem>>, %arg6: memref<256x128xbf16, #tpu.memory_space<vmem>>) attributes {dimension_semantics = [#tpu.dimension_semantics<parallel>], iteration_bounds = array<i64: 2>, scalar_prefetch = 0 : i64, scratch_operands = 0 : i64, tpu.core_type = #tpu.core_type<tc>, window_params = [{transform_indices = @transform_0, window_bounds = array<i64: 256, 48>}, {pipeline_mode = #tpu.pipeline_mode<synchronous>, transform_indices = @transform_1, window_bounds = array<i64: 48, 128>}, {pipeline_mode = #tpu.pipeline_mode<synchronous>, transform_indices = @transform_2, window_bounds = array<i64: 1, 128>}, {pipeline_mode = #tpu.pipeline_mode<synchronous>, transform_indices = @transform_3, window_bounds = array<i64: 1, 128>}, {transform_indices = @transform_4, window_bounds = array<i64: 256, 128>}, {transform_indices = @transform_5, window_bounds = array<i64: 256, 128>}]} {
    %c0 = arith.constant 0 : index
    %c0_0 = arith.constant 0 : index
    %0 = vector.load %arg1[%c0, %c0_0] : memref<256x48xbf16, #tpu.memory_space<vmem>>, vector<256x48xbf16>
    %c0_1 = arith.constant 0 : index
    %c0_2 = arith.constant 0 : index
    %1 = vector.load %arg2[%c0_1, %c0_2] : memref<48x128xbf16, #tpu.memory_space<vmem>>, vector<48x128xbf16>
    %cst = arith.constant dense<0.000000e+00> : vector<256x128xf32>
    %2 = tpu.matmul %0, %1, %cst {dimension_numbers = #tpu.dot_dimension_numbers<[1], [0], [0], [1], [0, 0, 1, 1], [], []>} : vector<256x48xbf16>, vector<48x128xbf16>, vector<256x128xf32> -> vector<256x128xf32>
    %c0_3 = arith.constant 0 : index
    %c0_4 = arith.constant 0 : index
    %3 = vector.load %arg3[%c0_3, %c0_4] : memref<1x128xf32, #tpu.memory_space<vmem>>, vector<1x128xf32>
    %4 = vector.broadcast %3 : vector<1x128xf32> to vector<256x128xf32>
    %5 = arith.mulf %2, %4 : vector<256x128xf32>
    %c0_5 = arith.constant 0 : index
    %c0_6 = arith.constant 0 : index
    %6 = vector.load %arg4[%c0_5, %c0_6] : memref<1x128xf32, #tpu.memory_space<vmem>>, vector<1x128xf32>
    %7 = vector.broadcast %6 : vector<1x128xf32> to vector<256x128xf32>
    %8 = arith.addf %5, %7 : vector<256x128xf32>
    %c0_7 = arith.constant 0 : index
    %c0_8 = arith.constant 0 : index
    %9 = vector.load %arg5[%c0_7, %c0_8] : memref<256x128xbf16, #tpu.memory_space<vmem>>, vector<256x128xbf16>
    %10 = arith.extf %9 : vector<256x128xbf16> to vector<256x128xf32>
    %11 = arith.addf %8, %10 : vector<256x128xf32>
    %cst_9 = arith.constant 0.000000e+00 : f32
    %12 = vector.broadcast %cst_9 : f32 to vector<256x128xf32>
    %13 = arith.maximumf %11, %12 : vector<256x128xf32>
    %14 = arith.truncf %13 : vector<256x128xf32> to vector<256x128xbf16>
    %c0_10 = arith.constant 0 : index
    %c0_11 = arith.constant 0 : index
    %15 = vector.load %arg6[%c0_10, %c0_11] : memref<256x128xbf16, #tpu.memory_space<vmem>>, vector<256x128xbf16>
    tpu.vector_store %arg6[%c0_10, %c0_11], %14 {strides = array<i32>} : memref<256x128xbf16, #tpu.memory_space<vmem>>, vector<256x128xbf16>,
    return
  }
  func.func @transform_0(%arg0: i32) -> (i32, i32) {
    %c0_i32 = arith.constant 0 : i32
    %c0_i32_0 = arith.constant 0 : i32
    return %arg0, %c0_i32 : i32, i32
  }
  func.func @transform_1(%arg0: i32) -> (i32, i32) {
    %c0_i32 = arith.constant 0 : i32
    %c0_i32_0 = arith.constant 0 : i32
    %c0_i32_1 = arith.constant 0 : i32
    return %c0_i32, %c0_i32_0 : i32, i32
  }
  func.func @transform_2(%arg0: i32) -> (i32, i32) {
    %c0_i32 = arith.constant 0 : i32
    %c0_i32_0 = arith.constant 0 : i32
    %c0_i32_1 = arith.constant 0 : i32
    return %c0_i32, %c0_i32_0 : i32, i32
  }
  func.func @transform_3(%arg0: i32) -> (i32, i32) {
    %c0_i32 = arith.constant 0 : i32
    %c0_i32_0 = arith.constant 0 : i32
    %c0_i32_1 = arith.constant 0 : i32
    return %c0_i32, %c0_i32_0 : i32, i32
  }
  func.func @transform_4(%arg0: i32) -> (i32, i32) {
    %c0_i32 = arith.constant 0 : i32
    %c0_i32_0 = arith.constant 0 : i32
    return %arg0, %c0_i32 : i32, i32
  }
  func.func @transform_5(%arg0: i32) -> (i32, i32) {
    %c0_i32 = arith.constant 0 : i32
    %c0_i32_0 = arith.constant 0 : i32
    return %arg0, %c0_i32 : i32, i32
  }
}

module attributes {stable_mosaic.version = 11 : i64} {
  func.func @_mm_fast_kernel(%arg0: i32, %arg1: memref<256x16xbf16, #tpu.memory_space<vmem>>, %arg2: memref<16x128xbf16, #tpu.memory_space<vmem>>, %arg3: memref<1x128xf32, #tpu.memory_space<vmem>>, %arg4: memref<1x128xf32, #tpu.memory_space<vmem>>, %arg5: memref<256x128xf32, #tpu.memory_space<vmem>>) attributes {dimension_semantics = [#tpu.dimension_semantics<parallel>], iteration_bounds = array<i64: 2>, scalar_prefetch = 0 : i64, scratch_operands = 0 : i64, tpu.core_type = #tpu.core_type<tc>, window_params = [{transform_indices = @transform_0, window_bounds = array<i64: 256, 16>}, {pipeline_mode = #tpu.pipeline_mode<synchronous>, transform_indices = @transform_1, window_bounds = array<i64: 16, 128>}, {pipeline_mode = #tpu.pipeline_mode<synchronous>, transform_indices = @transform_2, window_bounds = array<i64: 1, 128>}, {pipeline_mode = #tpu.pipeline_mode<synchronous>, transform_indices = @transform_3, window_bounds = array<i64: 1, 128>}, {transform_indices = @transform_4, window_bounds = array<i64: 256, 128>}]} {
    %c0 = arith.constant 0 : index
    %c0_0 = arith.constant 0 : index
    %0 = vector.load %arg1[%c0, %c0_0] : memref<256x16xbf16, #tpu.memory_space<vmem>>, vector<256x16xbf16>
    %c0_1 = arith.constant 0 : index
    %c0_2 = arith.constant 0 : index
    %1 = vector.load %arg2[%c0_1, %c0_2] : memref<16x128xbf16, #tpu.memory_space<vmem>>, vector<16x128xbf16>
    %cst = arith.constant dense<0.000000e+00> : vector<256x128xf32>
    %2 = tpu.matmul %0, %1, %cst {dimension_numbers = #tpu.dot_dimension_numbers<[1], [0], [0], [1], [0, 0, 1, 1], [], []>} : vector<256x16xbf16>, vector<16x128xbf16>, vector<256x128xf32> -> vector<256x128xf32>
    %c0_3 = arith.constant 0 : index
    %c0_4 = arith.constant 0 : index
    %3 = vector.load %arg3[%c0_3, %c0_4] : memref<1x128xf32, #tpu.memory_space<vmem>>, vector<1x128xf32>
    %4 = vector.broadcast %3 : vector<1x128xf32> to vector<256x128xf32>
    %5 = arith.mulf %2, %4 : vector<256x128xf32>
    %c0_5 = arith.constant 0 : index
    %c0_6 = arith.constant 0 : index
    %6 = vector.load %arg4[%c0_5, %c0_6] : memref<1x128xf32, #tpu.memory_space<vmem>>, vector<1x128xf32>
    %7 = vector.broadcast %6 : vector<1x128xf32> to vector<256x128xf32>
    %8 = arith.addf %5, %7 : vector<256x128xf32>
    %c0_7 = arith.constant 0 : index
    %c0_8 = arith.constant 0 : index
    %9 = vector.load %arg5[%c0_7, %c0_8] : memref<256x128xf32, #tpu.memory_space<vmem>>, vector<256x128xf32>
    tpu.vector_store %arg5[%c0_7, %c0_8], %8 {strides = array<i32>} : memref<256x128xf32, #tpu.memory_space<vmem>>, vector<256x128xf32>,
    return
  }
  func.func @transform_0(%arg0: i32) -> (i32, i32) {
    %c0_i32 = arith.constant 0 : i32
    %c0_i32_0 = arith.constant 0 : i32
    return %arg0, %c0_i32 : i32, i32
  }
  func.func @transform_1(%arg0: i32) -> (i32, i32) {
    %c0_i32 = arith.constant 0 : i32
    %c0_i32_0 = arith.constant 0 : i32
    %c0_i32_1 = arith.constant 0 : i32
    return %c0_i32, %c0_i32_0 : i32, i32
  }
  func.func @transform_2(%arg0: i32) -> (i32, i32) {
    %c0_i32 = arith.constant 0 : i32
    %c0_i32_0 = arith.constant 0 : i32
    %c0_i32_1 = arith.constant 0 : i32
    return %c0_i32, %c0_i32_0 : i32, i32
  }
  func.func @transform_3(%arg0: i32) -> (i32, i32) {
    %c0_i32 = arith.constant 0 : i32
    %c0_i32_0 = arith.constant 0 : i32
    %c0_i32_1 = arith.constant 0 : i32
    return %c0_i32, %c0_i32_0 : i32, i32
  }
  func.func @transform_4(%arg0: i32) -> (i32, i32) {
    %c0_i32 = arith.constant 0 : i32
    %c0_i32_0 = arith.constant 0 : i32
    return %arg0, %c0_i32 : i32, i32
  }
}

</mosaic_0001>

<llo_original>
// kernel: tile.22
$region0: #{tile.22}
  #allocation0 [shape = 's32[1]{0}', space=sflag, size = 0x4, scoped, tag = 'scoped memory for tile.22']
  %s0 = inlined_call_operand.vmem [shape: f32[64], index: 0, kind: input, shape index: {}]
  %s1 = inlined_call_operand.vmem [shape: f32[4,64], index: 1, kind: output, shape index: {}]
  // Predicated region
  $region2: #{tile.22} parent=0 // pred_check
    _
  $region3: #{tile.22} parent=0 // pred_check_branch
    %3 = sbr.rel (0) target = $region5
  $region4: #{tile.22} parent=0 // pred_region
    _
  $region5: #{tile.22} parent=0 // pred_fallthru
    _
  %v4 = vld [vmem:[%s0] ss:$0 sm:$0xff]
  %5 = vst [vmem:[%s1] sm:$0xf] %v4

// kernel: tile.26
$region0: #{tile.26}
  %s0 = inlined_call_operand.vmem [shape: f32[4,64], index: 0, kind: input, shape index: {}]
  %s1 = inlined_call_operand.vmem [shape: f32[1,256], index: 1, kind: output, shape index: {}]
  $region1: #{tile.26} parent=0
    #allocation0 [shape = 'u8[8192]{0}', space=vmem, size = 0x2000, scoped, tag = 'scoped mem for output reshape']
    #allocation1 [shape = 'u8[4096]{0}', space=vmem, size = 0x1000, scoped, tag = 'scoped mem for input reshape']
    %s3 = ssub.s32 16, 1
    %v4 = vld [vmem:[%s0] sm:%s3]
    %5 = vst [vmem:[#allocation1] sm:%s3] %v4
    %s6 = smov 3
    %v7 = vld [vmem:[#allocation1] ss:$2 sm:%s6]
    %vm8 = vcmask 523264
    %9 = vst.msk [vmem:[#allocation0] ss:$8 sm:$0x3] %vm8, %v7
    %s10 = scalar_lea.vmem [#allocation1], 1
    %s11 = smov 3
    %v12 = vld [vmem:[%s10] ss:$2 sm:%s11]
    %13 = vrot.lane.b32.xlu0 %v12, 64
    %v14 = vpop.permute.xlu0 %13
    %vm15 = vcmask 1048064
    %16 = vst.msk [vmem:[#allocation0] ss:$8 sm:$0x3] %vm15, %v14
    %s18 = ssub.s32 2, 1
    %v19 = vld [vmem:[#allocation0] sm:%s18]
    %s21 = ssub.s32 2, 1
    %22 = vst [vmem:[%s1] sm:%s21] %v19
    %s23 = scalar_lea.vmem [#allocation0], 8
    %v24 = vld [vmem:[%s23] sm:%s18]
    %s26 = ssub.s32 2, 1
    %s27 = scalar_lea.vmem %s1, 1
    %28 = vst [vmem:[%s27] sm:%s26] %v24

// kernel: tile.30
$region0: #{tile.30}
  #allocation0 [shape = 's32[1]{0}', space=sflag, size = 0x4, scoped, tag = 'scoped memory for tile.30']
  %s0 = inlined_call_operand.vmem [shape: f32[16], index: 0, kind: input, shape index: {}]
  %s1 = inlined_call_operand.vmem [shape: f32[4,16], index: 1, kind: output, shape index: {}]
  // Predicated region
  $region2: #{tile.30} parent=0 // pred_check
    _
  $region3: #{tile.30} parent=0 // pred_check_branch
    %3 = sbr.rel (0) target = $region5
  $region4: #{tile.30} parent=0 // pred_region
    _
  $region5: #{tile.30} parent=0 // pred_fallthru
    _
  %v4 = vld [vmem:[%s0] ss:$0 sm:$0xff]
  %5 = vst [vmem:[%s1] sm:$0xf] %v4

// kernel: tile.34
$region0: #{tile.34}
  %s0 = inlined_call_operand.vmem [shape: f32[4,16], index: 0, kind: input, shape index: {}]
  %s1 = inlined_call_operand.vmem [shape: f32[1,64], index: 1, kind: output, shape index: {}]
  $region1: #{tile.34} parent=0
    #allocation0 [shape = 'u8[4096]{0}', space=vmem, size = 0x1000, scoped, tag = 'scoped mem for output reshape']
    #allocation1 [shape = 'u8[4096]{0}', space=vmem, size = 0x1000, scoped, tag = 'scoped mem for input reshape']
    %s3 = ssub.s32 16, 1
    %v4 = vld [vmem:[%s0] sm:%s3]
    %5 = vst [vmem:[#allocation1] sm:%s3] %v4
    %v6 = vld [vmem:[#allocation1] sm:$0x1]
    %vm7 = vcmask 130048
    %8 = vst.msk [vmem:[#allocation0] sm:$0x1] %vm7, %v6
    %s9 = scalar_lea.vmem [#allocation1], 3
    %v10 = vld [vmem:[%s9] sm:$0x1]
    %11 = vrot.lane.b32.xlu0 %v10, 48
    %v12 = vpop.permute.xlu0 %11
    %vm13 = vcmask 523648
    %14 = vst.msk [vmem:[#allocation0] sm:$0x1] %vm13, %v12
    %s15 = scalar_lea.vmem [#allocation1], 2
    %v16 = vld [vmem:[%s15] sm:$0x1]
    %17 = vrot.lane.b32.xlu0 %v16, 32
    %v18 = vpop.permute.xlu0 %17
    %vm19 = vcmask 392448
    %20 = vst.msk [vmem:[#allocation0] sm:$0x1] %vm19, %v18
    %s21 = scalar_lea.vmem [#allocation1], 1
    %v22 = vld [vmem:[%s21] sm:$0x1]
    %23 = vrot.lane.b32.xlu0 %v22, 16
    %v24 = vpop.permute.xlu0 %23
    %vm25 = vcmask 261248
    %26 = vst.msk [vmem:[#allocation0] sm:$0x1] %vm25, %v24
    %s28 = ssub.s32 2, 1
    %v29 = vld [vmem:[#allocation0] sm:%s28]
    %s31 = ssub.s32 2, 1
    %32 = vst [vmem:[%s1] sm:%s31] %v29

// kernel: _lambda_.74
$region0: #{_lambda_.74}
  #allocation0 [shape = 'u32[]', space=smem, size = 0x4, offset = 0x4, fixed_abs, tag = 'smem constant byte address 0x4 - core index']
  #allocation1 [shape = 'u32[72,128]{1,0:T(1,128)}', space=vmem, size = 0x9000, scoped, tag = 'internal scratch']
  %s0 = inlined_call_operand.vmem [shape: bf16[512,32], index: 0, kind: input, shape index: {}]
  %s1 = inlined_call_operand.vmem [shape: bf16[32,128], index: 1, kind: input, shape index: {}]
  %s2 = inlined_call_operand.vmem [shape: f32[1,128], index: 2, kind: input, shape index: {}]
  %s3 = inlined_call_operand.vmem [shape: f32[1,128], index: 3, kind: input, shape index: {}]
  %s4 = inlined_call_operand.vmem [shape: bf16[512,128], index: 4, kind: output, shape index: {}]
  %s5 = sld [smem:[#allocation0]]
  $region49: #{_lambda_.74} parent=0
    _
  %s7 = ssub.s32 1, %s5
  %s8 = scalar_select 0, %s7, %s5
  loop: start=0, step=1, limit=4
  $region2: #{_lambda_.74} parent=0 // loop_pre_header
    _
  $region3: #{_lambda_.74} parent=0 // loop_header
    %s10 = sphi 0, %s14
    %p11 = scmp.ge.s32.totalorder %s10, 4
    %s20 = sphi 0, %s22
    %s23 = sphi 0, %s20
    %s24 = sphi 0, %s23
    %s40 = sphi 0, %s24
    %s44 = sphi 0, %s44
    %s46 = sphi 0, %s44
    %s47 = sphi 0, %s46
    %s61 = sphi 0, %s47
    %s65 = sphi 0, %s65
    %s67 = sphi 0, %s65
    %s68 = sphi 0, %s67
    %s82 = sphi 0, %s68
    %s86 = sphi 0, %s86
    %s88 = sphi 0, %s86
    %s89 = sphi 0, %s88
    %s103 = sphi 0, %s89
    %s109 = sphi 0, %s111
    %s112 = sphi 0, %s109
    %s113 = sphi 0, %s112
    %s129 = sphi 0, %s113
  $region4: #{_lambda_.74} parent=0 // loop_header_branch
    %13 = sbr.rel (%p11) target = $region8
  $region5: #{_lambda_.74} parent=0 // loop_body
    %s15 = ssub.s32 %s10, 1
    %s16 = ssub.s32 %s10, 2
    %s17 = sadd.s32 %s10, 1
    %s18 = ssub.s32 %s10, %s17
    %p19 = scmp.eq.s32.totalorder %s18, 0
    %s21 = sadd.s32 %s20, 1
    %s22 = scalar_select %p19, %s20, %s21
    %p25 = pneg %p19
    %p26 = scmp.eq.s32.totalorder %s10, 1
    %p27 = por %p25, %p26
    %p28 = scmp.ne.s32.totalorder %s20, %s23
    %p29 = scmp.eq.s32.totalorder %s10, 0
    %p30 = por %p28, %p29
    %p31 = scmp.ne.s32.totalorder %s20, %s23
    %p32 = scmp.eq.s32.totalorder %s15, 1
    %p33 = por %p31, %p32
    %p34 = scmp.ne.s32.totalorder %s23, %s24
    %p35 = scmp.eq.s32.totalorder %s15, 0
    %p36 = por %p34, %p35
    %p37 = scmp.ne.s32.totalorder %s23, %s24
    %p38 = scmp.eq.s32.totalorder %s16, 1
    %p39 = por %p37, %p38
    %p41 = scmp.ne.s32.totalorder %s24, %s40
    %p42 = scmp.eq.s32.totalorder %s16, 0
    %p43 = por %p41, %p42
    %s45 = sadd.s32 %s44, 1
    %p48 = scmp.eq.s32.totalorder %s10, 1
    %p49 = scmp.ne.s32.totalorder %s44, %s46
    %p50 = scmp.eq.s32.totalorder %s10, 0
    %p51 = por %p49, %p50
    %p52 = scmp.ne.s32.totalorder %s44, %s46
    %p53 = scmp.eq.s32.totalorder %s15, 1
    %p54 = por %p52, %p53
    %p55 = scmp.ne.s32.totalorder %s46, %s47
    %p56 = scmp.eq.s32.totalorder %s15, 0
    %p57 = por %p55, %p56
    %p58 = scmp.ne.s32.totalorder %s46, %s47
    %p59 = scmp.eq.s32.totalorder %s16, 1
    %p60 = por %p58, %p59
    %p62 = scmp.ne.s32.totalorder %s47, %s61
    %p63 = scmp.eq.s32.totalorder %s16, 0
    %p64 = por %p62, %p63
    %s66 = sadd.s32 %s65, 1
    %p69 = scmp.eq.s32.totalorder %s10, 1
    %p70 = scmp.ne.s32.totalorder %s65, %s67
    %p71 = scmp.eq.s32.totalorder %s10, 0
    %p72 = por %p70, %p71
    %p73 = scmp.ne.s32.totalorder %s65, %s67
    %p74 = scmp.eq.s32.totalorder %s15, 1
    %p75 = por %p73, %p74
    %p76 = scmp.ne.s32.totalorder %s67, %s68
    %p77 = scmp.eq.s32.totalorder %s15, 0
    %p78 = por %p76, %p77
    %p79 = scmp.ne.s32.totalorder %s67, %s68
    %p80 = scmp.eq.s32.totalorder %s16, 1
    %p81 = por %p79, %p80
    %p83 = scmp.ne.s32.totalorder %s68, %s82
    %p84 = scmp.eq.s32.totalorder %s16, 0
    %p85 = por %p83, %p84
    %s87 = sadd.s32 %s86, 1
    %p90 = scmp.eq.s32.totalorder %s10, 1
    %p91 = scmp.ne.s32.totalorder %s86, %s88
    %p92 = scmp.eq.s32.totalorder %s10, 0
    %p93 = por %p91, %p92
    %p94 = scmp.ne.s32.totalorder %s86, %s88
    %p95 = scmp.eq.s32.totalorder %s15, 1
    %p96 = por %p94, %p95
    %p97 = scmp.ne.s32.totalorder %s88, %s89
    %p98 = scmp.eq.s32.totalorder %s15, 0
    %p99 = por %p97, %p98
    %p100 = scmp.ne.s32.totalorder %s88, %s89
    %p101 = scmp.eq.s32.totalorder %s16, 1
    %p102 = por %p100, %p101
    %p104 = scmp.ne.s32.totalorder %s89, %s103
    %p105 = scmp.eq.s32.totalorder %s16, 0
    %p106 = por %p104, %p105
    %s107 = ssub.s32 %s10, %s17
    %p108 = scmp.eq.s32.totalorder %s107, 0
    %s110 = sadd.s32 %s109, 1
    %s111 = scalar_select %p108, %s109, %s110
    %p114 = pneg %p108
    %p115 = scmp.eq.s32.totalorder %s10, 1
    %p116 = por %p114, %p115
    %p117 = scmp.ne.s32.totalorder %s109, %s112
    %p118 = scmp.eq.s32.totalorder %s10, 0
    %p119 = por %p117, %p118
    %p120 = scmp.ne.s32.totalorder %s109, %s112
    %p121 = scmp.eq.s32.totalorder %s15, 1
    %p122 = por %p120, %p121
    %p123 = scmp.ne.s32.totalorder %s112, %s113
    %p124 = scmp.eq.s32.totalorder %s15, 0
    %p125 = por %p123, %p124
    %p126 = scmp.ne.s32.totalorder %s112, %s113
    %p127 = scmp.eq.s32.totalorder %s16, 1
    %p128 = por %p126, %p127
    %p130 = scmp.ne.s32.totalorder %s113, %s129
    %p131 = scmp.eq.s32.totalorder %s16, 0
    %p132 = por %p130, %p131
    %p133 = scmp.le.s32.totalorder 1, %s10
    %p134 = scmp.lt.s32.totalorder %s10, 3
    %p135 = pnand %p133, %p134
    %p136 = pneg %p135
    // Predicated region
    $region9: #{_lambda_.74} parent=5 // pred_check
      _
    $region10: #{_lambda_.74} parent=5 // pred_check_branch
      %138 = sbr.rel (%p135) target = $region12
    $region11: #{_lambda_.74} parent=5 // pred_region
      %s139 = ssub.s32 %s10, 1
      // Predicated region
      $region13: #{_lambda_.74} parent=11 // pred_check
        %p140 = pneg %p57
      $region14: #{_lambda_.74} parent=11 // pred_check_branch
        %142 = sbr.rel (%p140) target = $region16
      $region15: #{_lambda_.74} parent=11 // pred_region
        _
      $region16: #{_lambda_.74} parent=11 // pred_fallthru
        _
      // Predicated region
      $region17: #{_lambda_.74} parent=11 // pred_check
        %p143 = pneg %p78
      $region18: #{_lambda_.74} parent=11 // pred_check_branch
        %145 = sbr.rel (%p143) target = $region20
      $region19: #{_lambda_.74} parent=11 // pred_region
        _
      $region20: #{_lambda_.74} parent=11 // pred_fallthru
        _
      // Predicated region
      $region21: #{_lambda_.74} parent=11 // pred_check
        %p146 = pneg %p99
      $region22: #{_lambda_.74} parent=11 // pred_check_branch
        %148 = sbr.rel (%p146) target = $region24
      $region23: #{_lambda_.74} parent=11 // pred_region
        _
      $region24: #{_lambda_.74} parent=11 // pred_fallthru
        _
    $region12: #{_lambda_.74} parent=5 // pred_fallthru
      _
    %p149 = scmp.lt.s32.totalorder %s10, 2
    // Predicated region
    $region25: #{_lambda_.74} parent=5 // pred_check
      %p150 = pneg %p149
    $region26: #{_lambda_.74} parent=5 // pred_check_branch
      %152 = sbr.rel (%p150) target = $region28
    $region27: #{_lambda_.74} parent=5 // pred_region
      // Predicated region
      $region29: #{_lambda_.74} parent=27 // pred_check
        %p153 = pneg %p30
      $region30: #{_lambda_.74} parent=27 // pred_check_branch
        %155 = sbr.rel (%p153) target = $region32
      $region31: #{_lambda_.74} parent=27 // pred_region
        %s156 = smul.u32 32, %s10
        %p157 = scmp.lt.s32.totalorder %s156, 63
        %s158 = scalar_select %p157, %s156, 63
        %s159 = smul.addr %s158, 4
        %s160 = scalar_lea.vmem %s0, %s159
        %s161 = smul.u32 32, %s10
      $region32: #{_lambda_.74} parent=27 // pred_fallthru
        _
    $region28: #{_lambda_.74} parent=5 // pred_fallthru
      _
    %p162 = scmp.le.s32.totalorder 1, %s10
    %p163 = scmp.lt.s32.totalorder %s10, 3
    %p164 = pnand %p162, %p163
    %p165 = pneg %p164
    // Predicated region
    $region33: #{_lambda_.74} parent=5 // pred_check
      _
    $region34: #{_lambda_.74} parent=5 // pred_check_branch
      %167 = sbr.rel (%p164) target = $region36
    $region35: #{_lambda_.74} parent=5 // pred_region
      %s168 = ssub.s32 %s10, 1
      %s169 = smul.u32 32, %s15
      %p170 = scmp.lt.s32.totalorder %s169, 63
      %s171 = scalar_select %p170, %s169, 63
      %s172 = smul.addr %s171, 4
      %s173 = scalar_lea.vmem %s0, %s172
      %p174 = pneg %p36
      %p175 = pneg %p33
      %p176 = pneg %p57
      %p177 = pneg %p54
      %p178 = pneg %p78
      %p179 = pneg %p75
      %p180 = pneg %p99
      %p181 = pneg %p96
      %p182 = pneg %p125
      %p183 = pneg %p122
      %s184 = smul.u32 32, %s15
      %p185 = scmp.lt.s32.totalorder %s184, 63
      %s186 = scalar_select %p185, %s184, 63
      %s187 = smul.addr %s186, 4
      %s188 = scalar_lea.vmem %s4, %s187
      %s189 = smul.u32 32, %s15
      %p190 = scmp.lt.s32.totalorder %s189, 63
      %s191 = scalar_select %p190, %s189, 63
      %s192 = smul.addr %s191, 4
      %s193 = scalar_lea.vmem %s0, %s192
      %s194 = smul.u32 32, %s15
      %s195 = smul.u32 32, %s15
      %p196 = scmp.lt.s32.totalorder %s195, 63
      %s197 = scalar_select %p196, %s195, 63
      %s198 = smul.addr %s197, 4
      %s199 = scalar_lea.vmem %s4, %s198
      %s200 = smul.u32 32, %s15
      %v202 = vld [vmem:[%s193] sm:$0xf]
      %v203 = vld [vmem:[%s193 + $0x4] sm:$0xf]
      %v204 = vld [vmem:[%s193 + $0x8] sm:$0xf]
      %v205 = vld [vmem:[%s193 + $0xc] sm:$0xf]
      %v206 = vld [vmem:[%s193 + $0x10] sm:$0xf]
      %v207 = vld [vmem:[%s193 + $0x14] sm:$0xf]
      %v208 = vld [vmem:[%s193 + $0x18] sm:$0xf]
      %v209 = vld [vmem:[%s193 + $0x1c] sm:$0xf]
      %v210 = vld [vmem:[%s193 + $0x20] sm:$0xf]
      %v211 = vld [vmem:[%s193 + $0x24] sm:$0xf]
      %v212 = vld [vmem:[%s193 + $0x28] sm:$0xf]
      %v213 = vld [vmem:[%s193 + $0x2c] sm:$0xf]
      %v214 = vld [vmem:[%s193 + $0x30] sm:$0xf]
      %v215 = vld [vmem:[%s193 + $0x34] sm:$0xf]
      %v216 = vld [vmem:[%s193 + $0x38] sm:$0xf]
      %v217 = vld [vmem:[%s193 + $0x3c] sm:$0xf]
      %v218 = vld [vmem:[%s193 + $0x40] sm:$0xf]
      %v219 = vld [vmem:[%s193 + $0x44] sm:$0xf]
      %v220 = vld [vmem:[%s193 + $0x48] sm:$0xf]
      %v221 = vld [vmem:[%s193 + $0x4c] sm:$0xf]
      %v222 = vld [vmem:[%s193 + $0x50] sm:$0xf]
      %v223 = vld [vmem:[%s193 + $0x54] sm:$0xf]
      %v224 = vld [vmem:[%s193 + $0x58] sm:$0xf]
      %v225 = vld [vmem:[%s193 + $0x5c] sm:$0xf]
      %v226 = vld [vmem:[%s193 + $0x60] sm:$0xf]
      %v227 = vld [vmem:[%s193 + $0x64] sm:$0xf]
      %v228 = vld [vmem:[%s193 + $0x68] sm:$0xf]
      %v229 = vld [vmem:[%s193 + $0x6c] sm:$0xf]
      %v230 = vld [vmem:[%s193 + $0x70] sm:$0xf]
      %v231 = vld [vmem:[%s193 + $0x74] sm:$0xf]
      %v232 = vld [vmem:[%s193 + $0x78] sm:$0xf]
      %v233 = vld [vmem:[%s193 + $0x7c] sm:$0xf]
      %v234 = vld [vmem:[%s1] sm:$0xf]
      %v235 = vld [vmem:[%s1 + $0x4] sm:$0xf]
      %v236 = vld [vmem:[%s1 + $0x8] sm:$0xf]
      %v237 = vld [vmem:[%s1 + $0xc] sm:$0xf]
      %v270 = vunpack.c.l.b16 %v202
      %v271 = vunpack.c.l.b16 %v203
      %v272 = vunpack.c.l.b16 %v204
      %v273 = vunpack.c.l.b16 %v205
      %v274 = vunpack.c.l.b16 %v206
      %v275 = vunpack.c.l.b16 %v207
      %v276 = vunpack.c.l.b16 %v208
      %v277 = vunpack.c.l.b16 %v209
      %v278 = vunpack.c.l.b16 %v210
      %v279 = vunpack.c.l.b16 %v211
      %v280 = vunpack.c.l.b16 %v212
      %v281 = vunpack.c.l.b16 %v213
      %v282 = vunpack.c.l.b16 %v214
      %v283 = vunpack.c.l.b16 %v215
      %v284 = vunpack.c.l.b16 %v216
      %v285 = vunpack.c.l.b16 %v217
      %v286 = vunpack.c.l.b16 %v218
      %v287 = vunpack.c.l.b16 %v219
      %v288 = vunpack.c.l.b16 %v220
      %v289 = vunpack.c.l.b16 %v221
      %v290 = vunpack.c.l.b16 %v222
      %v291 = vunpack.c.l.b16 %v223
      %v292 = vunpack.c.l.b16 %v224
      %v293 = vunpack.c.l.b16 %v225
      %v294 = vunpack.c.l.b16 %v226
      %v295 = vunpack.c.l.b16 %v227
      %v296 = vunpack.c.l.b16 %v228
      %v297 = vunpack.c.l.b16 %v229
      %v298 = vunpack.c.l.b16 %v230
      %v299 = vunpack.c.l.b16 %v231
      %v300 = vunpack.c.l.b16 %v232
      %v301 = vunpack.c.l.b16 %v233
      %v302 = vpack.c.b16 %v271, %v270
      %v303 = vpack.c.b16 %v273, %v272
      %v304 = vpack.c.b16 %v275, %v274
      %v305 = vpack.c.b16 %v277, %v276
      %v306 = vpack.c.b16 %v279, %v278
      %v307 = vpack.c.b16 %v281, %v280
      %v308 = vpack.c.b16 %v283, %v282
      %v309 = vpack.c.b16 %v285, %v284
      %v310 = vpack.c.b16 %v287, %v286
      %v311 = vpack.c.b16 %v289, %v288
      %v312 = vpack.c.b16 %v291, %v290
      %v313 = vpack.c.b16 %v293, %v292
      %v314 = vpack.c.b16 %v295, %v294
      %v315 = vpack.c.b16 %v297, %v296
      %v316 = vpack.c.b16 %v299, %v298
      %v317 = vpack.c.b16 %v301, %v300
      %v322 = vunpack.c.l.b16 %v234
      %v323 = vunpack.c.l.b16 %v235
      %v324 = vunpack.c.l.b16 %v236
      %v325 = vunpack.c.l.b16 %v237
      %v326 = vpack.c.b16 %v323, %v322
      %v327 = vpack.c.b16 %v325, %v324
      %vm330 = vcmask 261120
      %v332 = vsel %vm330, %v302, 0
      %v335 = vsel %vm330, %v303, 0
      %v338 = vsel %vm330, %v304, 0
      %v341 = vsel %vm330, %v305, 0
      %v344 = vsel %vm330, %v306, 0
      %v347 = vsel %vm330, %v307, 0
      %v350 = vsel %vm330, %v308, 0
      %v353 = vsel %vm330, %v309, 0
      %v356 = vsel %vm330, %v310, 0
      %v359 = vsel %vm330, %v311, 0
      %v362 = vsel %vm330, %v312, 0
      %v365 = vsel %vm330, %v313, 0
      %v368 = vsel %vm330, %v314, 0
      %v371 = vsel %vm330, %v315, 0
      %v374 = vsel %vm330, %v316, 0
      %v377 = vsel %vm330, %v317, 0
      %379 = vmatpush.bf16.msra.mxu0 0
      %380 = vmatpush.bf16.msra.mxu0 0
      %381 = vmatpush.bf16.msra.mxu0 0
      %382 = vmatpush.bf16.msra.mxu0 0
      %383 = vmatpush.bf16.msra.mxu0 0
      %384 = vmatpush.bf16.msra.mxu0 0
      %385 = vmatpush.bf16.msra.mxu0 %v327
      %386 = vmatpush.bf16.msra.mxu0 %v326
      %387 = vmatmul.bf16.gmra.mxu0 %v332
      %v388 = vpop.f32.mrf.mxu0
      %v389 = vadd.f32 0.0, %v388
      %v390 = vpop.f32.mrf.mxu0
      %v391 = vadd.f32 0.0, %v390
      %392 = vmatmul.bf16.gmra.mxu0 %v335
      %v393 = vpop.f32.mrf.mxu0
      %v394 = vadd.f32 0.0, %v393
      %v395 = vpop.f32.mrf.mxu0
      %v396 = vadd.f32 0.0, %v395
      %397 = vmatmul.bf16.gmra.mxu0 %v338
      %v398 = vpop.f32.mrf.mxu0
      %v399 = vadd.f32 0.0, %v398
      %v400 = vpop.f32.mrf.mxu0
      %v401 = vadd.f32 0.0, %v400
      %402 = vmatmul.bf16.gmra.mxu0 %v341
      %v403 = vpop.f32.mrf.mxu0
      %v404 = vadd.f32 0.0, %v403
      %v405 = vpop.f32.mrf.mxu0
      %v406 = vadd.f32 0.0, %v405
      %407 = vmatmul.bf16.gmra.mxu0 %v344
      %v408 = vpop.f32.mrf.mxu0
      %v409 = vadd.f32 0.0, %v408
      %v410 = vpop.f32.mrf.mxu0
      %v411 = vadd.f32 0.0, %v410
      %412 = vmatmul.bf16.gmra.mxu0 %v347
      %v413 = vpop.f32.mrf.mxu0
      %v414 = vadd.f32 0.0, %v413
      %v415 = vpop.f32.mrf.mxu0
      %v416 = vadd.f32 0.0, %v415
      %417 = vmatmul.bf16.gmra.mxu0 %v350
      %v418 = vpop.f32.mrf.mxu0
      %v419 = vadd.f32 0.0, %v418
      %v420 = vpop.f32.mrf.mxu0
      %v421 = vadd.f32 0.0, %v420
      %422 = vmatmul.bf16.gmra.mxu0 %v353
      %v423 = vpop.f32.mrf.mxu0
      %v424 = vadd.f32 0.0, %v423
      %v425 = vpop.f32.mrf.mxu0
      %v426 = vadd.f32 0.0, %v425
      %427 = vmatmul.bf16.gmra.mxu0 %v356
      %v428 = vpop.f32.mrf.mxu0
      %v429 = vadd.f32 0.0, %v428
      %v430 = vpop.f32.mrf.mxu0
      %v431 = vadd.f32 0.0, %v430
      %432 = vmatmul.bf16.gmra.mxu0 %v359
      %v433 = vpop.f32.mrf.mxu0
      %v434 = vadd.f32 0.0, %v433
      %v435 = vpop.f32.mrf.mxu0
      %v436 = vadd.f32 0.0, %v435
      %437 = vmatmul.bf16.gmra.mxu0 %v362
      %v438 = vpop.f32.mrf.mxu0
      %v439 = vadd.f32 0.0, %v438
      %v440 = vpop.f32.mrf.mxu0
      %v441 = vadd.f32 0.0, %v440
      %442 = vmatmul.bf16.gmra.mxu0 %v365
      %v443 = vpop.f32.mrf.mxu0
      %v444 = vadd.f32 0.0, %v443
      %v445 = vpop.f32.mrf.mxu0
      %v446 = vadd.f32 0.0, %v445
      %447 = vmatmul.bf16.gmra.mxu0 %v368
      %v448 = vpop.f32.mrf.mxu0
      %v449 = vadd.f32 0.0, %v448
      %v450 = vpop.f32.mrf.mxu0
      %v451 = vadd.f32 0.0, %v450
      %452 = vmatmul.bf16.gmra.mxu0 %v371
      %v453 = vpop.f32.mrf.mxu0
      %v454 = vadd.f32 0.0, %v453
      %v455 = vpop.f32.mrf.mxu0
      %v456 = vadd.f32 0.0, %v455
      %457 = vmatmul.bf16.gmra.mxu0 %v374
      %v458 = vpop.f32.mrf.mxu0
      %v459 = vadd.f32 0.0, %v458
      %v460 = vpop.f32.mrf.mxu0
      %v461 = vadd.f32 0.0, %v460
      %462 = vmatmul.bf16.gmra.mxu0 %v377
      %v463 = vpop.f32.mrf.mxu0
      %v464 = vadd.f32 0.0, %v463
      %v465 = vpop.f32.mrf.mxu0
      %v466 = vadd.f32 0.0, %v465
      %467 = vdwg.mxu0
      %v468 = vld [vmem:[%s2] sm:$0x1]
      %v470 = vperm.slane %v468, 0
      %v472 = vmul.f32 %v389, %v470
      %v473 = vmul.f32 %v391, %v470
      %v474 = vmul.f32 %v394, %v470
      %v475 = vmul.f32 %v396, %v470
      %v476 = vmul.f32 %v399, %v470
      %v477 = vmul.f32 %v401, %v470
      %v478 = vmul.f32 %v404, %v470
      %v479 = vmul.f32 %v406, %v470
      %v480 = vmul.f32 %v409, %v470
      %v481 = vmul.f32 %v411, %v470
      %v482 = vmul.f32 %v414, %v470
      %v483 = vmul.f32 %v416, %v470
      %v484 = vmul.f32 %v419, %v470
      %v485 = vmul.f32 %v421, %v470
      %v486 = vmul.f32 %v424, %v470
      %v487 = vmul.f32 %v426, %v470
      %v488 = vmul.f32 %v429, %v470
      %v489 = vmul.f32 %v431, %v470
      %v490 = vmul.f32 %v434, %v470
      %v491 = vmul.f32 %v436, %v470
      %v492 = vmul.f32 %v439, %v470
      %v493 = vmul.f32 %v441, %v470
      %v494 = vmul.f32 %v444, %v470
      %v495 = vmul.f32 %v446, %v470
      %v496 = vmul.f32 %v449, %v470
      %v497 = vmul.f32 %v451, %v470
      %v498 = vmul.f32 %v454, %v470
      %v499 = vmul.f32 %v456, %v470
      %v500 = vmul.f32 %v459, %v470
      %v501 = vmul.f32 %v461, %v470
      %v502 = vmul.f32 %v464, %v470
      %v503 = vmul.f32 %v466, %v470
      %v504 = vld [vmem:[%s3] sm:$0x1]
      %v506 = vperm.slane %v504, 0
      %v508 = vadd.f32 %v472, %v506
      %v509 = vadd.f32 %v473, %v506
      %v510 = vadd.f32 %v474, %v506
      %v511 = vadd.f32 %v475, %v506
      %v512 = vadd.f32 %v476, %v506
      %v513 = vadd.f32 %v477, %v506
      %v514 = vadd.f32 %v478, %v506
      %v515 = vadd.f32 %v479, %v506
      %v516 = vadd.f32 %v480, %v506
      %v517 = vadd.f32 %v481, %v506
      %v518 = vadd.f32 %v482, %v506
      %v519 = vadd.f32 %v483, %v506
      %v520 = vadd.f32 %v484, %v506
      %v521 = vadd.f32 %v485, %v506
      %v522 = vadd.f32 %v486, %v506
      %v523 = vadd.f32 %v487, %v506
      %v524 = vadd.f32 %v488, %v506
      %v525 = vadd.f32 %v489, %v506
      %v526 = vadd.f32 %v490, %v506
      %v527 = vadd.f32 %v491, %v506
      %v528 = vadd.f32 %v492, %v506
      %v529 = vadd.f32 %v493, %v506
      %v530 = vadd.f32 %v494, %v506
      %v531 = vadd.f32 %v495, %v506
      %v532 = vadd.f32 %v496, %v506
      %v533 = vadd.f32 %v497, %v506
      %v534 = vadd.f32 %v498, %v506
      %v535 = vadd.f32 %v499, %v506
      %v536 = vadd.f32 %v500, %v506
      %v537 = vadd.f32 %v501, %v506
      %v538 = vadd.f32 %v502, %v506
      %v539 = vadd.f32 %v503, %v506
      %v540 = vmax.f32 %v508, 0.0
      %v541 = vmax.f32 %v509, 0.0
      %v542 = vmax.f32 %v510, 0.0
      %v543 = vmax.f32 %v511, 0.0
      %v544 = vmax.f32 %v512, 0.0
      %v545 = vmax.f32 %v513, 0.0
      %v546 = vmax.f32 %v514, 0.0
      %v547 = vmax.f32 %v515, 0.0
      %v548 = vmax.f32 %v516, 0.0
      %v549 = vmax.f32 %v517, 0.0
      %v550 = vmax.f32 %v518, 0.0
      %v551 = vmax.f32 %v519, 0.0
      %v552 = vmax.f32 %v520, 0.0
      %v553 = vmax.f32 %v521, 0.0
      %v554 = vmax.f32 %v522, 0.0
      %v555 = vmax.f32 %v523, 0.0
      %v556 = vmax.f32 %v524, 0.0
      %v557 = vmax.f32 %v525, 0.0
      %v558 = vmax.f32 %v526, 0.0
      %v559 = vmax.f32 %v527, 0.0
      %v560 = vmax.f32 %v528, 0.0
      %v561 = vmax.f32 %v529, 0.0
      %v562 = vmax.f32 %v530, 0.0
      %v563 = vmax.f32 %v531, 0.0
      %v564 = vmax.f32 %v532, 0.0
      %v565 = vmax.f32 %v533, 0.0
      %v566 = vmax.f32 %v534, 0.0
      %v567 = vmax.f32 %v535, 0.0
      %v568 = vmax.f32 %v536, 0.0
      %v569 = vmax.f32 %v537, 0.0
      %v570 = vmax.f32 %v538, 0.0
      %v571 = vmax.f32 %v539, 0.0
      %v572 = vpack.c.bf16 %v540, %v540
      %v573 = vpack.c.bf16 %v541, %v541
      %v574 = vpack.c.bf16 %v542, %v542
      %v575 = vpack.c.bf16 %v543, %v543
      %v576 = vpack.c.bf16 %v544, %v544
      %v577 = vpack.c.bf16 %v545, %v545
      %v578 = vpack.c.bf16 %v546, %v546
      %v579 = vpack.c.bf16 %v547, %v547
      %v580 = vpack.c.bf16 %v548, %v548
      %v581 = vpack.c.bf16 %v549, %v549
      %v582 = vpack.c.bf16 %v550, %v550
      %v583 = vpack.c.bf16 %v551, %v551
      %v584 = vpack.c.bf16 %v552, %v552
      %v585 = vpack.c.bf16 %v553, %v553
      %v586 = vpack.c.bf16 %v554, %v554
      %v587 = vpack.c.bf16 %v555, %v555
      %v588 = vpack.c.bf16 %v556, %v556
      %v589 = vpack.c.bf16 %v557, %v557
      %v590 = vpack.c.bf16 %v558, %v558
      %v591 = vpack.c.bf16 %v559, %v559
      %v592 = vpack.c.bf16 %v560, %v560
      %v593 = vpack.c.bf16 %v561, %v561
      %v594 = vpack.c.bf16 %v562, %v562
      %v595 = vpack.c.bf16 %v563, %v563
      %v596 = vpack.c.bf16 %v564, %v564
      %v597 = vpack.c.bf16 %v565, %v565
      %v598 = vpack.c.bf16 %v566, %v566
      %v599 = vpack.c.bf16 %v567, %v567
      %v600 = vpack.c.bf16 %v568, %v568
      %v601 = vpack.c.bf16 %v569, %v569
      %v602 = vpack.c.bf16 %v570, %v570
      %v603 = vpack.c.bf16 %v571, %v571
      %604 = vst [vmem:[%s199] sm:$0xf] %v572
      %605 = vst [vmem:[%s199 + $0x4] sm:$0xf] %v573
      %606 = vst [vmem:[%s199 + $0x8] sm:$0xf] %v574
      %607 = vst [vmem:[%s199 + $0xc] sm:$0xf] %v575
      %608 = vst [vmem:[%s199 + $0x10] sm:$0xf] %v576
      %609 = vst [vmem:[%s199 + $0x14] sm:$0xf] %v577
      %610 = vst [vmem:[%s199 + $0x18] sm:$0xf] %v578
      %611 = vst [vmem:[%s199 + $0x1c] sm:$0xf] %v579
      %612 = vst [vmem:[%s199 + $0x20] sm:$0xf] %v580
      %613 = vst [vmem:[%s199 + $0x24] sm:$0xf] %v581
      %614 = vst [vmem:[%s199 + $0x28] sm:$0xf] %v582
      %615 = vst [vmem:[%s199 + $0x2c] sm:$0xf] %v583
      %616 = vst [vmem:[%s199 + $0x30] sm:$0xf] %v584
      %617 = vst [vmem:[%s199 + $0x34] sm:$0xf] %v585
      %618 = vst [vmem:[%s199 + $0x38] sm:$0xf] %v586
      %619 = vst [vmem:[%s199 + $0x3c] sm:$0xf] %v587
      %620 = vst [vmem:[%s199 + $0x40] sm:$0xf] %v588
      %621 = vst [vmem:[%s199 + $0x44] sm:$0xf] %v589
      %622 = vst [vmem:[%s199 + $0x48] sm:$0xf] %v590
      %623 = vst [vmem:[%s199 + $0x4c] sm:$0xf] %v591
      %624 = vst [vmem:[%s199 + $0x50] sm:$0xf] %v592
      %625 = vst [vmem:[%s199 + $0x54] sm:$0xf] %v593
      %626 = vst [vmem:[%s199 + $0x58] sm:$0xf] %v594
      %627 = vst [vmem:[%s199 + $0x5c] sm:$0xf] %v595
      %628 = vst [vmem:[%s199 + $0x60] sm:$0xf] %v596
      %629 = vst [vmem:[%s199 + $0x64] sm:$0xf] %v597
      %630 = vst [vmem:[%s199 + $0x68] sm:$0xf] %v598
      %631 = vst [vmem:[%s199 + $0x6c] sm:$0xf] %v599
      %632 = vst [vmem:[%s199 + $0x70] sm:$0xf] %v600
      %633 = vst [vmem:[%s199 + $0x74] sm:$0xf] %v601
      %634 = vst [vmem:[%s199 + $0x78] sm:$0xf] %v602
      %635 = vst [vmem:[%s199 + $0x7c] sm:$0xf] %v603
      %s636 = smul.u32 32, %s15
      %p637 = scmp.lt.s32.totalorder %s636, 63
      %s638 = scalar_select %p637, %s636, 63
      %s639 = smul.addr %s638, 4
      %s640 = scalar_lea.vmem %s4, %s639
      // Predicated region
      $region37: #{_lambda_.74} parent=35 // pred_check
        %p641 = pneg %p122
      $region38: #{_lambda_.74} parent=35 // pred_check_branch
        %643 = sbr.rel (%p641) target = $region40
      $region39: #{_lambda_.74} parent=35 // pred_region
        %s644 = smul.u32 32, %s15
      $region40: #{_lambda_.74} parent=35 // pred_fallthru
        _
    $region36: #{_lambda_.74} parent=5 // pred_fallthru
      _
    %p645 = scmp.le.s32.totalorder 2, %s10
    // Predicated region
    $region41: #{_lambda_.74} parent=5 // pred_check
      %p646 = pneg %p645
    $region42: #{_lambda_.74} parent=5 // pred_check_branch
      %648 = sbr.rel (%p646) target = $region44
    $region43: #{_lambda_.74} parent=5 // pred_region
      %s649 = ssub.s32 %s10, 2
      // Predicated region
      $region45: #{_lambda_.74} parent=43 // pred_check
        %p650 = pneg %p128
      $region46: #{_lambda_.74} parent=43 // pred_check_branch
        %652 = sbr.rel (%p650) target = $region48
      $region47: #{_lambda_.74} parent=43 // pred_region
        %s653 = smul.u32 32, %s16
        %p654 = scmp.lt.s32.totalorder %s653, 63
        %s655 = scalar_select %p654, %s653, 63
        %s656 = smul.addr %s655, 4
        %s657 = scalar_lea.vmem %s4, %s656
      $region48: #{_lambda_.74} parent=43 // pred_fallthru
        _
    $region44: #{_lambda_.74} parent=5 // pred_fallthru
      _
  $region6: #{_lambda_.74} parent=0 // loop_footer
    %s14 = sadd.s32 1, %s10
  $region7: #{_lambda_.74} parent=0 // loop_footer_branch
    %9 = sbr.rel target = $region3
  $region8: #{_lambda_.74} parent=0 // loop_exit
    _

// kernel: _lambda_.75
$region0: #{_lambda_.75}
  #allocation0 [shape = 'u32[]', space=smem, size = 0x4, offset = 0x4, fixed_abs, tag = 'smem constant byte address 0x4 - core index']
  #allocation1 [shape = 'u32[72,128]{1,0:T(1,128)}', space=vmem, size = 0x9000, scoped, tag = 'internal scratch']
  %s0 = inlined_call_operand.vmem [shape: bf16[128,144], index: 0, kind: input, shape index: {}]
  %s1 = inlined_call_operand.vmem [shape: bf16[144,128], index: 1, kind: input, shape index: {}]
  %s2 = inlined_call_operand.vmem [shape: f32[1,128], index: 2, kind: input, shape index: {}]
  %s3 = inlined_call_operand.vmem [shape: f32[1,128], index: 3, kind: input, shape index: {}]
  %s4 = inlined_call_operand.vmem [shape: bf16[128,128], index: 4, kind: output, shape index: {}]
  %s5 = sld [smem:[#allocation0]]
  $region49: #{_lambda_.75} parent=0
    _
  %s7 = ssub.s32 1, %s5
  %s8 = scalar_select 0, %s7, %s5
  loop: start=0, step=1, limit=4
  $region2: #{_lambda_.75} parent=0 // loop_pre_header
    _
  $region3: #{_lambda_.75} parent=0 // loop_header
    %s10 = sphi 0, %s14
    %p11 = scmp.ge.s32.totalorder %s10, 4
    %s20 = sphi 0, %s22
    %s23 = sphi 0, %s20
    %s24 = sphi 0, %s23
    %s40 = sphi 0, %s24
    %s44 = sphi 0, %s44
    %s46 = sphi 0, %s44
    %s47 = sphi 0, %s46
    %s61 = sphi 0, %s47
    %s65 = sphi 0, %s65
    %s67 = sphi 0, %s65
    %s68 = sphi 0, %s67
    %s82 = sphi 0, %s68
    %s86 = sphi 0, %s86
    %s88 = sphi 0, %s86
    %s89 = sphi 0, %s88
    %s103 = sphi 0, %s89
    %s109 = sphi 0, %s111
    %s112 = sphi 0, %s109
    %s113 = sphi 0, %s112
    %s129 = sphi 0, %s113
  $region4: #{_lambda_.75} parent=0 // loop_header_branch
    %13 = sbr.rel (%p11) target = $region8
  $region5: #{_lambda_.75} parent=0 // loop_body
    %s15 = ssub.s32 %s10, 1
    %s16 = ssub.s32 %s10, 2
    %s17 = sadd.s32 %s10, 1
    %s18 = ssub.s32 %s10, %s17
    %p19 = scmp.eq.s32.totalorder %s18, 0
    %s21 = sadd.s32 %s20, 1
    %s22 = scalar_select %p19, %s20, %s21
    %p25 = pneg %p19
    %p26 = scmp.eq.s32.totalorder %s10, 1
    %p27 = por %p25, %p26
    %p28 = scmp.ne.s32.totalorder %s20, %s23
    %p29 = scmp.eq.s32.totalorder %s10, 0
    %p30 = por %p28, %p29
    %p31 = scmp.ne.s32.totalorder %s20, %s23
    %p32 = scmp.eq.s32.totalorder %s15, 1
    %p33 = por %p31, %p32
    %p34 = scmp.ne.s32.totalorder %s23, %s24
    %p35 = scmp.eq.s32.totalorder %s15, 0
    %p36 = por %p34, %p35
    %p37 = scmp.ne.s32.totalorder %s23, %s24
    %p38 = scmp.eq.s32.totalorder %s16, 1
    %p39 = por %p37, %p38
    %p41 = scmp.ne.s32.totalorder %s24, %s40
    %p42 = scmp.eq.s32.totalorder %s16, 0
    %p43 = por %p41, %p42
    %s45 = sadd.s32 %s44, 1
    %p48 = scmp.eq.s32.totalorder %s10, 1
    %p49 = scmp.ne.s32.totalorder %s44, %s46
    %p50 = scmp.eq.s32.totalorder %s10, 0
    %p51 = por %p49, %p50
    %p52 = scmp.ne.s32.totalorder %s44, %s46
    %p53 = scmp.eq.s32.totalorder %s15, 1
    %p54 = por %p52, %p53
    %p55 = scmp.ne.s32.totalorder %s46, %s47
    %p56 = scmp.eq.s32.totalorder %s15, 0
    %p57 = por %p55, %p56
    %p58 = scmp.ne.s32.totalorder %s46, %s47
    %p59 = scmp.eq.s32.totalorder %s16, 1
    %p60 = por %p58, %p59
    %p62 = scmp.ne.s32.totalorder %s47, %s61
    %p63 = scmp.eq.s32.totalorder %s16, 0
    %p64 = por %p62, %p63
    %s66 = sadd.s32 %s65, 1
    %p69 = scmp.eq.s32.totalorder %s10, 1
    %p70 = scmp.ne.s32.totalorder %s65, %s67
    %p71 = scmp.eq.s32.totalorder %s10, 0
    %p72 = por %p70, %p71
    %p73 = scmp.ne.s32.totalorder %s65, %s67
    %p74 = scmp.eq.s32.totalorder %s15, 1
    %p75 = por %p73, %p74
    %p76 = scmp.ne.s32.totalorder %s67, %s68
    %p77 = scmp.eq.s32.totalorder %s15, 0
    %p78 = por %p76, %p77
    %p79 = scmp.ne.s32.totalorder %s67, %s68
    %p80 = scmp.eq.s32.totalorder %s16, 1
    %p81 = por %p79, %p80
    %p83 = scmp.ne.s32.totalorder %s68, %s82
    %p84 = scmp.eq.s32.totalorder %s16, 0
    %p85 = por %p83, %p84
    %s87 = sadd.s32 %s86, 1
    %p90 = scmp.eq.s32.totalorder %s10, 1
    %p91 = scmp.ne.s32.totalorder %s86, %s88
    %p92 = scmp.eq.s32.totalorder %s10, 0
    %p93 = por %p91, %p92
    %p94 = scmp.ne.s32.totalorder %s86, %s88
    %p95 = scmp.eq.s32.totalorder %s15, 1
    %p96 = por %p94, %p95
    %p97 = scmp.ne.s32.totalorder %s88, %s89
    %p98 = scmp.eq.s32.totalorder %s15, 0
    %p99 = por %p97, %p98
    %p100 = scmp.ne.s32.totalorder %s88, %s89
    %p101 = scmp.eq.s32.totalorder %s16, 1
    %p102 = por %p100, %p101
    %p104 = scmp.ne.s32.totalorder %s89, %s103
    %p105 = scmp.eq.s32.totalorder %s16, 0
    %p106 = por %p104, %p105
    %s107 = ssub.s32 %s10, %s17
    %p108 = scmp.eq.s32.totalorder %s107, 0
    %s110 = sadd.s32 %s109, 1
    %s111 = scalar_select %p108, %s109, %s110
    %p114 = pneg %p108
    %p115 = scmp.eq.s32.totalorder %s10, 1
    %p116 = por %p114, %p115
    %p117 = scmp.ne.s32.totalorder %s109, %s112
    %p118 = scmp.eq.s32.totalorder %s10, 0
    %p119 = por %p117, %p118
    %p120 = scmp.ne.s32.totalorder %s109, %s112
    %p121 = scmp.eq.s32.totalorder %s15, 1
    %p122 = por %p120, %p121
    %p123 = scmp.ne.s32.totalorder %s112, %s113
    %p124 = scmp.eq.s32.totalorder %s15, 0
    %p125 = por %p123, %p124
    %p126 = scmp.ne.s32.totalorder %s112, %s113
    %p127 = scmp.eq.s32.totalorder %s16, 1
    %p128 = por %p126, %p127
    %p130 = scmp.ne.s32.totalorder %s113, %s129
    %p131 = scmp.eq.s32.totalorder %s16, 0
    %p132 = por %p130, %p131
    %p133 = scmp.le.s32.totalorder 1, %s10
    %p134 = scmp.lt.s32.totalorder %s10, 3
    %p135 = pnand %p133, %p134
    %p136 = pneg %p135
    // Predicated region
    $region9: #{_lambda_.75} parent=5 // pred_check
      _
    $region10: #{_lambda_.75} parent=5 // pred_check_branch
      %138 = sbr.rel (%p135) target = $region12
    $region11: #{_lambda_.75} parent=5 // pred_region
      %s139 = ssub.s32 %s10, 1
      // Predicated region
      $region13: #{_lambda_.75} parent=11 // pred_check
        %p140 = pneg %p57
      $region14: #{_lambda_.75} parent=11 // pred_check_branch
        %142 = sbr.rel (%p140) target = $region16
      $region15: #{_lambda_.75} parent=11 // pred_region
        _
      $region16: #{_lambda_.75} parent=11 // pred_fallthru
        _
      // Predicated region
      $region17: #{_lambda_.75} parent=11 // pred_check
        %p143 = pneg %p78
      $region18: #{_lambda_.75} parent=11 // pred_check_branch
        %145 = sbr.rel (%p143) target = $region20
      $region19: #{_lambda_.75} parent=11 // pred_region
        _
      $region20: #{_lambda_.75} parent=11 // pred_fallthru
        _
      // Predicated region
      $region21: #{_lambda_.75} parent=11 // pred_check
        %p146 = pneg %p99
      $region22: #{_lambda_.75} parent=11 // pred_check_branch
        %148 = sbr.rel (%p146) target = $region24
      $region23: #{_lambda_.75} parent=11 // pred_region
        _
      $region24: #{_lambda_.75} parent=11 // pred_fallthru
        _
    $region12: #{_lambda_.75} parent=5 // pred_fallthru
      _
    %p149 = scmp.lt.s32.totalorder %s10, 2
    // Predicated region
    $region25: #{_lambda_.75} parent=5 // pred_check
      %p150 = pneg %p149
    $region26: #{_lambda_.75} parent=5 // pred_check_branch
      %152 = sbr.rel (%p150) target = $region28
    $region27: #{_lambda_.75} parent=5 // pred_region
      // Predicated region
      $region29: #{_lambda_.75} parent=27 // pred_check
        %p153 = pneg %p30
      $region30: #{_lambda_.75} parent=27 // pred_check_branch
        %155 = sbr.rel (%p153) target = $region32
      $region31: #{_lambda_.75} parent=27 // pred_region
        %s156 = smul.u32 8, %s10
        %p157 = scmp.lt.s32.totalorder %s156, 15
        %s158 = scalar_select %p157, %s156, 15
        %s159 = smul.addr %s158, 2
        %s160 = smul.addr %s159, 4
        %s161 = scalar_lea.vmem %s0, %s160
        %s162 = smul.u32 8, %s10
      $region32: #{_lambda_.75} parent=27 // pred_fallthru
        _
    $region28: #{_lambda_.75} parent=5 // pred_fallthru
      _
    %p163 = scmp.le.s32.totalorder 1, %s10
    %p164 = scmp.lt.s32.totalorder %s10, 3
    %p165 = pnand %p163, %p164
    %p166 = pneg %p165
    // Predicated region
    $region33: #{_lambda_.75} parent=5 // pred_check
      _
    $region34: #{_lambda_.75} parent=5 // pred_check_branch
      %168 = sbr.rel (%p165) target = $region36
    $region35: #{_lambda_.75} parent=5 // pred_region
      %s169 = ssub.s32 %s10, 1
      %s170 = smul.u32 8, %s15
      %p171 = scmp.lt.s32.totalorder %s170, 15
      %s172 = scalar_select %p171, %s170, 15
      %s173 = smul.addr %s172, 2
      %s174 = smul.addr %s173, 4
      %s175 = scalar_lea.vmem %s0, %s174
      %p176 = pneg %p36
      %p177 = pneg %p33
      %p178 = pneg %p57
      %p179 = pneg %p54
      %p180 = pneg %p78
      %p181 = pneg %p75
      %p182 = pneg %p99
      %p183 = pneg %p96
      %p184 = pneg %p125
      %p185 = pneg %p122
      %s186 = smul.u32 8, %s15
      %p187 = scmp.lt.s32.totalorder %s186, 15
      %s188 = scalar_select %p187, %s186, 15
      %s189 = smul.addr %s188, 4
      %s190 = scalar_lea.vmem %s4, %s189
      %s191 = smul.u32 8, %s15
      %p192 = scmp.lt.s32.totalorder %s191, 15
      %s193 = scalar_select %p192, %s191, 15
      %s194 = smul.addr %s193, 2
      %s195 = smul.addr %s194, 4
      %s196 = scalar_lea.vmem %s0, %s195
      %s197 = smul.u32 8, %s15
      %s198 = smul.u32 8, %s15
      %p199 = scmp.lt.s32.totalorder %s198, 15
      %s200 = scalar_select %p199, %s198, 15
      %s201 = smul.addr %s200, 4
      %s202 = scalar_lea.vmem %s4, %s201
      %s203 = smul.u32 8, %s15
      %v205 = vld [vmem:[%s196] sm:$0xff]
      %v206 = vld [vmem:[%s196 + $0x8] sm:$0xff]
      %v207 = vld [vmem:[%s196 + $0x10] sm:$0xff]
      %v208 = vld [vmem:[%s196 + $0x18] sm:$0xff]
      %v209 = vld [vmem:[%s196 + $0x20] sm:$0xff]
      %v210 = vld [vmem:[%s196 + $0x28] sm:$0xff]
      %v211 = vld [vmem:[%s196 + $0x30] sm:$0xff]
      %v212 = vld [vmem:[%s196 + $0x38] sm:$0xff]
      %v213 = vld [vmem:[%s1] sm:$0xf]
      %v214 = vld [vmem:[%s1 + $0x4] sm:$0xf]
      %v215 = vld [vmem:[%s1 + $0x8] sm:$0xf]
      %v216 = vld [vmem:[%s1 + $0xc] sm:$0xf]
      %v217 = vld [vmem:[%s1 + $0x10] sm:$0xf]
      %v218 = vld [vmem:[%s1 + $0x14] sm:$0xf]
      %v219 = vld [vmem:[%s1 + $0x18] sm:$0xf]
      %v220 = vld [vmem:[%s1 + $0x1c] sm:$0xf]
      %v221 = vld [vmem:[%s1 + $0x20] sm:$0xf]
      %v222 = vld [vmem:[%s1 + $0x24] sm:$0xf]
      %v223 = vld [vmem:[%s1 + $0x28] sm:$0xf]
      %v224 = vld [vmem:[%s1 + $0x2c] sm:$0xf]
      %v225 = vld [vmem:[%s1 + $0x30] sm:$0xf]
      %v226 = vld [vmem:[%s1 + $0x34] sm:$0xf]
      %v227 = vld [vmem:[%s1 + $0x38] sm:$0xf]
      %v228 = vld [vmem:[%s1 + $0x3c] sm:$0xf]
      %v229 = vld [vmem:[%s1 + $0x40] sm:$0xf]
      %v230 = vld [vmem:[%s1 + $0x44] sm:$0xf]
      %v239 = vunpack.c.l.b16 %v205
      %v240 = vunpack.c.h.b16 %v205
      %v241 = vunpack.c.l.b16 %v206
      %v242 = vunpack.c.h.b16 %v206
      %v243 = vunpack.c.l.b16 %v207
      %v244 = vunpack.c.h.b16 %v207
      %v245 = vunpack.c.l.b16 %v208
      %v246 = vunpack.c.h.b16 %v208
      %v247 = vunpack.c.l.b16 %v209
      %v248 = vunpack.c.h.b16 %v209
      %v249 = vunpack.c.l.b16 %v210
      %v250 = vunpack.c.h.b16 %v210
      %v251 = vunpack.c.l.b16 %v211
      %v252 = vunpack.c.h.b16 %v211
      %v253 = vunpack.c.l.b16 %v212
      %v254 = vunpack.c.h.b16 %v212
      %v255 = vpack.c.b16 %v241, %v239
      %v256 = vpack.c.b16 %v242, %v240
      %v257 = vpack.c.b16 %v245, %v243
      %v258 = vpack.c.b16 %v246, %v244
      %v259 = vpack.c.b16 %v249, %v247
      %v260 = vpack.c.b16 %v250, %v248
      %v261 = vpack.c.b16 %v253, %v251
      %v262 = vpack.c.b16 %v254, %v252
      %v285 = vunpack.c.l.b16 %v213
      %v286 = vunpack.c.l.b16 %v214
      %v287 = vunpack.c.l.b16 %v215
      %v288 = vunpack.c.l.b16 %v216
      %v289 = vunpack.c.l.b16 %v217
      %v290 = vunpack.c.l.b16 %v218
      %v291 = vunpack.c.l.b16 %v219
      %v292 = vunpack.c.l.b16 %v220
      %v293 = vunpack.c.l.b16 %v221
      %v294 = vunpack.c.l.b16 %v222
      %v295 = vunpack.c.l.b16 %v223
      %v296 = vunpack.c.l.b16 %v224
      %v297 = vunpack.c.l.b16 %v225
      %v298 = vunpack.c.l.b16 %v226
      %v299 = vunpack.c.l.b16 %v227
      %v300 = vunpack.c.l.b16 %v228
      %v301 = vunpack.c.l.b16 %v229
      %v302 = vunpack.c.l.b16 %v230
      %v303 = vpack.c.b16 %v286, %v285
      %v304 = vpack.c.b16 %v288, %v287
      %v305 = vpack.c.b16 %v290, %v289
      %v306 = vpack.c.b16 %v292, %v291
      %v307 = vpack.c.b16 %v294, %v293
      %v308 = vpack.c.b16 %v296, %v295
      %v309 = vpack.c.b16 %v298, %v297
      %v310 = vpack.c.b16 %v300, %v299
      %v311 = vpack.c.b16 %v302, %v301
      %vm321 = vcmask 130048
      %v323 = vsel %vm321, %v256, 0
      %v326 = vsel %vm321, %v258, 0
      %v329 = vsel %vm321, %v260, 0
      %v332 = vsel %vm321, %v262, 0
      %334 = vmatpush.bf16.msra.mxu0 %v310
      %335 = vmatpush.bf16.msra.mxu0 %v309
      %336 = vmatpush.bf16.msra.mxu0 %v308
      %337 = vmatpush.bf16.msra.mxu0 %v307
      %338 = vmatpush.bf16.msra.mxu0 %v306
      %339 = vmatpush.bf16.msra.mxu0 %v305
      %340 = vmatpush.bf16.msra.mxu0 %v304
      %341 = vmatpush.bf16.msra.mxu0 %v303
      %342 = vmatmul.bf16.gmra.mxu0 %v255
      %v343 = vpop.f32.mrf.mxu0
      %v344 = vadd.f32 0.0, %v343
      %v345 = vpop.f32.mrf.mxu0
      %v346 = vadd.f32 0.0, %v345
      %347 = vmatmul.bf16.gmra.mxu0 %v257
      %v348 = vpop.f32.mrf.mxu0
      %v349 = vadd.f32 0.0, %v348
      %v350 = vpop.f32.mrf.mxu0
      %v351 = vadd.f32 0.0, %v350
      %352 = vmatmul.bf16.gmra.mxu0 %v259
      %v353 = vpop.f32.mrf.mxu0
      %v354 = vadd.f32 0.0, %v353
      %v355 = vpop.f32.mrf.mxu0
      %v356 = vadd.f32 0.0, %v355
      %357 = vmatmul.bf16.gmra.mxu0 %v261
      %v358 = vpop.f32.mrf.mxu0
      %v359 = vadd.f32 0.0, %v358
      %v360 = vpop.f32.mrf.mxu0
      %v361 = vadd.f32 0.0, %v360
      %362 = vdwg.mxu0
      %363 = vmatpush.bf16.msra.mxu0 0
      %364 = vmatpush.bf16.msra.mxu0 0
      %365 = vmatpush.bf16.msra.mxu0 0
      %366 = vmatpush.bf16.msra.mxu0 0
      %367 = vmatpush.bf16.msra.mxu0 0
      %368 = vmatpush.bf16.msra.mxu0 0
      %369 = vmatpush.bf16.msra.mxu0 0
      %370 = vmatpush.bf16.msra.mxu0 %v311
      %371 = vmatmul.bf16.gmra.mxu0 %v323
      %v372 = vpop.f32.mrf.mxu0
      %v373 = vadd.f32 %v344, %v372
      %v374 = vpop.f32.mrf.mxu0
      %v375 = vadd.f32 %v346, %v374
      %376 = vmatmul.bf16.gmra.mxu0 %v326
      %v377 = vpop.f32.mrf.mxu0
      %v378 = vadd.f32 %v349, %v377
      %v379 = vpop.f32.mrf.mxu0
      %v380 = vadd.f32 %v351, %v379
      %381 = vmatmul.bf16.gmra.mxu0 %v329
      %v382 = vpop.f32.mrf.mxu0
      %v383 = vadd.f32 %v354, %v382
      %v384 = vpop.f32.mrf.mxu0
      %v385 = vadd.f32 %v356, %v384
      %386 = vmatmul.bf16.gmra.mxu0 %v332
      %v387 = vpop.f32.mrf.mxu0
      %v388 = vadd.f32 %v359, %v387
      %v389 = vpop.f32.mrf.mxu0
      %v390 = vadd.f32 %v361, %v389
      %391 = vdwg.mxu0
      %v392 = vld [vmem:[%s2] sm:$0x1]
      %v394 = vperm.slane %v392, 0
      %v396 = vmul.f32 %v373, %v394
      %v397 = vmul.f32 %v375, %v394
      %v398 = vmul.f32 %v378, %v394
      %v399 = vmul.f32 %v380, %v394
      %v400 = vmul.f32 %v383, %v394
      %v401 = vmul.f32 %v385, %v394
      %v402 = vmul.f32 %v388, %v394
      %v403 = vmul.f32 %v390, %v394
      %v404 = vld [vmem:[%s3] sm:$0x1]
      %v406 = vperm.slane %v404, 0
      %v408 = vadd.f32 %v396, %v406
      %v409 = vadd.f32 %v397, %v406
      %v410 = vadd.f32 %v398, %v406
      %v411 = vadd.f32 %v399, %v406
      %v412 = vadd.f32 %v400, %v406
      %v413 = vadd.f32 %v401, %v406
      %v414 = vadd.f32 %v402, %v406
      %v415 = vadd.f32 %v403, %v406
      %v416 = vmax.f32 %v408, 0.0
      %v417 = vmax.f32 %v409, 0.0
      %v418 = vmax.f32 %v410, 0.0
      %v419 = vmax.f32 %v411, 0.0
      %v420 = vmax.f32 %v412, 0.0
      %v421 = vmax.f32 %v413, 0.0
      %v422 = vmax.f32 %v414, 0.0
      %v423 = vmax.f32 %v415, 0.0
      %v424 = vpack.c.bf16 %v416, %v416
      %v425 = vpack.c.bf16 %v417, %v417
      %v426 = vpack.c.bf16 %v418, %v418
      %v427 = vpack.c.bf16 %v419, %v419
      %v428 = vpack.c.bf16 %v420, %v420
      %v429 = vpack.c.bf16 %v421, %v421
      %v430 = vpack.c.bf16 %v422, %v422
      %v431 = vpack.c.bf16 %v423, %v423
      %432 = vst [vmem:[%s202] sm:$0xf] %v424
      %433 = vst [vmem:[%s202 + $0x4] sm:$0xf] %v425
      %434 = vst [vmem:[%s202 + $0x8] sm:$0xf] %v426
      %435 = vst [vmem:[%s202 + $0xc] sm:$0xf] %v427
      %436 = vst [vmem:[%s202 + $0x10] sm:$0xf] %v428
      %437 = vst [vmem:[%s202 + $0x14] sm:$0xf] %v429
      %438 = vst [vmem:[%s202 + $0x18] sm:$0xf] %v430
      %439 = vst [vmem:[%s202 + $0x1c] sm:$0xf] %v431
      %s440 = smul.u32 8, %s15
      %p441 = scmp.lt.s32.totalorder %s440, 15
      %s442 = scalar_select %p441, %s440, 15
      %s443 = smul.addr %s442, 4
      %s444 = scalar_lea.vmem %s4, %s443
      // Predicated region
      $region37: #{_lambda_.75} parent=35 // pred_check
        %p445 = pneg %p122
      $region38: #{_lambda_.75} parent=35 // pred_check_branch
        %447 = sbr.rel (%p445) target = $region40
      $region39: #{_lambda_.75} parent=35 // pred_region
        %s448 = smul.u32 8, %s15
      $region40: #{_lambda_.75} parent=35 // pred_fallthru
        _
    $region36: #{_lambda_.75} parent=5 // pred_fallthru
      _
    %p449 = scmp.le.s32.totalorder 2, %s10
    // Predicated region
    $region41: #{_lambda_.75} parent=5 // pred_check
      %p450 = pneg %p449
    $region42: #{_lambda_.75} parent=5 // pred_check_branch
      %452 = sbr.rel (%p450) target = $region44
    $region43: #{_lambda_.75} parent=5 // pred_region
      %s453 = ssub.s32 %s10, 2
      // Predicated region
      $region45: #{_lambda_.75} parent=43 // pred_check
        %p454 = pneg %p128
      $region46: #{_lambda_.75} parent=43 // pred_check_branch
        %456 = sbr.rel (%p454) target = $region48
      $region47: #{_lambda_.75} parent=43 // pred_region
        %s457 = smul.u32 8, %s16
        %p458 = scmp.lt.s32.totalorder %s457, 15
        %s459 = scalar_select %p458, %s457, 15
        %s460 = smul.addr %s459, 4
        %s461 = scalar_lea.vmem %s4, %s460
      $region48: #{_lambda_.75} parent=43 // pred_fallthru
        _
    $region44: #{_lambda_.75} parent=5 // pred_fallthru
      _
  $region6: #{_lambda_.75} parent=0 // loop_footer
    %s14 = sadd.s32 1, %s10
  $region7: #{_lambda_.75} parent=0 // loop_footer_branch
    %9 = sbr.rel target = $region3
  $region8: #{_lambda_.75} parent=0 // loop_exit
    _

// kernel: _lambda_.76
$region0: #{_lambda_.76}
  #allocation0 [shape = 'u32[]', space=smem, size = 0x4, offset = 0x4, fixed_abs, tag = 'smem constant byte address 0x4 - core index']
  #allocation1 [shape = 'u32[72,128]{1,0:T(1,128)}', space=vmem, size = 0x9000, scoped, tag = 'internal scratch']
  %s0 = inlined_call_operand.vmem [shape: bf16[128,192], index: 0, kind: input, shape index: {}]
  %s1 = inlined_call_operand.vmem [shape: bf16[192,64], index: 1, kind: input, shape index: {}]
  %s2 = inlined_call_operand.vmem [shape: f32[1,64], index: 2, kind: input, shape index: {}]
  %s3 = inlined_call_operand.vmem [shape: f32[1,64], index: 3, kind: input, shape index: {}]
  %s4 = inlined_call_operand.vmem [shape: bf16[128,64], index: 4, kind: output, shape index: {}]
  %s5 = sld [smem:[#allocation0]]
  $region49: #{_lambda_.76} parent=0
    _
  %s7 = ssub.s32 1, %s5
  %s8 = scalar_select 0, %s7, %s5
  loop: start=0, step=1, limit=4
  $region2: #{_lambda_.76} parent=0 // loop_pre_header
    _
  $region3: #{_lambda_.76} parent=0 // loop_header
    %s10 = sphi 0, %s14
    %p11 = scmp.ge.s32.totalorder %s10, 4
    %s20 = sphi 0, %s22
    %s23 = sphi 0, %s20
    %s24 = sphi 0, %s23
    %s40 = sphi 0, %s24
    %s44 = sphi 0, %s44
    %s46 = sphi 0, %s44
    %s47 = sphi 0, %s46
    %s61 = sphi 0, %s47
    %s65 = sphi 0, %s65
    %s67 = sphi 0, %s65
    %s68 = sphi 0, %s67
    %s82 = sphi 0, %s68
    %s86 = sphi 0, %s86
    %s88 = sphi 0, %s86
    %s89 = sphi 0, %s88
    %s103 = sphi 0, %s89
    %s109 = sphi 0, %s111
    %s112 = sphi 0, %s109
    %s113 = sphi 0, %s112
    %s129 = sphi 0, %s113
  $region4: #{_lambda_.76} parent=0 // loop_header_branch
    %13 = sbr.rel (%p11) target = $region8
  $region5: #{_lambda_.76} parent=0 // loop_body
    %s15 = ssub.s32 %s10, 1
    %s16 = ssub.s32 %s10, 2
    %s17 = sadd.s32 %s10, 1
    %s18 = ssub.s32 %s10, %s17
    %p19 = scmp.eq.s32.totalorder %s18, 0
    %s21 = sadd.s32 %s20, 1
    %s22 = scalar_select %p19, %s20, %s21
    %p25 = pneg %p19
    %p26 = scmp.eq.s32.totalorder %s10, 1
    %p27 = por %p25, %p26
    %p28 = scmp.ne.s32.totalorder %s20, %s23
    %p29 = scmp.eq.s32.totalorder %s10, 0
    %p30 = por %p28, %p29
    %p31 = scmp.ne.s32.totalorder %s20, %s23
    %p32 = scmp.eq.s32.totalorder %s15, 1
    %p33 = por %p31, %p32
    %p34 = scmp.ne.s32.totalorder %s23, %s24
    %p35 = scmp.eq.s32.totalorder %s15, 0
    %p36 = por %p34, %p35
    %p37 = scmp.ne.s32.totalorder %s23, %s24
    %p38 = scmp.eq.s32.totalorder %s16, 1
    %p39 = por %p37, %p38
    %p41 = scmp.ne.s32.totalorder %s24, %s40
    %p42 = scmp.eq.s32.totalorder %s16, 0
    %p43 = por %p41, %p42
    %s45 = sadd.s32 %s44, 1
    %p48 = scmp.eq.s32.totalorder %s10, 1
    %p49 = scmp.ne.s32.totalorder %s44, %s46
    %p50 = scmp.eq.s32.totalorder %s10, 0
    %p51 = por %p49, %p50
    %p52 = scmp.ne.s32.totalorder %s44, %s46
    %p53 = scmp.eq.s32.totalorder %s15, 1
    %p54 = por %p52, %p53
    %p55 = scmp.ne.s32.totalorder %s46, %s47
    %p56 = scmp.eq.s32.totalorder %s15, 0
    %p57 = por %p55, %p56
    %p58 = scmp.ne.s32.totalorder %s46, %s47
    %p59 = scmp.eq.s32.totalorder %s16, 1
    %p60 = por %p58, %p59
    %p62 = scmp.ne.s32.totalorder %s47, %s61
    %p63 = scmp.eq.s32.totalorder %s16, 0
    %p64 = por %p62, %p63
    %s66 = sadd.s32 %s65, 1
    %p69 = scmp.eq.s32.totalorder %s10, 1
    %p70 = scmp.ne.s32.totalorder %s65, %s67
    %p71 = scmp.eq.s32.totalorder %s10, 0
    %p72 = por %p70, %p71
    %p73 = scmp.ne.s32.totalorder %s65, %s67
    %p74 = scmp.eq.s32.totalorder %s15, 1
    %p75 = por %p73, %p74
    %p76 = scmp.ne.s32.totalorder %s67, %s68
    %p77 = scmp.eq.s32.totalorder %s15, 0
    %p78 = por %p76, %p77
    %p79 = scmp.ne.s32.totalorder %s67, %s68
    %p80 = scmp.eq.s32.totalorder %s16, 1
    %p81 = por %p79, %p80
    %p83 = scmp.ne.s32.totalorder %s68, %s82
    %p84 = scmp.eq.s32.totalorder %s16, 0
    %p85 = por %p83, %p84
    %s87 = sadd.s32 %s86, 1
    %p90 = scmp.eq.s32.totalorder %s10, 1
    %p91 = scmp.ne.s32.totalorder %s86, %s88
    %p92 = scmp.eq.s32.totalorder %s10, 0
    %p93 = por %p91, %p92
    %p94 = scmp.ne.s32.totalorder %s86, %s88
    %p95 = scmp.eq.s32.totalorder %s15, 1
    %p96 = por %p94, %p95
    %p97 = scmp.ne.s32.totalorder %s88, %s89
    %p98 = scmp.eq.s32.totalorder %s15, 0
    %p99 = por %p97, %p98
    %p100 = scmp.ne.s32.totalorder %s88, %s89
    %p101 = scmp.eq.s32.totalorder %s16, 1
    %p102 = por %p100, %p101
    %p104 = scmp.ne.s32.totalorder %s89, %s103
    %p105 = scmp.eq.s32.totalorder %s16, 0
    %p106 = por %p104, %p105
    %s107 = ssub.s32 %s10, %s17
    %p108 = scmp.eq.s32.totalorder %s107, 0
    %s110 = sadd.s32 %s109, 1
    %s111 = scalar_select %p108, %s109, %s110
    %p114 = pneg %p108
    %p115 = scmp.eq.s32.totalorder %s10, 1
    %p116 = por %p114, %p115
    %p117 = scmp.ne.s32.totalorder %s109, %s112
    %p118 = scmp.eq.s32.totalorder %s10, 0
    %p119 = por %p117, %p118
    %p120 = scmp.ne.s32.totalorder %s109, %s112
    %p121 = scmp.eq.s32.totalorder %s15, 1
    %p122 = por %p120, %p121
    %p123 = scmp.ne.s32.totalorder %s112, %s113
    %p124 = scmp.eq.s32.totalorder %s15, 0
    %p125 = por %p123, %p124
    %p126 = scmp.ne.s32.totalorder %s112, %s113
    %p127 = scmp.eq.s32.totalorder %s16, 1
    %p128 = por %p126, %p127
    %p130 = scmp.ne.s32.totalorder %s113, %s129
    %p131 = scmp.eq.s32.totalorder %s16, 0
    %p132 = por %p130, %p131
    %p133 = scmp.le.s32.totalorder 1, %s10
    %p134 = scmp.lt.s32.totalorder %s10, 3
    %p135 = pnand %p133, %p134
    %p136 = pneg %p135
    // Predicated region
    $region9: #{_lambda_.76} parent=5 // pred_check
      _
    $region10: #{_lambda_.76} parent=5 // pred_check_branch
      %138 = sbr.rel (%p135) target = $region12
    $region11: #{_lambda_.76} parent=5 // pred_region
      %s139 = ssub.s32 %s10, 1
      // Predicated region
      $region13: #{_lambda_.76} parent=11 // pred_check
        %p140 = pneg %p57
      $region14: #{_lambda_.76} parent=11 // pred_check_branch
        %142 = sbr.rel (%p140) target = $region16
      $region15: #{_lambda_.76} parent=11 // pred_region
        _
      $region16: #{_lambda_.76} parent=11 // pred_fallthru
        _
      // Predicated region
      $region17: #{_lambda_.76} parent=11 // pred_check
        %p143 = pneg %p78
      $region18: #{_lambda_.76} parent=11 // pred_check_branch
        %145 = sbr.rel (%p143) target = $region20
      $region19: #{_lambda_.76} parent=11 // pred_region
        _
      $region20: #{_lambda_.76} parent=11 // pred_fallthru
        _
      // Predicated region
      $region21: #{_lambda_.76} parent=11 // pred_check
        %p146 = pneg %p99
      $region22: #{_lambda_.76} parent=11 // pred_check_branch
        %148 = sbr.rel (%p146) target = $region24
      $region23: #{_lambda_.76} parent=11 // pred_region
        _
      $region24: #{_lambda_.76} parent=11 // pred_fallthru
        _
    $region12: #{_lambda_.76} parent=5 // pred_fallthru
      _
    %p149 = scmp.lt.s32.totalorder %s10, 2
    // Predicated region
    $region25: #{_lambda_.76} parent=5 // pred_check
      %p150 = pneg %p149
    $region26: #{_lambda_.76} parent=5 // pred_check_branch
      %152 = sbr.rel (%p150) target = $region28
    $region27: #{_lambda_.76} parent=5 // pred_region
      // Predicated region
      $region29: #{_lambda_.76} parent=27 // pred_check
        %p153 = pneg %p30
      $region30: #{_lambda_.76} parent=27 // pred_check_branch
        %155 = sbr.rel (%p153) target = $region32
      $region31: #{_lambda_.76} parent=27 // pred_region
        %s156 = smul.u32 8, %s10
        %p157 = scmp.lt.s32.totalorder %s156, 15
        %s158 = scalar_select %p157, %s156, 15
        %s159 = smul.addr %s158, 2
        %s160 = smul.addr %s159, 4
        %s161 = scalar_lea.vmem %s0, %s160
        %s162 = smul.u32 8, %s10
      $region32: #{_lambda_.76} parent=27 // pred_fallthru
        _
    $region28: #{_lambda_.76} parent=5 // pred_fallthru
      _
    %p163 = scmp.le.s32.totalorder 1, %s10
    %p164 = scmp.lt.s32.totalorder %s10, 3
    %p165 = pnand %p163, %p164
    %p166 = pneg %p165
    // Predicated region
    $region33: #{_lambda_.76} parent=5 // pred_check
      _
    $region34: #{_lambda_.76} parent=5 // pred_check_branch
      %168 = sbr.rel (%p165) target = $region36
    $region35: #{_lambda_.76} parent=5 // pred_region
      %s169 = ssub.s32 %s10, 1
      %s170 = smul.u32 8, %s15
      %p171 = scmp.lt.s32.totalorder %s170, 15
      %s172 = scalar_select %p171, %s170, 15
      %s173 = smul.addr %s172, 2
      %s174 = smul.addr %s173, 4
      %s175 = scalar_lea.vmem %s0, %s174
      %p176 = pneg %p36
      %p177 = pneg %p33
      %p178 = pneg %p57
      %p179 = pneg %p54
      %p180 = pneg %p78
      %p181 = pneg %p75
      %p182 = pneg %p99
      %p183 = pneg %p96
      %p184 = pneg %p125
      %p185 = pneg %p122
      %s186 = smul.u32 8, %s15
      %p187 = scmp.lt.s32.totalorder %s186, 15
      %s188 = scalar_select %p187, %s186, 15
      %s189 = smul.addr %s188, 4
      %s190 = scalar_lea.vmem %s4, %s189
      %s191 = smul.u32 8, %s15
      %p192 = scmp.lt.s32.totalorder %s191, 15
      %s193 = scalar_select %p192, %s191, 15
      %s194 = smul.addr %s193, 2
      %s195 = smul.addr %s194, 4
      %s196 = scalar_lea.vmem %s0, %s195
      %s197 = smul.u32 8, %s15
      %s198 = smul.u32 8, %s15
      %p199 = scmp.lt.s32.totalorder %s198, 15
      %s200 = scalar_select %p199, %s198, 15
      %s201 = smul.addr %s200, 4
      %s202 = scalar_lea.vmem %s4, %s201
      %s203 = smul.u32 8, %s15
      %v205 = vld [vmem:[%s196] sm:$0xff]
      %v206 = vld [vmem:[%s196 + $0x8] sm:$0xff]
      %v207 = vld [vmem:[%s196 + $0x10] sm:$0xff]
      %v208 = vld [vmem:[%s196 + $0x18] sm:$0xff]
      %v209 = vld [vmem:[%s196 + $0x20] sm:$0xff]
      %v210 = vld [vmem:[%s196 + $0x28] sm:$0xff]
      %v211 = vld [vmem:[%s196 + $0x30] sm:$0xff]
      %v212 = vld [vmem:[%s196 + $0x38] sm:$0xff]
      %v213 = vld [vmem:[%s1] sm:$0xf]
      %v214 = vld [vmem:[%s1 + $0x4] sm:$0xf]
      %v215 = vld [vmem:[%s1 + $0x8] sm:$0xf]
      %v216 = vld [vmem:[%s1 + $0xc] sm:$0xf]
      %v217 = vld [vmem:[%s1 + $0x10] sm:$0xf]
      %v218 = vld [vmem:[%s1 + $0x14] sm:$0xf]
      %v219 = vld [vmem:[%s1 + $0x18] sm:$0xf]
      %v220 = vld [vmem:[%s1 + $0x1c] sm:$0xf]
      %v221 = vld [vmem:[%s1 + $0x20] sm:$0xf]
      %v222 = vld [vmem:[%s1 + $0x24] sm:$0xf]
      %v223 = vld [vmem:[%s1 + $0x28] sm:$0xf]
      %v224 = vld [vmem:[%s1 + $0x2c] sm:$0xf]
      %v225 = vld [vmem:[%s1 + $0x30] sm:$0xf]
      %v226 = vld [vmem:[%s1 + $0x34] sm:$0xf]
      %v227 = vld [vmem:[%s1 + $0x38] sm:$0xf]
      %v228 = vld [vmem:[%s1 + $0x3c] sm:$0xf]
      %v229 = vld [vmem:[%s1 + $0x40] sm:$0xf]
      %v230 = vld [vmem:[%s1 + $0x44] sm:$0xf]
      %v231 = vld [vmem:[%s1 + $0x48] sm:$0xf]
      %v232 = vld [vmem:[%s1 + $0x4c] sm:$0xf]
      %v233 = vld [vmem:[%s1 + $0x50] sm:$0xf]
      %v234 = vld [vmem:[%s1 + $0x54] sm:$0xf]
      %v235 = vld [vmem:[%s1 + $0x58] sm:$0xf]
      %v236 = vld [vmem:[%s1 + $0x5c] sm:$0xf]
      %v245 = vunpack.c.l.b16 %v205
      %v246 = vunpack.c.h.b16 %v205
      %v247 = vunpack.c.l.b16 %v206
      %v248 = vunpack.c.h.b16 %v206
      %v249 = vunpack.c.l.b16 %v207
      %v250 = vunpack.c.h.b16 %v207
      %v251 = vunpack.c.l.b16 %v208
      %v252 = vunpack.c.h.b16 %v208
      %v253 = vunpack.c.l.b16 %v209
      %v254 = vunpack.c.h.b16 %v209
      %v255 = vunpack.c.l.b16 %v210
      %v256 = vunpack.c.h.b16 %v210
      %v257 = vunpack.c.l.b16 %v211
      %v258 = vunpack.c.h.b16 %v211
      %v259 = vunpack.c.l.b16 %v212
      %v260 = vunpack.c.h.b16 %v212
      %v261 = vpack.c.b16 %v247, %v245
      %v262 = vpack.c.b16 %v248, %v246
      %v263 = vpack.c.b16 %v251, %v249
      %v264 = vpack.c.b16 %v252, %v250
      %v265 = vpack.c.b16 %v255, %v253
      %v266 = vpack.c.b16 %v256, %v254
      %v267 = vpack.c.b16 %v259, %v257
      %v268 = vpack.c.b16 %v260, %v258
      %v297 = vunpack.c.l.b16 %v213
      %v298 = vunpack.c.l.b16 %v214
      %v299 = vunpack.c.l.b16 %v215
      %v300 = vunpack.c.l.b16 %v216
      %v301 = vunpack.c.l.b16 %v217
      %v302 = vunpack.c.l.b16 %v218
      %v303 = vunpack.c.l.b16 %v219
      %v304 = vunpack.c.l.b16 %v220
      %v305 = vunpack.c.l.b16 %v221
      %v306 = vunpack.c.l.b16 %v222
      %v307 = vunpack.c.l.b16 %v223
      %v308 = vunpack.c.l.b16 %v224
      %v309 = vunpack.c.l.b16 %v225
      %v310 = vunpack.c.l.b16 %v226
      %v311 = vunpack.c.l.b16 %v227
      %v312 = vunpack.c.l.b16 %v228
      %v313 = vunpack.c.l.b16 %v229
      %v314 = vunpack.c.l.b16 %v230
      %v315 = vunpack.c.l.b16 %v231
      %v316 = vunpack.c.l.b16 %v232
      %v317 = vunpack.c.l.b16 %v233
      %v318 = vunpack.c.l.b16 %v234
      %v319 = vunpack.c.l.b16 %v235
      %v320 = vunpack.c.l.b16 %v236
      %v321 = vpack.c.b16 %v298, %v297
      %v322 = vpack.c.b16 %v300, %v299
      %v323 = vpack.c.b16 %v302, %v301
      %v324 = vpack.c.b16 %v304, %v303
      %v325 = vpack.c.b16 %v306, %v305
      %v326 = vpack.c.b16 %v308, %v307
      %v327 = vpack.c.b16 %v310, %v309
      %v328 = vpack.c.b16 %v312, %v311
      %v329 = vpack.c.b16 %v314, %v313
      %v330 = vpack.c.b16 %v316, %v315
      %v331 = vpack.c.b16 %v318, %v317
      %v332 = vpack.c.b16 %v320, %v319
      %vm345 = vcmask 523264
      %v347 = vsel %vm345, %v262, 0
      %v350 = vsel %vm345, %v264, 0
      %v353 = vsel %vm345, %v266, 0
      %v356 = vsel %vm345, %v268, 0
      %358 = vmatpush.bf16.msra.mxu0 %v328
      %359 = vmatpush.bf16.msra.mxu0 %v327
      %360 = vmatpush.bf16.msra.mxu0 %v326
      %361 = vmatpush.bf16.msra.mxu0 %v325
      %362 = vmatpush.bf16.msra.mxu0 %v324
      %363 = vmatpush.bf16.msra.mxu0 %v323
      %364 = vmatpush.bf16.msra.mxu0 %v322
      %365 = vmatpush.bf16.msra.mxu0 %v321
      %366 = vmatmul.bf16.gmra.mxu0 %v261
      %v367 = vpop.f32.mrf.mxu0
      %v368 = vadd.f32 0.0, %v367
      %v369 = vpop.f32.mrf.mxu0
      %v370 = vadd.f32 0.0, %v369
      %371 = vmatmul.bf16.gmra.mxu0 %v263
      %v372 = vpop.f32.mrf.mxu0
      %v373 = vadd.f32 0.0, %v372
      %v374 = vpop.f32.mrf.mxu0
      %v375 = vadd.f32 0.0, %v374
      %376 = vmatmul.bf16.gmra.mxu0 %v265
      %v377 = vpop.f32.mrf.mxu0
      %v378 = vadd.f32 0.0, %v377
      %v379 = vpop.f32.mrf.mxu0
      %v380 = vadd.f32 0.0, %v379
      %381 = vmatmul.bf16.gmra.mxu0 %v267
      %v382 = vpop.f32.mrf.mxu0
      %v383 = vadd.f32 0.0, %v382
      %v384 = vpop.f32.mrf.mxu0
      %v385 = vadd.f32 0.0, %v384
      %386 = vdwg.mxu0
      %387 = vmatpush.bf16.msra.mxu0 0
      %388 = vmatpush.bf16.msra.mxu0 0
      %389 = vmatpush.bf16.msra.mxu0 0
      %390 = vmatpush.bf16.msra.mxu0 0
      %391 = vmatpush.bf16.msra.mxu0 %v332
      %392 = vmatpush.bf16.msra.mxu0 %v331
      %393 = vmatpush.bf16.msra.mxu0 %v330
      %394 = vmatpush.bf16.msra.mxu0 %v329
      %395 = vmatmul.bf16.gmra.mxu0 %v347
      %v396 = vpop.f32.mrf.mxu0
      %v397 = vadd.f32 %v368, %v396
      %v398 = vpop.f32.mrf.mxu0
      %v399 = vadd.f32 %v370, %v398
      %400 = vmatmul.bf16.gmra.mxu0 %v350
      %v401 = vpop.f32.mrf.mxu0
      %v402 = vadd.f32 %v373, %v401
      %v403 = vpop.f32.mrf.mxu0
      %v404 = vadd.f32 %v375, %v403
      %405 = vmatmul.bf16.gmra.mxu0 %v353
      %v406 = vpop.f32.mrf.mxu0
      %v407 = vadd.f32 %v378, %v406
      %v408 = vpop.f32.mrf.mxu0
      %v409 = vadd.f32 %v380, %v408
      %410 = vmatmul.bf16.gmra.mxu0 %v356
      %v411 = vpop.f32.mrf.mxu0
      %v412 = vadd.f32 %v383, %v411
      %v413 = vpop.f32.mrf.mxu0
      %v414 = vadd.f32 %v385, %v413
      %415 = vdwg.mxu0
      %v416 = vld [vmem:[%s2] sm:$0x1]
      %v418 = vperm.slane %v416, 0
      %v420 = vmul.f32 %v397, %v418
      %v421 = vmul.f32 %v399, %v418
      %v422 = vmul.f32 %v402, %v418
      %v423 = vmul.f32 %v404, %v418
      %v424 = vmul.f32 %v407, %v418
      %v425 = vmul.f32 %v409, %v418
      %v426 = vmul.f32 %v412, %v418
      %v427 = vmul.f32 %v414, %v418
      %v428 = vld [vmem:[%s3] sm:$0x1]
      %v430 = vperm.slane %v428, 0
      %v432 = vadd.f32 %v420, %v430
      %v433 = vadd.f32 %v421, %v430
      %v434 = vadd.f32 %v422, %v430
      %v435 = vadd.f32 %v423, %v430
      %v436 = vadd.f32 %v424, %v430
      %v437 = vadd.f32 %v425, %v430
      %v438 = vadd.f32 %v426, %v430
      %v439 = vadd.f32 %v427, %v430
      %v440 = vmax.f32 %v432, 0.0
      %v441 = vmax.f32 %v433, 0.0
      %v442 = vmax.f32 %v434, 0.0
      %v443 = vmax.f32 %v435, 0.0
      %v444 = vmax.f32 %v436, 0.0
      %v445 = vmax.f32 %v437, 0.0
      %v446 = vmax.f32 %v438, 0.0
      %v447 = vmax.f32 %v439, 0.0
      %v448 = vpack.c.bf16 %v440, %v440
      %v449 = vpack.c.bf16 %v441, %v441
      %v450 = vpack.c.bf16 %v442, %v442
      %v451 = vpack.c.bf16 %v443, %v443
      %v452 = vpack.c.bf16 %v444, %v444
      %v453 = vpack.c.bf16 %v445, %v445
      %v454 = vpack.c.bf16 %v446, %v446
      %v455 = vpack.c.bf16 %v447, %v447
      %vm456 = vcmask 519168
      %457 = vst.msk [vmem:[%s202] sm:$0xf] %vm456, %v448
      %458 = vst.msk [vmem:[%s202 + $0x4] sm:$0xf] %vm456, %v449
      %459 = vst.msk [vmem:[%s202 + $0x8] sm:$0xf] %vm456, %v450
      %460 = vst.msk [vmem:[%s202 + $0xc] sm:$0xf] %vm456, %v451
      %461 = vst.msk [vmem:[%s202 + $0x10] sm:$0xf] %vm456, %v452
      %462 = vst.msk [vmem:[%s202 + $0x14] sm:$0xf] %vm456, %v453
      %463 = vst.msk [vmem:[%s202 + $0x18] sm:$0xf] %vm456, %v454
      %464 = vst.msk [vmem:[%s202 + $0x1c] sm:$0xf] %vm456, %v455
      %s465 = smul.u32 8, %s15
      %p466 = scmp.lt.s32.totalorder %s465, 15
      %s467 = scalar_select %p466, %s465, 15
      %s468 = smul.addr %s467, 4
      %s469 = scalar_lea.vmem %s4, %s468
      // Predicated region
      $region37: #{_lambda_.76} parent=35 // pred_check
        %p470 = pneg %p122
      $region38: #{_lambda_.76} parent=35 // pred_check_branch
        %472 = sbr.rel (%p470) target = $region40
      $region39: #{_lambda_.76} parent=35 // pred_region
        %s473 = smul.u32 8, %s15
      $region40: #{_lambda_.76} parent=35 // pred_fallthru
        _
    $region36: #{_lambda_.76} parent=5 // pred_fallthru
      _
    %p474 = scmp.le.s32.totalorder 2, %s10
    // Predicated region
    $region41: #{_lambda_.76} parent=5 // pred_check
      %p475 = pneg %p474
    $region42: #{_lambda_.76} parent=5 // pred_check_branch
      %477 = sbr.rel (%p475) target = $region44
    $region43: #{_lambda_.76} parent=5 // pred_region
      %s478 = ssub.s32 %s10, 2
      // Predicated region
      $region45: #{_lambda_.76} parent=43 // pred_check
        %p479 = pneg %p128
      $region46: #{_lambda_.76} parent=43 // pred_check_branch
        %481 = sbr.rel (%p479) target = $region48
      $region47: #{_lambda_.76} parent=43 // pred_region
        %s482 = smul.u32 8, %s16
        %p483 = scmp.lt.s32.totalorder %s482, 15
        %s484 = scalar_select %p483, %s482, 15
        %s485 = smul.addr %s484, 4
        %s486 = scalar_lea.vmem %s4, %s485
      $region48: #{_lambda_.76} parent=43 // pred_fallthru
        _
    $region44: #{_lambda_.76} parent=5 // pred_fallthru
      _
  $region6: #{_lambda_.76} parent=0 // loop_footer
    %s14 = sadd.s32 1, %s10
  $region7: #{_lambda_.76} parent=0 // loop_footer_branch
    %9 = sbr.rel target = $region3
  $region8: #{_lambda_.76} parent=0 // loop_exit
    _

// kernel: _lambda_.79
$region0: #{_lambda_.79}
  #allocation0 [shape = 'u32[]', space=smem, size = 0x4, offset = 0x4, fixed_abs, tag = 'smem constant byte address 0x4 - core index']
  #allocation1 [shape = 'u32[72,128]{1,0:T(1,128)}', space=vmem, size = 0x9000, scoped, tag = 'internal scratch']
  %s0 = inlined_call_operand.vmem [shape: bf16[128,192], index: 0, kind: input, shape index: {}]
  %s1 = inlined_call_operand.vmem [shape: bf16[192,64], index: 1, kind: input, shape index: {}]
  %s2 = inlined_call_operand.vmem [shape: f32[1,64], index: 2, kind: input, shape index: {}]
  %s3 = inlined_call_operand.vmem [shape: f32[1,64], index: 3, kind: input, shape index: {}]
  %s4 = inlined_call_operand.vmem [shape: bf16[128,64], index: 4, kind: input, shape index: {}]
  %s5 = inlined_call_operand.vmem [shape: bf16[128,64], index: 5, kind: output, shape index: {}]
  %s6 = sld [smem:[#allocation0]]
  $region53: #{_lambda_.79} parent=0
    _
  %s8 = ssub.s32 1, %s6
  %s9 = scalar_select 0, %s8, %s6
  loop: start=0, step=1, limit=4
  $region2: #{_lambda_.79} parent=0 // loop_pre_header
    _
  $region3: #{_lambda_.79} parent=0 // loop_header
    %s11 = sphi 0, %s15
    %p12 = scmp.ge.s32.totalorder %s11, 4
    %s21 = sphi 0, %s23
    %s24 = sphi 0, %s21
    %s25 = sphi 0, %s24
    %s41 = sphi 0, %s25
    %s45 = sphi 0, %s45
    %s47 = sphi 0, %s45
    %s48 = sphi 0, %s47
    %s62 = sphi 0, %s48
    %s66 = sphi 0, %s66
    %s68 = sphi 0, %s66
    %s69 = sphi 0, %s68
    %s83 = sphi 0, %s69
    %s87 = sphi 0, %s87
    %s89 = sphi 0, %s87
    %s90 = sphi 0, %s89
    %s104 = sphi 0, %s90
    %s110 = sphi 0, %s112
    %s113 = sphi 0, %s110
    %s114 = sphi 0, %s113
    %s130 = sphi 0, %s114
    %s136 = sphi 0, %s138
    %s139 = sphi 0, %s136
    %s140 = sphi 0, %s139
    %s156 = sphi 0, %s140
  $region4: #{_lambda_.79} parent=0 // loop_header_branch
    %14 = sbr.rel (%p12) target = $region8
  $region5: #{_lambda_.79} parent=0 // loop_body
    %s16 = ssub.s32 %s11, 1
    %s17 = ssub.s32 %s11, 2
    %s18 = sadd.s32 %s11, 1
    %s19 = ssub.s32 %s11, %s18
    %p20 = scmp.eq.s32.totalorder %s19, 0
    %s22 = sadd.s32 %s21, 1
    %s23 = scalar_select %p20, %s21, %s22
    %p26 = pneg %p20
    %p27 = scmp.eq.s32.totalorder %s11, 1
    %p28 = por %p26, %p27
    %p29 = scmp.ne.s32.totalorder %s21, %s24
    %p30 = scmp.eq.s32.totalorder %s11, 0
    %p31 = por %p29, %p30
    %p32 = scmp.ne.s32.totalorder %s21, %s24
    %p33 = scmp.eq.s32.totalorder %s16, 1
    %p34 = por %p32, %p33
    %p35 = scmp.ne.s32.totalorder %s24, %s25
    %p36 = scmp.eq.s32.totalorder %s16, 0
    %p37 = por %p35, %p36
    %p38 = scmp.ne.s32.totalorder %s24, %s25
    %p39 = scmp.eq.s32.totalorder %s17, 1
    %p40 = por %p38, %p39
    %p42 = scmp.ne.s32.totalorder %s25, %s41
    %p43 = scmp.eq.s32.totalorder %s17, 0
    %p44 = por %p42, %p43
    %s46 = sadd.s32 %s45, 1
    %p49 = scmp.eq.s32.totalorder %s11, 1
    %p50 = scmp.ne.s32.totalorder %s45, %s47
    %p51 = scmp.eq.s32.totalorder %s11, 0
    %p52 = por %p50, %p51
    %p53 = scmp.ne.s32.totalorder %s45, %s47
    %p54 = scmp.eq.s32.totalorder %s16, 1
    %p55 = por %p53, %p54
    %p56 = scmp.ne.s32.totalorder %s47, %s48
    %p57 = scmp.eq.s32.totalorder %s16, 0
    %p58 = por %p56, %p57
    %p59 = scmp.ne.s32.totalorder %s47, %s48
    %p60 = scmp.eq.s32.totalorder %s17, 1
    %p61 = por %p59, %p60
    %p63 = scmp.ne.s32.totalorder %s48, %s62
    %p64 = scmp.eq.s32.totalorder %s17, 0
    %p65 = por %p63, %p64
    %s67 = sadd.s32 %s66, 1
    %p70 = scmp.eq.s32.totalorder %s11, 1
    %p71 = scmp.ne.s32.totalorder %s66, %s68
    %p72 = scmp.eq.s32.totalorder %s11, 0
    %p73 = por %p71, %p72
    %p74 = scmp.ne.s32.totalorder %s66, %s68
    %p75 = scmp.eq.s32.totalorder %s16, 1
    %p76 = por %p74, %p75
    %p77 = scmp.ne.s32.totalorder %s68, %s69
    %p78 = scmp.eq.s32.totalorder %s16, 0
    %p79 = por %p77, %p78
    %p80 = scmp.ne.s32.totalorder %s68, %s69
    %p81 = scmp.eq.s32.totalorder %s17, 1
    %p82 = por %p80, %p81
    %p84 = scmp.ne.s32.totalorder %s69, %s83
    %p85 = scmp.eq.s32.totalorder %s17, 0
    %p86 = por %p84, %p85
    %s88 = sadd.s32 %s87, 1
    %p91 = scmp.eq.s32.totalorder %s11, 1
    %p92 = scmp.ne.s32.totalorder %s87, %s89
    %p93 = scmp.eq.s32.totalorder %s11, 0
    %p94 = por %p92, %p93
    %p95 = scmp.ne.s32.totalorder %s87, %s89
    %p96 = scmp.eq.s32.totalorder %s16, 1
    %p97 = por %p95, %p96
    %p98 = scmp.ne.s32.totalorder %s89, %s90
    %p99 = scmp.eq.s32.totalorder %s16, 0
    %p100 = por %p98, %p99
    %p101 = scmp.ne.s32.totalorder %s89, %s90
    %p102 = scmp.eq.s32.totalorder %s17, 1
    %p103 = por %p101, %p102
    %p105 = scmp.ne.s32.totalorder %s90, %s104
    %p106 = scmp.eq.s32.totalorder %s17, 0
    %p107 = por %p105, %p106
    %s108 = ssub.s32 %s11, %s18
    %p109 = scmp.eq.s32.totalorder %s108, 0
    %s111 = sadd.s32 %s110, 1
    %s112 = scalar_select %p109, %s110, %s111
    %p115 = pneg %p109
    %p116 = scmp.eq.s32.totalorder %s11, 1
    %p117 = por %p115, %p116
    %p118 = scmp.ne.s32.totalorder %s110, %s113
    %p119 = scmp.eq.s32.totalorder %s11, 0
    %p120 = por %p118, %p119
    %p121 = scmp.ne.s32.totalorder %s110, %s113
    %p122 = scmp.eq.s32.totalorder %s16, 1
    %p123 = por %p121, %p122
    %p124 = scmp.ne.s32.totalorder %s113, %s114
    %p125 = scmp.eq.s32.totalorder %s16, 0
    %p126 = por %p124, %p125
    %p127 = scmp.ne.s32.totalorder %s113, %s114
    %p128 = scmp.eq.s32.totalorder %s17, 1
    %p129 = por %p127, %p128
    %p131 = scmp.ne.s32.totalorder %s114, %s130
    %p132 = scmp.eq.s32.totalorder %s17, 0
    %p133 = por %p131, %p132
    %s134 = ssub.s32 %s11, %s18
    %p135 = scmp.eq.s32.totalorder %s134, 0
    %s137 = sadd.s32 %s136, 1
    %s138 = scalar_select %p135, %s136, %s137
    %p141 = pneg %p135
    %p142 = scmp.eq.s32.totalorder %s11, 1
    %p143 = por %p141, %p142
    %p144 = scmp.ne.s32.totalorder %s136, %s139
    %p145 = scmp.eq.s32.totalorder %s11, 0
    %p146 = por %p144, %p145
    %p147 = scmp.ne.s32.totalorder %s136, %s139
    %p148 = scmp.eq.s32.totalorder %s16, 1
    %p149 = por %p147, %p148
    %p150 = scmp.ne.s32.totalorder %s139, %s140
    %p151 = scmp.eq.s32.totalorder %s16, 0
    %p152 = por %p150, %p151
    %p153 = scmp.ne.s32.totalorder %s139, %s140
    %p154 = scmp.eq.s32.totalorder %s17, 1
    %p155 = por %p153, %p154
    %p157 = scmp.ne.s32.totalorder %s140, %s156
    %p158 = scmp.eq.s32.totalorder %s17, 0
    %p159 = por %p157, %p158
    %p160 = scmp.le.s32.totalorder 1, %s11
    %p161 = scmp.lt.s32.totalorder %s11, 3
    %p162 = pnand %p160, %p161
    %p163 = pneg %p162
    // Predicated region
    $region9: #{_lambda_.79} parent=5 // pred_check
      _
    $region10: #{_lambda_.79} parent=5 // pred_check_branch
      %165 = sbr.rel (%p162) target = $region12
    $region11: #{_lambda_.79} parent=5 // pred_region
      %s166 = ssub.s32 %s11, 1
      // Predicated region
      $region13: #{_lambda_.79} parent=11 // pred_check
        %p167 = pneg %p58
      $region14: #{_lambda_.79} parent=11 // pred_check_branch
        %169 = sbr.rel (%p167) target = $region16
      $region15: #{_lambda_.79} parent=11 // pred_region
        _
      $region16: #{_lambda_.79} parent=11 // pred_fallthru
        _
      // Predicated region
      $region17: #{_lambda_.79} parent=11 // pred_check
        %p170 = pneg %p79
      $region18: #{_lambda_.79} parent=11 // pred_check_branch
        %172 = sbr.rel (%p170) target = $region20
      $region19: #{_lambda_.79} parent=11 // pred_region
        _
      $region20: #{_lambda_.79} parent=11 // pred_fallthru
        _
      // Predicated region
      $region21: #{_lambda_.79} parent=11 // pred_check
        %p173 = pneg %p100
      $region22: #{_lambda_.79} parent=11 // pred_check_branch
        %175 = sbr.rel (%p173) target = $region24
      $region23: #{_lambda_.79} parent=11 // pred_region
        _
      $region24: #{_lambda_.79} parent=11 // pred_fallthru
        _
    $region12: #{_lambda_.79} parent=5 // pred_fallthru
      _
    %p176 = scmp.lt.s32.totalorder %s11, 2
    // Predicated region
    $region25: #{_lambda_.79} parent=5 // pred_check
      %p177 = pneg %p176
    $region26: #{_lambda_.79} parent=5 // pred_check_branch
      %179 = sbr.rel (%p177) target = $region28
    $region27: #{_lambda_.79} parent=5 // pred_region
      // Predicated region
      $region29: #{_lambda_.79} parent=27 // pred_check
        %p180 = pneg %p31
      $region30: #{_lambda_.79} parent=27 // pred_check_branch
        %182 = sbr.rel (%p180) target = $region32
      $region31: #{_lambda_.79} parent=27 // pred_region
        %s183 = smul.u32 8, %s11
        %p184 = scmp.lt.s32.totalorder %s183, 15
        %s185 = scalar_select %p184, %s183, 15
        %s186 = smul.addr %s185, 2
        %s187 = smul.addr %s186, 4
        %s188 = scalar_lea.vmem %s0, %s187
        %s189 = smul.u32 8, %s11
      $region32: #{_lambda_.79} parent=27 // pred_fallthru
        _
      // Predicated region
      $region33: #{_lambda_.79} parent=27 // pred_check
        %p190 = pneg %p120
      $region34: #{_lambda_.79} parent=27 // pred_check_branch
        %192 = sbr.rel (%p190) target = $region36
      $region35: #{_lambda_.79} parent=27 // pred_region
        %s193 = smul.u32 8, %s11
        %p194 = scmp.lt.s32.totalorder %s193, 15
        %s195 = scalar_select %p194, %s193, 15
        %s196 = smul.addr %s195, 4
        %s197 = scalar_lea.vmem %s4, %s196
        %s198 = smul.u32 8, %s11
      $region36: #{_lambda_.79} parent=27 // pred_fallthru
        _
    $region28: #{_lambda_.79} parent=5 // pred_fallthru
      _
    %p199 = scmp.le.s32.totalorder 1, %s11
    %p200 = scmp.lt.s32.totalorder %s11, 3
    %p201 = pnand %p199, %p200
    %p202 = pneg %p201
    // Predicated region
    $region37: #{_lambda_.79} parent=5 // pred_check
      _
    $region38: #{_lambda_.79} parent=5 // pred_check_branch
      %204 = sbr.rel (%p201) target = $region40
    $region39: #{_lambda_.79} parent=5 // pred_region
      %s205 = ssub.s32 %s11, 1
      %s206 = smul.u32 8, %s16
      %p207 = scmp.lt.s32.totalorder %s206, 15
      %s208 = scalar_select %p207, %s206, 15
      %s209 = smul.addr %s208, 2
      %s210 = smul.addr %s209, 4
      %s211 = scalar_lea.vmem %s0, %s210
      %p212 = pneg %p37
      %p213 = pneg %p34
      %p214 = pneg %p58
      %p215 = pneg %p55
      %p216 = pneg %p79
      %p217 = pneg %p76
      %p218 = pneg %p100
      %p219 = pneg %p97
      %s220 = smul.u32 8, %s16
      %p221 = scmp.lt.s32.totalorder %s220, 15
      %s222 = scalar_select %p221, %s220, 15
      %s223 = smul.addr %s222, 4
      %s224 = scalar_lea.vmem %s4, %s223
      %p225 = pneg %p126
      %p226 = pneg %p123
      %p227 = pneg %p152
      %p228 = pneg %p149
      %s229 = smul.u32 8, %s16
      %p230 = scmp.lt.s32.totalorder %s229, 15
      %s231 = scalar_select %p230, %s229, 15
      %s232 = smul.addr %s231, 4
      %s233 = scalar_lea.vmem %s5, %s232
      %s234 = smul.u32 8, %s16
      %p235 = scmp.lt.s32.totalorder %s234, 15
      %s236 = scalar_select %p235, %s234, 15
      %s237 = smul.addr %s236, 2
      %s238 = smul.addr %s237, 4
      %s239 = scalar_lea.vmem %s0, %s238
      %s240 = smul.u32 8, %s16
      %s241 = smul.u32 8, %s16
      %p242 = scmp.lt.s32.totalorder %s241, 15
      %s243 = scalar_select %p242, %s241, 15
      %s244 = smul.addr %s243, 4
      %s245 = scalar_lea.vmem %s4, %s244
      %s246 = smul.u32 8, %s16
      %s247 = smul.u32 8, %s16
      %p248 = scmp.lt.s32.totalorder %s247, 15
      %s249 = scalar_select %p248, %s247, 15
      %s250 = smul.addr %s249, 4
      %s251 = scalar_lea.vmem %s5, %s250
      %s252 = smul.u32 8, %s16
      %v254 = vld [vmem:[%s239] sm:$0xff]
      %v255 = vld [vmem:[%s239 + $0x8] sm:$0xff]
      %v256 = vld [vmem:[%s239 + $0x10] sm:$0xff]
      %v257 = vld [vmem:[%s239 + $0x18] sm:$0xff]
      %v258 = vld [vmem:[%s239 + $0x20] sm:$0xff]
      %v259 = vld [vmem:[%s239 + $0x28] sm:$0xff]
      %v260 = vld [vmem:[%s239 + $0x30] sm:$0xff]
      %v261 = vld [vmem:[%s239 + $0x38] sm:$0xff]
      %v262 = vld [vmem:[%s1] sm:$0xf]
      %v263 = vld [vmem:[%s1 + $0x4] sm:$0xf]
      %v264 = vld [vmem:[%s1 + $0x8] sm:$0xf]
      %v265 = vld [vmem:[%s1 + $0xc] sm:$0xf]
      %v266 = vld [vmem:[%s1 + $0x10] sm:$0xf]
      %v267 = vld [vmem:[%s1 + $0x14] sm:$0xf]
      %v268 = vld [vmem:[%s1 + $0x18] sm:$0xf]
      %v269 = vld [vmem:[%s1 + $0x1c] sm:$0xf]
      %v270 = vld [vmem:[%s1 + $0x20] sm:$0xf]
      %v271 = vld [vmem:[%s1 + $0x24] sm:$0xf]
      %v272 = vld [vmem:[%s1 + $0x28] sm:$0xf]
      %v273 = vld [vmem:[%s1 + $0x2c] sm:$0xf]
      %v274 = vld [vmem:[%s1 + $0x30] sm:$0xf]
      %v275 = vld [vmem:[%s1 + $0x34] sm:$0xf]
      %v276 = vld [vmem:[%s1 + $0x38] sm:$0xf]
      %v277 = vld [vmem:[%s1 + $0x3c] sm:$0xf]
      %v278 = vld [vmem:[%s1 + $0x40] sm:$0xf]
      %v279 = vld [vmem:[%s1 + $0x44] sm:$0xf]
      %v280 = vld [vmem:[%s1 + $0x48] sm:$0xf]
      %v281 = vld [vmem:[%s1 + $0x4c] sm:$0xf]
      %v282 = vld [vmem:[%s1 + $0x50] sm:$0xf]
      %v283 = vld [vmem:[%s1 + $0x54] sm:$0xf]
      %v284 = vld [vmem:[%s1 + $0x58] sm:$0xf]
      %v285 = vld [vmem:[%s1 + $0x5c] sm:$0xf]
      %v294 = vunpack.c.l.b16 %v254
      %v295 = vunpack.c.h.b16 %v254
      %v296 = vunpack.c.l.b16 %v255
      %v297 = vunpack.c.h.b16 %v255
      %v298 = vunpack.c.l.b16 %v256
      %v299 = vunpack.c.h.b16 %v256
      %v300 = vunpack.c.l.b16 %v257
      %v301 = vunpack.c.h.b16 %v257
      %v302 = vunpack.c.l.b16 %v258
      %v303 = vunpack.c.h.b16 %v258
      %v304 = vunpack.c.l.b16 %v259
      %v305 = vunpack.c.h.b16 %v259
      %v306 = vunpack.c.l.b16 %v260
      %v307 = vunpack.c.h.b16 %v260
      %v308 = vunpack.c.l.b16 %v261
      %v309 = vunpack.c.h.b16 %v261
      %v310 = vpack.c.b16 %v296, %v294
      %v311 = vpack.c.b16 %v297, %v295
      %v312 = vpack.c.b16 %v300, %v298
      %v313 = vpack.c.b16 %v301, %v299
      %v314 = vpack.c.b16 %v304, %v302
      %v315 = vpack.c.b16 %v305, %v303
      %v316 = vpack.c.b16 %v308, %v306
      %v317 = vpack.c.b16 %v309, %v307
      %v346 = vunpack.c.l.b16 %v262
      %v347 = vunpack.c.l.b16 %v263
      %v348 = vunpack.c.l.b16 %v264
      %v349 = vunpack.c.l.b16 %v265
      %v350 = vunpack.c.l.b16 %v266
      %v351 = vunpack.c.l.b16 %v267
      %v352 = vunpack.c.l.b16 %v268
      %v353 = vunpack.c.l.b16 %v269
      %v354 = vunpack.c.l.b16 %v270
      %v355 = vunpack.c.l.b16 %v271
      %v356 = vunpack.c.l.b16 %v272
      %v357 = vunpack.c.l.b16 %v273
      %v358 = vunpack.c.l.b16 %v274
      %v359 = vunpack.c.l.b16 %v275
      %v360 = vunpack.c.l.b16 %v276
      %v361 = vunpack.c.l.b16 %v277
      %v362 = vunpack.c.l.b16 %v278
      %v363 = vunpack.c.l.b16 %v279
      %v364 = vunpack.c.l.b16 %v280
      %v365 = vunpack.c.l.b16 %v281
      %v366 = vunpack.c.l.b16 %v282
      %v367 = vunpack.c.l.b16 %v283
      %v368 = vunpack.c.l.b16 %v284
      %v369 = vunpack.c.l.b16 %v285
      %v370 = vpack.c.b16 %v347, %v346
      %v371 = vpack.c.b16 %v349, %v348
      %v372 = vpack.c.b16 %v351, %v350
      %v373 = vpack.c.b16 %v353, %v352
      %v374 = vpack.c.b16 %v355, %v354
      %v375 = vpack.c.b16 %v357, %v356
      %v376 = vpack.c.b16 %v359, %v358
      %v377 = vpack.c.b16 %v361, %v360
      %v378 = vpack.c.b16 %v363, %v362
      %v379 = vpack.c.b16 %v365, %v364
      %v380 = vpack.c.b16 %v367, %v366
      %v381 = vpack.c.b16 %v369, %v368
      %vm394 = vcmask 523264
      %v396 = vsel %vm394, %v311, 0
      %v399 = vsel %vm394, %v313, 0
      %v402 = vsel %vm394, %v315, 0
      %v405 = vsel %vm394, %v317, 0
      %407 = vmatpush.bf16.msra.mxu0 %v377
      %408 = vmatpush.bf16.msra.mxu0 %v376
      %409 = vmatpush.bf16.msra.mxu0 %v375
      %410 = vmatpush.bf16.msra.mxu0 %v374
      %411 = vmatpush.bf16.msra.mxu0 %v373
      %412 = vmatpush.bf16.msra.mxu0 %v372
      %413 = vmatpush.bf16.msra.mxu0 %v371
      %414 = vmatpush.bf16.msra.mxu0 %v370
      %415 = vmatmul.bf16.gmra.mxu0 %v310
      %v416 = vpop.f32.mrf.mxu0
      %v417 = vadd.f32 0.0, %v416
      %v418 = vpop.f32.mrf.mxu0
      %v419 = vadd.f32 0.0, %v418
      %420 = vmatmul.bf16.gmra.mxu0 %v312
      %v421 = vpop.f32.mrf.mxu0
      %v422 = vadd.f32 0.0, %v421
      %v423 = vpop.f32.mrf.mxu0
      %v424 = vadd.f32 0.0, %v423
      %425 = vmatmul.bf16.gmra.mxu0 %v314
      %v426 = vpop.f32.mrf.mxu0
      %v427 = vadd.f32 0.0, %v426
      %v428 = vpop.f32.mrf.mxu0
      %v429 = vadd.f32 0.0, %v428
      %430 = vmatmul.bf16.gmra.mxu0 %v316
      %v431 = vpop.f32.mrf.mxu0
      %v432 = vadd.f32 0.0, %v431
      %v433 = vpop.f32.mrf.mxu0
      %v434 = vadd.f32 0.0, %v433
      %435 = vdwg.mxu0
      %436 = vmatpush.bf16.msra.mxu0 0
      %437 = vmatpush.bf16.msra.mxu0 0
      %438 = vmatpush.bf16.msra.mxu0 0
      %439 = vmatpush.bf16.msra.mxu0 0
      %440 = vmatpush.bf16.msra.mxu0 %v381
      %441 = vmatpush.bf16.msra.mxu0 %v380
      %442 = vmatpush.bf16.msra.mxu0 %v379
      %443 = vmatpush.bf16.msra.mxu0 %v378
      %444 = vmatmul.bf16.gmra.mxu0 %v396
      %v445 = vpop.f32.mrf.mxu0
      %v446 = vadd.f32 %v417, %v445
      %v447 = vpop.f32.mrf.mxu0
      %v448 = vadd.f32 %v419, %v447
      %449 = vmatmul.bf16.gmra.mxu0 %v399
      %v450 = vpop.f32.mrf.mxu0
      %v451 = vadd.f32 %v422, %v450
      %v452 = vpop.f32.mrf.mxu0
      %v453 = vadd.f32 %v424, %v452
      %454 = vmatmul.bf16.gmra.mxu0 %v402
      %v455 = vpop.f32.mrf.mxu0
      %v456 = vadd.f32 %v427, %v455
      %v457 = vpop.f32.mrf.mxu0
      %v458 = vadd.f32 %v429, %v457
      %459 = vmatmul.bf16.gmra.mxu0 %v405
      %v460 = vpop.f32.mrf.mxu0
      %v461 = vadd.f32 %v432, %v460
      %v462 = vpop.f32.mrf.mxu0
      %v463 = vadd.f32 %v434, %v462
      %464 = vdwg.mxu0
      %v465 = vld [vmem:[%s2] sm:$0x1]
      %v467 = vperm.slane %v465, 0
      %v469 = vmul.f32 %v446, %v467
      %v470 = vmul.f32 %v448, %v467
      %v471 = vmul.f32 %v451, %v467
      %v472 = vmul.f32 %v453, %v467
      %v473 = vmul.f32 %v456, %v467
      %v474 = vmul.f32 %v458, %v467
      %v475 = vmul.f32 %v461, %v467
      %v476 = vmul.f32 %v463, %v467
      %v477 = vld [vmem:[%s3] sm:$0x1]
      %v479 = vperm.slane %v477, 0
      %v481 = vadd.f32 %v469, %v479
      %v482 = vadd.f32 %v470, %v479
      %v483 = vadd.f32 %v471, %v479
      %v484 = vadd.f32 %v472, %v479
      %v485 = vadd.f32 %v473, %v479
      %v486 = vadd.f32 %v474, %v479
      %v487 = vadd.f32 %v475, %v479
      %v488 = vadd.f32 %v476, %v479
      %v489 = vld [vmem:[%s245] sm:$0xf]
      %v490 = vld [vmem:[%s245 + $0x4] sm:$0xf]
      %v491 = vld [vmem:[%s245 + $0x8] sm:$0xf]
      %v492 = vld [vmem:[%s245 + $0xc] sm:$0xf]
      %v493 = vld [vmem:[%s245 + $0x10] sm:$0xf]
      %v494 = vld [vmem:[%s245 + $0x14] sm:$0xf]
      %v495 = vld [vmem:[%s245 + $0x18] sm:$0xf]
      %v496 = vld [vmem:[%s245 + $0x1c] sm:$0xf]
      %v497 = vunpack.c.l.bf16 %v489
      %v498 = vunpack.c.l.bf16 %v490
      %v499 = vunpack.c.l.bf16 %v491
      %v500 = vunpack.c.l.bf16 %v492
      %v501 = vunpack.c.l.bf16 %v493
      %v502 = vunpack.c.l.bf16 %v494
      %v503 = vunpack.c.l.bf16 %v495
      %v504 = vunpack.c.l.bf16 %v496
      %v505 = vadd.f32 %v481, %v497
      %v506 = vadd.f32 %v482, %v498
      %v507 = vadd.f32 %v483, %v499
      %v508 = vadd.f32 %v484, %v500
      %v509 = vadd.f32 %v485, %v501
      %v510 = vadd.f32 %v486, %v502
      %v511 = vadd.f32 %v487, %v503
      %v512 = vadd.f32 %v488, %v504
      %v513 = vmax.f32 %v505, 0.0
      %v514 = vmax.f32 %v506, 0.0
      %v515 = vmax.f32 %v507, 0.0
      %v516 = vmax.f32 %v508, 0.0
      %v517 = vmax.f32 %v509, 0.0
      %v518 = vmax.f32 %v510, 0.0
      %v519 = vmax.f32 %v511, 0.0
      %v520 = vmax.f32 %v512, 0.0
      %v521 = vpack.c.bf16 %v513, %v513
      %v522 = vpack.c.bf16 %v514, %v514
      %v523 = vpack.c.bf16 %v515, %v515
      %v524 = vpack.c.bf16 %v516, %v516
      %v525 = vpack.c.bf16 %v517, %v517
      %v526 = vpack.c.bf16 %v518, %v518
      %v527 = vpack.c.bf16 %v519, %v519
      %v528 = vpack.c.bf16 %v520, %v520
      %vm529 = vcmask 519168
      %530 = vst.msk [vmem:[%s251] sm:$0xf] %vm529, %v521
      %531 = vst.msk [vmem:[%s251 + $0x4] sm:$0xf] %vm529, %v522
      %532 = vst.msk [vmem:[%s251 + $0x8] sm:$0xf] %vm529, %v523
      %533 = vst.msk [vmem:[%s251 + $0xc] sm:$0xf] %vm529, %v524
      %534 = vst.msk [vmem:[%s251 + $0x10] sm:$0xf] %vm529, %v525
      %535 = vst.msk [vmem:[%s251 + $0x14] sm:$0xf] %vm529, %v526
      %536 = vst.msk [vmem:[%s251 + $0x18] sm:$0xf] %vm529, %v527
      %537 = vst.msk [vmem:[%s251 + $0x1c] sm:$0xf] %vm529, %v528
      %s538 = smul.u32 8, %s16
      %p539 = scmp.lt.s32.totalorder %s538, 15
      %s540 = scalar_select %p539, %s538, 15
      %s541 = smul.addr %s540, 4
      %s542 = scalar_lea.vmem %s5, %s541
      // Predicated region
      $region41: #{_lambda_.79} parent=39 // pred_check
        %p543 = pneg %p149
      $region42: #{_lambda_.79} parent=39 // pred_check_branch
        %545 = sbr.rel (%p543) target = $region44
      $region43: #{_lambda_.79} parent=39 // pred_region
        %s546 = smul.u32 8, %s16
      $region44: #{_lambda_.79} parent=39 // pred_fallthru
        _
    $region40: #{_lambda_.79} parent=5 // pred_fallthru
      _
    %p547 = scmp.le.s32.totalorder 2, %s11
    // Predicated region
    $region45: #{_lambda_.79} parent=5 // pred_check
      %p548 = pneg %p547
    $region46: #{_lambda_.79} parent=5 // pred_check_branch
      %550 = sbr.rel (%p548) target = $region48
    $region47: #{_lambda_.79} parent=5 // pred_region
      %s551 = ssub.s32 %s11, 2
      // Predicated region
      $region49: #{_lambda_.79} parent=47 // pred_check
        %p552 = pneg %p155
      $region50: #{_lambda_.79} parent=47 // pred_check_branch
        %554 = sbr.rel (%p552) target = $region52
      $region51: #{_lambda_.79} parent=47 // pred_region
        %s555 = smul.u32 8, %s17
        %p556 = scmp.lt.s32.totalorder %s555, 15
        %s557 = scalar_select %p556, %s555, 15
        %s558 = smul.addr %s557, 4
        %s559 = scalar_lea.vmem %s5, %s558
      $region52: #{_lambda_.79} parent=47 // pred_fallthru
        _
    $region48: #{_lambda_.79} parent=5 // pred_fallthru
      _
  $region6: #{_lambda_.79} parent=0 // loop_footer
    %s15 = sadd.s32 1, %s11
  $region7: #{_lambda_.79} parent=0 // loop_footer_branch
    %10 = sbr.rel target = $region3
  $region8: #{_lambda_.79} parent=0 // loop_exit
    _

// kernel: _lambda_.96
$region0: #{_lambda_.96}
  #allocation0 [shape = 'u32[]', space=smem, size = 0x4, offset = 0x4, fixed_abs, tag = 'smem constant byte address 0x4 - core index']
  #allocation1 [shape = 'u32[72,128]{1,0:T(1,128)}', space=vmem, size = 0x9000, scoped, tag = 'internal scratch']
  %s0 = inlined_call_operand.vmem [shape: bf16[32,576], index: 0, kind: input, shape index: {}]
  %s1 = inlined_call_operand.vmem [shape: bf16[576,64], index: 1, kind: input, shape index: {}]
  %s2 = inlined_call_operand.vmem [shape: f32[1,64], index: 2, kind: input, shape index: {}]
  %s3 = inlined_call_operand.vmem [shape: f32[1,64], index: 3, kind: input, shape index: {}]
  %s4 = inlined_call_operand.vmem [shape: bf16[32,64], index: 4, kind: output, shape index: {}]
  %s5 = sld [smem:[#allocation0]]
  $region49: #{_lambda_.96} parent=0
    _
  %s7 = ssub.s32 1, %s5
  %s8 = scalar_select 0, %s7, %s5
  loop: start=0, step=1, limit=4
  $region2: #{_lambda_.96} parent=0 // loop_pre_header
    _
  $region3: #{_lambda_.96} parent=0 // loop_header
    %s10 = sphi 0, %s14
    %p11 = scmp.ge.s32.totalorder %s10, 4
    %s20 = sphi 0, %s22
    %s23 = sphi 0, %s20
    %s24 = sphi 0, %s23
    %s40 = sphi 0, %s24
    %s44 = sphi 0, %s44
    %s46 = sphi 0, %s44
    %s47 = sphi 0, %s46
    %s61 = sphi 0, %s47
    %s65 = sphi 0, %s65
    %s67 = sphi 0, %s65
    %s68 = sphi 0, %s67
    %s82 = sphi 0, %s68
    %s86 = sphi 0, %s86
    %s88 = sphi 0, %s86
    %s89 = sphi 0, %s88
    %s103 = sphi 0, %s89
    %s109 = sphi 0, %s111
    %s112 = sphi 0, %s109
    %s113 = sphi 0, %s112
    %s129 = sphi 0, %s113
  $region4: #{_lambda_.96} parent=0 // loop_header_branch
    %13 = sbr.rel (%p11) target = $region8
  $region5: #{_lambda_.96} parent=0 // loop_body
    %s15 = ssub.s32 %s10, 1
    %s16 = ssub.s32 %s10, 2
    %s17 = sadd.s32 %s10, 1
    %s18 = ssub.s32 %s10, %s17
    %p19 = scmp.eq.s32.totalorder %s18, 0
    %s21 = sadd.s32 %s20, 1
    %s22 = scalar_select %p19, %s20, %s21
    %p25 = pneg %p19
    %p26 = scmp.eq.s32.totalorder %s10, 1
    %p27 = por %p25, %p26
    %p28 = scmp.ne.s32.totalorder %s20, %s23
    %p29 = scmp.eq.s32.totalorder %s10, 0
    %p30 = por %p28, %p29
    %p31 = scmp.ne.s32.totalorder %s20, %s23
    %p32 = scmp.eq.s32.totalorder %s15, 1
    %p33 = por %p31, %p32
    %p34 = scmp.ne.s32.totalorder %s23, %s24
    %p35 = scmp.eq.s32.totalorder %s15, 0
    %p36 = por %p34, %p35
    %p37 = scmp.ne.s32.totalorder %s23, %s24
    %p38 = scmp.eq.s32.totalorder %s16, 1
    %p39 = por %p37, %p38
    %p41 = scmp.ne.s32.totalorder %s24, %s40
    %p42 = scmp.eq.s32.totalorder %s16, 0
    %p43 = por %p41, %p42
    %s45 = sadd.s32 %s44, 1
    %p48 = scmp.eq.s32.totalorder %s10, 1
    %p49 = scmp.ne.s32.totalorder %s44, %s46
    %p50 = scmp.eq.s32.totalorder %s10, 0
    %p51 = por %p49, %p50
    %p52 = scmp.ne.s32.totalorder %s44, %s46
    %p53 = scmp.eq.s32.totalorder %s15, 1
    %p54 = por %p52, %p53
    %p55 = scmp.ne.s32.totalorder %s46, %s47
    %p56 = scmp.eq.s32.totalorder %s15, 0
    %p57 = por %p55, %p56
    %p58 = scmp.ne.s32.totalorder %s46, %s47
    %p59 = scmp.eq.s32.totalorder %s16, 1
    %p60 = por %p58, %p59
    %p62 = scmp.ne.s32.totalorder %s47, %s61
    %p63 = scmp.eq.s32.totalorder %s16, 0
    %p64 = por %p62, %p63
    %s66 = sadd.s32 %s65, 1
    %p69 = scmp.eq.s32.totalorder %s10, 1
    %p70 = scmp.ne.s32.totalorder %s65, %s67
    %p71 = scmp.eq.s32.totalorder %s10, 0
    %p72 = por %p70, %p71
    %p73 = scmp.ne.s32.totalorder %s65, %s67
    %p74 = scmp.eq.s32.totalorder %s15, 1
    %p75 = por %p73, %p74
    %p76 = scmp.ne.s32.totalorder %s67, %s68
    %p77 = scmp.eq.s32.totalorder %s15, 0
    %p78 = por %p76, %p77
    %p79 = scmp.ne.s32.totalorder %s67, %s68
    %p80 = scmp.eq.s32.totalorder %s16, 1
    %p81 = por %p79, %p80
    %p83 = scmp.ne.s32.totalorder %s68, %s82
    %p84 = scmp.eq.s32.totalorder %s16, 0
    %p85 = por %p83, %p84
    %s87 = sadd.s32 %s86, 1
    %p90 = scmp.eq.s32.totalorder %s10, 1
    %p91 = scmp.ne.s32.totalorder %s86, %s88
    %p92 = scmp.eq.s32.totalorder %s10, 0
    %p93 = por %p91, %p92
    %p94 = scmp.ne.s32.totalorder %s86, %s88
    %p95 = scmp.eq.s32.totalorder %s15, 1
    %p96 = por %p94, %p95
    %p97 = scmp.ne.s32.totalorder %s88, %s89
    %p98 = scmp.eq.s32.totalorder %s15, 0
    %p99 = por %p97, %p98
    %p100 = scmp.ne.s32.totalorder %s88, %s89
    %p101 = scmp.eq.s32.totalorder %s16, 1
    %p102 = por %p100, %p101
    %p104 = scmp.ne.s32.totalorder %s89, %s103
    %p105 = scmp.eq.s32.totalorder %s16, 0
    %p106 = por %p104, %p105
    %s107 = ssub.s32 %s10, %s17
    %p108 = scmp.eq.s32.totalorder %s107, 0
    %s110 = sadd.s32 %s109, 1
    %s111 = scalar_select %p108, %s109, %s110
    %p114 = pneg %p108
    %p115 = scmp.eq.s32.totalorder %s10, 1
    %p116 = por %p114, %p115
    %p117 = scmp.ne.s32.totalorder %s109, %s112
    %p118 = scmp.eq.s32.totalorder %s10, 0
    %p119 = por %p117, %p118
    %p120 = scmp.ne.s32.totalorder %s109, %s112
    %p121 = scmp.eq.s32.totalorder %s15, 1
    %p122 = por %p120, %p121
    %p123 = scmp.ne.s32.totalorder %s112, %s113
    %p124 = scmp.eq.s32.totalorder %s15, 0
    %p125 = por %p123, %p124
    %p126 = scmp.ne.s32.totalorder %s112, %s113
    %p127 = scmp.eq.s32.totalorder %s16, 1
    %p128 = por %p126, %p127
    %p130 = scmp.ne.s32.totalorder %s113, %s129
    %p131 = scmp.eq.s32.totalorder %s16, 0
    %p132 = por %p130, %p131
    %p133 = scmp.le.s32.totalorder 1, %s10
    %p134 = scmp.lt.s32.totalorder %s10, 3
    %p135 = pnand %p133, %p134
    %p136 = pneg %p135
    // Predicated region
    $region9: #{_lambda_.96} parent=5 // pred_check
      _
    $region10: #{_lambda_.96} parent=5 // pred_check_branch
      %138 = sbr.rel (%p135) target = $region12
    $region11: #{_lambda_.96} parent=5 // pred_region
      %s139 = ssub.s32 %s10, 1
      // Predicated region
      $region13: #{_lambda_.96} parent=11 // pred_check
        %p140 = pneg %p57
      $region14: #{_lambda_.96} parent=11 // pred_check_branch
        %142 = sbr.rel (%p140) target = $region16
      $region15: #{_lambda_.96} parent=11 // pred_region
        _
      $region16: #{_lambda_.96} parent=11 // pred_fallthru
        _
      // Predicated region
      $region17: #{_lambda_.96} parent=11 // pred_check
        %p143 = pneg %p78
      $region18: #{_lambda_.96} parent=11 // pred_check_branch
        %145 = sbr.rel (%p143) target = $region20
      $region19: #{_lambda_.96} parent=11 // pred_region
        _
      $region20: #{_lambda_.96} parent=11 // pred_fallthru
        _
      // Predicated region
      $region21: #{_lambda_.96} parent=11 // pred_check
        %p146 = pneg %p99
      $region22: #{_lambda_.96} parent=11 // pred_check_branch
        %148 = sbr.rel (%p146) target = $region24
      $region23: #{_lambda_.96} parent=11 // pred_region
        _
      $region24: #{_lambda_.96} parent=11 // pred_fallthru
        _
    $region12: #{_lambda_.96} parent=5 // pred_fallthru
      _
    %p149 = scmp.lt.s32.totalorder %s10, 2
    // Predicated region
    $region25: #{_lambda_.96} parent=5 // pred_check
      %p150 = pneg %p149
    $region26: #{_lambda_.96} parent=5 // pred_check_branch
      %152 = sbr.rel (%p150) target = $region28
    $region27: #{_lambda_.96} parent=5 // pred_region
      // Predicated region
      $region29: #{_lambda_.96} parent=27 // pred_check
        %p153 = pneg %p30
      $region30: #{_lambda_.96} parent=27 // pred_check_branch
        %155 = sbr.rel (%p153) target = $region32
      $region31: #{_lambda_.96} parent=27 // pred_region
        %s156 = smul.u32 2, %s10
        %p157 = scmp.lt.s32.totalorder %s156, 3
        %s158 = scalar_select %p157, %s156, 3
        %s159 = smul.addr %s158, 5
        %s160 = smul.addr %s159, 4
        %s161 = scalar_lea.vmem %s0, %s160
        %s162 = smul.u32 2, %s10
      $region32: #{_lambda_.96} parent=27 // pred_fallthru
        _
    $region28: #{_lambda_.96} parent=5 // pred_fallthru
      _
    %p163 = scmp.le.s32.totalorder 1, %s10
    %p164 = scmp.lt.s32.totalorder %s10, 3
    %p165 = pnand %p163, %p164
    %p166 = pneg %p165
    // Predicated region
    $region33: #{_lambda_.96} parent=5 // pred_check
      _
    $region34: #{_lambda_.96} parent=5 // pred_check_branch
      %168 = sbr.rel (%p165) target = $region36
    $region35: #{_lambda_.96} parent=5 // pred_region
      %s169 = ssub.s32 %s10, 1
      %s170 = smul.u32 2, %s15
      %p171 = scmp.lt.s32.totalorder %s170, 3
      %s172 = scalar_select %p171, %s170, 3
      %s173 = smul.addr %s172, 5
      %s174 = smul.addr %s173, 4
      %s175 = scalar_lea.vmem %s0, %s174
      %p176 = pneg %p36
      %p177 = pneg %p33
      %p178 = pneg %p57
      %p179 = pneg %p54
      %p180 = pneg %p78
      %p181 = pneg %p75
      %p182 = pneg %p99
      %p183 = pneg %p96
      %p184 = pneg %p125
      %p185 = pneg %p122
      %s186 = smul.u32 2, %s15
      %p187 = scmp.lt.s32.totalorder %s186, 3
      %s188 = scalar_select %p187, %s186, 3
      %s189 = smul.addr %s188, 4
      %s190 = scalar_lea.vmem %s4, %s189
      %s191 = smul.u32 2, %s15
      %p192 = scmp.lt.s32.totalorder %s191, 3
      %s193 = scalar_select %p192, %s191, 3
      %s194 = smul.addr %s193, 5
      %s195 = smul.addr %s194, 4
      %s196 = scalar_lea.vmem %s0, %s195
      %s197 = smul.u32 2, %s15
      %s198 = smul.u32 2, %s15
      %p199 = scmp.lt.s32.totalorder %s198, 3
      %s200 = scalar_select %p199, %s198, 3
      %s201 = smul.addr %s200, 4
      %s202 = scalar_lea.vmem %s4, %s201
      %s203 = smul.u32 2, %s15
      %v205 = vld [vmem:[%s196] sm:$0xff]
      %v206 = vld [vmem:[%s196 + $0x8] sm:$0xff]
      %v207 = vld [vmem:[%s196 + $0x10] sm:$0xf]
      %v208 = vld [vmem:[%s196 + $0x14] sm:$0xff]
      %v209 = vld [vmem:[%s196 + $0x1c] sm:$0xff]
      %v210 = vld [vmem:[%s196 + $0x24] sm:$0xf]
      %v211 = vld [vmem:[%s1] sm:$0xf]
      %v212 = vld [vmem:[%s1 + $0x4] sm:$0xf]
      %v213 = vld [vmem:[%s1 + $0x8] sm:$0xf]
      %v214 = vld [vmem:[%s1 + $0xc] sm:$0xf]
      %v215 = vld [vmem:[%s1 + $0x10] sm:$0xf]
      %v216 = vld [vmem:[%s1 + $0x14] sm:$0xf]
      %v217 = vld [vmem:[%s1 + $0x18] sm:$0xf]
      %v218 = vld [vmem:[%s1 + $0x1c] sm:$0xf]
      %v219 = vld [vmem:[%s1 + $0x20] sm:$0xf]
      %v220 = vld [vmem:[%s1 + $0x24] sm:$0xf]
      %v221 = vld [vmem:[%s1 + $0x28] sm:$0xf]
      %v222 = vld [vmem:[%s1 + $0x2c] sm:$0xf]
      %v223 = vld [vmem:[%s1 + $0x30] sm:$0xf]
      %v224 = vld [vmem:[%s1 + $0x34] sm:$0xf]
      %v225 = vld [vmem:[%s1 + $0x38] sm:$0xf]
      %v226 = vld [vmem:[%s1 + $0x3c] sm:$0xf]
      %v227 = vld [vmem:[%s1 + $0x40] sm:$0xf]
      %v228 = vld [vmem:[%s1 + $0x44] sm:$0xf]
      %v229 = vld [vmem:[%s1 + $0x48] sm:$0xf]
      %v230 = vld [vmem:[%s1 + $0x4c] sm:$0xf]
      %v231 = vld [vmem:[%s1 + $0x50] sm:$0xf]
      %v232 = vld [vmem:[%s1 + $0x54] sm:$0xf]
      %v233 = vld [vmem:[%s1 + $0x58] sm:$0xf]
      %v234 = vld [vmem:[%s1 + $0x5c] sm:$0xf]
      %v235 = vld [vmem:[%s1 + $0x60] sm:$0xf]
      %v236 = vld [vmem:[%s1 + $0x64] sm:$0xf]
      %v237 = vld [vmem:[%s1 + $0x68] sm:$0xf]
      %v238 = vld [vmem:[%s1 + $0x6c] sm:$0xf]
      %v239 = vld [vmem:[%s1 + $0x70] sm:$0xf]
      %v240 = vld [vmem:[%s1 + $0x74] sm:$0xf]
      %v241 = vld [vmem:[%s1 + $0x78] sm:$0xf]
      %v242 = vld [vmem:[%s1 + $0x7c] sm:$0xf]
      %v243 = vld [vmem:[%s1 + $0x80] sm:$0xf]
      %v244 = vld [vmem:[%s1 + $0x84] sm:$0xf]
      %v245 = vld [vmem:[%s1 + $0x88] sm:$0xf]
      %v246 = vld [vmem:[%s1 + $0x8c] sm:$0xf]
      %v247 = vld [vmem:[%s1 + $0x90] sm:$0xf]
      %v248 = vld [vmem:[%s1 + $0x94] sm:$0xf]
      %v249 = vld [vmem:[%s1 + $0x98] sm:$0xf]
      %v250 = vld [vmem:[%s1 + $0x9c] sm:$0xf]
      %v251 = vld [vmem:[%s1 + $0xa0] sm:$0xf]
      %v252 = vld [vmem:[%s1 + $0xa4] sm:$0xf]
      %v253 = vld [vmem:[%s1 + $0xa8] sm:$0xf]
      %v254 = vld [vmem:[%s1 + $0xac] sm:$0xf]
      %v255 = vld [vmem:[%s1 + $0xb0] sm:$0xf]
      %v256 = vld [vmem:[%s1 + $0xb4] sm:$0xf]
      %v257 = vld [vmem:[%s1 + $0xb8] sm:$0xf]
      %v258 = vld [vmem:[%s1 + $0xbc] sm:$0xf]
      %v259 = vld [vmem:[%s1 + $0xc0] sm:$0xf]
      %v260 = vld [vmem:[%s1 + $0xc4] sm:$0xf]
      %v261 = vld [vmem:[%s1 + $0xc8] sm:$0xf]
      %v262 = vld [vmem:[%s1 + $0xcc] sm:$0xf]
      %v263 = vld [vmem:[%s1 + $0xd0] sm:$0xf]
      %v264 = vld [vmem:[%s1 + $0xd4] sm:$0xf]
      %v265 = vld [vmem:[%s1 + $0xd8] sm:$0xf]
      %v266 = vld [vmem:[%s1 + $0xdc] sm:$0xf]
      %v267 = vld [vmem:[%s1 + $0xe0] sm:$0xf]
      %v268 = vld [vmem:[%s1 + $0xe4] sm:$0xf]
      %v269 = vld [vmem:[%s1 + $0xe8] sm:$0xf]
      %v270 = vld [vmem:[%s1 + $0xec] sm:$0xf]
      %v271 = vld [vmem:[%s1 + $0xf0] sm:$0xf]
      %v272 = vld [vmem:[%s1 + $0xf4] sm:$0xf]
      %v273 = vld [vmem:[%s1 + $0xf8] sm:$0xf]
      %v274 = vld [vmem:[%s1 + $0xfc] sm:$0xf]
      %v275 = vld [vmem:[%s1 + $0x100] sm:$0xf]
      %v276 = vld [vmem:[%s1 + $0x104] sm:$0xf]
      %v277 = vld [vmem:[%s1 + $0x108] sm:$0xf]
      %v278 = vld [vmem:[%s1 + $0x10c] sm:$0xf]
      %v279 = vld [vmem:[%s1 + $0x110] sm:$0xf]
      %v280 = vld [vmem:[%s1 + $0x114] sm:$0xf]
      %v281 = vld [vmem:[%s1 + $0x118] sm:$0xf]
      %v282 = vld [vmem:[%s1 + $0x11c] sm:$0xf]
      %v289 = vunpack.c.l.b16 %v205
      %v290 = vunpack.c.h.b16 %v205
      %v291 = vunpack.c.l.b16 %v206
      %v292 = vunpack.c.h.b16 %v206
      %v293 = vunpack.c.l.b16 %v207
      %v294 = vunpack.c.l.b16 %v208
      %v295 = vunpack.c.h.b16 %v208
      %v296 = vunpack.c.l.b16 %v209
      %v297 = vunpack.c.h.b16 %v209
      %v298 = vunpack.c.l.b16 %v210
      %v299 = vpack.c.b16 %v294, %v289
      %v300 = vpack.c.b16 %v295, %v290
      %v301 = vpack.c.b16 %v296, %v291
      %v302 = vpack.c.b16 %v297, %v292
      %v303 = vpack.c.b16 %v298, %v293
      %v380 = vunpack.c.l.b16 %v211
      %v381 = vunpack.c.l.b16 %v212
      %v382 = vunpack.c.l.b16 %v213
      %v383 = vunpack.c.l.b16 %v214
      %v384 = vunpack.c.l.b16 %v215
      %v385 = vunpack.c.l.b16 %v216
      %v386 = vunpack.c.l.b16 %v217
      %v387 = vunpack.c.l.b16 %v218
      %v388 = vunpack.c.l.b16 %v219
      %v389 = vunpack.c.l.b16 %v220
      %v390 = vunpack.c.l.b16 %v221
      %v391 = vunpack.c.l.b16 %v222
      %v392 = vunpack.c.l.b16 %v223
      %v393 = vunpack.c.l.b16 %v224
      %v394 = vunpack.c.l.b16 %v225
      %v395 = vunpack.c.l.b16 %v226
      %v396 = vunpack.c.l.b16 %v227
      %v397 = vunpack.c.l.b16 %v228
      %v398 = vunpack.c.l.b16 %v229
      %v399 = vunpack.c.l.b16 %v230
      %v400 = vunpack.c.l.b16 %v231
      %v401 = vunpack.c.l.b16 %v232
      %v402 = vunpack.c.l.b16 %v233
      %v403 = vunpack.c.l.b16 %v234
      %v404 = vunpack.c.l.b16 %v235
      %v405 = vunpack.c.l.b16 %v236
      %v406 = vunpack.c.l.b16 %v237
      %v407 = vunpack.c.l.b16 %v238
      %v408 = vunpack.c.l.b16 %v239
      %v409 = vunpack.c.l.b16 %v240
      %v410 = vunpack.c.l.b16 %v241
      %v411 = vunpack.c.l.b16 %v242
      %v412 = vunpack.c.l.b16 %v243
      %v413 = vunpack.c.l.b16 %v244
      %v414 = vunpack.c.l.b16 %v245
      %v415 = vunpack.c.l.b16 %v246
      %v416 = vunpack.c.l.b16 %v247
      %v417 = vunpack.c.l.b16 %v248
      %v418 = vunpack.c.l.b16 %v249
      %v419 = vunpack.c.l.b16 %v250
      %v420 = vunpack.c.l.b16 %v251
      %v421 = vunpack.c.l.b16 %v252
      %v422 = vunpack.c.l.b16 %v253
      %v423 = vunpack.c.l.b16 %v254
      %v424 = vunpack.c.l.b16 %v255
      %v425 = vunpack.c.l.b16 %v256
      %v426 = vunpack.c.l.b16 %v257
      %v427 = vunpack.c.l.b16 %v258
      %v428 = vunpack.c.l.b16 %v259
      %v429 = vunpack.c.l.b16 %v260
      %v430 = vunpack.c.l.b16 %v261
      %v431 = vunpack.c.l.b16 %v262
      %v432 = vunpack.c.l.b16 %v263
      %v433 = vunpack.c.l.b16 %v264
      %v434 = vunpack.c.l.b16 %v265
      %v435 = vunpack.c.l.b16 %v266
      %v436 = vunpack.c.l.b16 %v267
      %v437 = vunpack.c.l.b16 %v268
      %v438 = vunpack.c.l.b16 %v269
      %v439 = vunpack.c.l.b16 %v270
      %v440 = vunpack.c.l.b16 %v271
      %v441 = vunpack.c.l.b16 %v272
      %v442 = vunpack.c.l.b16 %v273
      %v443 = vunpack.c.l.b16 %v274
      %v444 = vunpack.c.l.b16 %v275
      %v445 = vunpack.c.l.b16 %v276
      %v446 = vunpack.c.l.b16 %v277
      %v447 = vunpack.c.l.b16 %v278
      %v448 = vunpack.c.l.b16 %v279
      %v449 = vunpack.c.l.b16 %v280
      %v450 = vunpack.c.l.b16 %v281
      %v451 = vunpack.c.l.b16 %v282
      %v452 = vpack.c.b16 %v381, %v380
      %v453 = vpack.c.b16 %v383, %v382
      %v454 = vpack.c.b16 %v385, %v384
      %v455 = vpack.c.b16 %v387, %v386
      %v456 = vpack.c.b16 %v389, %v388
      %v457 = vpack.c.b16 %v391, %v390
      %v458 = vpack.c.b16 %v393, %v392
      %v459 = vpack.c.b16 %v395, %v394
      %v460 = vpack.c.b16 %v397, %v396
      %v461 = vpack.c.b16 %v399, %v398
      %v462 = vpack.c.b16 %v401, %v400
      %v463 = vpack.c.b16 %v403, %v402
      %v464 = vpack.c.b16 %v405, %v404
      %v465 = vpack.c.b16 %v407, %v406
      %v466 = vpack.c.b16 %v409, %v408
      %v467 = vpack.c.b16 %v411, %v410
      %v468 = vpack.c.b16 %v413, %v412
      %v469 = vpack.c.b16 %v415, %v414
      %v470 = vpack.c.b16 %v417, %v416
      %v471 = vpack.c.b16 %v419, %v418
      %v472 = vpack.c.b16 %v421, %v420
      %v473 = vpack.c.b16 %v423, %v422
      %v474 = vpack.c.b16 %v425, %v424
      %v475 = vpack.c.b16 %v427, %v426
      %v476 = vpack.c.b16 %v429, %v428
      %v477 = vpack.c.b16 %v431, %v430
      %v478 = vpack.c.b16 %v433, %v432
      %v479 = vpack.c.b16 %v435, %v434
      %v480 = vpack.c.b16 %v437, %v436
      %v481 = vpack.c.b16 %v439, %v438
      %v482 = vpack.c.b16 %v441, %v440
      %v483 = vpack.c.b16 %v443, %v442
      %v484 = vpack.c.b16 %v445, %v444
      %v485 = vpack.c.b16 %v447, %v446
      %v486 = vpack.c.b16 %v449, %v448
      %v487 = vpack.c.b16 %v451, %v450
      %vm524 = vcmask 523264
      %v526 = vsel %vm524, %v303, 0
      %528 = vmatpush.bf16.msra.mxu0 %v459
      %529 = vmatpush.bf16.msra.mxu0 %v458
      %530 = vmatpush.bf16.msra.mxu0 %v457
      %531 = vmatpush.bf16.msra.mxu0 %v456
      %532 = vmatpush.bf16.msra.mxu0 %v455
      %533 = vmatpush.bf16.msra.mxu0 %v454
      %534 = vmatpush.bf16.msra.mxu0 %v453
      %535 = vmatpush.bf16.msra.mxu0 %v452
      %536 = vmatmul.bf16.gmra.mxu0 %v299
      %v537 = vpop.f32.mrf.mxu0
      %v538 = vadd.f32 0.0, %v537
      %v539 = vpop.f32.mrf.mxu0
      %v540 = vadd.f32 0.0, %v539
      %541 = vdwg.mxu0
      %542 = vmatpush.bf16.msra.mxu0 %v467
      %543 = vmatpush.bf16.msra.mxu0 %v466
      %544 = vmatpush.bf16.msra.mxu0 %v465
      %545 = vmatpush.bf16.msra.mxu0 %v464
      %546 = vmatpush.bf16.msra.mxu0 %v463
      %547 = vmatpush.bf16.msra.mxu0 %v462
      %548 = vmatpush.bf16.msra.mxu0 %v461
      %549 = vmatpush.bf16.msra.mxu0 %v460
      %550 = vmatmul.bf16.gmra.mxu0 %v300
      %v551 = vpop.f32.mrf.mxu0
      %v552 = vadd.f32 %v538, %v551
      %v553 = vpop.f32.mrf.mxu0
      %v554 = vadd.f32 %v540, %v553
      %555 = vdwg.mxu0
      %556 = vmatpush.bf16.msra.mxu0 %v475
      %557 = vmatpush.bf16.msra.mxu0 %v474
      %558 = vmatpush.bf16.msra.mxu0 %v473
      %559 = vmatpush.bf16.msra.mxu0 %v472
      %560 = vmatpush.bf16.msra.mxu0 %v471
      %561 = vmatpush.bf16.msra.mxu0 %v470
      %562 = vmatpush.bf16.msra.mxu0 %v469
      %563 = vmatpush.bf16.msra.mxu0 %v468
      %564 = vmatmul.bf16.gmra.mxu0 %v301
      %v565 = vpop.f32.mrf.mxu0
      %v566 = vadd.f32 %v552, %v565
      %v567 = vpop.f32.mrf.mxu0
      %v568 = vadd.f32 %v554, %v567
      %569 = vdwg.mxu0
      %570 = vmatpush.bf16.msra.mxu0 %v483
      %571 = vmatpush.bf16.msra.mxu0 %v482
      %572 = vmatpush.bf16.msra.mxu0 %v481
      %573 = vmatpush.bf16.msra.mxu0 %v480
      %574 = vmatpush.bf16.msra.mxu0 %v479
      %575 = vmatpush.bf16.msra.mxu0 %v478
      %576 = vmatpush.bf16.msra.mxu0 %v477
      %577 = vmatpush.bf16.msra.mxu0 %v476
      %578 = vmatmul.bf16.gmra.mxu0 %v302
      %v579 = vpop.f32.mrf.mxu0
      %v580 = vadd.f32 %v566, %v579
      %v581 = vpop.f32.mrf.mxu0
      %v582 = vadd.f32 %v568, %v581
      %583 = vdwg.mxu0
      %584 = vmatpush.bf16.msra.mxu0 0
      %585 = vmatpush.bf16.msra.mxu0 0
      %586 = vmatpush.bf16.msra.mxu0 0
      %587 = vmatpush.bf16.msra.mxu0 0
      %588 = vmatpush.bf16.msra.mxu0 %v487
      %589 = vmatpush.bf16.msra.mxu0 %v486
      %590 = vmatpush.bf16.msra.mxu0 %v485
      %591 = vmatpush.bf16.msra.mxu0 %v484
      %592 = vmatmul.bf16.gmra.mxu0 %v526
      %v593 = vpop.f32.mrf.mxu0
      %v594 = vadd.f32 %v580, %v593
      %v595 = vpop.f32.mrf.mxu0
      %v596 = vadd.f32 %v582, %v595
      %597 = vdwg.mxu0
      %v598 = vld [vmem:[%s2] sm:$0x1]
      %v600 = vperm.slane %v598, 0
      %v602 = vmul.f32 %v594, %v600
      %v603 = vmul.f32 %v596, %v600
      %v604 = vld [vmem:[%s3] sm:$0x1]
      %v606 = vperm.slane %v604, 0
      %v608 = vadd.f32 %v602, %v606
      %v609 = vadd.f32 %v603, %v606
      %v610 = vmax.f32 %v608, 0.0
      %v611 = vmax.f32 %v609, 0.0
      %v612 = vpack.c.bf16 %v610, %v610
      %v613 = vpack.c.bf16 %v611, %v611
      %vm614 = vcmask 519168
      %615 = vst.msk [vmem:[%s202] sm:$0xf] %vm614, %v612
      %616 = vst.msk [vmem:[%s202 + $0x4] sm:$0xf] %vm614, %v613
      %s617 = smul.u32 2, %s15
      %p618 = scmp.lt.s32.totalorder %s617, 3
      %s619 = scalar_select %p618, %s617, 3
      %s620 = smul.addr %s619, 4
      %s621 = scalar_lea.vmem %s4, %s620
      // Predicated region
      $region37: #{_lambda_.96} parent=35 // pred_check
        %p622 = pneg %p122
      $region38: #{_lambda_.96} parent=35 // pred_check_branch
        %624 = sbr.rel (%p622) target = $region40
      $region39: #{_lambda_.96} parent=35 // pred_region
        %s625 = smul.u32 2, %s15
      $region40: #{_lambda_.96} parent=35 // pred_fallthru
        _
    $region36: #{_lambda_.96} parent=5 // pred_fallthru
      _
    %p626 = scmp.le.s32.totalorder 2, %s10
    // Predicated region
    $region41: #{_lambda_.96} parent=5 // pred_check
      %p627 = pneg %p626
    $region42: #{_lambda_.96} parent=5 // pred_check_branch
      %629 = sbr.rel (%p627) target = $region44
    $region43: #{_lambda_.96} parent=5 // pred_region
      %s630 = ssub.s32 %s10, 2
      // Predicated region
      $region45: #{_lambda_.96} parent=43 // pred_check
        %p631 = pneg %p128
      $region46: #{_lambda_.96} parent=43 // pred_check_branch
        %633 = sbr.rel (%p631) target = $region48
      $region47: #{_lambda_.96} parent=43 // pred_region
        %s634 = smul.u32 2, %s16
        %p635 = scmp.lt.s32.totalorder %s634, 3
        %s636 = scalar_select %p635, %s634, 3
        %s637 = smul.addr %s636, 4
        %s638 = scalar_lea.vmem %s4, %s637
      $region48: #{_lambda_.96} parent=43 // pred_fallthru
        _
    $region44: #{_lambda_.96} parent=5 // pred_fallthru
      _
  $region6: #{_lambda_.96} parent=0 // loop_footer
    %s14 = sadd.s32 1, %s10
  $region7: #{_lambda_.96} parent=0 // loop_footer_branch
    %9 = sbr.rel target = $region3
  $region8: #{_lambda_.96} parent=0 // loop_exit
    _

// kernel: _lambda_.97
$region0: #{_lambda_.97}
  #allocation0 [shape = 'u32[]', space=smem, size = 0x4, offset = 0x4, fixed_abs, tag = 'smem constant byte address 0x4 - core index']
  #allocation1 [shape = 'u32[72,128]{1,0:T(1,128)}', space=vmem, size = 0x9000, scoped, tag = 'internal scratch']
  %s0 = inlined_call_operand.vmem [shape: bf16[32,384], index: 0, kind: input, shape index: {}]
  %s1 = inlined_call_operand.vmem [shape: bf16[384,128], index: 1, kind: input, shape index: {}]
  %s2 = inlined_call_operand.vmem [shape: f32[1,128], index: 2, kind: input, shape index: {}]
  %s3 = inlined_call_operand.vmem [shape: f32[1,128], index: 3, kind: input, shape index: {}]
  %s4 = inlined_call_operand.vmem [shape: bf16[32,128], index: 4, kind: output, shape index: {}]
  %s5 = sld [smem:[#allocation0]]
  $region49: #{_lambda_.97} parent=0
    _
  %s7 = ssub.s32 1, %s5
  %s8 = scalar_select 0, %s7, %s5
  loop: start=0, step=1, limit=4
  $region2: #{_lambda_.97} parent=0 // loop_pre_header
    _
  $region3: #{_lambda_.97} parent=0 // loop_header
    %s10 = sphi 0, %s14
    %p11 = scmp.ge.s32.totalorder %s10, 4
    %s20 = sphi 0, %s22
    %s23 = sphi 0, %s20
    %s24 = sphi 0, %s23
    %s40 = sphi 0, %s24
    %s44 = sphi 0, %s44
    %s46 = sphi 0, %s44
    %s47 = sphi 0, %s46
    %s61 = sphi 0, %s47
    %s65 = sphi 0, %s65
    %s67 = sphi 0, %s65
    %s68 = sphi 0, %s67
    %s82 = sphi 0, %s68
    %s86 = sphi 0, %s86
    %s88 = sphi 0, %s86
    %s89 = sphi 0, %s88
    %s103 = sphi 0, %s89
    %s109 = sphi 0, %s111
    %s112 = sphi 0, %s109
    %s113 = sphi 0, %s112
    %s129 = sphi 0, %s113
  $region4: #{_lambda_.97} parent=0 // loop_header_branch
    %13 = sbr.rel (%p11) target = $region8
  $region5: #{_lambda_.97} parent=0 // loop_body
    %s15 = ssub.s32 %s10, 1
    %s16 = ssub.s32 %s10, 2
    %s17 = sadd.s32 %s10, 1
    %s18 = ssub.s32 %s10, %s17
    %p19 = scmp.eq.s32.totalorder %s18, 0
    %s21 = sadd.s32 %s20, 1
    %s22 = scalar_select %p19, %s20, %s21
    %p25 = pneg %p19
    %p26 = scmp.eq.s32.totalorder %s10, 1
    %p27 = por %p25, %p26
    %p28 = scmp.ne.s32.totalorder %s20, %s23
    %p29 = scmp.eq.s32.totalorder %s10, 0
    %p30 = por %p28, %p29
    %p31 = scmp.ne.s32.totalorder %s20, %s23
    %p32 = scmp.eq.s32.totalorder %s15, 1
    %p33 = por %p31, %p32
    %p34 = scmp.ne.s32.totalorder %s23, %s24
    %p35 = scmp.eq.s32.totalorder %s15, 0
    %p36 = por %p34, %p35
    %p37 = scmp.ne.s32.totalorder %s23, %s24
    %p38 = scmp.eq.s32.totalorder %s16, 1
    %p39 = por %p37, %p38
    %p41 = scmp.ne.s32.totalorder %s24, %s40
    %p42 = scmp.eq.s32.totalorder %s16, 0
    %p43 = por %p41, %p42
    %s45 = sadd.s32 %s44, 1
    %p48 = scmp.eq.s32.totalorder %s10, 1
    %p49 = scmp.ne.s32.totalorder %s44, %s46
    %p50 = scmp.eq.s32.totalorder %s10, 0
    %p51 = por %p49, %p50
    %p52 = scmp.ne.s32.totalorder %s44, %s46
    %p53 = scmp.eq.s32.totalorder %s15, 1
    %p54 = por %p52, %p53
    %p55 = scmp.ne.s32.totalorder %s46, %s47
    %p56 = scmp.eq.s32.totalorder %s15, 0
    %p57 = por %p55, %p56
    %p58 = scmp.ne.s32.totalorder %s46, %s47
    %p59 = scmp.eq.s32.totalorder %s16, 1
    %p60 = por %p58, %p59
    %p62 = scmp.ne.s32.totalorder %s47, %s61
    %p63 = scmp.eq.s32.totalorder %s16, 0
    %p64 = por %p62, %p63
    %s66 = sadd.s32 %s65, 1
    %p69 = scmp.eq.s32.totalorder %s10, 1
    %p70 = scmp.ne.s32.totalorder %s65, %s67
    %p71 = scmp.eq.s32.totalorder %s10, 0
    %p72 = por %p70, %p71
    %p73 = scmp.ne.s32.totalorder %s65, %s67
    %p74 = scmp.eq.s32.totalorder %s15, 1
    %p75 = por %p73, %p74
    %p76 = scmp.ne.s32.totalorder %s67, %s68
    %p77 = scmp.eq.s32.totalorder %s15, 0
    %p78 = por %p76, %p77
    %p79 = scmp.ne.s32.totalorder %s67, %s68
    %p80 = scmp.eq.s32.totalorder %s16, 1
    %p81 = por %p79, %p80
    %p83 = scmp.ne.s32.totalorder %s68, %s82
    %p84 = scmp.eq.s32.totalorder %s16, 0
    %p85 = por %p83, %p84
    %s87 = sadd.s32 %s86, 1
    %p90 = scmp.eq.s32.totalorder %s10, 1
    %p91 = scmp.ne.s32.totalorder %s86, %s88
    %p92 = scmp.eq.s32.totalorder %s10, 0
    %p93 = por %p91, %p92
    %p94 = scmp.ne.s32.totalorder %s86, %s88
    %p95 = scmp.eq.s32.totalorder %s15, 1
    %p96 = por %p94, %p95
    %p97 = scmp.ne.s32.totalorder %s88, %s89
    %p98 = scmp.eq.s32.totalorder %s15, 0
    %p99 = por %p97, %p98
    %p100 = scmp.ne.s32.totalorder %s88, %s89
    %p101 = scmp.eq.s32.totalorder %s16, 1
    %p102 = por %p100, %p101
    %p104 = scmp.ne.s32.totalorder %s89, %s103
    %p105 = scmp.eq.s32.totalorder %s16, 0
    %p106 = por %p104, %p105
    %s107 = ssub.s32 %s10, %s17
    %p108 = scmp.eq.s32.totalorder %s107, 0
    %s110 = sadd.s32 %s109, 1
    %s111 = scalar_select %p108, %s109, %s110
    %p114 = pneg %p108
    %p115 = scmp.eq.s32.totalorder %s10, 1
    %p116 = por %p114, %p115
    %p117 = scmp.ne.s32.totalorder %s109, %s112
    %p118 = scmp.eq.s32.totalorder %s10, 0
    %p119 = por %p117, %p118
    %p120 = scmp.ne.s32.totalorder %s109, %s112
    %p121 = scmp.eq.s32.totalorder %s15, 1
    %p122 = por %p120, %p121
    %p123 = scmp.ne.s32.totalorder %s112, %s113
    %p124 = scmp.eq.s32.totalorder %s15, 0
    %p125 = por %p123, %p124
    %p126 = scmp.ne.s32.totalorder %s112, %s113
    %p127 = scmp.eq.s32.totalorder %s16, 1
    %p128 = por %p126, %p127
    %p130 = scmp.ne.s32.totalorder %s113, %s129
    %p131 = scmp.eq.s32.totalorder %s16, 0
    %p132 = por %p130, %p131
    %p133 = scmp.le.s32.totalorder 1, %s10
    %p134 = scmp.lt.s32.totalorder %s10, 3
    %p135 = pnand %p133, %p134
    %p136 = pneg %p135
    // Predicated region
    $region9: #{_lambda_.97} parent=5 // pred_check
      _
    $region10: #{_lambda_.97} parent=5 // pred_check_branch
      %138 = sbr.rel (%p135) target = $region12
    $region11: #{_lambda_.97} parent=5 // pred_region
      %s139 = ssub.s32 %s10, 1
      // Predicated region
      $region13: #{_lambda_.97} parent=11 // pred_check
        %p140 = pneg %p57
      $region14: #{_lambda_.97} parent=11 // pred_check_branch
        %142 = sbr.rel (%p140) target = $region16
      $region15: #{_lambda_.97} parent=11 // pred_region
        _
      $region16: #{_lambda_.97} parent=11 // pred_fallthru
        _
      // Predicated region
      $region17: #{_lambda_.97} parent=11 // pred_check
        %p143 = pneg %p78
      $region18: #{_lambda_.97} parent=11 // pred_check_branch
        %145 = sbr.rel (%p143) target = $region20
      $region19: #{_lambda_.97} parent=11 // pred_region
        _
      $region20: #{_lambda_.97} parent=11 // pred_fallthru
        _
      // Predicated region
      $region21: #{_lambda_.97} parent=11 // pred_check
        %p146 = pneg %p99
      $region22: #{_lambda_.97} parent=11 // pred_check_branch
        %148 = sbr.rel (%p146) target = $region24
      $region23: #{_lambda_.97} parent=11 // pred_region
        _
      $region24: #{_lambda_.97} parent=11 // pred_fallthru
        _
    $region12: #{_lambda_.97} parent=5 // pred_fallthru
      _
    %p149 = scmp.lt.s32.totalorder %s10, 2
    // Predicated region
    $region25: #{_lambda_.97} parent=5 // pred_check
      %p150 = pneg %p149
    $region26: #{_lambda_.97} parent=5 // pred_check_branch
      %152 = sbr.rel (%p150) target = $region28
    $region27: #{_lambda_.97} parent=5 // pred_region
      // Predicated region
      $region29: #{_lambda_.97} parent=27 // pred_check
        %p153 = pneg %p30
      $region30: #{_lambda_.97} parent=27 // pred_check_branch
        %155 = sbr.rel (%p153) target = $region32
      $region31: #{_lambda_.97} parent=27 // pred_region
        %s156 = smul.u32 2, %s10
        %p157 = scmp.lt.s32.totalorder %s156, 3
        %s158 = scalar_select %p157, %s156, 3
        %s159 = smul.addr %s158, 3
        %s160 = smul.addr %s159, 4
        %s161 = scalar_lea.vmem %s0, %s160
        %s162 = smul.u32 2, %s10
      $region32: #{_lambda_.97} parent=27 // pred_fallthru
        _
    $region28: #{_lambda_.97} parent=5 // pred_fallthru
      _
    %p163 = scmp.le.s32.totalorder 1, %s10
    %p164 = scmp.lt.s32.totalorder %s10, 3
    %p165 = pnand %p163, %p164
    %p166 = pneg %p165
    // Predicated region
    $region33: #{_lambda_.97} parent=5 // pred_check
      _
    $region34: #{_lambda_.97} parent=5 // pred_check_branch
      %168 = sbr.rel (%p165) target = $region36
    $region35: #{_lambda_.97} parent=5 // pred_region
      %s169 = ssub.s32 %s10, 1
      %s170 = smul.u32 2, %s15
      %p171 = scmp.lt.s32.totalorder %s170, 3
      %s172 = scalar_select %p171, %s170, 3
      %s173 = smul.addr %s172, 3
      %s174 = smul.addr %s173, 4
      %s175 = scalar_lea.vmem %s0, %s174
      %p176 = pneg %p36
      %p177 = pneg %p33
      %p178 = pneg %p57
      %p179 = pneg %p54
      %p180 = pneg %p78
      %p181 = pneg %p75
      %p182 = pneg %p99
      %p183 = pneg %p96
      %p184 = pneg %p125
      %p185 = pneg %p122
      %s186 = smul.u32 2, %s15
      %p187 = scmp.lt.s32.totalorder %s186, 3
      %s188 = scalar_select %p187, %s186, 3
      %s189 = smul.addr %s188, 4
      %s190 = scalar_lea.vmem %s4, %s189
      %s191 = smul.u32 2, %s15
      %p192 = scmp.lt.s32.totalorder %s191, 3
      %s193 = scalar_select %p192, %s191, 3
      %s194 = smul.addr %s193, 3
      %s195 = smul.addr %s194, 4
      %s196 = scalar_lea.vmem %s0, %s195
      %s197 = smul.u32 2, %s15
      %s198 = smul.u32 2, %s15
      %p199 = scmp.lt.s32.totalorder %s198, 3
      %s200 = scalar_select %p199, %s198, 3
      %s201 = smul.addr %s200, 4
      %s202 = scalar_lea.vmem %s4, %s201
      %s203 = smul.u32 2, %s15
      %v204 = vld [vmem:[%s196] sm:$0xff]
      %v205 = vld [vmem:[%s196 + $0x8] sm:$0xf]
      %v206 = vld [vmem:[%s196 + $0xc] sm:$0xff]
      %v207 = vld [vmem:[%s196 + $0x14] sm:$0xf]
      %v208 = vld [vmem:[%s1] sm:$0xf]
      %v209 = vld [vmem:[%s1 + $0x4] sm:$0xf]
      %v210 = vld [vmem:[%s1 + $0x8] sm:$0xf]
      %v211 = vld [vmem:[%s1 + $0xc] sm:$0xf]
      %v212 = vld [vmem:[%s1 + $0x10] sm:$0xf]
      %v213 = vld [vmem:[%s1 + $0x14] sm:$0xf]
      %v214 = vld [vmem:[%s1 + $0x18] sm:$0xf]
      %v215 = vld [vmem:[%s1 + $0x1c] sm:$0xf]
      %v216 = vld [vmem:[%s1 + $0x20] sm:$0xf]
      %v217 = vld [vmem:[%s1 + $0x24] sm:$0xf]
      %v218 = vld [vmem:[%s1 + $0x28] sm:$0xf]
      %v219 = vld [vmem:[%s1 + $0x2c] sm:$0xf]
      %v220 = vld [vmem:[%s1 + $0x30] sm:$0xf]
      %v221 = vld [vmem:[%s1 + $0x34] sm:$0xf]
      %v222 = vld [vmem:[%s1 + $0x38] sm:$0xf]
      %v223 = vld [vmem:[%s1 + $0x3c] sm:$0xf]
      %v224 = vld [vmem:[%s1 + $0x40] sm:$0xf]
      %v225 = vld [vmem:[%s1 + $0x44] sm:$0xf]
      %v226 = vld [vmem:[%s1 + $0x48] sm:$0xf]
      %v227 = vld [vmem:[%s1 + $0x4c] sm:$0xf]
      %v228 = vld [vmem:[%s1 + $0x50] sm:$0xf]
      %v229 = vld [vmem:[%s1 + $0x54] sm:$0xf]
      %v230 = vld [vmem:[%s1 + $0x58] sm:$0xf]
      %v231 = vld [vmem:[%s1 + $0x5c] sm:$0xf]
      %v232 = vld [vmem:[%s1 + $0x60] sm:$0xf]
      %v233 = vld [vmem:[%s1 + $0x64] sm:$0xf]
      %v234 = vld [vmem:[%s1 + $0x68] sm:$0xf]
      %v235 = vld [vmem:[%s1 + $0x6c] sm:$0xf]
      %v236 = vld [vmem:[%s1 + $0x70] sm:$0xf]
      %v237 = vld [vmem:[%s1 + $0x74] sm:$0xf]
      %v238 = vld [vmem:[%s1 + $0x78] sm:$0xf]
      %v239 = vld [vmem:[%s1 + $0x7c] sm:$0xf]
      %v240 = vld [vmem:[%s1 + $0x80] sm:$0xf]
      %v241 = vld [vmem:[%s1 + $0x84] sm:$0xf]
      %v242 = vld [vmem:[%s1 + $0x88] sm:$0xf]
      %v243 = vld [vmem:[%s1 + $0x8c] sm:$0xf]
      %v244 = vld [vmem:[%s1 + $0x90] sm:$0xf]
      %v245 = vld [vmem:[%s1 + $0x94] sm:$0xf]
      %v246 = vld [vmem:[%s1 + $0x98] sm:$0xf]
      %v247 = vld [vmem:[%s1 + $0x9c] sm:$0xf]
      %v248 = vld [vmem:[%s1 + $0xa0] sm:$0xf]
      %v249 = vld [vmem:[%s1 + $0xa4] sm:$0xf]
      %v250 = vld [vmem:[%s1 + $0xa8] sm:$0xf]
      %v251 = vld [vmem:[%s1 + $0xac] sm:$0xf]
      %v252 = vld [vmem:[%s1 + $0xb0] sm:$0xf]
      %v253 = vld [vmem:[%s1 + $0xb4] sm:$0xf]
      %v254 = vld [vmem:[%s1 + $0xb8] sm:$0xf]
      %v255 = vld [vmem:[%s1 + $0xbc] sm:$0xf]
      %v260 = vunpack.c.l.b16 %v204
      %v261 = vunpack.c.h.b16 %v204
      %v262 = vunpack.c.l.b16 %v205
      %v263 = vunpack.c.l.b16 %v206
      %v264 = vunpack.c.h.b16 %v206
      %v265 = vunpack.c.l.b16 %v207
      %v266 = vpack.c.b16 %v263, %v260
      %v267 = vpack.c.b16 %v264, %v261
      %v268 = vpack.c.b16 %v265, %v262
      %v320 = vunpack.c.l.b16 %v208
      %v321 = vunpack.c.l.b16 %v209
      %v322 = vunpack.c.l.b16 %v210
      %v323 = vunpack.c.l.b16 %v211
      %v324 = vunpack.c.l.b16 %v212
      %v325 = vunpack.c.l.b16 %v213
      %v326 = vunpack.c.l.b16 %v214
      %v327 = vunpack.c.l.b16 %v215
      %v328 = vunpack.c.l.b16 %v216
      %v329 = vunpack.c.l.b16 %v217
      %v330 = vunpack.c.l.b16 %v218
      %v331 = vunpack.c.l.b16 %v219
      %v332 = vunpack.c.l.b16 %v220
      %v333 = vunpack.c.l.b16 %v221
      %v334 = vunpack.c.l.b16 %v222
      %v335 = vunpack.c.l.b16 %v223
      %v336 = vunpack.c.l.b16 %v224
      %v337 = vunpack.c.l.b16 %v225
      %v338 = vunpack.c.l.b16 %v226
      %v339 = vunpack.c.l.b16 %v227
      %v340 = vunpack.c.l.b16 %v228
      %v341 = vunpack.c.l.b16 %v229
      %v342 = vunpack.c.l.b16 %v230
      %v343 = vunpack.c.l.b16 %v231
      %v344 = vunpack.c.l.b16 %v232
      %v345 = vunpack.c.l.b16 %v233
      %v346 = vunpack.c.l.b16 %v234
      %v347 = vunpack.c.l.b16 %v235
      %v348 = vunpack.c.l.b16 %v236
      %v349 = vunpack.c.l.b16 %v237
      %v350 = vunpack.c.l.b16 %v238
      %v351 = vunpack.c.l.b16 %v239
      %v352 = vunpack.c.l.b16 %v240
      %v353 = vunpack.c.l.b16 %v241
      %v354 = vunpack.c.l.b16 %v242
      %v355 = vunpack.c.l.b16 %v243
      %v356 = vunpack.c.l.b16 %v244
      %v357 = vunpack.c.l.b16 %v245
      %v358 = vunpack.c.l.b16 %v246
      %v359 = vunpack.c.l.b16 %v247
      %v360 = vunpack.c.l.b16 %v248
      %v361 = vunpack.c.l.b16 %v249
      %v362 = vunpack.c.l.b16 %v250
      %v363 = vunpack.c.l.b16 %v251
      %v364 = vunpack.c.l.b16 %v252
      %v365 = vunpack.c.l.b16 %v253
      %v366 = vunpack.c.l.b16 %v254
      %v367 = vunpack.c.l.b16 %v255
      %v368 = vpack.c.b16 %v321, %v320
      %v369 = vpack.c.b16 %v323, %v322
      %v370 = vpack.c.b16 %v325, %v324
      %v371 = vpack.c.b16 %v327, %v326
      %v372 = vpack.c.b16 %v329, %v328
      %v373 = vpack.c.b16 %v331, %v330
      %v374 = vpack.c.b16 %v333, %v332
      %v375 = vpack.c.b16 %v335, %v334
      %v376 = vpack.c.b16 %v337, %v336
      %v377 = vpack.c.b16 %v339, %v338
      %v378 = vpack.c.b16 %v341, %v340
      %v379 = vpack.c.b16 %v343, %v342
      %v380 = vpack.c.b16 %v345, %v344
      %v381 = vpack.c.b16 %v347, %v346
      %v382 = vpack.c.b16 %v349, %v348
      %v383 = vpack.c.b16 %v351, %v350
      %v384 = vpack.c.b16 %v353, %v352
      %v385 = vpack.c.b16 %v355, %v354
      %v386 = vpack.c.b16 %v357, %v356
      %v387 = vpack.c.b16 %v359, %v358
      %v388 = vpack.c.b16 %v361, %v360
      %v389 = vpack.c.b16 %v363, %v362
      %v390 = vpack.c.b16 %v365, %v364
      %v391 = vpack.c.b16 %v367, %v366
      %416 = vmatpush.bf16.msra.mxu0 %v375
      %417 = vmatpush.bf16.msra.mxu0 %v374
      %418 = vmatpush.bf16.msra.mxu0 %v373
      %419 = vmatpush.bf16.msra.mxu0 %v372
      %420 = vmatpush.bf16.msra.mxu0 %v371
      %421 = vmatpush.bf16.msra.mxu0 %v370
      %422 = vmatpush.bf16.msra.mxu0 %v369
      %423 = vmatpush.bf16.msra.mxu0 %v368
      %424 = vmatmul.bf16.gmra.mxu0 %v266
      %v425 = vpop.f32.mrf.mxu0
      %v426 = vadd.f32 0.0, %v425
      %v427 = vpop.f32.mrf.mxu0
      %v428 = vadd.f32 0.0, %v427
      %429 = vdwg.mxu0
      %430 = vmatpush.bf16.msra.mxu0 %v383
      %431 = vmatpush.bf16.msra.mxu0 %v382
      %432 = vmatpush.bf16.msra.mxu0 %v381
      %433 = vmatpush.bf16.msra.mxu0 %v380
      %434 = vmatpush.bf16.msra.mxu0 %v379
      %435 = vmatpush.bf16.msra.mxu0 %v378
      %436 = vmatpush.bf16.msra.mxu0 %v377
      %437 = vmatpush.bf16.msra.mxu0 %v376
      %438 = vmatmul.bf16.gmra.mxu0 %v267
      %v439 = vpop.f32.mrf.mxu0
      %v440 = vadd.f32 %v426, %v439
      %v441 = vpop.f32.mrf.mxu0
      %v442 = vadd.f32 %v428, %v441
      %443 = vdwg.mxu0
      %444 = vmatpush.bf16.msra.mxu0 %v391
      %445 = vmatpush.bf16.msra.mxu0 %v390
      %446 = vmatpush.bf16.msra.mxu0 %v389
      %447 = vmatpush.bf16.msra.mxu0 %v388
      %448 = vmatpush.bf16.msra.mxu0 %v387
      %449 = vmatpush.bf16.msra.mxu0 %v386
      %450 = vmatpush.bf16.msra.mxu0 %v385
      %451 = vmatpush.bf16.msra.mxu0 %v384
      %452 = vmatmul.bf16.gmra.mxu0 %v268
      %v453 = vpop.f32.mrf.mxu0
      %v454 = vadd.f32 %v440, %v453
      %v455 = vpop.f32.mrf.mxu0
      %v456 = vadd.f32 %v442, %v455
      %457 = vdwg.mxu0
      %v458 = vld [vmem:[%s2] sm:$0x1]
      %v460 = vperm.slane %v458, 0
      %v462 = vmul.f32 %v454, %v460
      %v463 = vmul.f32 %v456, %v460
      %v464 = vld [vmem:[%s3] sm:$0x1]
      %v466 = vperm.slane %v464, 0
      %v468 = vadd.f32 %v462, %v466
      %v469 = vadd.f32 %v463, %v466
      %v470 = vmax.f32 %v468, 0.0
      %v471 = vmax.f32 %v469, 0.0
      %v472 = vpack.c.bf16 %v470, %v470
      %v473 = vpack.c.bf16 %v471, %v471
      %474 = vst [vmem:[%s202] sm:$0xf] %v472
      %475 = vst [vmem:[%s202 + $0x4] sm:$0xf] %v473
      %s476 = smul.u32 2, %s15
      %p477 = scmp.lt.s32.totalorder %s476, 3
      %s478 = scalar_select %p477, %s476, 3
      %s479 = smul.addr %s478, 4
      %s480 = scalar_lea.vmem %s4, %s479
      // Predicated region
      $region37: #{_lambda_.97} parent=35 // pred_check
        %p481 = pneg %p122
      $region38: #{_lambda_.97} parent=35 // pred_check_branch
        %483 = sbr.rel (%p481) target = $region40
      $region39: #{_lambda_.97} parent=35 // pred_region
        %s484 = smul.u32 2, %s15
      $region40: #{_lambda_.97} parent=35 // pred_fallthru
        _
    $region36: #{_lambda_.97} parent=5 // pred_fallthru
      _
    %p485 = scmp.le.s32.totalorder 2, %s10
    // Predicated region
    $region41: #{_lambda_.97} parent=5 // pred_check
      %p486 = pneg %p485
    $region42: #{_lambda_.97} parent=5 // pred_check_branch
      %488 = sbr.rel (%p486) target = $region44
    $region43: #{_lambda_.97} parent=5 // pred_region
      %s489 = ssub.s32 %s10, 2
      // Predicated region
      $region45: #{_lambda_.97} parent=43 // pred_check
        %p490 = pneg %p128
      $region46: #{_lambda_.97} parent=43 // pred_check_branch
        %492 = sbr.rel (%p490) target = $region48
      $region47: #{_lambda_.97} parent=43 // pred_region
        %s493 = smul.u32 2, %s16
        %p494 = scmp.lt.s32.totalorder %s493, 3
        %s495 = scalar_select %p494, %s493, 3
        %s496 = smul.addr %s495, 4
        %s497 = scalar_lea.vmem %s4, %s496
      $region48: #{_lambda_.97} parent=43 // pred_fallthru
        _
    $region44: #{_lambda_.97} parent=5 // pred_fallthru
      _
  $region6: #{_lambda_.97} parent=0 // loop_footer
    %s14 = sadd.s32 1, %s10
  $region7: #{_lambda_.97} parent=0 // loop_footer_branch
    %9 = sbr.rel target = $region3
  $region8: #{_lambda_.97} parent=0 // loop_exit
    _

// kernel: _lambda_.100
$region0: #{_lambda_.100}
  #allocation0 [shape = 'u32[]', space=smem, size = 0x4, offset = 0x4, fixed_abs, tag = 'smem constant byte address 0x4 - core index']
  #allocation1 [shape = 'u32[72,128]{1,0:T(1,128)}', space=vmem, size = 0x9000, scoped, tag = 'internal scratch']
  %s0 = inlined_call_operand.vmem [shape: bf16[32,384], index: 0, kind: input, shape index: {}]
  %s1 = inlined_call_operand.vmem [shape: bf16[384,128], index: 1, kind: input, shape index: {}]
  %s2 = inlined_call_operand.vmem [shape: f32[1,128], index: 2, kind: input, shape index: {}]
  %s3 = inlined_call_operand.vmem [shape: f32[1,128], index: 3, kind: input, shape index: {}]
  %s4 = inlined_call_operand.vmem [shape: bf16[32,128], index: 4, kind: input, shape index: {}]
  %s5 = inlined_call_operand.vmem [shape: bf16[32,128], index: 5, kind: output, shape index: {}]
  %s6 = sld [smem:[#allocation0]]
  $region53: #{_lambda_.100} parent=0
    _
  %s8 = ssub.s32 1, %s6
  %s9 = scalar_select 0, %s8, %s6
  loop: start=0, step=1, limit=4
  $region2: #{_lambda_.100} parent=0 // loop_pre_header
    _
  $region3: #{_lambda_.100} parent=0 // loop_header
    %s11 = sphi 0, %s15
    %p12 = scmp.ge.s32.totalorder %s11, 4
    %s21 = sphi 0, %s23
    %s24 = sphi 0, %s21
    %s25 = sphi 0, %s24
    %s41 = sphi 0, %s25
    %s45 = sphi 0, %s45
    %s47 = sphi 0, %s45
    %s48 = sphi 0, %s47
    %s62 = sphi 0, %s48
    %s66 = sphi 0, %s66
    %s68 = sphi 0, %s66
    %s69 = sphi 0, %s68
    %s83 = sphi 0, %s69
    %s87 = sphi 0, %s87
    %s89 = sphi 0, %s87
    %s90 = sphi 0, %s89
    %s104 = sphi 0, %s90
    %s110 = sphi 0, %s112
    %s113 = sphi 0, %s110
    %s114 = sphi 0, %s113
    %s130 = sphi 0, %s114
    %s136 = sphi 0, %s138
    %s139 = sphi 0, %s136
    %s140 = sphi 0, %s139
    %s156 = sphi 0, %s140
  $region4: #{_lambda_.100} parent=0 // loop_header_branch
    %14 = sbr.rel (%p12) target = $region8
  $region5: #{_lambda_.100} parent=0 // loop_body
    %s16 = ssub.s32 %s11, 1
    %s17 = ssub.s32 %s11, 2
    %s18 = sadd.s32 %s11, 1
    %s19 = ssub.s32 %s11, %s18
    %p20 = scmp.eq.s32.totalorder %s19, 0
    %s22 = sadd.s32 %s21, 1
    %s23 = scalar_select %p20, %s21, %s22
    %p26 = pneg %p20
    %p27 = scmp.eq.s32.totalorder %s11, 1
    %p28 = por %p26, %p27
    %p29 = scmp.ne.s32.totalorder %s21, %s24
    %p30 = scmp.eq.s32.totalorder %s11, 0
    %p31 = por %p29, %p30
    %p32 = scmp.ne.s32.totalorder %s21, %s24
    %p33 = scmp.eq.s32.totalorder %s16, 1
    %p34 = por %p32, %p33
    %p35 = scmp.ne.s32.totalorder %s24, %s25
    %p36 = scmp.eq.s32.totalorder %s16, 0
    %p37 = por %p35, %p36
    %p38 = scmp.ne.s32.totalorder %s24, %s25
    %p39 = scmp.eq.s32.totalorder %s17, 1
    %p40 = por %p38, %p39
    %p42 = scmp.ne.s32.totalorder %s25, %s41
    %p43 = scmp.eq.s32.totalorder %s17, 0
    %p44 = por %p42, %p43
    %s46 = sadd.s32 %s45, 1
    %p49 = scmp.eq.s32.totalorder %s11, 1
    %p50 = scmp.ne.s32.totalorder %s45, %s47
    %p51 = scmp.eq.s32.totalorder %s11, 0
    %p52 = por %p50, %p51
    %p53 = scmp.ne.s32.totalorder %s45, %s47
    %p54 = scmp.eq.s32.totalorder %s16, 1
    %p55 = por %p53, %p54
    %p56 = scmp.ne.s32.totalorder %s47, %s48
    %p57 = scmp.eq.s32.totalorder %s16, 0
    %p58 = por %p56, %p57
    %p59 = scmp.ne.s32.totalorder %s47, %s48
    %p60 = scmp.eq.s32.totalorder %s17, 1
    %p61 = por %p59, %p60
    %p63 = scmp.ne.s32.totalorder %s48, %s62
    %p64 = scmp.eq.s32.totalorder %s17, 0
    %p65 = por %p63, %p64
    %s67 = sadd.s32 %s66, 1
    %p70 = scmp.eq.s32.totalorder %s11, 1
    %p71 = scmp.ne.s32.totalorder %s66, %s68
    %p72 = scmp.eq.s32.totalorder %s11, 0
    %p73 = por %p71, %p72
    %p74 = scmp.ne.s32.totalorder %s66, %s68
    %p75 = scmp.eq.s32.totalorder %s16, 1
    %p76 = por %p74, %p75
    %p77 = scmp.ne.s32.totalorder %s68, %s69
    %p78 = scmp.eq.s32.totalorder %s16, 0
    %p79 = por %p77, %p78
    %p80 = scmp.ne.s32.totalorder %s68, %s69
    %p81 = scmp.eq.s32.totalorder %s17, 1
    %p82 = por %p80, %p81
    %p84 = scmp.ne.s32.totalorder %s69, %s83
    %p85 = scmp.eq.s32.totalorder %s17, 0
    %p86 = por %p84, %p85
    %s88 = sadd.s32 %s87, 1
    %p91 = scmp.eq.s32.totalorder %s11, 1
    %p92 = scmp.ne.s32.totalorder %s87, %s89
    %p93 = scmp.eq.s32.totalorder %s11, 0
    %p94 = por %p92, %p93
    %p95 = scmp.ne.s32.totalorder %s87, %s89
    %p96 = scmp.eq.s32.totalorder %s16, 1
    %p97 = por %p95, %p96
    %p98 = scmp.ne.s32.totalorder %s89, %s90
    %p99 = scmp.eq.s32.totalorder %s16, 0
    %p100 = por %p98, %p99
    %p101 = scmp.ne.s32.totalorder %s89, %s90
    %p102 = scmp.eq.s32.totalorder %s17, 1
    %p103 = por %p101, %p102
    %p105 = scmp.ne.s32.totalorder %s90, %s104
    %p106 = scmp.eq.s32.totalorder %s17, 0
    %p107 = por %p105, %p106
    %s108 = ssub.s32 %s11, %s18
    %p109 = scmp.eq.s32.totalorder %s108, 0
    %s111 = sadd.s32 %s110, 1
    %s112 = scalar_select %p109, %s110, %s111
    %p115 = pneg %p109
    %p116 = scmp.eq.s32.totalorder %s11, 1
    %p117 = por %p115, %p116
    %p118 = scmp.ne.s32.totalorder %s110, %s113
    %p119 = scmp.eq.s32.totalorder %s11, 0
    %p120 = por %p118, %p119
    %p121 = scmp.ne.s32.totalorder %s110, %s113
    %p122 = scmp.eq.s32.totalorder %s16, 1
    %p123 = por %p121, %p122
    %p124 = scmp.ne.s32.totalorder %s113, %s114
    %p125 = scmp.eq.s32.totalorder %s16, 0
    %p126 = por %p124, %p125
    %p127 = scmp.ne.s32.totalorder %s113, %s114
    %p128 = scmp.eq.s32.totalorder %s17, 1
    %p129 = por %p127, %p128
    %p131 = scmp.ne.s32.totalorder %s114, %s130
    %p132 = scmp.eq.s32.totalorder %s17, 0
    %p133 = por %p131, %p132
    %s134 = ssub.s32 %s11, %s18
    %p135 = scmp.eq.s32.totalorder %s134, 0
    %s137 = sadd.s32 %s136, 1
    %s138 = scalar_select %p135, %s136, %s137
    %p141 = pneg %p135
    %p142 = scmp.eq.s32.totalorder %s11, 1
    %p143 = por %p141, %p142
    %p144 = scmp.ne.s32.totalorder %s136, %s139
    %p145 = scmp.eq.s32.totalorder %s11, 0
    %p146 = por %p144, %p145
    %p147 = scmp.ne.s32.totalorder %s136, %s139
    %p148 = scmp.eq.s32.totalorder %s16, 1
    %p149 = por %p147, %p148
    %p150 = scmp.ne.s32.totalorder %s139, %s140
    %p151 = scmp.eq.s32.totalorder %s16, 0
    %p152 = por %p150, %p151
    %p153 = scmp.ne.s32.totalorder %s139, %s140
    %p154 = scmp.eq.s32.totalorder %s17, 1
    %p155 = por %p153, %p154
    %p157 = scmp.ne.s32.totalorder %s140, %s156
    %p158 = scmp.eq.s32.totalorder %s17, 0
    %p159 = por %p157, %p158
    %p160 = scmp.le.s32.totalorder 1, %s11
    %p161 = scmp.lt.s32.totalorder %s11, 3
    %p162 = pnand %p160, %p161
    %p163 = pneg %p162
    // Predicated region
    $region9: #{_lambda_.100} parent=5 // pred_check
      _
    $region10: #{_lambda_.100} parent=5 // pred_check_branch
      %165 = sbr.rel (%p162) target = $region12
    $region11: #{_lambda_.100} parent=5 // pred_region
      %s166 = ssub.s32 %s11, 1
      // Predicated region
      $region13: #{_lambda_.100} parent=11 // pred_check
        %p167 = pneg %p58
      $region14: #{_lambda_.100} parent=11 // pred_check_branch
        %169 = sbr.rel (%p167) target = $region16
      $region15: #{_lambda_.100} parent=11 // pred_region
        _
      $region16: #{_lambda_.100} parent=11 // pred_fallthru
        _
      // Predicated region
      $region17: #{_lambda_.100} parent=11 // pred_check
        %p170 = pneg %p79
      $region18: #{_lambda_.100} parent=11 // pred_check_branch
        %172 = sbr.rel (%p170) target = $region20
      $region19: #{_lambda_.100} parent=11 // pred_region
        _
      $region20: #{_lambda_.100} parent=11 // pred_fallthru
        _
      // Predicated region
      $region21: #{_lambda_.100} parent=11 // pred_check
        %p173 = pneg %p100
      $region22: #{_lambda_.100} parent=11 // pred_check_branch
        %175 = sbr.rel (%p173) target = $region24
      $region23: #{_lambda_.100} parent=11 // pred_region
        _
      $region24: #{_lambda_.100} parent=11 // pred_fallthru
        _
    $region12: #{_lambda_.100} parent=5 // pred_fallthru
      _
    %p176 = scmp.lt.s32.totalorder %s11, 2
    // Predicated region
    $region25: #{_lambda_.100} parent=5 // pred_check
      %p177 = pneg %p176
    $region26: #{_lambda_.100} parent=5 // pred_check_branch
      %179 = sbr.rel (%p177) target = $region28
    $region27: #{_lambda_.100} parent=5 // pred_region
      // Predicated region
      $region29: #{_lambda_.100} parent=27 // pred_check
        %p180 = pneg %p31
      $region30: #{_lambda_.100} parent=27 // pred_check_branch
        %182 = sbr.rel (%p180) target = $region32
      $region31: #{_lambda_.100} parent=27 // pred_region
        %s183 = smul.u32 2, %s11
        %p184 = scmp.lt.s32.totalorder %s183, 3
        %s185 = scalar_select %p184, %s183, 3
        %s186 = smul.addr %s185, 3
        %s187 = smul.addr %s186, 4
        %s188 = scalar_lea.vmem %s0, %s187
        %s189 = smul.u32 2, %s11
      $region32: #{_lambda_.100} parent=27 // pred_fallthru
        _
      // Predicated region
      $region33: #{_lambda_.100} parent=27 // pred_check
        %p190 = pneg %p120
      $region34: #{_lambda_.100} parent=27 // pred_check_branch
        %192 = sbr.rel (%p190) target = $region36
      $region35: #{_lambda_.100} parent=27 // pred_region
        %s193 = smul.u32 2, %s11
        %p194 = scmp.lt.s32.totalorder %s193, 3
        %s195 = scalar_select %p194, %s193, 3
        %s196 = smul.addr %s195, 4
        %s197 = scalar_lea.vmem %s4, %s196
        %s198 = smul.u32 2, %s11
      $region36: #{_lambda_.100} parent=27 // pred_fallthru
        _
    $region28: #{_lambda_.100} parent=5 // pred_fallthru
      _
    %p199 = scmp.le.s32.totalorder 1, %s11
    %p200 = scmp.lt.s32.totalorder %s11, 3
    %p201 = pnand %p199, %p200
    %p202 = pneg %p201
    // Predicated region
    $region37: #{_lambda_.100} parent=5 // pred_check
      _
    $region38: #{_lambda_.100} parent=5 // pred_check_branch
      %204 = sbr.rel (%p201) target = $region40
    $region39: #{_lambda_.100} parent=5 // pred_region
      %s205 = ssub.s32 %s11, 1
      %s206 = smul.u32 2, %s16
      %p207 = scmp.lt.s32.totalorder %s206, 3
      %s208 = scalar_select %p207, %s206, 3
      %s209 = smul.addr %s208, 3
      %s210 = smul.addr %s209, 4
      %s211 = scalar_lea.vmem %s0, %s210
      %p212 = pneg %p37
      %p213 = pneg %p34
      %p214 = pneg %p58
      %p215 = pneg %p55
      %p216 = pneg %p79
      %p217 = pneg %p76
      %p218 = pneg %p100
      %p219 = pneg %p97
      %s220 = smul.u32 2, %s16
      %p221 = scmp.lt.s32.totalorder %s220, 3
      %s222 = scalar_select %p221, %s220, 3
      %s223 = smul.addr %s222, 4
      %s224 = scalar_lea.vmem %s4, %s223
      %p225 = pneg %p126
      %p226 = pneg %p123
      %p227 = pneg %p152
      %p228 = pneg %p149
      %s229 = smul.u32 2, %s16
      %p230 = scmp.lt.s32.totalorder %s229, 3
      %s231 = scalar_select %p230, %s229, 3
      %s232 = smul.addr %s231, 4
      %s233 = scalar_lea.vmem %s5, %s232
      %s234 = smul.u32 2, %s16
      %p235 = scmp.lt.s32.totalorder %s234, 3
      %s236 = scalar_select %p235, %s234, 3
      %s237 = smul.addr %s236, 3
      %s238 = smul.addr %s237, 4
      %s239 = scalar_lea.vmem %s0, %s238
      %s240 = smul.u32 2, %s16
      %s241 = smul.u32 2, %s16
      %p242 = scmp.lt.s32.totalorder %s241, 3
      %s243 = scalar_select %p242, %s241, 3
      %s244 = smul.addr %s243, 4
      %s245 = scalar_lea.vmem %s4, %s244
      %s246 = smul.u32 2, %s16
      %s247 = smul.u32 2, %s16
      %p248 = scmp.lt.s32.totalorder %s247, 3
      %s249 = scalar_select %p248, %s247, 3
      %s250 = smul.addr %s249, 4
      %s251 = scalar_lea.vmem %s5, %s250
      %s252 = smul.u32 2, %s16
      %v253 = vld [vmem:[%s239] sm:$0xff]
      %v254 = vld [vmem:[%s239 + $0x8] sm:$0xf]
      %v255 = vld [vmem:[%s239 + $0xc] sm:$0xff]
      %v256 = vld [vmem:[%s239 + $0x14] sm:$0xf]
      %v257 = vld [vmem:[%s1] sm:$0xf]
      %v258 = vld [vmem:[%s1 + $0x4] sm:$0xf]
      %v259 = vld [vmem:[%s1 + $0x8] sm:$0xf]
      %v260 = vld [vmem:[%s1 + $0xc] sm:$0xf]
      %v261 = vld [vmem:[%s1 + $0x10] sm:$0xf]
      %v262 = vld [vmem:[%s1 + $0x14] sm:$0xf]
      %v263 = vld [vmem:[%s1 + $0x18] sm:$0xf]
      %v264 = vld [vmem:[%s1 + $0x1c] sm:$0xf]
      %v265 = vld [vmem:[%s1 + $0x20] sm:$0xf]
      %v266 = vld [vmem:[%s1 + $0x24] sm:$0xf]
      %v267 = vld [vmem:[%s1 + $0x28] sm:$0xf]
      %v268 = vld [vmem:[%s1 + $0x2c] sm:$0xf]
      %v269 = vld [vmem:[%s1 + $0x30] sm:$0xf]
      %v270 = vld [vmem:[%s1 + $0x34] sm:$0xf]
      %v271 = vld [vmem:[%s1 + $0x38] sm:$0xf]
      %v272 = vld [vmem:[%s1 + $0x3c] sm:$0xf]
      %v273 = vld [vmem:[%s1 + $0x40] sm:$0xf]
      %v274 = vld [vmem:[%s1 + $0x44] sm:$0xf]
      %v275 = vld [vmem:[%s1 + $0x48] sm:$0xf]
      %v276 = vld [vmem:[%s1 + $0x4c] sm:$0xf]
      %v277 = vld [vmem:[%s1 + $0x50] sm:$0xf]
      %v278 = vld [vmem:[%s1 + $0x54] sm:$0xf]
      %v279 = vld [vmem:[%s1 + $0x58] sm:$0xf]
      %v280 = vld [vmem:[%s1 + $0x5c] sm:$0xf]
      %v281 = vld [vmem:[%s1 + $0x60] sm:$0xf]
      %v282 = vld [vmem:[%s1 + $0x64] sm:$0xf]
      %v283 = vld [vmem:[%s1 + $0x68] sm:$0xf]
      %v284 = vld [vmem:[%s1 + $0x6c] sm:$0xf]
      %v285 = vld [vmem:[%s1 + $0x70] sm:$0xf]
      %v286 = vld [vmem:[%s1 + $0x74] sm:$0xf]
      %v287 = vld [vmem:[%s1 + $0x78] sm:$0xf]
      %v288 = vld [vmem:[%s1 + $0x7c] sm:$0xf]
      %v289 = vld [vmem:[%s1 + $0x80] sm:$0xf]
      %v290 = vld [vmem:[%s1 + $0x84] sm:$0xf]
      %v291 = vld [vmem:[%s1 + $0x88] sm:$0xf]
      %v292 = vld [vmem:[%s1 + $0x8c] sm:$0xf]
      %v293 = vld [vmem:[%s1 + $0x90] sm:$0xf]
      %v294 = vld [vmem:[%s1 + $0x94] sm:$0xf]
      %v295 = vld [vmem:[%s1 + $0x98] sm:$0xf]
      %v296 = vld [vmem:[%s1 + $0x9c] sm:$0xf]
      %v297 = vld [vmem:[%s1 + $0xa0] sm:$0xf]
      %v298 = vld [vmem:[%s1 + $0xa4] sm:$0xf]
      %v299 = vld [vmem:[%s1 + $0xa8] sm:$0xf]
      %v300 = vld [vmem:[%s1 + $0xac] sm:$0xf]
      %v301 = vld [vmem:[%s1 + $0xb0] sm:$0xf]
      %v302 = vld [vmem:[%s1 + $0xb4] sm:$0xf]
      %v303 = vld [vmem:[%s1 + $0xb8] sm:$0xf]
      %v304 = vld [vmem:[%s1 + $0xbc] sm:$0xf]
      %v309 = vunpack.c.l.b16 %v253
      %v310 = vunpack.c.h.b16 %v253
      %v311 = vunpack.c.l.b16 %v254
      %v312 = vunpack.c.l.b16 %v255
      %v313 = vunpack.c.h.b16 %v255
      %v314 = vunpack.c.l.b16 %v256
      %v315 = vpack.c.b16 %v312, %v309
      %v316 = vpack.c.b16 %v313, %v310
      %v317 = vpack.c.b16 %v314, %v311
      %v369 = vunpack.c.l.b16 %v257
      %v370 = vunpack.c.l.b16 %v258
      %v371 = vunpack.c.l.b16 %v259
      %v372 = vunpack.c.l.b16 %v260
      %v373 = vunpack.c.l.b16 %v261
      %v374 = vunpack.c.l.b16 %v262
      %v375 = vunpack.c.l.b16 %v263
      %v376 = vunpack.c.l.b16 %v264
      %v377 = vunpack.c.l.b16 %v265
      %v378 = vunpack.c.l.b16 %v266
      %v379 = vunpack.c.l.b16 %v267
      %v380 = vunpack.c.l.b16 %v268
      %v381 = vunpack.c.l.b16 %v269
      %v382 = vunpack.c.l.b16 %v270
      %v383 = vunpack.c.l.b16 %v271
      %v384 = vunpack.c.l.b16 %v272
      %v385 = vunpack.c.l.b16 %v273
      %v386 = vunpack.c.l.b16 %v274
      %v387 = vunpack.c.l.b16 %v275
      %v388 = vunpack.c.l.b16 %v276
      %v389 = vunpack.c.l.b16 %v277
      %v390 = vunpack.c.l.b16 %v278
      %v391 = vunpack.c.l.b16 %v279
      %v392 = vunpack.c.l.b16 %v280
      %v393 = vunpack.c.l.b16 %v281
      %v394 = vunpack.c.l.b16 %v282
      %v395 = vunpack.c.l.b16 %v283
      %v396 = vunpack.c.l.b16 %v284
      %v397 = vunpack.c.l.b16 %v285
      %v398 = vunpack.c.l.b16 %v286
      %v399 = vunpack.c.l.b16 %v287
      %v400 = vunpack.c.l.b16 %v288
      %v401 = vunpack.c.l.b16 %v289
      %v402 = vunpack.c.l.b16 %v290
      %v403 = vunpack.c.l.b16 %v291
      %v404 = vunpack.c.l.b16 %v292
      %v405 = vunpack.c.l.b16 %v293
      %v406 = vunpack.c.l.b16 %v294
      %v407 = vunpack.c.l.b16 %v295
      %v408 = vunpack.c.l.b16 %v296
      %v409 = vunpack.c.l.b16 %v297
      %v410 = vunpack.c.l.b16 %v298
      %v411 = vunpack.c.l.b16 %v299
      %v412 = vunpack.c.l.b16 %v300
      %v413 = vunpack.c.l.b16 %v301
      %v414 = vunpack.c.l.b16 %v302
      %v415 = vunpack.c.l.b16 %v303
      %v416 = vunpack.c.l.b16 %v304
      %v417 = vpack.c.b16 %v370, %v369
      %v418 = vpack.c.b16 %v372, %v371
      %v419 = vpack.c.b16 %v374, %v373
      %v420 = vpack.c.b16 %v376, %v375
      %v421 = vpack.c.b16 %v378, %v377
      %v422 = vpack.c.b16 %v380, %v379
      %v423 = vpack.c.b16 %v382, %v381
      %v424 = vpack.c.b16 %v384, %v383
      %v425 = vpack.c.b16 %v386, %v385
      %v426 = vpack.c.b16 %v388, %v387
      %v427 = vpack.c.b16 %v390, %v389
      %v428 = vpack.c.b16 %v392, %v391
      %v429 = vpack.c.b16 %v394, %v393
      %v430 = vpack.c.b16 %v396, %v395
      %v431 = vpack.c.b16 %v398, %v397
      %v432 = vpack.c.b16 %v400, %v399
      %v433 = vpack.c.b16 %v402, %v401
      %v434 = vpack.c.b16 %v404, %v403
      %v435 = vpack.c.b16 %v406, %v405
      %v436 = vpack.c.b16 %v408, %v407
      %v437 = vpack.c.b16 %v410, %v409
      %v438 = vpack.c.b16 %v412, %v411
      %v439 = vpack.c.b16 %v414, %v413
      %v440 = vpack.c.b16 %v416, %v415
      %465 = vmatpush.bf16.msra.mxu0 %v424
      %466 = vmatpush.bf16.msra.mxu0 %v423
      %467 = vmatpush.bf16.msra.mxu0 %v422
      %468 = vmatpush.bf16.msra.mxu0 %v421
      %469 = vmatpush.bf16.msra.mxu0 %v420
      %470 = vmatpush.bf16.msra.mxu0 %v419
      %471 = vmatpush.bf16.msra.mxu0 %v418
      %472 = vmatpush.bf16.msra.mxu0 %v417
      %473 = vmatmul.bf16.gmra.mxu0 %v315
      %v474 = vpop.f32.mrf.mxu0
      %v475 = vadd.f32 0.0, %v474
      %v476 = vpop.f32.mrf.mxu0
      %v477 = vadd.f32 0.0, %v476
      %478 = vdwg.mxu0
      %479 = vmatpush.bf16.msra.mxu0 %v432
      %480 = vmatpush.bf16.msra.mxu0 %v431
      %481 = vmatpush.bf16.msra.mxu0 %v430
      %482 = vmatpush.bf16.msra.mxu0 %v429
      %483 = vmatpush.bf16.msra.mxu0 %v428
      %484 = vmatpush.bf16.msra.mxu0 %v427
      %485 = vmatpush.bf16.msra.mxu0 %v426
      %486 = vmatpush.bf16.msra.mxu0 %v425
      %487 = vmatmul.bf16.gmra.mxu0 %v316
      %v488 = vpop.f32.mrf.mxu0
      %v489 = vadd.f32 %v475, %v488
      %v490 = vpop.f32.mrf.mxu0
      %v491 = vadd.f32 %v477, %v490
      %492 = vdwg.mxu0
      %493 = vmatpush.bf16.msra.mxu0 %v440
      %494 = vmatpush.bf16.msra.mxu0 %v439
      %495 = vmatpush.bf16.msra.mxu0 %v438
      %496 = vmatpush.bf16.msra.mxu0 %v437
      %497 = vmatpush.bf16.msra.mxu0 %v436
      %498 = vmatpush.bf16.msra.mxu0 %v435
      %499 = vmatpush.bf16.msra.mxu0 %v434
      %500 = vmatpush.bf16.msra.mxu0 %v433
      %501 = vmatmul.bf16.gmra.mxu0 %v317
      %v502 = vpop.f32.mrf.mxu0
      %v503 = vadd.f32 %v489, %v502
      %v504 = vpop.f32.mrf.mxu0
      %v505 = vadd.f32 %v491, %v504
      %506 = vdwg.mxu0
      %v507 = vld [vmem:[%s2] sm:$0x1]
      %v509 = vperm.slane %v507, 0
      %v511 = vmul.f32 %v503, %v509
      %v512 = vmul.f32 %v505, %v509
      %v513 = vld [vmem:[%s3] sm:$0x1]
      %v515 = vperm.slane %v513, 0
      %v517 = vadd.f32 %v511, %v515
      %v518 = vadd.f32 %v512, %v515
      %v519 = vld [vmem:[%s245] sm:$0xf]
      %v520 = vld [vmem:[%s245 + $0x4] sm:$0xf]
      %v521 = vunpack.c.l.bf16 %v519
      %v522 = vunpack.c.l.bf16 %v520
      %v523 = vadd.f32 %v517, %v521
      %v524 = vadd.f32 %v518, %v522
      %v525 = vmax.f32 %v523, 0.0
      %v526 = vmax.f32 %v524, 0.0
      %v527 = vpack.c.bf16 %v525, %v525
      %v528 = vpack.c.bf16 %v526, %v526
      %529 = vst [vmem:[%s251] sm:$0xf] %v527
      %530 = vst [vmem:[%s251 + $0x4] sm:$0xf] %v528
      %s531 = smul.u32 2, %s16
      %p532 = scmp.lt.s32.totalorder %s531, 3
      %s533 = scalar_select %p532, %s531, 3
      %s534 = smul.addr %s533, 4
      %s535 = scalar_lea.vmem %s5, %s534
      // Predicated region
      $region41: #{_lambda_.100} parent=39 // pred_check
        %p536 = pneg %p149
      $region42: #{_lambda_.100} parent=39 // pred_check_branch
        %538 = sbr.rel (%p536) target = $region44
      $region43: #{_lambda_.100} parent=39 // pred_region
        %s539 = smul.u32 2, %s16
      $region44: #{_lambda_.100} parent=39 // pred_fallthru
        _
    $region40: #{_lambda_.100} parent=5 // pred_fallthru
      _
    %p540 = scmp.le.s32.totalorder 2, %s11
    // Predicated region
    $region45: #{_lambda_.100} parent=5 // pred_check
      %p541 = pneg %p540
    $region46: #{_lambda_.100} parent=5 // pred_check_branch
      %543 = sbr.rel (%p541) target = $region48
    $region47: #{_lambda_.100} parent=5 // pred_region
      %s544 = ssub.s32 %s11, 2
      // Predicated region
      $region49: #{_lambda_.100} parent=47 // pred_check
        %p545 = pneg %p155
      $region50: #{_lambda_.100} parent=47 // pred_check_branch
        %547 = sbr.rel (%p545) target = $region52
      $region51: #{_lambda_.100} parent=47 // pred_region
        %s548 = smul.u32 2, %s17
        %p549 = scmp.lt.s32.totalorder %s548, 3
        %s550 = scalar_select %p549, %s548, 3
        %s551 = smul.addr %s550, 4
        %s552 = scalar_lea.vmem %s5, %s551
      $region52: #{_lambda_.100} parent=47 // pred_fallthru
        _
    $region48: #{_lambda_.100} parent=5 // pred_fallthru
      _
  $region6: #{_lambda_.100} parent=0 // loop_footer
    %s15 = sadd.s32 1, %s11
  $region7: #{_lambda_.100} parent=0 // loop_footer_branch
    %10 = sbr.rel target = $region3
  $region8: #{_lambda_.100} parent=0 // loop_exit
    _

// kernel: _lambda_.129
$region0: #{_lambda_.129}
  #allocation0 [shape = 'u32[]', space=smem, size = 0x4, offset = 0x4, fixed_abs, tag = 'smem constant byte address 0x4 - core index']
  #allocation1 [shape = 'u32[72,128]{1,0:T(1,128)}', space=vmem, size = 0x9000, scoped, tag = 'internal scratch']
  %s0 = inlined_call_operand.vmem [shape: bf16[32,512], index: 0, kind: input, shape index: {}]
  %s1 = inlined_call_operand.vmem [shape: bf16[512,256], index: 1, kind: input, shape index: {}]
  %s2 = inlined_call_operand.vmem [shape: f32[1,256], index: 2, kind: input, shape index: {}]
  %s3 = inlined_call_operand.vmem [shape: f32[1,256], index: 3, kind: input, shape index: {}]
  %s4 = inlined_call_operand.vmem [shape: bf16[32,256], index: 4, kind: output, shape index: {}]
  %s5 = sld [smem:[#allocation0]]
  $region49: #{_lambda_.129} parent=0
    _
  %s7 = ssub.s32 1, %s5
  %s8 = scalar_select 0, %s7, %s5
  loop: start=0, step=1, limit=4
  $region2: #{_lambda_.129} parent=0 // loop_pre_header
    _
  $region3: #{_lambda_.129} parent=0 // loop_header
    %s10 = sphi 0, %s14
    %p11 = scmp.ge.s32.totalorder %s10, 4
    %s20 = sphi 0, %s22
    %s23 = sphi 0, %s20
    %s24 = sphi 0, %s23
    %s40 = sphi 0, %s24
    %s44 = sphi 0, %s44
    %s46 = sphi 0, %s44
    %s47 = sphi 0, %s46
    %s61 = sphi 0, %s47
    %s65 = sphi 0, %s65
    %s67 = sphi 0, %s65
    %s68 = sphi 0, %s67
    %s82 = sphi 0, %s68
    %s86 = sphi 0, %s86
    %s88 = sphi 0, %s86
    %s89 = sphi 0, %s88
    %s103 = sphi 0, %s89
    %s109 = sphi 0, %s111
    %s112 = sphi 0, %s109
    %s113 = sphi 0, %s112
    %s129 = sphi 0, %s113
  $region4: #{_lambda_.129} parent=0 // loop_header_branch
    %13 = sbr.rel (%p11) target = $region8
  $region5: #{_lambda_.129} parent=0 // loop_body
    %s15 = ssub.s32 %s10, 1
    %s16 = ssub.s32 %s10, 2
    %s17 = sadd.s32 %s10, 1
    %s18 = ssub.s32 %s10, %s17
    %p19 = scmp.eq.s32.totalorder %s18, 0
    %s21 = sadd.s32 %s20, 1
    %s22 = scalar_select %p19, %s20, %s21
    %p25 = pneg %p19
    %p26 = scmp.eq.s32.totalorder %s10, 1
    %p27 = por %p25, %p26
    %p28 = scmp.ne.s32.totalorder %s20, %s23
    %p29 = scmp.eq.s32.totalorder %s10, 0
    %p30 = por %p28, %p29
    %p31 = scmp.ne.s32.totalorder %s20, %s23
    %p32 = scmp.eq.s32.totalorder %s15, 1
    %p33 = por %p31, %p32
    %p34 = scmp.ne.s32.totalorder %s23, %s24
    %p35 = scmp.eq.s32.totalorder %s15, 0
    %p36 = por %p34, %p35
    %p37 = scmp.ne.s32.totalorder %s23, %s24
    %p38 = scmp.eq.s32.totalorder %s16, 1
    %p39 = por %p37, %p38
    %p41 = scmp.ne.s32.totalorder %s24, %s40
    %p42 = scmp.eq.s32.totalorder %s16, 0
    %p43 = por %p41, %p42
    %s45 = sadd.s32 %s44, 1
    %p48 = scmp.eq.s32.totalorder %s10, 1
    %p49 = scmp.ne.s32.totalorder %s44, %s46
    %p50 = scmp.eq.s32.totalorder %s10, 0
    %p51 = por %p49, %p50
    %p52 = scmp.ne.s32.totalorder %s44, %s46
    %p53 = scmp.eq.s32.totalorder %s15, 1
    %p54 = por %p52, %p53
    %p55 = scmp.ne.s32.totalorder %s46, %s47
    %p56 = scmp.eq.s32.totalorder %s15, 0
    %p57 = por %p55, %p56
    %p58 = scmp.ne.s32.totalorder %s46, %s47
    %p59 = scmp.eq.s32.totalorder %s16, 1
    %p60 = por %p58, %p59
    %p62 = scmp.ne.s32.totalorder %s47, %s61
    %p63 = scmp.eq.s32.totalorder %s16, 0
    %p64 = por %p62, %p63
    %s66 = sadd.s32 %s65, 1
    %p69 = scmp.eq.s32.totalorder %s10, 1
    %p70 = scmp.ne.s32.totalorder %s65, %s67
    %p71 = scmp.eq.s32.totalorder %s10, 0
    %p72 = por %p70, %p71
    %p73 = scmp.ne.s32.totalorder %s65, %s67
    %p74 = scmp.eq.s32.totalorder %s15, 1
    %p75 = por %p73, %p74
    %p76 = scmp.ne.s32.totalorder %s67, %s68
    %p77 = scmp.eq.s32.totalorder %s15, 0
    %p78 = por %p76, %p77
    %p79 = scmp.ne.s32.totalorder %s67, %s68
    %p80 = scmp.eq.s32.totalorder %s16, 1
    %p81 = por %p79, %p80
    %p83 = scmp.ne.s32.totalorder %s68, %s82
    %p84 = scmp.eq.s32.totalorder %s16, 0
    %p85 = por %p83, %p84
    %s87 = sadd.s32 %s86, 1
    %p90 = scmp.eq.s32.totalorder %s10, 1
    %p91 = scmp.ne.s32.totalorder %s86, %s88
    %p92 = scmp.eq.s32.totalorder %s10, 0
    %p93 = por %p91, %p92
    %p94 = scmp.ne.s32.totalorder %s86, %s88
    %p95 = scmp.eq.s32.totalorder %s15, 1
    %p96 = por %p94, %p95
    %p97 = scmp.ne.s32.totalorder %s88, %s89
    %p98 = scmp.eq.s32.totalorder %s15, 0
    %p99 = por %p97, %p98
    %p100 = scmp.ne.s32.totalorder %s88, %s89
    %p101 = scmp.eq.s32.totalorder %s16, 1
    %p102 = por %p100, %p101
    %p104 = scmp.ne.s32.totalorder %s89, %s103
    %p105 = scmp.eq.s32.totalorder %s16, 0
    %p106 = por %p104, %p105
    %s107 = ssub.s32 %s10, %s17
    %p108 = scmp.eq.s32.totalorder %s107, 0
    %s110 = sadd.s32 %s109, 1
    %s111 = scalar_select %p108, %s109, %s110
    %p114 = pneg %p108
    %p115 = scmp.eq.s32.totalorder %s10, 1
    %p116 = por %p114, %p115
    %p117 = scmp.ne.s32.totalorder %s109, %s112
    %p118 = scmp.eq.s32.totalorder %s10, 0
    %p119 = por %p117, %p118
    %p120 = scmp.ne.s32.totalorder %s109, %s112
    %p121 = scmp.eq.s32.totalorder %s15, 1
    %p122 = por %p120, %p121
    %p123 = scmp.ne.s32.totalorder %s112, %s113
    %p124 = scmp.eq.s32.totalorder %s15, 0
    %p125 = por %p123, %p124
    %p126 = scmp.ne.s32.totalorder %s112, %s113
    %p127 = scmp.eq.s32.totalorder %s16, 1
    %p128 = por %p126, %p127
    %p130 = scmp.ne.s32.totalorder %s113, %s129
    %p131 = scmp.eq.s32.totalorder %s16, 0
    %p132 = por %p130, %p131
    %p133 = scmp.le.s32.totalorder 1, %s10
    %p134 = scmp.lt.s32.totalorder %s10, 3
    %p135 = pnand %p133, %p134
    %p136 = pneg %p135
    // Predicated region
    $region9: #{_lambda_.129} parent=5 // pred_check
      _
    $region10: #{_lambda_.129} parent=5 // pred_check_branch
      %138 = sbr.rel (%p135) target = $region12
    $region11: #{_lambda_.129} parent=5 // pred_region
      %s139 = ssub.s32 %s10, 1
      // Predicated region
      $region13: #{_lambda_.129} parent=11 // pred_check
        %p140 = pneg %p57
      $region14: #{_lambda_.129} parent=11 // pred_check_branch
        %142 = sbr.rel (%p140) target = $region16
      $region15: #{_lambda_.129} parent=11 // pred_region
        _
      $region16: #{_lambda_.129} parent=11 // pred_fallthru
        _
      // Predicated region
      $region17: #{_lambda_.129} parent=11 // pred_check
        %p143 = pneg %p78
      $region18: #{_lambda_.129} parent=11 // pred_check_branch
        %145 = sbr.rel (%p143) target = $region20
      $region19: #{_lambda_.129} parent=11 // pred_region
        _
      $region20: #{_lambda_.129} parent=11 // pred_fallthru
        _
      // Predicated region
      $region21: #{_lambda_.129} parent=11 // pred_check
        %p146 = pneg %p99
      $region22: #{_lambda_.129} parent=11 // pred_check_branch
        %148 = sbr.rel (%p146) target = $region24
      $region23: #{_lambda_.129} parent=11 // pred_region
        _
      $region24: #{_lambda_.129} parent=11 // pred_fallthru
        _
    $region12: #{_lambda_.129} parent=5 // pred_fallthru
      _
    %p149 = scmp.lt.s32.totalorder %s10, 2
    // Predicated region
    $region25: #{_lambda_.129} parent=5 // pred_check
      %p150 = pneg %p149
    $region26: #{_lambda_.129} parent=5 // pred_check_branch
      %152 = sbr.rel (%p150) target = $region28
    $region27: #{_lambda_.129} parent=5 // pred_region
      // Predicated region
      $region29: #{_lambda_.129} parent=27 // pred_check
        %p153 = pneg %p30
      $region30: #{_lambda_.129} parent=27 // pred_check_branch
        %155 = sbr.rel (%p153) target = $region32
      $region31: #{_lambda_.129} parent=27 // pred_region
        %s156 = smul.u32 2, %s10
        %p157 = scmp.lt.s32.totalorder %s156, 3
        %s158 = scalar_select %p157, %s156, 3
        %s159 = smul.addr %s158, 4
        %s160 = smul.addr %s159, 4
        %s161 = scalar_lea.vmem %s0, %s160
        %s162 = smul.u32 2, %s10
      $region32: #{_lambda_.129} parent=27 // pred_fallthru
        _
    $region28: #{_lambda_.129} parent=5 // pred_fallthru
      _
    %p163 = scmp.le.s32.totalorder 1, %s10
    %p164 = scmp.lt.s32.totalorder %s10, 3
    %p165 = pnand %p163, %p164
    %p166 = pneg %p165
    // Predicated region
    $region33: #{_lambda_.129} parent=5 // pred_check
      _
    $region34: #{_lambda_.129} parent=5 // pred_check_branch
      %168 = sbr.rel (%p165) target = $region36
    $region35: #{_lambda_.129} parent=5 // pred_region
      %s169 = ssub.s32 %s10, 1
      %s170 = smul.u32 2, %s15
      %p171 = scmp.lt.s32.totalorder %s170, 3
      %s172 = scalar_select %p171, %s170, 3
      %s173 = smul.addr %s172, 4
      %s174 = smul.addr %s173, 4
      %s175 = scalar_lea.vmem %s0, %s174
      %p176 = pneg %p36
      %p177 = pneg %p33
      %p178 = pneg %p57
      %p179 = pneg %p54
      %p180 = pneg %p78
      %p181 = pneg %p75
      %p182 = pneg %p99
      %p183 = pneg %p96
      %p184 = pneg %p125
      %p185 = pneg %p122
      %s186 = smul.u32 2, %s15
      %p187 = scmp.lt.s32.totalorder %s186, 3
      %s188 = scalar_select %p187, %s186, 3
      %s189 = smul.addr %s188, 2
      %s190 = smul.addr %s189, 4
      %s191 = scalar_lea.vmem %s4, %s190
      %s192 = smul.u32 2, %s15
      %p193 = scmp.lt.s32.totalorder %s192, 3
      %s194 = scalar_select %p193, %s192, 3
      %s195 = smul.addr %s194, 4
      %s196 = smul.addr %s195, 4
      %s197 = scalar_lea.vmem %s0, %s196
      %s198 = smul.u32 2, %s15
      %s199 = smul.u32 2, %s15
      %p200 = scmp.lt.s32.totalorder %s199, 3
      %s201 = scalar_select %p200, %s199, 3
      %s202 = smul.addr %s201, 2
      %s203 = smul.addr %s202, 4
      %s204 = scalar_lea.vmem %s4, %s203
      %s205 = smul.u32 2, %s15
      %v206 = vld [vmem:[%s197] sm:$0xff]
      %v207 = vld [vmem:[%s197 + $0x8] sm:$0xff]
      %v208 = vld [vmem:[%s197 + $0x10] sm:$0xff]
      %v209 = vld [vmem:[%s197 + $0x18] sm:$0xff]
      %v210 = vld [vmem:[%s1] sm:$0xff]
      %v211 = vld [vmem:[%s1 + $0x8] sm:$0xff]
      %v212 = vld [vmem:[%s1 + $0x10] sm:$0xff]
      %v213 = vld [vmem:[%s1 + $0x18] sm:$0xff]
      %v214 = vld [vmem:[%s1 + $0x20] sm:$0xff]
      %v215 = vld [vmem:[%s1 + $0x28] sm:$0xff]
      %v216 = vld [vmem:[%s1 + $0x30] sm:$0xff]
      %v217 = vld [vmem:[%s1 + $0x38] sm:$0xff]
      %v218 = vld [vmem:[%s1 + $0x40] sm:$0xff]
      %v219 = vld [vmem:[%s1 + $0x48] sm:$0xff]
      %v220 = vld [vmem:[%s1 + $0x50] sm:$0xff]
      %v221 = vld [vmem:[%s1 + $0x58] sm:$0xff]
      %v222 = vld [vmem:[%s1 + $0x60] sm:$0xff]
      %v223 = vld [vmem:[%s1 + $0x68] sm:$0xff]
      %v224 = vld [vmem:[%s1 + $0x70] sm:$0xff]
      %v225 = vld [vmem:[%s1 + $0x78] sm:$0xff]
      %v226 = vld [vmem:[%s1 + $0x80] sm:$0xff]
      %v227 = vld [vmem:[%s1 + $0x88] sm:$0xff]
      %v228 = vld [vmem:[%s1 + $0x90] sm:$0xff]
      %v229 = vld [vmem:[%s1 + $0x98] sm:$0xff]
      %v230 = vld [vmem:[%s1 + $0xa0] sm:$0xff]
      %v231 = vld [vmem:[%s1 + $0xa8] sm:$0xff]
      %v232 = vld [vmem:[%s1 + $0xb0] sm:$0xff]
      %v233 = vld [vmem:[%s1 + $0xb8] sm:$0xff]
      %v234 = vld [vmem:[%s1 + $0xc0] sm:$0xff]
      %v235 = vld [vmem:[%s1 + $0xc8] sm:$0xff]
      %v236 = vld [vmem:[%s1 + $0xd0] sm:$0xff]
      %v237 = vld [vmem:[%s1 + $0xd8] sm:$0xff]
      %v238 = vld [vmem:[%s1 + $0xe0] sm:$0xff]
      %v239 = vld [vmem:[%s1 + $0xe8] sm:$0xff]
      %v240 = vld [vmem:[%s1 + $0xf0] sm:$0xff]
      %v241 = vld [vmem:[%s1 + $0xf8] sm:$0xff]
      %v242 = vld [vmem:[%s1 + $0x100] sm:$0xff]
      %v243 = vld [vmem:[%s1 + $0x108] sm:$0xff]
      %v244 = vld [vmem:[%s1 + $0x110] sm:$0xff]
      %v245 = vld [vmem:[%s1 + $0x118] sm:$0xff]
      %v246 = vld [vmem:[%s1 + $0x120] sm:$0xff]
      %v247 = vld [vmem:[%s1 + $0x128] sm:$0xff]
      %v248 = vld [vmem:[%s1 + $0x130] sm:$0xff]
      %v249 = vld [vmem:[%s1 + $0x138] sm:$0xff]
      %v250 = vld [vmem:[%s1 + $0x140] sm:$0xff]
      %v251 = vld [vmem:[%s1 + $0x148] sm:$0xff]
      %v252 = vld [vmem:[%s1 + $0x150] sm:$0xff]
      %v253 = vld [vmem:[%s1 + $0x158] sm:$0xff]
      %v254 = vld [vmem:[%s1 + $0x160] sm:$0xff]
      %v255 = vld [vmem:[%s1 + $0x168] sm:$0xff]
      %v256 = vld [vmem:[%s1 + $0x170] sm:$0xff]
      %v257 = vld [vmem:[%s1 + $0x178] sm:$0xff]
      %v258 = vld [vmem:[%s1 + $0x180] sm:$0xff]
      %v259 = vld [vmem:[%s1 + $0x188] sm:$0xff]
      %v260 = vld [vmem:[%s1 + $0x190] sm:$0xff]
      %v261 = vld [vmem:[%s1 + $0x198] sm:$0xff]
      %v262 = vld [vmem:[%s1 + $0x1a0] sm:$0xff]
      %v263 = vld [vmem:[%s1 + $0x1a8] sm:$0xff]
      %v264 = vld [vmem:[%s1 + $0x1b0] sm:$0xff]
      %v265 = vld [vmem:[%s1 + $0x1b8] sm:$0xff]
      %v266 = vld [vmem:[%s1 + $0x1c0] sm:$0xff]
      %v267 = vld [vmem:[%s1 + $0x1c8] sm:$0xff]
      %v268 = vld [vmem:[%s1 + $0x1d0] sm:$0xff]
      %v269 = vld [vmem:[%s1 + $0x1d8] sm:$0xff]
      %v270 = vld [vmem:[%s1 + $0x1e0] sm:$0xff]
      %v271 = vld [vmem:[%s1 + $0x1e8] sm:$0xff]
      %v272 = vld [vmem:[%s1 + $0x1f0] sm:$0xff]
      %v273 = vld [vmem:[%s1 + $0x1f8] sm:$0xff]
      %v278 = vunpack.c.l.b16 %v206
      %v279 = vunpack.c.h.b16 %v206
      %v280 = vunpack.c.l.b16 %v207
      %v281 = vunpack.c.h.b16 %v207
      %v282 = vunpack.c.l.b16 %v208
      %v283 = vunpack.c.h.b16 %v208
      %v284 = vunpack.c.l.b16 %v209
      %v285 = vunpack.c.h.b16 %v209
      %v286 = vpack.c.b16 %v282, %v278
      %v287 = vpack.c.b16 %v283, %v279
      %v288 = vpack.c.b16 %v284, %v280
      %v289 = vpack.c.b16 %v285, %v281
      %v358 = vunpack.c.l.b16 %v210
      %v359 = vunpack.c.h.b16 %v210
      %v360 = vunpack.c.l.b16 %v211
      %v361 = vunpack.c.h.b16 %v211
      %v362 = vunpack.c.l.b16 %v212
      %v363 = vunpack.c.h.b16 %v212
      %v364 = vunpack.c.l.b16 %v213
      %v365 = vunpack.c.h.b16 %v213
      %v366 = vunpack.c.l.b16 %v214
      %v367 = vunpack.c.h.b16 %v214
      %v368 = vunpack.c.l.b16 %v215
      %v369 = vunpack.c.h.b16 %v215
      %v370 = vunpack.c.l.b16 %v216
      %v371 = vunpack.c.h.b16 %v216
      %v372 = vunpack.c.l.b16 %v217
      %v373 = vunpack.c.h.b16 %v217
      %v374 = vunpack.c.l.b16 %v218
      %v375 = vunpack.c.h.b16 %v218
      %v376 = vunpack.c.l.b16 %v219
      %v377 = vunpack.c.h.b16 %v219
      %v378 = vunpack.c.l.b16 %v220
      %v379 = vunpack.c.h.b16 %v220
      %v380 = vunpack.c.l.b16 %v221
      %v381 = vunpack.c.h.b16 %v221
      %v382 = vunpack.c.l.b16 %v222
      %v383 = vunpack.c.h.b16 %v222
      %v384 = vunpack.c.l.b16 %v223
      %v385 = vunpack.c.h.b16 %v223
      %v386 = vunpack.c.l.b16 %v224
      %v387 = vunpack.c.h.b16 %v224
      %v388 = vunpack.c.l.b16 %v225
      %v389 = vunpack.c.h.b16 %v225
      %v390 = vunpack.c.l.b16 %v226
      %v391 = vunpack.c.h.b16 %v226
      %v392 = vunpack.c.l.b16 %v227
      %v393 = vunpack.c.h.b16 %v227
      %v394 = vunpack.c.l.b16 %v228
      %v395 = vunpack.c.h.b16 %v228
      %v396 = vunpack.c.l.b16 %v229
      %v397 = vunpack.c.h.b16 %v229
      %v398 = vunpack.c.l.b16 %v230
      %v399 = vunpack.c.h.b16 %v230
      %v400 = vunpack.c.l.b16 %v231
      %v401 = vunpack.c.h.b16 %v231
      %v402 = vunpack.c.l.b16 %v232
      %v403 = vunpack.c.h.b16 %v232
      %v404 = vunpack.c.l.b16 %v233
      %v405 = vunpack.c.h.b16 %v233
      %v406 = vunpack.c.l.b16 %v234
      %v407 = vunpack.c.h.b16 %v234
      %v408 = vunpack.c.l.b16 %v235
      %v409 = vunpack.c.h.b16 %v235
      %v410 = vunpack.c.l.b16 %v236
      %v411 = vunpack.c.h.b16 %v236
      %v412 = vunpack.c.l.b16 %v237
      %v413 = vunpack.c.h.b16 %v237
      %v414 = vunpack.c.l.b16 %v238
      %v415 = vunpack.c.h.b16 %v238
      %v416 = vunpack.c.l.b16 %v239
      %v417 = vunpack.c.h.b16 %v239
      %v418 = vunpack.c.l.b16 %v240
      %v419 = vunpack.c.h.b16 %v240
      %v420 = vunpack.c.l.b16 %v241
      %v421 = vunpack.c.h.b16 %v241
      %v422 = vunpack.c.l.b16 %v242
      %v423 = vunpack.c.h.b16 %v242
      %v424 = vunpack.c.l.b16 %v243
      %v425 = vunpack.c.h.b16 %v243
      %v426 = vunpack.c.l.b16 %v244
      %v427 = vunpack.c.h.b16 %v244
      %v428 = vunpack.c.l.b16 %v245
      %v429 = vunpack.c.h.b16 %v245
      %v430 = vunpack.c.l.b16 %v246
      %v431 = vunpack.c.h.b16 %v246
      %v432 = vunpack.c.l.b16 %v247
      %v433 = vunpack.c.h.b16 %v247
      %v434 = vunpack.c.l.b16 %v248
      %v435 = vunpack.c.h.b16 %v248
      %v436 = vunpack.c.l.b16 %v249
      %v437 = vunpack.c.h.b16 %v249
      %v438 = vunpack.c.l.b16 %v250
      %v439 = vunpack.c.h.b16 %v250
      %v440 = vunpack.c.l.b16 %v251
      %v441 = vunpack.c.h.b16 %v251
      %v442 = vunpack.c.l.b16 %v252
      %v443 = vunpack.c.h.b16 %v252
      %v444 = vunpack.c.l.b16 %v253
      %v445 = vunpack.c.h.b16 %v253
      %v446 = vunpack.c.l.b16 %v254
      %v447 = vunpack.c.h.b16 %v254
      %v448 = vunpack.c.l.b16 %v255
      %v449 = vunpack.c.h.b16 %v255
      %v450 = vunpack.c.l.b16 %v256
      %v451 = vunpack.c.h.b16 %v256
      %v452 = vunpack.c.l.b16 %v257
      %v453 = vunpack.c.h.b16 %v257
      %v454 = vunpack.c.l.b16 %v258
      %v455 = vunpack.c.h.b16 %v258
      %v456 = vunpack.c.l.b16 %v259
      %v457 = vunpack.c.h.b16 %v259
      %v458 = vunpack.c.l.b16 %v260
      %v459 = vunpack.c.h.b16 %v260
      %v460 = vunpack.c.l.b16 %v261
      %v461 = vunpack.c.h.b16 %v261
      %v462 = vunpack.c.l.b16 %v262
      %v463 = vunpack.c.h.b16 %v262
      %v464 = vunpack.c.l.b16 %v263
      %v465 = vunpack.c.h.b16 %v263
      %v466 = vunpack.c.l.b16 %v264
      %v467 = vunpack.c.h.b16 %v264
      %v468 = vunpack.c.l.b16 %v265
      %v469 = vunpack.c.h.b16 %v265
      %v470 = vunpack.c.l.b16 %v266
      %v471 = vunpack.c.h.b16 %v266
      %v472 = vunpack.c.l.b16 %v267
      %v473 = vunpack.c.h.b16 %v267
      %v474 = vunpack.c.l.b16 %v268
      %v475 = vunpack.c.h.b16 %v268
      %v476 = vunpack.c.l.b16 %v269
      %v477 = vunpack.c.h.b16 %v269
      %v478 = vunpack.c.l.b16 %v270
      %v479 = vunpack.c.h.b16 %v270
      %v480 = vunpack.c.l.b16 %v271
      %v481 = vunpack.c.h.b16 %v271
      %v482 = vunpack.c.l.b16 %v272
      %v483 = vunpack.c.h.b16 %v272
      %v484 = vunpack.c.l.b16 %v273
      %v485 = vunpack.c.h.b16 %v273
      %v486 = vpack.c.b16 %v360, %v358
      %v487 = vpack.c.b16 %v361, %v359
      %v488 = vpack.c.b16 %v364, %v362
      %v489 = vpack.c.b16 %v365, %v363
      %v490 = vpack.c.b16 %v368, %v366
      %v491 = vpack.c.b16 %v369, %v367
      %v492 = vpack.c.b16 %v372, %v370
      %v493 = vpack.c.b16 %v373, %v371
      %v494 = vpack.c.b16 %v376, %v374
      %v495 = vpack.c.b16 %v377, %v375
      %v496 = vpack.c.b16 %v380, %v378
      %v497 = vpack.c.b16 %v381, %v379
      %v498 = vpack.c.b16 %v384, %v382
      %v499 = vpack.c.b16 %v385, %v383
      %v500 = vpack.c.b16 %v388, %v386
      %v501 = vpack.c.b16 %v389, %v387
      %v502 = vpack.c.b16 %v392, %v390
      %v503 = vpack.c.b16 %v393, %v391
      %v504 = vpack.c.b16 %v396, %v394
      %v505 = vpack.c.b16 %v397, %v395
      %v506 = vpack.c.b16 %v400, %v398
      %v507 = vpack.c.b16 %v401, %v399
      %v508 = vpack.c.b16 %v404, %v402
      %v509 = vpack.c.b16 %v405, %v403
      %v510 = vpack.c.b16 %v408, %v406
      %v511 = vpack.c.b16 %v409, %v407
      %v512 = vpack.c.b16 %v412, %v410
      %v513 = vpack.c.b16 %v413, %v411
      %v514 = vpack.c.b16 %v416, %v414
      %v515 = vpack.c.b16 %v417, %v415
      %v516 = vpack.c.b16 %v420, %v418
      %v517 = vpack.c.b16 %v421, %v419
      %v518 = vpack.c.b16 %v424, %v422
      %v519 = vpack.c.b16 %v425, %v423
      %v520 = vpack.c.b16 %v428, %v426
      %v521 = vpack.c.b16 %v429, %v427
      %v522 = vpack.c.b16 %v432, %v430
      %v523 = vpack.c.b16 %v433, %v431
      %v524 = vpack.c.b16 %v436, %v434
      %v525 = vpack.c.b16 %v437, %v435
      %v526 = vpack.c.b16 %v440, %v438
      %v527 = vpack.c.b16 %v441, %v439
      %v528 = vpack.c.b16 %v444, %v442
      %v529 = vpack.c.b16 %v445, %v443
      %v530 = vpack.c.b16 %v448, %v446
      %v531 = vpack.c.b16 %v449, %v447
      %v532 = vpack.c.b16 %v452, %v450
      %v533 = vpack.c.b16 %v453, %v451
      %v534 = vpack.c.b16 %v456, %v454
      %v535 = vpack.c.b16 %v457, %v455
      %v536 = vpack.c.b16 %v460, %v458
      %v537 = vpack.c.b16 %v461, %v459
      %v538 = vpack.c.b16 %v464, %v462
      %v539 = vpack.c.b16 %v465, %v463
      %v540 = vpack.c.b16 %v468, %v466
      %v541 = vpack.c.b16 %v469, %v467
      %v542 = vpack.c.b16 %v472, %v470
      %v543 = vpack.c.b16 %v473, %v471
      %v544 = vpack.c.b16 %v476, %v474
      %v545 = vpack.c.b16 %v477, %v475
      %v546 = vpack.c.b16 %v480, %v478
      %v547 = vpack.c.b16 %v481, %v479
      %v548 = vpack.c.b16 %v484, %v482
      %v549 = vpack.c.b16 %v485, %v483
      %614 = vmatpush.bf16.msra.mxu0 %v500
      %615 = vmatpush.bf16.msra.mxu0 %v498
      %616 = vmatpush.bf16.msra.mxu0 %v496
      %617 = vmatpush.bf16.msra.mxu0 %v494
      %618 = vmatpush.bf16.msra.mxu0 %v492
      %619 = vmatpush.bf16.msra.mxu0 %v490
      %620 = vmatpush.bf16.msra.mxu0 %v488
      %621 = vmatpush.bf16.msra.mxu0 %v486
      %622 = vmatmul.bf16.gmra.mxu0 %v286
      %v623 = vpop.f32.mrf.mxu0
      %v624 = vadd.f32 0.0, %v623
      %v625 = vpop.f32.mrf.mxu0
      %v626 = vadd.f32 0.0, %v625
      %627 = vdwg.mxu0
      %628 = vmatpush.bf16.msra.mxu0 %v516
      %629 = vmatpush.bf16.msra.mxu0 %v514
      %630 = vmatpush.bf16.msra.mxu0 %v512
      %631 = vmatpush.bf16.msra.mxu0 %v510
      %632 = vmatpush.bf16.msra.mxu0 %v508
      %633 = vmatpush.bf16.msra.mxu0 %v506
      %634 = vmatpush.bf16.msra.mxu0 %v504
      %635 = vmatpush.bf16.msra.mxu0 %v502
      %636 = vmatmul.bf16.gmra.mxu0 %v287
      %v637 = vpop.f32.mrf.mxu0
      %v638 = vadd.f32 %v624, %v637
      %v639 = vpop.f32.mrf.mxu0
      %v640 = vadd.f32 %v626, %v639
      %641 = vdwg.mxu0
      %642 = vmatpush.bf16.msra.mxu0 %v532
      %643 = vmatpush.bf16.msra.mxu0 %v530
      %644 = vmatpush.bf16.msra.mxu0 %v528
      %645 = vmatpush.bf16.msra.mxu0 %v526
      %646 = vmatpush.bf16.msra.mxu0 %v524
      %647 = vmatpush.bf16.msra.mxu0 %v522
      %648 = vmatpush.bf16.msra.mxu0 %v520
      %649 = vmatpush.bf16.msra.mxu0 %v518
      %650 = vmatmul.bf16.gmra.mxu0 %v288
      %v651 = vpop.f32.mrf.mxu0
      %v652 = vadd.f32 %v638, %v651
      %v653 = vpop.f32.mrf.mxu0
      %v654 = vadd.f32 %v640, %v653
      %655 = vdwg.mxu0
      %656 = vmatpush.bf16.msra.mxu0 %v548
      %657 = vmatpush.bf16.msra.mxu0 %v546
      %658 = vmatpush.bf16.msra.mxu0 %v544
      %659 = vmatpush.bf16.msra.mxu0 %v542
      %660 = vmatpush.bf16.msra.mxu0 %v540
      %661 = vmatpush.bf16.msra.mxu0 %v538
      %662 = vmatpush.bf16.msra.mxu0 %v536
      %663 = vmatpush.bf16.msra.mxu0 %v534
      %664 = vmatmul.bf16.gmra.mxu0 %v289
      %v665 = vpop.f32.mrf.mxu0
      %v666 = vadd.f32 %v652, %v665
      %v667 = vpop.f32.mrf.mxu0
      %v668 = vadd.f32 %v654, %v667
      %669 = vdwg.mxu0
      %670 = vmatpush.bf16.msra.mxu0 %v501
      %671 = vmatpush.bf16.msra.mxu0 %v499
      %672 = vmatpush.bf16.msra.mxu0 %v497
      %673 = vmatpush.bf16.msra.mxu0 %v495
      %674 = vmatpush.bf16.msra.mxu0 %v493
      %675 = vmatpush.bf16.msra.mxu0 %v491
      %676 = vmatpush.bf16.msra.mxu0 %v489
      %677 = vmatpush.bf16.msra.mxu0 %v487
      %678 = vmatmul.bf16.gmra.mxu0 %v286
      %v679 = vpop.f32.mrf.mxu0
      %v680 = vadd.f32 0.0, %v679
      %v681 = vpop.f32.mrf.mxu0
      %v682 = vadd.f32 0.0, %v681
      %683 = vdwg.mxu0
      %684 = vmatpush.bf16.msra.mxu0 %v517
      %685 = vmatpush.bf16.msra.mxu0 %v515
      %686 = vmatpush.bf16.msra.mxu0 %v513
      %687 = vmatpush.bf16.msra.mxu0 %v511
      %688 = vmatpush.bf16.msra.mxu0 %v509
      %689 = vmatpush.bf16.msra.mxu0 %v507
      %690 = vmatpush.bf16.msra.mxu0 %v505
      %691 = vmatpush.bf16.msra.mxu0 %v503
      %692 = vmatmul.bf16.gmra.mxu0 %v287
      %v693 = vpop.f32.mrf.mxu0
      %v694 = vadd.f32 %v680, %v693
      %v695 = vpop.f32.mrf.mxu0
      %v696 = vadd.f32 %v682, %v695
      %697 = vdwg.mxu0
      %698 = vmatpush.bf16.msra.mxu0 %v533
      %699 = vmatpush.bf16.msra.mxu0 %v531
      %700 = vmatpush.bf16.msra.mxu0 %v529
      %701 = vmatpush.bf16.msra.mxu0 %v527
      %702 = vmatpush.bf16.msra.mxu0 %v525
      %703 = vmatpush.bf16.msra.mxu0 %v523
      %704 = vmatpush.bf16.msra.mxu0 %v521
      %705 = vmatpush.bf16.msra.mxu0 %v519
      %706 = vmatmul.bf16.gmra.mxu0 %v288
      %v707 = vpop.f32.mrf.mxu0
      %v708 = vadd.f32 %v694, %v707
      %v709 = vpop.f32.mrf.mxu0
      %v710 = vadd.f32 %v696, %v709
      %711 = vdwg.mxu0
      %712 = vmatpush.bf16.msra.mxu0 %v549
      %713 = vmatpush.bf16.msra.mxu0 %v547
      %714 = vmatpush.bf16.msra.mxu0 %v545
      %715 = vmatpush.bf16.msra.mxu0 %v543
      %716 = vmatpush.bf16.msra.mxu0 %v541
      %717 = vmatpush.bf16.msra.mxu0 %v539
      %718 = vmatpush.bf16.msra.mxu0 %v537
      %719 = vmatpush.bf16.msra.mxu0 %v535
      %720 = vmatmul.bf16.gmra.mxu0 %v289
      %v721 = vpop.f32.mrf.mxu0
      %v722 = vadd.f32 %v708, %v721
      %v723 = vpop.f32.mrf.mxu0
      %v724 = vadd.f32 %v710, %v723
      %725 = vdwg.mxu0
      %v726 = vld [vmem:[%s2] sm:$0x3]
      %v728 = vperm.slane %v726, 0
      %v729 = vperm.slane %v726, 1
      %v732 = vmul.f32 %v666, %v728
      %v733 = vmul.f32 %v722, %v729
      %v734 = vmul.f32 %v668, %v728
      %v735 = vmul.f32 %v724, %v729
      %v736 = vld [vmem:[%s3] sm:$0x3]
      %v738 = vperm.slane %v736, 0
      %v739 = vperm.slane %v736, 1
      %v742 = vadd.f32 %v732, %v738
      %v743 = vadd.f32 %v733, %v739
      %v744 = vadd.f32 %v734, %v738
      %v745 = vadd.f32 %v735, %v739
      %v746 = vmax.f32 %v742, 0.0
      %v747 = vmax.f32 %v743, 0.0
      %v748 = vmax.f32 %v744, 0.0
      %v749 = vmax.f32 %v745, 0.0
      %v750 = vpack.c.bf16 %v747, %v746
      %v751 = vpack.c.bf16 %v749, %v748
      %752 = vst [vmem:[%s204] sm:$0xff] %v750
      %753 = vst [vmem:[%s204 + $0x8] sm:$0xff] %v751
      %s754 = smul.u32 2, %s15
      %p755 = scmp.lt.s32.totalorder %s754, 3
      %s756 = scalar_select %p755, %s754, 3
      %s757 = smul.addr %s756, 2
      %s758 = smul.addr %s757, 4
      %s759 = scalar_lea.vmem %s4, %s758
      // Predicated region
      $region37: #{_lambda_.129} parent=35 // pred_check
        %p760 = pneg %p122
      $region38: #{_lambda_.129} parent=35 // pred_check_branch
        %762 = sbr.rel (%p760) target = $region40
      $region39: #{_lambda_.129} parent=35 // pred_region
        %s763 = smul.u32 2, %s15
      $region40: #{_lambda_.129} parent=35 // pred_fallthru
        _
    $region36: #{_lambda_.129} parent=5 // pred_fallthru
      _
    %p764 = scmp.le.s32.totalorder 2, %s10
    // Predicated region
    $region41: #{_lambda_.129} parent=5 // pred_check
      %p765 = pneg %p764
    $region42: #{_lambda_.129} parent=5 // pred_check_branch
      %767 = sbr.rel (%p765) target = $region44
    $region43: #{_lambda_.129} parent=5 // pred_region
      %s768 = ssub.s32 %s10, 2
      // Predicated region
      $region45: #{_lambda_.129} parent=43 // pred_check
        %p769 = pneg %p128
      $region46: #{_lambda_.129} parent=43 // pred_check_branch
        %771 = sbr.rel (%p769) target = $region48
      $region47: #{_lambda_.129} parent=43 // pred_region
        %s772 = smul.u32 2, %s16
        %p773 = scmp.lt.s32.totalorder %s772, 3
        %s774 = scalar_select %p773, %s772, 3
        %s775 = smul.addr %s774, 2
        %s776 = smul.addr %s775, 4
        %s777 = scalar_lea.vmem %s4, %s776
      $region48: #{_lambda_.129} parent=43 // pred_fallthru
        _
    $region44: #{_lambda_.129} parent=5 // pred_fallthru
      _
  $region6: #{_lambda_.129} parent=0 // loop_footer
    %s14 = sadd.s32 1, %s10
  $region7: #{_lambda_.129} parent=0 // loop_footer_branch
    %9 = sbr.rel target = $region3
  $region8: #{_lambda_.129} parent=0 // loop_exit
    _

// kernel: _lambda_.138
$region0: #{_lambda_.138}
  #allocation0 [shape = 'u32[]', space=smem, size = 0x4, offset = 0x4, fixed_abs, tag = 'smem constant byte address 0x4 - core index']
  #allocation1 [shape = 'u32[72,128]{1,0:T(1,128)}', space=vmem, size = 0x9000, scoped, tag = 'internal scratch']
  %s0 = inlined_call_operand.vmem [shape: bf16[128,256], index: 0, kind: input, shape index: {}]
  %s1 = inlined_call_operand.vmem [shape: bf16[256,64], index: 1, kind: input, shape index: {}]
  %s2 = inlined_call_operand.vmem [shape: f32[1,64], index: 2, kind: input, shape index: {}]
  %s3 = inlined_call_operand.vmem [shape: f32[1,64], index: 3, kind: input, shape index: {}]
  %s4 = inlined_call_operand.vmem [shape: bf16[128,64], index: 4, kind: output, shape index: {}]
  %s5 = sld [smem:[#allocation0]]
  $region49: #{_lambda_.138} parent=0
    _
  %s7 = ssub.s32 1, %s5
  %s8 = scalar_select 0, %s7, %s5
  loop: start=0, step=1, limit=4
  $region2: #{_lambda_.138} parent=0 // loop_pre_header
    _
  $region3: #{_lambda_.138} parent=0 // loop_header
    %s10 = sphi 0, %s14
    %p11 = scmp.ge.s32.totalorder %s10, 4
    %s20 = sphi 0, %s22
    %s23 = sphi 0, %s20
    %s24 = sphi 0, %s23
    %s40 = sphi 0, %s24
    %s44 = sphi 0, %s44
    %s46 = sphi 0, %s44
    %s47 = sphi 0, %s46
    %s61 = sphi 0, %s47
    %s65 = sphi 0, %s65
    %s67 = sphi 0, %s65
    %s68 = sphi 0, %s67
    %s82 = sphi 0, %s68
    %s86 = sphi 0, %s86
    %s88 = sphi 0, %s86
    %s89 = sphi 0, %s88
    %s103 = sphi 0, %s89
    %s109 = sphi 0, %s111
    %s112 = sphi 0, %s109
    %s113 = sphi 0, %s112
    %s129 = sphi 0, %s113
  $region4: #{_lambda_.138} parent=0 // loop_header_branch
    %13 = sbr.rel (%p11) target = $region8
  $region5: #{_lambda_.138} parent=0 // loop_body
    %s15 = ssub.s32 %s10, 1
    %s16 = ssub.s32 %s10, 2
    %s17 = sadd.s32 %s10, 1
    %s18 = ssub.s32 %s10, %s17
    %p19 = scmp.eq.s32.totalorder %s18, 0
    %s21 = sadd.s32 %s20, 1
    %s22 = scalar_select %p19, %s20, %s21
    %p25 = pneg %p19
    %p26 = scmp.eq.s32.totalorder %s10, 1
    %p27 = por %p25, %p26
    %p28 = scmp.ne.s32.totalorder %s20, %s23
    %p29 = scmp.eq.s32.totalorder %s10, 0
    %p30 = por %p28, %p29
    %p31 = scmp.ne.s32.totalorder %s20, %s23
    %p32 = scmp.eq.s32.totalorder %s15, 1
    %p33 = por %p31, %p32
    %p34 = scmp.ne.s32.totalorder %s23, %s24
    %p35 = scmp.eq.s32.totalorder %s15, 0
    %p36 = por %p34, %p35
    %p37 = scmp.ne.s32.totalorder %s23, %s24
    %p38 = scmp.eq.s32.totalorder %s16, 1
    %p39 = por %p37, %p38
    %p41 = scmp.ne.s32.totalorder %s24, %s40
    %p42 = scmp.eq.s32.totalorder %s16, 0
    %p43 = por %p41, %p42
    %s45 = sadd.s32 %s44, 1
    %p48 = scmp.eq.s32.totalorder %s10, 1
    %p49 = scmp.ne.s32.totalorder %s44, %s46
    %p50 = scmp.eq.s32.totalorder %s10, 0
    %p51 = por %p49, %p50
    %p52 = scmp.ne.s32.totalorder %s44, %s46
    %p53 = scmp.eq.s32.totalorder %s15, 1
    %p54 = por %p52, %p53
    %p55 = scmp.ne.s32.totalorder %s46, %s47
    %p56 = scmp.eq.s32.totalorder %s15, 0
    %p57 = por %p55, %p56
    %p58 = scmp.ne.s32.totalorder %s46, %s47
    %p59 = scmp.eq.s32.totalorder %s16, 1
    %p60 = por %p58, %p59
    %p62 = scmp.ne.s32.totalorder %s47, %s61
    %p63 = scmp.eq.s32.totalorder %s16, 0
    %p64 = por %p62, %p63
    %s66 = sadd.s32 %s65, 1
    %p69 = scmp.eq.s32.totalorder %s10, 1
    %p70 = scmp.ne.s32.totalorder %s65, %s67
    %p71 = scmp.eq.s32.totalorder %s10, 0
    %p72 = por %p70, %p71
    %p73 = scmp.ne.s32.totalorder %s65, %s67
    %p74 = scmp.eq.s32.totalorder %s15, 1
    %p75 = por %p73, %p74
    %p76 = scmp.ne.s32.totalorder %s67, %s68
    %p77 = scmp.eq.s32.totalorder %s15, 0
    %p78 = por %p76, %p77
    %p79 = scmp.ne.s32.totalorder %s67, %s68
    %p80 = scmp.eq.s32.totalorder %s16, 1
    %p81 = por %p79, %p80
    %p83 = scmp.ne.s32.totalorder %s68, %s82
    %p84 = scmp.eq.s32.totalorder %s16, 0
    %p85 = por %p83, %p84
    %s87 = sadd.s32 %s86, 1
    %p90 = scmp.eq.s32.totalorder %s10, 1
    %p91 = scmp.ne.s32.totalorder %s86, %s88
    %p92 = scmp.eq.s32.totalorder %s10, 0
    %p93 = por %p91, %p92
    %p94 = scmp.ne.s32.totalorder %s86, %s88
    %p95 = scmp.eq.s32.totalorder %s15, 1
    %p96 = por %p94, %p95
    %p97 = scmp.ne.s32.totalorder %s88, %s89
    %p98 = scmp.eq.s32.totalorder %s15, 0
    %p99 = por %p97, %p98
    %p100 = scmp.ne.s32.totalorder %s88, %s89
    %p101 = scmp.eq.s32.totalorder %s16, 1
    %p102 = por %p100, %p101
    %p104 = scmp.ne.s32.totalorder %s89, %s103
    %p105 = scmp.eq.s32.totalorder %s16, 0
    %p106 = por %p104, %p105
    %s107 = ssub.s32 %s10, %s17
    %p108 = scmp.eq.s32.totalorder %s107, 0
    %s110 = sadd.s32 %s109, 1
    %s111 = scalar_select %p108, %s109, %s110
    %p114 = pneg %p108
    %p115 = scmp.eq.s32.totalorder %s10, 1
    %p116 = por %p114, %p115
    %p117 = scmp.ne.s32.totalorder %s109, %s112
    %p118 = scmp.eq.s32.totalorder %s10, 0
    %p119 = por %p117, %p118
    %p120 = scmp.ne.s32.totalorder %s109, %s112
    %p121 = scmp.eq.s32.totalorder %s15, 1
    %p122 = por %p120, %p121
    %p123 = scmp.ne.s32.totalorder %s112, %s113
    %p124 = scmp.eq.s32.totalorder %s15, 0
    %p125 = por %p123, %p124
    %p126 = scmp.ne.s32.totalorder %s112, %s113
    %p127 = scmp.eq.s32.totalorder %s16, 1
    %p128 = por %p126, %p127
    %p130 = scmp.ne.s32.totalorder %s113, %s129
    %p131 = scmp.eq.s32.totalorder %s16, 0
    %p132 = por %p130, %p131
    %p133 = scmp.le.s32.totalorder 1, %s10
    %p134 = scmp.lt.s32.totalorder %s10, 3
    %p135 = pnand %p133, %p134
    %p136 = pneg %p135
    // Predicated region
    $region9: #{_lambda_.138} parent=5 // pred_check
      _
    $region10: #{_lambda_.138} parent=5 // pred_check_branch
      %138 = sbr.rel (%p135) target = $region12
    $region11: #{_lambda_.138} parent=5 // pred_region
      %s139 = ssub.s32 %s10, 1
      // Predicated region
      $region13: #{_lambda_.138} parent=11 // pred_check
        %p140 = pneg %p57
      $region14: #{_lambda_.138} parent=11 // pred_check_branch
        %142 = sbr.rel (%p140) target = $region16
      $region15: #{_lambda_.138} parent=11 // pred_region
        _
      $region16: #{_lambda_.138} parent=11 // pred_fallthru
        _
      // Predicated region
      $region17: #{_lambda_.138} parent=11 // pred_check
        %p143 = pneg %p78
      $region18: #{_lambda_.138} parent=11 // pred_check_branch
        %145 = sbr.rel (%p143) target = $region20
      $region19: #{_lambda_.138} parent=11 // pred_region
        _
      $region20: #{_lambda_.138} parent=11 // pred_fallthru
        _
      // Predicated region
      $region21: #{_lambda_.138} parent=11 // pred_check
        %p146 = pneg %p99
      $region22: #{_lambda_.138} parent=11 // pred_check_branch
        %148 = sbr.rel (%p146) target = $region24
      $region23: #{_lambda_.138} parent=11 // pred_region
        _
      $region24: #{_lambda_.138} parent=11 // pred_fallthru
        _
    $region12: #{_lambda_.138} parent=5 // pred_fallthru
      _
    %p149 = scmp.lt.s32.totalorder %s10, 2
    // Predicated region
    $region25: #{_lambda_.138} parent=5 // pred_check
      %p150 = pneg %p149
    $region26: #{_lambda_.138} parent=5 // pred_check_branch
      %152 = sbr.rel (%p150) target = $region28
    $region27: #{_lambda_.138} parent=5 // pred_region
      // Predicated region
      $region29: #{_lambda_.138} parent=27 // pred_check
        %p153 = pneg %p30
      $region30: #{_lambda_.138} parent=27 // pred_check_branch
        %155 = sbr.rel (%p153) target = $region32
      $region31: #{_lambda_.138} parent=27 // pred_region
        %s156 = smul.u32 8, %s10
        %p157 = scmp.lt.s32.totalorder %s156, 15
        %s158 = scalar_select %p157, %s156, 15
        %s159 = smul.addr %s158, 2
        %s160 = smul.addr %s159, 4
        %s161 = scalar_lea.vmem %s0, %s160
        %s162 = smul.u32 8, %s10
      $region32: #{_lambda_.138} parent=27 // pred_fallthru
        _
    $region28: #{_lambda_.138} parent=5 // pred_fallthru
      _
    %p163 = scmp.le.s32.totalorder 1, %s10
    %p164 = scmp.lt.s32.totalorder %s10, 3
    %p165 = pnand %p163, %p164
    %p166 = pneg %p165
    // Predicated region
    $region33: #{_lambda_.138} parent=5 // pred_check
      _
    $region34: #{_lambda_.138} parent=5 // pred_check_branch
      %168 = sbr.rel (%p165) target = $region36
    $region35: #{_lambda_.138} parent=5 // pred_region
      %s169 = ssub.s32 %s10, 1
      %s170 = smul.u32 8, %s15
      %p171 = scmp.lt.s32.totalorder %s170, 15
      %s172 = scalar_select %p171, %s170, 15
      %s173 = smul.addr %s172, 2
      %s174 = smul.addr %s173, 4
      %s175 = scalar_lea.vmem %s0, %s174
      %p176 = pneg %p36
      %p177 = pneg %p33
      %p178 = pneg %p57
      %p179 = pneg %p54
      %p180 = pneg %p78
      %p181 = pneg %p75
      %p182 = pneg %p99
      %p183 = pneg %p96
      %p184 = pneg %p125
      %p185 = pneg %p122
      %s186 = smul.u32 8, %s15
      %p187 = scmp.lt.s32.totalorder %s186, 15
      %s188 = scalar_select %p187, %s186, 15
      %s189 = smul.addr %s188, 4
      %s190 = scalar_lea.vmem %s4, %s189
      %s191 = smul.u32 8, %s15
      %p192 = scmp.lt.s32.totalorder %s191, 15
      %s193 = scalar_select %p192, %s191, 15
      %s194 = smul.addr %s193, 2
      %s195 = smul.addr %s194, 4
      %s196 = scalar_lea.vmem %s0, %s195
      %s197 = smul.u32 8, %s15
      %s198 = smul.u32 8, %s15
      %p199 = scmp.lt.s32.totalorder %s198, 15
      %s200 = scalar_select %p199, %s198, 15
      %s201 = smul.addr %s200, 4
      %s202 = scalar_lea.vmem %s4, %s201
      %s203 = smul.u32 8, %s15
      %v204 = vld [vmem:[%s196] sm:$0xff]
      %v205 = vld [vmem:[%s196 + $0x8] sm:$0xff]
      %v206 = vld [vmem:[%s196 + $0x10] sm:$0xff]
      %v207 = vld [vmem:[%s196 + $0x18] sm:$0xff]
      %v208 = vld [vmem:[%s196 + $0x20] sm:$0xff]
      %v209 = vld [vmem:[%s196 + $0x28] sm:$0xff]
      %v210 = vld [vmem:[%s196 + $0x30] sm:$0xff]
      %v211 = vld [vmem:[%s196 + $0x38] sm:$0xff]
      %v212 = vld [vmem:[%s1] sm:$0xf]
      %v213 = vld [vmem:[%s1 + $0x4] sm:$0xf]
      %v214 = vld [vmem:[%s1 + $0x8] sm:$0xf]
      %v215 = vld [vmem:[%s1 + $0xc] sm:$0xf]
      %v216 = vld [vmem:[%s1 + $0x10] sm:$0xf]
      %v217 = vld [vmem:[%s1 + $0x14] sm:$0xf]
      %v218 = vld [vmem:[%s1 + $0x18] sm:$0xf]
      %v219 = vld [vmem:[%s1 + $0x1c] sm:$0xf]
      %v220 = vld [vmem:[%s1 + $0x20] sm:$0xf]
      %v221 = vld [vmem:[%s1 + $0x24] sm:$0xf]
      %v222 = vld [vmem:[%s1 + $0x28] sm:$0xf]
      %v223 = vld [vmem:[%s1 + $0x2c] sm:$0xf]
      %v224 = vld [vmem:[%s1 + $0x30] sm:$0xf]
      %v225 = vld [vmem:[%s1 + $0x34] sm:$0xf]
      %v226 = vld [vmem:[%s1 + $0x38] sm:$0xf]
      %v227 = vld [vmem:[%s1 + $0x3c] sm:$0xf]
      %v228 = vld [vmem:[%s1 + $0x40] sm:$0xf]
      %v229 = vld [vmem:[%s1 + $0x44] sm:$0xf]
      %v230 = vld [vmem:[%s1 + $0x48] sm:$0xf]
      %v231 = vld [vmem:[%s1 + $0x4c] sm:$0xf]
      %v232 = vld [vmem:[%s1 + $0x50] sm:$0xf]
      %v233 = vld [vmem:[%s1 + $0x54] sm:$0xf]
      %v234 = vld [vmem:[%s1 + $0x58] sm:$0xf]
      %v235 = vld [vmem:[%s1 + $0x5c] sm:$0xf]
      %v236 = vld [vmem:[%s1 + $0x60] sm:$0xf]
      %v237 = vld [vmem:[%s1 + $0x64] sm:$0xf]
      %v238 = vld [vmem:[%s1 + $0x68] sm:$0xf]
      %v239 = vld [vmem:[%s1 + $0x6c] sm:$0xf]
      %v240 = vld [vmem:[%s1 + $0x70] sm:$0xf]
      %v241 = vld [vmem:[%s1 + $0x74] sm:$0xf]
      %v242 = vld [vmem:[%s1 + $0x78] sm:$0xf]
      %v243 = vld [vmem:[%s1 + $0x7c] sm:$0xf]
      %v252 = vunpack.c.l.b16 %v204
      %v253 = vunpack.c.h.b16 %v204
      %v254 = vunpack.c.l.b16 %v205
      %v255 = vunpack.c.h.b16 %v205
      %v256 = vunpack.c.l.b16 %v206
      %v257 = vunpack.c.h.b16 %v206
      %v258 = vunpack.c.l.b16 %v207
      %v259 = vunpack.c.h.b16 %v207
      %v260 = vunpack.c.l.b16 %v208
      %v261 = vunpack.c.h.b16 %v208
      %v262 = vunpack.c.l.b16 %v209
      %v263 = vunpack.c.h.b16 %v209
      %v264 = vunpack.c.l.b16 %v210
      %v265 = vunpack.c.h.b16 %v210
      %v266 = vunpack.c.l.b16 %v211
      %v267 = vunpack.c.h.b16 %v211
      %v268 = vpack.c.b16 %v254, %v252
      %v269 = vpack.c.b16 %v255, %v253
      %v270 = vpack.c.b16 %v258, %v256
      %v271 = vpack.c.b16 %v259, %v257
      %v272 = vpack.c.b16 %v262, %v260
      %v273 = vpack.c.b16 %v263, %v261
      %v274 = vpack.c.b16 %v266, %v264
      %v275 = vpack.c.b16 %v267, %v265
      %v316 = vunpack.c.l.b16 %v212
      %v317 = vunpack.c.l.b16 %v213
      %v318 = vunpack.c.l.b16 %v214
      %v319 = vunpack.c.l.b16 %v215
      %v320 = vunpack.c.l.b16 %v216
      %v321 = vunpack.c.l.b16 %v217
      %v322 = vunpack.c.l.b16 %v218
      %v323 = vunpack.c.l.b16 %v219
      %v324 = vunpack.c.l.b16 %v220
      %v325 = vunpack.c.l.b16 %v221
      %v326 = vunpack.c.l.b16 %v222
      %v327 = vunpack.c.l.b16 %v223
      %v328 = vunpack.c.l.b16 %v224
      %v329 = vunpack.c.l.b16 %v225
      %v330 = vunpack.c.l.b16 %v226
      %v331 = vunpack.c.l.b16 %v227
      %v332 = vunpack.c.l.b16 %v228
      %v333 = vunpack.c.l.b16 %v229
      %v334 = vunpack.c.l.b16 %v230
      %v335 = vunpack.c.l.b16 %v231
      %v336 = vunpack.c.l.b16 %v232
      %v337 = vunpack.c.l.b16 %v233
      %v338 = vunpack.c.l.b16 %v234
      %v339 = vunpack.c.l.b16 %v235
      %v340 = vunpack.c.l.b16 %v236
      %v341 = vunpack.c.l.b16 %v237
      %v342 = vunpack.c.l.b16 %v238
      %v343 = vunpack.c.l.b16 %v239
      %v344 = vunpack.c.l.b16 %v240
      %v345 = vunpack.c.l.b16 %v241
      %v346 = vunpack.c.l.b16 %v242
      %v347 = vunpack.c.l.b16 %v243
      %v348 = vpack.c.b16 %v317, %v316
      %v349 = vpack.c.b16 %v319, %v318
      %v350 = vpack.c.b16 %v321, %v320
      %v351 = vpack.c.b16 %v323, %v322
      %v352 = vpack.c.b16 %v325, %v324
      %v353 = vpack.c.b16 %v327, %v326
      %v354 = vpack.c.b16 %v329, %v328
      %v355 = vpack.c.b16 %v331, %v330
      %v356 = vpack.c.b16 %v333, %v332
      %v357 = vpack.c.b16 %v335, %v334
      %v358 = vpack.c.b16 %v337, %v336
      %v359 = vpack.c.b16 %v339, %v338
      %v360 = vpack.c.b16 %v341, %v340
      %v361 = vpack.c.b16 %v343, %v342
      %v362 = vpack.c.b16 %v345, %v344
      %v363 = vpack.c.b16 %v347, %v346
      %380 = vmatpush.bf16.msra.mxu0 %v355
      %381 = vmatpush.bf16.msra.mxu0 %v354
      %382 = vmatpush.bf16.msra.mxu0 %v353
      %383 = vmatpush.bf16.msra.mxu0 %v352
      %384 = vmatpush.bf16.msra.mxu0 %v351
      %385 = vmatpush.bf16.msra.mxu0 %v350
      %386 = vmatpush.bf16.msra.mxu0 %v349
      %387 = vmatpush.bf16.msra.mxu0 %v348
      %388 = vmatmul.bf16.gmra.mxu0 %v268
      %v389 = vpop.f32.mrf.mxu0
      %v390 = vadd.f32 0.0, %v389
      %v391 = vpop.f32.mrf.mxu0
      %v392 = vadd.f32 0.0, %v391
      %393 = vmatmul.bf16.gmra.mxu0 %v270
      %v394 = vpop.f32.mrf.mxu0
      %v395 = vadd.f32 0.0, %v394
      %v396 = vpop.f32.mrf.mxu0
      %v397 = vadd.f32 0.0, %v396
      %398 = vmatmul.bf16.gmra.mxu0 %v272
      %v399 = vpop.f32.mrf.mxu0
      %v400 = vadd.f32 0.0, %v399
      %v401 = vpop.f32.mrf.mxu0
      %v402 = vadd.f32 0.0, %v401
      %403 = vmatmul.bf16.gmra.mxu0 %v274
      %v404 = vpop.f32.mrf.mxu0
      %v405 = vadd.f32 0.0, %v404
      %v406 = vpop.f32.mrf.mxu0
      %v407 = vadd.f32 0.0, %v406
      %408 = vdwg.mxu0
      %409 = vmatpush.bf16.msra.mxu0 %v363
      %410 = vmatpush.bf16.msra.mxu0 %v362
      %411 = vmatpush.bf16.msra.mxu0 %v361
      %412 = vmatpush.bf16.msra.mxu0 %v360
      %413 = vmatpush.bf16.msra.mxu0 %v359
      %414 = vmatpush.bf16.msra.mxu0 %v358
      %415 = vmatpush.bf16.msra.mxu0 %v357
      %416 = vmatpush.bf16.msra.mxu0 %v356
      %417 = vmatmul.bf16.gmra.mxu0 %v269
      %v418 = vpop.f32.mrf.mxu0
      %v419 = vadd.f32 %v390, %v418
      %v420 = vpop.f32.mrf.mxu0
      %v421 = vadd.f32 %v392, %v420
      %422 = vmatmul.bf16.gmra.mxu0 %v271
      %v423 = vpop.f32.mrf.mxu0
      %v424 = vadd.f32 %v395, %v423
      %v425 = vpop.f32.mrf.mxu0
      %v426 = vadd.f32 %v397, %v425
      %427 = vmatmul.bf16.gmra.mxu0 %v273
      %v428 = vpop.f32.mrf.mxu0
      %v429 = vadd.f32 %v400, %v428
      %v430 = vpop.f32.mrf.mxu0
      %v431 = vadd.f32 %v402, %v430
      %432 = vmatmul.bf16.gmra.mxu0 %v275
      %v433 = vpop.f32.mrf.mxu0
      %v434 = vadd.f32 %v405, %v433
      %v435 = vpop.f32.mrf.mxu0
      %v436 = vadd.f32 %v407, %v435
      %437 = vdwg.mxu0
      %v438 = vld [vmem:[%s2] sm:$0x1]
      %v440 = vperm.slane %v438, 0
      %v442 = vmul.f32 %v419, %v440
      %v443 = vmul.f32 %v421, %v440
      %v444 = vmul.f32 %v424, %v440
      %v445 = vmul.f32 %v426, %v440
      %v446 = vmul.f32 %v429, %v440
      %v447 = vmul.f32 %v431, %v440
      %v448 = vmul.f32 %v434, %v440
      %v449 = vmul.f32 %v436, %v440
      %v450 = vld [vmem:[%s3] sm:$0x1]
      %v452 = vperm.slane %v450, 0
      %v454 = vadd.f32 %v442, %v452
      %v455 = vadd.f32 %v443, %v452
      %v456 = vadd.f32 %v444, %v452
      %v457 = vadd.f32 %v445, %v452
      %v458 = vadd.f32 %v446, %v452
      %v459 = vadd.f32 %v447, %v452
      %v460 = vadd.f32 %v448, %v452
      %v461 = vadd.f32 %v449, %v452
      %v462 = vmax.f32 %v454, 0.0
      %v463 = vmax.f32 %v455, 0.0
      %v464 = vmax.f32 %v456, 0.0
      %v465 = vmax.f32 %v457, 0.0
      %v466 = vmax.f32 %v458, 0.0
      %v467 = vmax.f32 %v459, 0.0
      %v468 = vmax.f32 %v460, 0.0
      %v469 = vmax.f32 %v461, 0.0
      %v470 = vpack.c.bf16 %v462, %v462
      %v471 = vpack.c.bf16 %v463, %v463
      %v472 = vpack.c.bf16 %v464, %v464
      %v473 = vpack.c.bf16 %v465, %v465
      %v474 = vpack.c.bf16 %v466, %v466
      %v475 = vpack.c.bf16 %v467, %v467
      %v476 = vpack.c.bf16 %v468, %v468
      %v477 = vpack.c.bf16 %v469, %v469
      %vm478 = vcmask 519168
      %479 = vst.msk [vmem:[%s202] sm:$0xf] %vm478, %v470
      %480 = vst.msk [vmem:[%s202 + $0x4] sm:$0xf] %vm478, %v471
      %481 = vst.msk [vmem:[%s202 + $0x8] sm:$0xf] %vm478, %v472
      %482 = vst.msk [vmem:[%s202 + $0xc] sm:$0xf] %vm478, %v473
      %483 = vst.msk [vmem:[%s202 + $0x10] sm:$0xf] %vm478, %v474
      %484 = vst.msk [vmem:[%s202 + $0x14] sm:$0xf] %vm478, %v475
      %485 = vst.msk [vmem:[%s202 + $0x18] sm:$0xf] %vm478, %v476
      %486 = vst.msk [vmem:[%s202 + $0x1c] sm:$0xf] %vm478, %v477
      %s487 = smul.u32 8, %s15
      %p488 = scmp.lt.s32.totalorder %s487, 15
      %s489 = scalar_select %p488, %s487, 15
      %s490 = smul.addr %s489, 4
      %s491 = scalar_lea.vmem %s4, %s490
      // Predicated region
      $region37: #{_lambda_.138} parent=35 // pred_check
        %p492 = pneg %p122
      $region38: #{_lambda_.138} parent=35 // pred_check_branch
        %494 = sbr.rel (%p492) target = $region40
      $region39: #{_lambda_.138} parent=35 // pred_region
        %s495 = smul.u32 8, %s15
      $region40: #{_lambda_.138} parent=35 // pred_fallthru
        _
    $region36: #{_lambda_.138} parent=5 // pred_fallthru
      _
    %p496 = scmp.le.s32.totalorder 2, %s10
    // Predicated region
    $region41: #{_lambda_.138} parent=5 // pred_check
      %p497 = pneg %p496
    $region42: #{_lambda_.138} parent=5 // pred_check_branch
      %499 = sbr.rel (%p497) target = $region44
    $region43: #{_lambda_.138} parent=5 // pred_region
      %s500 = ssub.s32 %s10, 2
      // Predicated region
      $region45: #{_lambda_.138} parent=43 // pred_check
        %p501 = pneg %p128
      $region46: #{_lambda_.138} parent=43 // pred_check_branch
        %503 = sbr.rel (%p501) target = $region48
      $region47: #{_lambda_.138} parent=43 // pred_region
        %s504 = smul.u32 8, %s16
        %p505 = scmp.lt.s32.totalorder %s504, 15
        %s506 = scalar_select %p505, %s504, 15
        %s507 = smul.addr %s506, 4
        %s508 = scalar_lea.vmem %s4, %s507
      $region48: #{_lambda_.138} parent=43 // pred_fallthru
        _
    $region44: #{_lambda_.138} parent=5 // pred_fallthru
      _
  $region6: #{_lambda_.138} parent=0 // loop_footer
    %s14 = sadd.s32 1, %s10
  $region7: #{_lambda_.138} parent=0 // loop_footer_branch
    %9 = sbr.rel target = $region3
  $region8: #{_lambda_.138} parent=0 // loop_exit
    _

// kernel: _lambda_.139
$region0: #{_lambda_.139}
  #allocation0 [shape = 'u32[]', space=smem, size = 0x4, offset = 0x4, fixed_abs, tag = 'smem constant byte address 0x4 - core index']
  #allocation1 [shape = 'u32[72,128]{1,0:T(1,128)}', space=vmem, size = 0x9000, scoped, tag = 'internal scratch']
  %s0 = inlined_call_operand.vmem [shape: bf16[512,48], index: 0, kind: input, shape index: {}]
  %s1 = inlined_call_operand.vmem [shape: bf16[48,128], index: 1, kind: input, shape index: {}]
  %s2 = inlined_call_operand.vmem [shape: f32[1,128], index: 2, kind: input, shape index: {}]
  %s3 = inlined_call_operand.vmem [shape: f32[1,128], index: 3, kind: input, shape index: {}]
  %s4 = inlined_call_operand.vmem [shape: bf16[512,128], index: 4, kind: output, shape index: {}]
  %s5 = sld [smem:[#allocation0]]
  $region49: #{_lambda_.139} parent=0
    _
  %s7 = ssub.s32 1, %s5
  %s8 = scalar_select 0, %s7, %s5
  loop: start=0, step=1, limit=4
  $region2: #{_lambda_.139} parent=0 // loop_pre_header
    _
  $region3: #{_lambda_.139} parent=0 // loop_header
    %s10 = sphi 0, %s14
    %p11 = scmp.ge.s32.totalorder %s10, 4
    %s20 = sphi 0, %s22
    %s23 = sphi 0, %s20
    %s24 = sphi 0, %s23
    %s40 = sphi 0, %s24
    %s44 = sphi 0, %s44
    %s46 = sphi 0, %s44
    %s47 = sphi 0, %s46
    %s61 = sphi 0, %s47
    %s65 = sphi 0, %s65
    %s67 = sphi 0, %s65
    %s68 = sphi 0, %s67
    %s82 = sphi 0, %s68
    %s86 = sphi 0, %s86
    %s88 = sphi 0, %s86
    %s89 = sphi 0, %s88
    %s103 = sphi 0, %s89
    %s109 = sphi 0, %s111
    %s112 = sphi 0, %s109
    %s113 = sphi 0, %s112
    %s129 = sphi 0, %s113
  $region4: #{_lambda_.139} parent=0 // loop_header_branch
    %13 = sbr.rel (%p11) target = $region8
  $region5: #{_lambda_.139} parent=0 // loop_body
    %s15 = ssub.s32 %s10, 1
    %s16 = ssub.s32 %s10, 2
    %s17 = sadd.s32 %s10, 1
    %s18 = ssub.s32 %s10, %s17
    %p19 = scmp.eq.s32.totalorder %s18, 0
    %s21 = sadd.s32 %s20, 1
    %s22 = scalar_select %p19, %s20, %s21
    %p25 = pneg %p19
    %p26 = scmp.eq.s32.totalorder %s10, 1
    %p27 = por %p25, %p26
    %p28 = scmp.ne.s32.totalorder %s20, %s23
    %p29 = scmp.eq.s32.totalorder %s10, 0
    %p30 = por %p28, %p29
    %p31 = scmp.ne.s32.totalorder %s20, %s23
    %p32 = scmp.eq.s32.totalorder %s15, 1
    %p33 = por %p31, %p32
    %p34 = scmp.ne.s32.totalorder %s23, %s24
    %p35 = scmp.eq.s32.totalorder %s15, 0
    %p36 = por %p34, %p35
    %p37 = scmp.ne.s32.totalorder %s23, %s24
    %p38 = scmp.eq.s32.totalorder %s16, 1
    %p39 = por %p37, %p38
    %p41 = scmp.ne.s32.totalorder %s24, %s40
    %p42 = scmp.eq.s32.totalorder %s16, 0
    %p43 = por %p41, %p42
    %s45 = sadd.s32 %s44, 1
    %p48 = scmp.eq.s32.totalorder %s10, 1
    %p49 = scmp.ne.s32.totalorder %s44, %s46
    %p50 = scmp.eq.s32.totalorder %s10, 0
    %p51 = por %p49, %p50
    %p52 = scmp.ne.s32.totalorder %s44, %s46
    %p53 = scmp.eq.s32.totalorder %s15, 1
    %p54 = por %p52, %p53
    %p55 = scmp.ne.s32.totalorder %s46, %s47
    %p56 = scmp.eq.s32.totalorder %s15, 0
    %p57 = por %p55, %p56
    %p58 = scmp.ne.s32.totalorder %s46, %s47
    %p59 = scmp.eq.s32.totalorder %s16, 1
    %p60 = por %p58, %p59
    %p62 = scmp.ne.s32.totalorder %s47, %s61
    %p63 = scmp.eq.s32.totalorder %s16, 0
    %p64 = por %p62, %p63
    %s66 = sadd.s32 %s65, 1
    %p69 = scmp.eq.s32.totalorder %s10, 1
    %p70 = scmp.ne.s32.totalorder %s65, %s67
    %p71 = scmp.eq.s32.totalorder %s10, 0
    %p72 = por %p70, %p71
    %p73 = scmp.ne.s32.totalorder %s65, %s67
    %p74 = scmp.eq.s32.totalorder %s15, 1
    %p75 = por %p73, %p74
    %p76 = scmp.ne.s32.totalorder %s67, %s68
    %p77 = scmp.eq.s32.totalorder %s15, 0
    %p78 = por %p76, %p77
    %p79 = scmp.ne.s32.totalorder %s67, %s68
    %p80 = scmp.eq.s32.totalorder %s16, 1
    %p81 = por %p79, %p80
    %p83 = scmp.ne.s32.totalorder %s68, %s82
    %p84 = scmp.eq.s32.totalorder %s16, 0
    %p85 = por %p83, %p84
    %s87 = sadd.s32 %s86, 1
    %p90 = scmp.eq.s32.totalorder %s10, 1
    %p91 = scmp.ne.s32.totalorder %s86, %s88
    %p92 = scmp.eq.s32.totalorder %s10, 0
    %p93 = por %p91, %p92
    %p94 = scmp.ne.s32.totalorder %s86, %s88
    %p95 = scmp.eq.s32.totalorder %s15, 1
    %p96 = por %p94, %p95
    %p97 = scmp.ne.s32.totalorder %s88, %s89
    %p98 = scmp.eq.s32.totalorder %s15, 0
    %p99 = por %p97, %p98
    %p100 = scmp.ne.s32.totalorder %s88, %s89
    %p101 = scmp.eq.s32.totalorder %s16, 1
    %p102 = por %p100, %p101
    %p104 = scmp.ne.s32.totalorder %s89, %s103
    %p105 = scmp.eq.s32.totalorder %s16, 0
    %p106 = por %p104, %p105
    %s107 = ssub.s32 %s10, %s17
    %p108 = scmp.eq.s32.totalorder %s107, 0
    %s110 = sadd.s32 %s109, 1
    %s111 = scalar_select %p108, %s109, %s110
    %p114 = pneg %p108
    %p115 = scmp.eq.s32.totalorder %s10, 1
    %p116 = por %p114, %p115
    %p117 = scmp.ne.s32.totalorder %s109, %s112
    %p118 = scmp.eq.s32.totalorder %s10, 0
    %p119 = por %p117, %p118
    %p120 = scmp.ne.s32.totalorder %s109, %s112
    %p121 = scmp.eq.s32.totalorder %s15, 1
    %p122 = por %p120, %p121
    %p123 = scmp.ne.s32.totalorder %s112, %s113
    %p124 = scmp.eq.s32.totalorder %s15, 0
    %p125 = por %p123, %p124
    %p126 = scmp.ne.s32.totalorder %s112, %s113
    %p127 = scmp.eq.s32.totalorder %s16, 1
    %p128 = por %p126, %p127
    %p130 = scmp.ne.s32.totalorder %s113, %s129
    %p131 = scmp.eq.s32.totalorder %s16, 0
    %p132 = por %p130, %p131
    %p133 = scmp.le.s32.totalorder 1, %s10
    %p134 = scmp.lt.s32.totalorder %s10, 3
    %p135 = pnand %p133, %p134
    %p136 = pneg %p135
    // Predicated region
    $region9: #{_lambda_.139} parent=5 // pred_check
      _
    $region10: #{_lambda_.139} parent=5 // pred_check_branch
      %138 = sbr.rel (%p135) target = $region12
    $region11: #{_lambda_.139} parent=5 // pred_region
      %s139 = ssub.s32 %s10, 1
      // Predicated region
      $region13: #{_lambda_.139} parent=11 // pred_check
        %p140 = pneg %p57
      $region14: #{_lambda_.139} parent=11 // pred_check_branch
        %142 = sbr.rel (%p140) target = $region16
      $region15: #{_lambda_.139} parent=11 // pred_region
        _
      $region16: #{_lambda_.139} parent=11 // pred_fallthru
        _
      // Predicated region
      $region17: #{_lambda_.139} parent=11 // pred_check
        %p143 = pneg %p78
      $region18: #{_lambda_.139} parent=11 // pred_check_branch
        %145 = sbr.rel (%p143) target = $region20
      $region19: #{_lambda_.139} parent=11 // pred_region
        _
      $region20: #{_lambda_.139} parent=11 // pred_fallthru
        _
      // Predicated region
      $region21: #{_lambda_.139} parent=11 // pred_check
        %p146 = pneg %p99
      $region22: #{_lambda_.139} parent=11 // pred_check_branch
        %148 = sbr.rel (%p146) target = $region24
      $region23: #{_lambda_.139} parent=11 // pred_region
        _
      $region24: #{_lambda_.139} parent=11 // pred_fallthru
        _
    $region12: #{_lambda_.139} parent=5 // pred_fallthru
      _
    %p149 = scmp.lt.s32.totalorder %s10, 2
    // Predicated region
    $region25: #{_lambda_.139} parent=5 // pred_check
      %p150 = pneg %p149
    $region26: #{_lambda_.139} parent=5 // pred_check_branch
      %152 = sbr.rel (%p150) target = $region28
    $region27: #{_lambda_.139} parent=5 // pred_region
      // Predicated region
      $region29: #{_lambda_.139} parent=27 // pred_check
        %p153 = pneg %p30
      $region30: #{_lambda_.139} parent=27 // pred_check_branch
        %155 = sbr.rel (%p153) target = $region32
      $region31: #{_lambda_.139} parent=27 // pred_region
        %s156 = smul.u32 32, %s10
        %p157 = scmp.lt.s32.totalorder %s156, 63
        %s158 = scalar_select %p157, %s156, 63
        %s159 = smul.addr %s158, 4
        %s160 = scalar_lea.vmem %s0, %s159
        %s161 = smul.u32 32, %s10
      $region32: #{_lambda_.139} parent=27 // pred_fallthru
        _
    $region28: #{_lambda_.139} parent=5 // pred_fallthru
      _
    %p162 = scmp.le.s32.totalorder 1, %s10
    %p163 = scmp.lt.s32.totalorder %s10, 3
    %p164 = pnand %p162, %p163
    %p165 = pneg %p164
    // Predicated region
    $region33: #{_lambda_.139} parent=5 // pred_check
      _
    $region34: #{_lambda_.139} parent=5 // pred_check_branch
      %167 = sbr.rel (%p164) target = $region36
    $region35: #{_lambda_.139} parent=5 // pred_region
      %s168 = ssub.s32 %s10, 1
      %s169 = smul.u32 32, %s15
      %p170 = scmp.lt.s32.totalorder %s169, 63
      %s171 = scalar_select %p170, %s169, 63
      %s172 = smul.addr %s171, 4
      %s173 = scalar_lea.vmem %s0, %s172
      %p174 = pneg %p36
      %p175 = pneg %p33
      %p176 = pneg %p57
      %p177 = pneg %p54
      %p178 = pneg %p78
      %p179 = pneg %p75
      %p180 = pneg %p99
      %p181 = pneg %p96
      %p182 = pneg %p125
      %p183 = pneg %p122
      %s184 = smul.u32 32, %s15
      %p185 = scmp.lt.s32.totalorder %s184, 63
      %s186 = scalar_select %p185, %s184, 63
      %s187 = smul.addr %s186, 4
      %s188 = scalar_lea.vmem %s4, %s187
      %s189 = smul.u32 32, %s15
      %p190 = scmp.lt.s32.totalorder %s189, 63
      %s191 = scalar_select %p190, %s189, 63
      %s192 = smul.addr %s191, 4
      %s193 = scalar_lea.vmem %s0, %s192
      %s194 = smul.u32 32, %s15
      %s195 = smul.u32 32, %s15
      %p196 = scmp.lt.s32.totalorder %s195, 63
      %s197 = scalar_select %p196, %s195, 63
      %s198 = smul.addr %s197, 4
      %s199 = scalar_lea.vmem %s4, %s198
      %s200 = smul.u32 32, %s15
      %v202 = vld [vmem:[%s193] sm:$0xf]
      %v203 = vld [vmem:[%s193 + $0x4] sm:$0xf]
      %v204 = vld [vmem:[%s193 + $0x8] sm:$0xf]
      %v205 = vld [vmem:[%s193 + $0xc] sm:$0xf]
      %v206 = vld [vmem:[%s193 + $0x10] sm:$0xf]
      %v207 = vld [vmem:[%s193 + $0x14] sm:$0xf]
      %v208 = vld [vmem:[%s193 + $0x18] sm:$0xf]
      %v209 = vld [vmem:[%s193 + $0x1c] sm:$0xf]
      %v210 = vld [vmem:[%s193 + $0x20] sm:$0xf]
      %v211 = vld [vmem:[%s193 + $0x24] sm:$0xf]
      %v212 = vld [vmem:[%s193 + $0x28] sm:$0xf]
      %v213 = vld [vmem:[%s193 + $0x2c] sm:$0xf]
      %v214 = vld [vmem:[%s193 + $0x30] sm:$0xf]
      %v215 = vld [vmem:[%s193 + $0x34] sm:$0xf]
      %v216 = vld [vmem:[%s193 + $0x38] sm:$0xf]
      %v217 = vld [vmem:[%s193 + $0x3c] sm:$0xf]
      %v218 = vld [vmem:[%s193 + $0x40] sm:$0xf]
      %v219 = vld [vmem:[%s193 + $0x44] sm:$0xf]
      %v220 = vld [vmem:[%s193 + $0x48] sm:$0xf]
      %v221 = vld [vmem:[%s193 + $0x4c] sm:$0xf]
      %v222 = vld [vmem:[%s193 + $0x50] sm:$0xf]
      %v223 = vld [vmem:[%s193 + $0x54] sm:$0xf]
      %v224 = vld [vmem:[%s193 + $0x58] sm:$0xf]
      %v225 = vld [vmem:[%s193 + $0x5c] sm:$0xf]
      %v226 = vld [vmem:[%s193 + $0x60] sm:$0xf]
      %v227 = vld [vmem:[%s193 + $0x64] sm:$0xf]
      %v228 = vld [vmem:[%s193 + $0x68] sm:$0xf]
      %v229 = vld [vmem:[%s193 + $0x6c] sm:$0xf]
      %v230 = vld [vmem:[%s193 + $0x70] sm:$0xf]
      %v231 = vld [vmem:[%s193 + $0x74] sm:$0xf]
      %v232 = vld [vmem:[%s193 + $0x78] sm:$0xf]
      %v233 = vld [vmem:[%s193 + $0x7c] sm:$0xf]
      %v234 = vld [vmem:[%s1] sm:$0xf]
      %v235 = vld [vmem:[%s1 + $0x4] sm:$0xf]
      %v236 = vld [vmem:[%s1 + $0x8] sm:$0xf]
      %v237 = vld [vmem:[%s1 + $0xc] sm:$0xf]
      %v238 = vld [vmem:[%s1 + $0x10] sm:$0xf]
      %v239 = vld [vmem:[%s1 + $0x14] sm:$0xf]
      %v272 = vunpack.c.l.b16 %v202
      %v273 = vunpack.c.l.b16 %v203
      %v274 = vunpack.c.l.b16 %v204
      %v275 = vunpack.c.l.b16 %v205
      %v276 = vunpack.c.l.b16 %v206
      %v277 = vunpack.c.l.b16 %v207
      %v278 = vunpack.c.l.b16 %v208
      %v279 = vunpack.c.l.b16 %v209
      %v280 = vunpack.c.l.b16 %v210
      %v281 = vunpack.c.l.b16 %v211
      %v282 = vunpack.c.l.b16 %v212
      %v283 = vunpack.c.l.b16 %v213
      %v284 = vunpack.c.l.b16 %v214
      %v285 = vunpack.c.l.b16 %v215
      %v286 = vunpack.c.l.b16 %v216
      %v287 = vunpack.c.l.b16 %v217
      %v288 = vunpack.c.l.b16 %v218
      %v289 = vunpack.c.l.b16 %v219
      %v290 = vunpack.c.l.b16 %v220
      %v291 = vunpack.c.l.b16 %v221
      %v292 = vunpack.c.l.b16 %v222
      %v293 = vunpack.c.l.b16 %v223
      %v294 = vunpack.c.l.b16 %v224
      %v295 = vunpack.c.l.b16 %v225
      %v296 = vunpack.c.l.b16 %v226
      %v297 = vunpack.c.l.b16 %v227
      %v298 = vunpack.c.l.b16 %v228
      %v299 = vunpack.c.l.b16 %v229
      %v300 = vunpack.c.l.b16 %v230
      %v301 = vunpack.c.l.b16 %v231
      %v302 = vunpack.c.l.b16 %v232
      %v303 = vunpack.c.l.b16 %v233
      %v304 = vpack.c.b16 %v273, %v272
      %v305 = vpack.c.b16 %v275, %v274
      %v306 = vpack.c.b16 %v277, %v276
      %v307 = vpack.c.b16 %v279, %v278
      %v308 = vpack.c.b16 %v281, %v280
      %v309 = vpack.c.b16 %v283, %v282
      %v310 = vpack.c.b16 %v285, %v284
      %v311 = vpack.c.b16 %v287, %v286
      %v312 = vpack.c.b16 %v289, %v288
      %v313 = vpack.c.b16 %v291, %v290
      %v314 = vpack.c.b16 %v293, %v292
      %v315 = vpack.c.b16 %v295, %v294
      %v316 = vpack.c.b16 %v297, %v296
      %v317 = vpack.c.b16 %v299, %v298
      %v318 = vpack.c.b16 %v301, %v300
      %v319 = vpack.c.b16 %v303, %v302
      %v326 = vunpack.c.l.b16 %v234
      %v327 = vunpack.c.l.b16 %v235
      %v328 = vunpack.c.l.b16 %v236
      %v329 = vunpack.c.l.b16 %v237
      %v330 = vunpack.c.l.b16 %v238
      %v331 = vunpack.c.l.b16 %v239
      %v332 = vpack.c.b16 %v327, %v326
      %v333 = vpack.c.b16 %v329, %v328
      %v334 = vpack.c.b16 %v331, %v330
      %vm338 = vcmask 392192
      %v340 = vsel %vm338, %v304, 0
      %v343 = vsel %vm338, %v305, 0
      %v346 = vsel %vm338, %v306, 0
      %v349 = vsel %vm338, %v307, 0
      %v352 = vsel %vm338, %v308, 0
      %v355 = vsel %vm338, %v309, 0
      %v358 = vsel %vm338, %v310, 0
      %v361 = vsel %vm338, %v311, 0
      %v364 = vsel %vm338, %v312, 0
      %v367 = vsel %vm338, %v313, 0
      %v370 = vsel %vm338, %v314, 0
      %v373 = vsel %vm338, %v315, 0
      %v376 = vsel %vm338, %v316, 0
      %v379 = vsel %vm338, %v317, 0
      %v382 = vsel %vm338, %v318, 0
      %v385 = vsel %vm338, %v319, 0
      %387 = vmatpush.bf16.msra.mxu0 0
      %388 = vmatpush.bf16.msra.mxu0 0
      %389 = vmatpush.bf16.msra.mxu0 0
      %390 = vmatpush.bf16.msra.mxu0 0
      %391 = vmatpush.bf16.msra.mxu0 0
      %392 = vmatpush.bf16.msra.mxu0 %v334
      %393 = vmatpush.bf16.msra.mxu0 %v333
      %394 = vmatpush.bf16.msra.mxu0 %v332
      %395 = vmatmul.bf16.gmra.mxu0 %v340
      %v396 = vpop.f32.mrf.mxu0
      %v397 = vadd.f32 0.0, %v396
      %v398 = vpop.f32.mrf.mxu0
      %v399 = vadd.f32 0.0, %v398
      %400 = vmatmul.bf16.gmra.mxu0 %v343
      %v401 = vpop.f32.mrf.mxu0
      %v402 = vadd.f32 0.0, %v401
      %v403 = vpop.f32.mrf.mxu0
      %v404 = vadd.f32 0.0, %v403
      %405 = vmatmul.bf16.gmra.mxu0 %v346
      %v406 = vpop.f32.mrf.mxu0
      %v407 = vadd.f32 0.0, %v406
      %v408 = vpop.f32.mrf.mxu0
      %v409 = vadd.f32 0.0, %v408
      %410 = vmatmul.bf16.gmra.mxu0 %v349
      %v411 = vpop.f32.mrf.mxu0
      %v412 = vadd.f32 0.0, %v411
      %v413 = vpop.f32.mrf.mxu0
      %v414 = vadd.f32 0.0, %v413
      %415 = vmatmul.bf16.gmra.mxu0 %v352
      %v416 = vpop.f32.mrf.mxu0
      %v417 = vadd.f32 0.0, %v416
      %v418 = vpop.f32.mrf.mxu0
      %v419 = vadd.f32 0.0, %v418
      %420 = vmatmul.bf16.gmra.mxu0 %v355
      %v421 = vpop.f32.mrf.mxu0
      %v422 = vadd.f32 0.0, %v421
      %v423 = vpop.f32.mrf.mxu0
      %v424 = vadd.f32 0.0, %v423
      %425 = vmatmul.bf16.gmra.mxu0 %v358
      %v426 = vpop.f32.mrf.mxu0
      %v427 = vadd.f32 0.0, %v426
      %v428 = vpop.f32.mrf.mxu0
      %v429 = vadd.f32 0.0, %v428
      %430 = vmatmul.bf16.gmra.mxu0 %v361
      %v431 = vpop.f32.mrf.mxu0
      %v432 = vadd.f32 0.0, %v431
      %v433 = vpop.f32.mrf.mxu0
      %v434 = vadd.f32 0.0, %v433
      %435 = vmatmul.bf16.gmra.mxu0 %v364
      %v436 = vpop.f32.mrf.mxu0
      %v437 = vadd.f32 0.0, %v436
      %v438 = vpop.f32.mrf.mxu0
      %v439 = vadd.f32 0.0, %v438
      %440 = vmatmul.bf16.gmra.mxu0 %v367
      %v441 = vpop.f32.mrf.mxu0
      %v442 = vadd.f32 0.0, %v441
      %v443 = vpop.f32.mrf.mxu0
      %v444 = vadd.f32 0.0, %v443
      %445 = vmatmul.bf16.gmra.mxu0 %v370
      %v446 = vpop.f32.mrf.mxu0
      %v447 = vadd.f32 0.0, %v446
      %v448 = vpop.f32.mrf.mxu0
      %v449 = vadd.f32 0.0, %v448
      %450 = vmatmul.bf16.gmra.mxu0 %v373
      %v451 = vpop.f32.mrf.mxu0
      %v452 = vadd.f32 0.0, %v451
      %v453 = vpop.f32.mrf.mxu0
      %v454 = vadd.f32 0.0, %v453
      %455 = vmatmul.bf16.gmra.mxu0 %v376
      %v456 = vpop.f32.mrf.mxu0
      %v457 = vadd.f32 0.0, %v456
      %v458 = vpop.f32.mrf.mxu0
      %v459 = vadd.f32 0.0, %v458
      %460 = vmatmul.bf16.gmra.mxu0 %v379
      %v461 = vpop.f32.mrf.mxu0
      %v462 = vadd.f32 0.0, %v461
      %v463 = vpop.f32.mrf.mxu0
      %v464 = vadd.f32 0.0, %v463
      %465 = vmatmul.bf16.gmra.mxu0 %v382
      %v466 = vpop.f32.mrf.mxu0
      %v467 = vadd.f32 0.0, %v466
      %v468 = vpop.f32.mrf.mxu0
      %v469 = vadd.f32 0.0, %v468
      %470 = vmatmul.bf16.gmra.mxu0 %v385
      %v471 = vpop.f32.mrf.mxu0
      %v472 = vadd.f32 0.0, %v471
      %v473 = vpop.f32.mrf.mxu0
      %v474 = vadd.f32 0.0, %v473
      %475 = vdwg.mxu0
      %v476 = vld [vmem:[%s2] sm:$0x1]
      %v478 = vperm.slane %v476, 0
      %v480 = vmul.f32 %v397, %v478
      %v481 = vmul.f32 %v399, %v478
      %v482 = vmul.f32 %v402, %v478
      %v483 = vmul.f32 %v404, %v478
      %v484 = vmul.f32 %v407, %v478
      %v485 = vmul.f32 %v409, %v478
      %v486 = vmul.f32 %v412, %v478
      %v487 = vmul.f32 %v414, %v478
      %v488 = vmul.f32 %v417, %v478
      %v489 = vmul.f32 %v419, %v478
      %v490 = vmul.f32 %v422, %v478
      %v491 = vmul.f32 %v424, %v478
      %v492 = vmul.f32 %v427, %v478
      %v493 = vmul.f32 %v429, %v478
      %v494 = vmul.f32 %v432, %v478
      %v495 = vmul.f32 %v434, %v478
      %v496 = vmul.f32 %v437, %v478
      %v497 = vmul.f32 %v439, %v478
      %v498 = vmul.f32 %v442, %v478
      %v499 = vmul.f32 %v444, %v478
      %v500 = vmul.f32 %v447, %v478
      %v501 = vmul.f32 %v449, %v478
      %v502 = vmul.f32 %v452, %v478
      %v503 = vmul.f32 %v454, %v478
      %v504 = vmul.f32 %v457, %v478
      %v505 = vmul.f32 %v459, %v478
      %v506 = vmul.f32 %v462, %v478
      %v507 = vmul.f32 %v464, %v478
      %v508 = vmul.f32 %v467, %v478
      %v509 = vmul.f32 %v469, %v478
      %v510 = vmul.f32 %v472, %v478
      %v511 = vmul.f32 %v474, %v478
      %v512 = vld [vmem:[%s3] sm:$0x1]
      %v514 = vperm.slane %v512, 0
      %v516 = vadd.f32 %v480, %v514
      %v517 = vadd.f32 %v481, %v514
      %v518 = vadd.f32 %v482, %v514
      %v519 = vadd.f32 %v483, %v514
      %v520 = vadd.f32 %v484, %v514
      %v521 = vadd.f32 %v485, %v514
      %v522 = vadd.f32 %v486, %v514
      %v523 = vadd.f32 %v487, %v514
      %v524 = vadd.f32 %v488, %v514
      %v525 = vadd.f32 %v489, %v514
      %v526 = vadd.f32 %v490, %v514
      %v527 = vadd.f32 %v491, %v514
      %v528 = vadd.f32 %v492, %v514
      %v529 = vadd.f32 %v493, %v514
      %v530 = vadd.f32 %v494, %v514
      %v531 = vadd.f32 %v495, %v514
      %v532 = vadd.f32 %v496, %v514
      %v533 = vadd.f32 %v497, %v514
      %v534 = vadd.f32 %v498, %v514
      %v535 = vadd.f32 %v499, %v514
      %v536 = vadd.f32 %v500, %v514
      %v537 = vadd.f32 %v501, %v514
      %v538 = vadd.f32 %v502, %v514
      %v539 = vadd.f32 %v503, %v514
      %v540 = vadd.f32 %v504, %v514
      %v541 = vadd.f32 %v505, %v514
      %v542 = vadd.f32 %v506, %v514
      %v543 = vadd.f32 %v507, %v514
      %v544 = vadd.f32 %v508, %v514
      %v545 = vadd.f32 %v509, %v514
      %v546 = vadd.f32 %v510, %v514
      %v547 = vadd.f32 %v511, %v514
      %v548 = vmax.f32 %v516, 0.0
      %v549 = vmax.f32 %v517, 0.0
      %v550 = vmax.f32 %v518, 0.0
      %v551 = vmax.f32 %v519, 0.0
      %v552 = vmax.f32 %v520, 0.0
      %v553 = vmax.f32 %v521, 0.0
      %v554 = vmax.f32 %v522, 0.0
      %v555 = vmax.f32 %v523, 0.0
      %v556 = vmax.f32 %v524, 0.0
      %v557 = vmax.f32 %v525, 0.0
      %v558 = vmax.f32 %v526, 0.0
      %v559 = vmax.f32 %v527, 0.0
      %v560 = vmax.f32 %v528, 0.0
      %v561 = vmax.f32 %v529, 0.0
      %v562 = vmax.f32 %v530, 0.0
      %v563 = vmax.f32 %v531, 0.0
      %v564 = vmax.f32 %v532, 0.0
      %v565 = vmax.f32 %v533, 0.0
      %v566 = vmax.f32 %v534, 0.0
      %v567 = vmax.f32 %v535, 0.0
      %v568 = vmax.f32 %v536, 0.0
      %v569 = vmax.f32 %v537, 0.0
      %v570 = vmax.f32 %v538, 0.0
      %v571 = vmax.f32 %v539, 0.0
      %v572 = vmax.f32 %v540, 0.0
      %v573 = vmax.f32 %v541, 0.0
      %v574 = vmax.f32 %v542, 0.0
      %v575 = vmax.f32 %v543, 0.0
      %v576 = vmax.f32 %v544, 0.0
      %v577 = vmax.f32 %v545, 0.0
      %v578 = vmax.f32 %v546, 0.0
      %v579 = vmax.f32 %v547, 0.0
      %v580 = vpack.c.bf16 %v548, %v548
      %v581 = vpack.c.bf16 %v549, %v549
      %v582 = vpack.c.bf16 %v550, %v550
      %v583 = vpack.c.bf16 %v551, %v551
      %v584 = vpack.c.bf16 %v552, %v552
      %v585 = vpack.c.bf16 %v553, %v553
      %v586 = vpack.c.bf16 %v554, %v554
      %v587 = vpack.c.bf16 %v555, %v555
      %v588 = vpack.c.bf16 %v556, %v556
      %v589 = vpack.c.bf16 %v557, %v557
      %v590 = vpack.c.bf16 %v558, %v558
      %v591 = vpack.c.bf16 %v559, %v559
      %v592 = vpack.c.bf16 %v560, %v560
      %v593 = vpack.c.bf16 %v561, %v561
      %v594 = vpack.c.bf16 %v562, %v562
      %v595 = vpack.c.bf16 %v563, %v563
      %v596 = vpack.c.bf16 %v564, %v564
      %v597 = vpack.c.bf16 %v565, %v565
      %v598 = vpack.c.bf16 %v566, %v566
      %v599 = vpack.c.bf16 %v567, %v567
      %v600 = vpack.c.bf16 %v568, %v568
      %v601 = vpack.c.bf16 %v569, %v569
      %v602 = vpack.c.bf16 %v570, %v570
      %v603 = vpack.c.bf16 %v571, %v571
      %v604 = vpack.c.bf16 %v572, %v572
      %v605 = vpack.c.bf16 %v573, %v573
      %v606 = vpack.c.bf16 %v574, %v574
      %v607 = vpack.c.bf16 %v575, %v575
      %v608 = vpack.c.bf16 %v576, %v576
      %v609 = vpack.c.bf16 %v577, %v577
      %v610 = vpack.c.bf16 %v578, %v578
      %v611 = vpack.c.bf16 %v579, %v579
      %612 = vst [vmem:[%s199] sm:$0xf] %v580
      %613 = vst [vmem:[%s199 + $0x4] sm:$0xf] %v581
      %614 = vst [vmem:[%s199 + $0x8] sm:$0xf] %v582
      %615 = vst [vmem:[%s199 + $0xc] sm:$0xf] %v583
      %616 = vst [vmem:[%s199 + $0x10] sm:$0xf] %v584
      %617 = vst [vmem:[%s199 + $0x14] sm:$0xf] %v585
      %618 = vst [vmem:[%s199 + $0x18] sm:$0xf] %v586
      %619 = vst [vmem:[%s199 + $0x1c] sm:$0xf] %v587
      %620 = vst [vmem:[%s199 + $0x20] sm:$0xf] %v588
      %621 = vst [vmem:[%s199 + $0x24] sm:$0xf] %v589
      %622 = vst [vmem:[%s199 + $0x28] sm:$0xf] %v590
      %623 = vst [vmem:[%s199 + $0x2c] sm:$0xf] %v591
      %624 = vst [vmem:[%s199 + $0x30] sm:$0xf] %v592
      %625 = vst [vmem:[%s199 + $0x34] sm:$0xf] %v593
      %626 = vst [vmem:[%s199 + $0x38] sm:$0xf] %v594
      %627 = vst [vmem:[%s199 + $0x3c] sm:$0xf] %v595
      %628 = vst [vmem:[%s199 + $0x40] sm:$0xf] %v596
      %629 = vst [vmem:[%s199 + $0x44] sm:$0xf] %v597
      %630 = vst [vmem:[%s199 + $0x48] sm:$0xf] %v598
      %631 = vst [vmem:[%s199 + $0x4c] sm:$0xf] %v599
      %632 = vst [vmem:[%s199 + $0x50] sm:$0xf] %v600
      %633 = vst [vmem:[%s199 + $0x54] sm:$0xf] %v601
      %634 = vst [vmem:[%s199 + $0x58] sm:$0xf] %v602
      %635 = vst [vmem:[%s199 + $0x5c] sm:$0xf] %v603
      %636 = vst [vmem:[%s199 + $0x60] sm:$0xf] %v604
      %637 = vst [vmem:[%s199 + $0x64] sm:$0xf] %v605
      %638 = vst [vmem:[%s199 + $0x68] sm:$0xf] %v606
      %639 = vst [vmem:[%s199 + $0x6c] sm:$0xf] %v607
      %640 = vst [vmem:[%s199 + $0x70] sm:$0xf] %v608
      %641 = vst [vmem:[%s199 + $0x74] sm:$0xf] %v609
      %642 = vst [vmem:[%s199 + $0x78] sm:$0xf] %v610
      %643 = vst [vmem:[%s199 + $0x7c] sm:$0xf] %v611
      %s644 = smul.u32 32, %s15
      %p645 = scmp.lt.s32.totalorder %s644, 63
      %s646 = scalar_select %p645, %s644, 63
      %s647 = smul.addr %s646, 4
      %s648 = scalar_lea.vmem %s4, %s647
      // Predicated region
      $region37: #{_lambda_.139} parent=35 // pred_check
        %p649 = pneg %p122
      $region38: #{_lambda_.139} parent=35 // pred_check_branch
        %651 = sbr.rel (%p649) target = $region40
      $region39: #{_lambda_.139} parent=35 // pred_region
        %s652 = smul.u32 32, %s15
      $region40: #{_lambda_.139} parent=35 // pred_fallthru
        _
    $region36: #{_lambda_.139} parent=5 // pred_fallthru
      _
    %p653 = scmp.le.s32.totalorder 2, %s10
    // Predicated region
    $region41: #{_lambda_.139} parent=5 // pred_check
      %p654 = pneg %p653
    $region42: #{_lambda_.139} parent=5 // pred_check_branch
      %656 = sbr.rel (%p654) target = $region44
    $region43: #{_lambda_.139} parent=5 // pred_region
      %s657 = ssub.s32 %s10, 2
      // Predicated region
      $region45: #{_lambda_.139} parent=43 // pred_check
        %p658 = pneg %p128
      $region46: #{_lambda_.139} parent=43 // pred_check_branch
        %660 = sbr.rel (%p658) target = $region48
      $region47: #{_lambda_.139} parent=43 // pred_region
        %s661 = smul.u32 32, %s16
        %p662 = scmp.lt.s32.totalorder %s661, 63
        %s663 = scalar_select %p662, %s661, 63
        %s664 = smul.addr %s663, 4
        %s665 = scalar_lea.vmem %s4, %s664
      $region48: #{_lambda_.139} parent=43 // pred_fallthru
        _
    $region44: #{_lambda_.139} parent=5 // pred_fallthru
      _
  $region6: #{_lambda_.139} parent=0 // loop_footer
    %s14 = sadd.s32 1, %s10
  $region7: #{_lambda_.139} parent=0 // loop_footer_branch
    %9 = sbr.rel target = $region3
  $region8: #{_lambda_.139} parent=0 // loop_exit
    _

// kernel: _lambda_.142
$region0: #{_lambda_.142}
  #allocation0 [shape = 'u32[]', space=smem, size = 0x4, offset = 0x4, fixed_abs, tag = 'smem constant byte address 0x4 - core index']
  #allocation1 [shape = 'u32[72,128]{1,0:T(1,128)}', space=vmem, size = 0x9000, scoped, tag = 'internal scratch']
  %s0 = inlined_call_operand.vmem [shape: bf16[512,48], index: 0, kind: input, shape index: {}]
  %s1 = inlined_call_operand.vmem [shape: bf16[48,128], index: 1, kind: input, shape index: {}]
  %s2 = inlined_call_operand.vmem [shape: f32[1,128], index: 2, kind: input, shape index: {}]
  %s3 = inlined_call_operand.vmem [shape: f32[1,128], index: 3, kind: input, shape index: {}]
  %s4 = inlined_call_operand.vmem [shape: bf16[512,128], index: 4, kind: input, shape index: {}]
  %s5 = inlined_call_operand.vmem [shape: bf16[512,128], index: 5, kind: output, shape index: {}]
  %s6 = sld [smem:[#allocation0]]
  $region53: #{_lambda_.142} parent=0
    _
  %s8 = ssub.s32 1, %s6
  %s9 = scalar_select 0, %s8, %s6
  loop: start=0, step=1, limit=4
  $region2: #{_lambda_.142} parent=0 // loop_pre_header
    _
  $region3: #{_lambda_.142} parent=0 // loop_header
    %s11 = sphi 0, %s15
    %p12 = scmp.ge.s32.totalorder %s11, 4
    %s21 = sphi 0, %s23
    %s24 = sphi 0, %s21
    %s25 = sphi 0, %s24
    %s41 = sphi 0, %s25
    %s45 = sphi 0, %s45
    %s47 = sphi 0, %s45
    %s48 = sphi 0, %s47
    %s62 = sphi 0, %s48
    %s66 = sphi 0, %s66
    %s68 = sphi 0, %s66
    %s69 = sphi 0, %s68
    %s83 = sphi 0, %s69
    %s87 = sphi 0, %s87
    %s89 = sphi 0, %s87
    %s90 = sphi 0, %s89
    %s104 = sphi 0, %s90
    %s110 = sphi 0, %s112
    %s113 = sphi 0, %s110
    %s114 = sphi 0, %s113
    %s130 = sphi 0, %s114
    %s136 = sphi 0, %s138
    %s139 = sphi 0, %s136
    %s140 = sphi 0, %s139
    %s156 = sphi 0, %s140
  $region4: #{_lambda_.142} parent=0 // loop_header_branch
    %14 = sbr.rel (%p12) target = $region8
  $region5: #{_lambda_.142} parent=0 // loop_body
    %s16 = ssub.s32 %s11, 1
    %s17 = ssub.s32 %s11, 2
    %s18 = sadd.s32 %s11, 1
    %s19 = ssub.s32 %s11, %s18
    %p20 = scmp.eq.s32.totalorder %s19, 0
    %s22 = sadd.s32 %s21, 1
    %s23 = scalar_select %p20, %s21, %s22
    %p26 = pneg %p20
    %p27 = scmp.eq.s32.totalorder %s11, 1
    %p28 = por %p26, %p27
    %p29 = scmp.ne.s32.totalorder %s21, %s24
    %p30 = scmp.eq.s32.totalorder %s11, 0
    %p31 = por %p29, %p30
    %p32 = scmp.ne.s32.totalorder %s21, %s24
    %p33 = scmp.eq.s32.totalorder %s16, 1
    %p34 = por %p32, %p33
    %p35 = scmp.ne.s32.totalorder %s24, %s25
    %p36 = scmp.eq.s32.totalorder %s16, 0
    %p37 = por %p35, %p36
    %p38 = scmp.ne.s32.totalorder %s24, %s25
    %p39 = scmp.eq.s32.totalorder %s17, 1
    %p40 = por %p38, %p39
    %p42 = scmp.ne.s32.totalorder %s25, %s41
    %p43 = scmp.eq.s32.totalorder %s17, 0
    %p44 = por %p42, %p43
    %s46 = sadd.s32 %s45, 1
    %p49 = scmp.eq.s32.totalorder %s11, 1
    %p50 = scmp.ne.s32.totalorder %s45, %s47
    %p51 = scmp.eq.s32.totalorder %s11, 0
    %p52 = por %p50, %p51
    %p53 = scmp.ne.s32.totalorder %s45, %s47
    %p54 = scmp.eq.s32.totalorder %s16, 1
    %p55 = por %p53, %p54
    %p56 = scmp.ne.s32.totalorder %s47, %s48
    %p57 = scmp.eq.s32.totalorder %s16, 0
    %p58 = por %p56, %p57
    %p59 = scmp.ne.s32.totalorder %s47, %s48
    %p60 = scmp.eq.s32.totalorder %s17, 1
    %p61 = por %p59, %p60
    %p63 = scmp.ne.s32.totalorder %s48, %s62
    %p64 = scmp.eq.s32.totalorder %s17, 0
    %p65 = por %p63, %p64
    %s67 = sadd.s32 %s66, 1
    %p70 = scmp.eq.s32.totalorder %s11, 1
    %p71 = scmp.ne.s32.totalorder %s66, %s68
    %p72 = scmp.eq.s32.totalorder %s11, 0
    %p73 = por %p71, %p72
    %p74 = scmp.ne.s32.totalorder %s66, %s68
    %p75 = scmp.eq.s32.totalorder %s16, 1
    %p76 = por %p74, %p75
    %p77 = scmp.ne.s32.totalorder %s68, %s69
    %p78 = scmp.eq.s32.totalorder %s16, 0
    %p79 = por %p77, %p78
    %p80 = scmp.ne.s32.totalorder %s68, %s69
    %p81 = scmp.eq.s32.totalorder %s17, 1
    %p82 = por %p80, %p81
    %p84 = scmp.ne.s32.totalorder %s69, %s83
    %p85 = scmp.eq.s32.totalorder %s17, 0
    %p86 = por %p84, %p85
    %s88 = sadd.s32 %s87, 1
    %p91 = scmp.eq.s32.totalorder %s11, 1
    %p92 = scmp.ne.s32.totalorder %s87, %s89
    %p93 = scmp.eq.s32.totalorder %s11, 0
    %p94 = por %p92, %p93
    %p95 = scmp.ne.s32.totalorder %s87, %s89
    %p96 = scmp.eq.s32.totalorder %s16, 1
    %p97 = por %p95, %p96
    %p98 = scmp.ne.s32.totalorder %s89, %s90
    %p99 = scmp.eq.s32.totalorder %s16, 0
    %p100 = por %p98, %p99
    %p101 = scmp.ne.s32.totalorder %s89, %s90
    %p102 = scmp.eq.s32.totalorder %s17, 1
    %p103 = por %p101, %p102
    %p105 = scmp.ne.s32.totalorder %s90, %s104
    %p106 = scmp.eq.s32.totalorder %s17, 0
    %p107 = por %p105, %p106
    %s108 = ssub.s32 %s11, %s18
    %p109 = scmp.eq.s32.totalorder %s108, 0
    %s111 = sadd.s32 %s110, 1
    %s112 = scalar_select %p109, %s110, %s111
    %p115 = pneg %p109
    %p116 = scmp.eq.s32.totalorder %s11, 1
    %p117 = por %p115, %p116
    %p118 = scmp.ne.s32.totalorder %s110, %s113
    %p119 = scmp.eq.s32.totalorder %s11, 0
    %p120 = por %p118, %p119
    %p121 = scmp.ne.s32.totalorder %s110, %s113
    %p122 = scmp.eq.s32.totalorder %s16, 1
    %p123 = por %p121, %p122
    %p124 = scmp.ne.s32.totalorder %s113, %s114
    %p125 = scmp.eq.s32.totalorder %s16, 0
    %p126 = por %p124, %p125
    %p127 = scmp.ne.s32.totalorder %s113, %s114
    %p128 = scmp.eq.s32.totalorder %s17, 1
    %p129 = por %p127, %p128
    %p131 = scmp.ne.s32.totalorder %s114, %s130
    %p132 = scmp.eq.s32.totalorder %s17, 0
    %p133 = por %p131, %p132
    %s134 = ssub.s32 %s11, %s18
    %p135 = scmp.eq.s32.totalorder %s134, 0
    %s137 = sadd.s32 %s136, 1
    %s138 = scalar_select %p135, %s136, %s137
    %p141 = pneg %p135
    %p142 = scmp.eq.s32.totalorder %s11, 1
    %p143 = por %p141, %p142
    %p144 = scmp.ne.s32.totalorder %s136, %s139
    %p145 = scmp.eq.s32.totalorder %s11, 0
    %p146 = por %p144, %p145
    %p147 = scmp.ne.s32.totalorder %s136, %s139
    %p148 = scmp.eq.s32.totalorder %s16, 1
    %p149 = por %p147, %p148
    %p150 = scmp.ne.s32.totalorder %s139, %s140
    %p151 = scmp.eq.s32.totalorder %s16, 0
    %p152 = por %p150, %p151
    %p153 = scmp.ne.s32.totalorder %s139, %s140
    %p154 = scmp.eq.s32.totalorder %s17, 1
    %p155 = por %p153, %p154
    %p157 = scmp.ne.s32.totalorder %s140, %s156
    %p158 = scmp.eq.s32.totalorder %s17, 0
    %p159 = por %p157, %p158
    %p160 = scmp.le.s32.totalorder 1, %s11
    %p161 = scmp.lt.s32.totalorder %s11, 3
    %p162 = pnand %p160, %p161
    %p163 = pneg %p162
    // Predicated region
    $region9: #{_lambda_.142} parent=5 // pred_check
      _
    $region10: #{_lambda_.142} parent=5 // pred_check_branch
      %165 = sbr.rel (%p162) target = $region12
    $region11: #{_lambda_.142} parent=5 // pred_region
      %s166 = ssub.s32 %s11, 1
      // Predicated region
      $region13: #{_lambda_.142} parent=11 // pred_check
        %p167 = pneg %p58
      $region14: #{_lambda_.142} parent=11 // pred_check_branch
        %169 = sbr.rel (%p167) target = $region16
      $region15: #{_lambda_.142} parent=11 // pred_region
        _
      $region16: #{_lambda_.142} parent=11 // pred_fallthru
        _
      // Predicated region
      $region17: #{_lambda_.142} parent=11 // pred_check
        %p170 = pneg %p79
      $region18: #{_lambda_.142} parent=11 // pred_check_branch
        %172 = sbr.rel (%p170) target = $region20
      $region19: #{_lambda_.142} parent=11 // pred_region
        _
      $region20: #{_lambda_.142} parent=11 // pred_fallthru
        _
      // Predicated region
      $region21: #{_lambda_.142} parent=11 // pred_check
        %p173 = pneg %p100
      $region22: #{_lambda_.142} parent=11 // pred_check_branch
        %175 = sbr.rel (%p173) target = $region24
      $region23: #{_lambda_.142} parent=11 // pred_region
        _
      $region24: #{_lambda_.142} parent=11 // pred_fallthru
        _
    $region12: #{_lambda_.142} parent=5 // pred_fallthru
      _
    %p176 = scmp.lt.s32.totalorder %s11, 2
    // Predicated region
    $region25: #{_lambda_.142} parent=5 // pred_check
      %p177 = pneg %p176
    $region26: #{_lambda_.142} parent=5 // pred_check_branch
      %179 = sbr.rel (%p177) target = $region28
    $region27: #{_lambda_.142} parent=5 // pred_region
      // Predicated region
      $region29: #{_lambda_.142} parent=27 // pred_check
        %p180 = pneg %p31
      $region30: #{_lambda_.142} parent=27 // pred_check_branch
        %182 = sbr.rel (%p180) target = $region32
      $region31: #{_lambda_.142} parent=27 // pred_region
        %s183 = smul.u32 32, %s11
        %p184 = scmp.lt.s32.totalorder %s183, 63
        %s185 = scalar_select %p184, %s183, 63
        %s186 = smul.addr %s185, 4
        %s187 = scalar_lea.vmem %s0, %s186
        %s188 = smul.u32 32, %s11
      $region32: #{_lambda_.142} parent=27 // pred_fallthru
        _
      // Predicated region
      $region33: #{_lambda_.142} parent=27 // pred_check
        %p189 = pneg %p120
      $region34: #{_lambda_.142} parent=27 // pred_check_branch
        %191 = sbr.rel (%p189) target = $region36
      $region35: #{_lambda_.142} parent=27 // pred_region
        %s192 = smul.u32 32, %s11
        %p193 = scmp.lt.s32.totalorder %s192, 63
        %s194 = scalar_select %p193, %s192, 63
        %s195 = smul.addr %s194, 4
        %s196 = scalar_lea.vmem %s4, %s195
        %s197 = smul.u32 32, %s11
      $region36: #{_lambda_.142} parent=27 // pred_fallthru
        _
    $region28: #{_lambda_.142} parent=5 // pred_fallthru
      _
    %p198 = scmp.le.s32.totalorder 1, %s11
    %p199 = scmp.lt.s32.totalorder %s11, 3
    %p200 = pnand %p198, %p199
    %p201 = pneg %p200
    // Predicated region
    $region37: #{_lambda_.142} parent=5 // pred_check
      _
    $region38: #{_lambda_.142} parent=5 // pred_check_branch
      %203 = sbr.rel (%p200) target = $region40
    $region39: #{_lambda_.142} parent=5 // pred_region
      %s204 = ssub.s32 %s11, 1
      %s205 = smul.u32 32, %s16
      %p206 = scmp.lt.s32.totalorder %s205, 63
      %s207 = scalar_select %p206, %s205, 63
      %s208 = smul.addr %s207, 4
      %s209 = scalar_lea.vmem %s0, %s208
      %p210 = pneg %p37
      %p211 = pneg %p34
      %p212 = pneg %p58
      %p213 = pneg %p55
      %p214 = pneg %p79
      %p215 = pneg %p76
      %p216 = pneg %p100
      %p217 = pneg %p97
      %s218 = smul.u32 32, %s16
      %p219 = scmp.lt.s32.totalorder %s218, 63
      %s220 = scalar_select %p219, %s218, 63
      %s221 = smul.addr %s220, 4
      %s222 = scalar_lea.vmem %s4, %s221
      %p223 = pneg %p126
      %p224 = pneg %p123
      %p225 = pneg %p152
      %p226 = pneg %p149
      %s227 = smul.u32 32, %s16
      %p228 = scmp.lt.s32.totalorder %s227, 63
      %s229 = scalar_select %p228, %s227, 63
      %s230 = smul.addr %s229, 4
      %s231 = scalar_lea.vmem %s5, %s230
      %s232 = smul.u32 32, %s16
      %p233 = scmp.lt.s32.totalorder %s232, 63
      %s234 = scalar_select %p233, %s232, 63
      %s235 = smul.addr %s234, 4
      %s236 = scalar_lea.vmem %s0, %s235
      %s237 = smul.u32 32, %s16
      %s238 = smul.u32 32, %s16
      %p239 = scmp.lt.s32.totalorder %s238, 63
      %s240 = scalar_select %p239, %s238, 63
      %s241 = smul.addr %s240, 4
      %s242 = scalar_lea.vmem %s4, %s241
      %s243 = smul.u32 32, %s16
      %s244 = smul.u32 32, %s16
      %p245 = scmp.lt.s32.totalorder %s244, 63
      %s246 = scalar_select %p245, %s244, 63
      %s247 = smul.addr %s246, 4
      %s248 = scalar_lea.vmem %s5, %s247
      %s249 = smul.u32 32, %s16
      %v251 = vld [vmem:[%s236] sm:$0xf]
      %v252 = vld [vmem:[%s236 + $0x4] sm:$0xf]
      %v253 = vld [vmem:[%s236 + $0x8] sm:$0xf]
      %v254 = vld [vmem:[%s236 + $0xc] sm:$0xf]
      %v255 = vld [vmem:[%s236 + $0x10] sm:$0xf]
      %v256 = vld [vmem:[%s236 + $0x14] sm:$0xf]
      %v257 = vld [vmem:[%s236 + $0x18] sm:$0xf]
      %v258 = vld [vmem:[%s236 + $0x1c] sm:$0xf]
      %v259 = vld [vmem:[%s236 + $0x20] sm:$0xf]
      %v260 = vld [vmem:[%s236 + $0x24] sm:$0xf]
      %v261 = vld [vmem:[%s236 + $0x28] sm:$0xf]
      %v262 = vld [vmem:[%s236 + $0x2c] sm:$0xf]
      %v263 = vld [vmem:[%s236 + $0x30] sm:$0xf]
      %v264 = vld [vmem:[%s236 + $0x34] sm:$0xf]
      %v265 = vld [vmem:[%s236 + $0x38] sm:$0xf]
      %v266 = vld [vmem:[%s236 + $0x3c] sm:$0xf]
      %v267 = vld [vmem:[%s236 + $0x40] sm:$0xf]
      %v268 = vld [vmem:[%s236 + $0x44] sm:$0xf]
      %v269 = vld [vmem:[%s236 + $0x48] sm:$0xf]
      %v270 = vld [vmem:[%s236 + $0x4c] sm:$0xf]
      %v271 = vld [vmem:[%s236 + $0x50] sm:$0xf]
      %v272 = vld [vmem:[%s236 + $0x54] sm:$0xf]
      %v273 = vld [vmem:[%s236 + $0x58] sm:$0xf]
      %v274 = vld [vmem:[%s236 + $0x5c] sm:$0xf]
      %v275 = vld [vmem:[%s236 + $0x60] sm:$0xf]
      %v276 = vld [vmem:[%s236 + $0x64] sm:$0xf]
      %v277 = vld [vmem:[%s236 + $0x68] sm:$0xf]
      %v278 = vld [vmem:[%s236 + $0x6c] sm:$0xf]
      %v279 = vld [vmem:[%s236 + $0x70] sm:$0xf]
      %v280 = vld [vmem:[%s236 + $0x74] sm:$0xf]
      %v281 = vld [vmem:[%s236 + $0x78] sm:$0xf]
      %v282 = vld [vmem:[%s236 + $0x7c] sm:$0xf]
      %v283 = vld [vmem:[%s1] sm:$0xf]
      %v284 = vld [vmem:[%s1 + $0x4] sm:$0xf]
      %v285 = vld [vmem:[%s1 + $0x8] sm:$0xf]
      %v286 = vld [vmem:[%s1 + $0xc] sm:$0xf]
      %v287 = vld [vmem:[%s1 + $0x10] sm:$0xf]
      %v288 = vld [vmem:[%s1 + $0x14] sm:$0xf]
      %v321 = vunpack.c.l.b16 %v251
      %v322 = vunpack.c.l.b16 %v252
      %v323 = vunpack.c.l.b16 %v253
      %v324 = vunpack.c.l.b16 %v254
      %v325 = vunpack.c.l.b16 %v255
      %v326 = vunpack.c.l.b16 %v256
      %v327 = vunpack.c.l.b16 %v257
      %v328 = vunpack.c.l.b16 %v258
      %v329 = vunpack.c.l.b16 %v259
      %v330 = vunpack.c.l.b16 %v260
      %v331 = vunpack.c.l.b16 %v261
      %v332 = vunpack.c.l.b16 %v262
      %v333 = vunpack.c.l.b16 %v263
      %v334 = vunpack.c.l.b16 %v264
      %v335 = vunpack.c.l.b16 %v265
      %v336 = vunpack.c.l.b16 %v266
      %v337 = vunpack.c.l.b16 %v267
      %v338 = vunpack.c.l.b16 %v268
      %v339 = vunpack.c.l.b16 %v269
      %v340 = vunpack.c.l.b16 %v270
      %v341 = vunpack.c.l.b16 %v271
      %v342 = vunpack.c.l.b16 %v272
      %v343 = vunpack.c.l.b16 %v273
      %v344 = vunpack.c.l.b16 %v274
      %v345 = vunpack.c.l.b16 %v275
      %v346 = vunpack.c.l.b16 %v276
      %v347 = vunpack.c.l.b16 %v277
      %v348 = vunpack.c.l.b16 %v278
      %v349 = vunpack.c.l.b16 %v279
      %v350 = vunpack.c.l.b16 %v280
      %v351 = vunpack.c.l.b16 %v281
      %v352 = vunpack.c.l.b16 %v282
      %v353 = vpack.c.b16 %v322, %v321
      %v354 = vpack.c.b16 %v324, %v323
      %v355 = vpack.c.b16 %v326, %v325
      %v356 = vpack.c.b16 %v328, %v327
      %v357 = vpack.c.b16 %v330, %v329
      %v358 = vpack.c.b16 %v332, %v331
      %v359 = vpack.c.b16 %v334, %v333
      %v360 = vpack.c.b16 %v336, %v335
      %v361 = vpack.c.b16 %v338, %v337
      %v362 = vpack.c.b16 %v340, %v339
      %v363 = vpack.c.b16 %v342, %v341
      %v364 = vpack.c.b16 %v344, %v343
      %v365 = vpack.c.b16 %v346, %v345
      %v366 = vpack.c.b16 %v348, %v347
      %v367 = vpack.c.b16 %v350, %v349
      %v368 = vpack.c.b16 %v352, %v351
      %v375 = vunpack.c.l.b16 %v283
      %v376 = vunpack.c.l.b16 %v284
      %v377 = vunpack.c.l.b16 %v285
      %v378 = vunpack.c.l.b16 %v286
      %v379 = vunpack.c.l.b16 %v287
      %v380 = vunpack.c.l.b16 %v288
      %v381 = vpack.c.b16 %v376, %v375
      %v382 = vpack.c.b16 %v378, %v377
      %v383 = vpack.c.b16 %v380, %v379
      %vm387 = vcmask 392192
      %v389 = vsel %vm387, %v353, 0
      %v392 = vsel %vm387, %v354, 0
      %v395 = vsel %vm387, %v355, 0
      %v398 = vsel %vm387, %v356, 0
      %v401 = vsel %vm387, %v357, 0
      %v404 = vsel %vm387, %v358, 0
      %v407 = vsel %vm387, %v359, 0
      %v410 = vsel %vm387, %v360, 0
      %v413 = vsel %vm387, %v361, 0
      %v416 = vsel %vm387, %v362, 0
      %v419 = vsel %vm387, %v363, 0
      %v422 = vsel %vm387, %v364, 0
      %v425 = vsel %vm387, %v365, 0
      %v428 = vsel %vm387, %v366, 0
      %v431 = vsel %vm387, %v367, 0
      %v434 = vsel %vm387, %v368, 0
      %436 = vmatpush.bf16.msra.mxu0 0
      %437 = vmatpush.bf16.msra.mxu0 0
      %438 = vmatpush.bf16.msra.mxu0 0
      %439 = vmatpush.bf16.msra.mxu0 0
      %440 = vmatpush.bf16.msra.mxu0 0
      %441 = vmatpush.bf16.msra.mxu0 %v383
      %442 = vmatpush.bf16.msra.mxu0 %v382
      %443 = vmatpush.bf16.msra.mxu0 %v381
      %444 = vmatmul.bf16.gmra.mxu0 %v389
      %v445 = vpop.f32.mrf.mxu0
      %v446 = vadd.f32 0.0, %v445
      %v447 = vpop.f32.mrf.mxu0
      %v448 = vadd.f32 0.0, %v447
      %449 = vmatmul.bf16.gmra.mxu0 %v392
      %v450 = vpop.f32.mrf.mxu0
      %v451 = vadd.f32 0.0, %v450
      %v452 = vpop.f32.mrf.mxu0
      %v453 = vadd.f32 0.0, %v452
      %454 = vmatmul.bf16.gmra.mxu0 %v395
      %v455 = vpop.f32.mrf.mxu0
      %v456 = vadd.f32 0.0, %v455
      %v457 = vpop.f32.mrf.mxu0
      %v458 = vadd.f32 0.0, %v457
      %459 = vmatmul.bf16.gmra.mxu0 %v398
      %v460 = vpop.f32.mrf.mxu0
      %v461 = vadd.f32 0.0, %v460
      %v462 = vpop.f32.mrf.mxu0
      %v463 = vadd.f32 0.0, %v462
      %464 = vmatmul.bf16.gmra.mxu0 %v401
      %v465 = vpop.f32.mrf.mxu0
      %v466 = vadd.f32 0.0, %v465
      %v467 = vpop.f32.mrf.mxu0
      %v468 = vadd.f32 0.0, %v467
      %469 = vmatmul.bf16.gmra.mxu0 %v404
      %v470 = vpop.f32.mrf.mxu0
      %v471 = vadd.f32 0.0, %v470
      %v472 = vpop.f32.mrf.mxu0
      %v473 = vadd.f32 0.0, %v472
      %474 = vmatmul.bf16.gmra.mxu0 %v407
      %v475 = vpop.f32.mrf.mxu0
      %v476 = vadd.f32 0.0, %v475
      %v477 = vpop.f32.mrf.mxu0
      %v478 = vadd.f32 0.0, %v477
      %479 = vmatmul.bf16.gmra.mxu0 %v410
      %v480 = vpop.f32.mrf.mxu0
      %v481 = vadd.f32 0.0, %v480
      %v482 = vpop.f32.mrf.mxu0
      %v483 = vadd.f32 0.0, %v482
      %484 = vmatmul.bf16.gmra.mxu0 %v413
      %v485 = vpop.f32.mrf.mxu0
      %v486 = vadd.f32 0.0, %v485
      %v487 = vpop.f32.mrf.mxu0
      %v488 = vadd.f32 0.0, %v487
      %489 = vmatmul.bf16.gmra.mxu0 %v416
      %v490 = vpop.f32.mrf.mxu0
      %v491 = vadd.f32 0.0, %v490
      %v492 = vpop.f32.mrf.mxu0
      %v493 = vadd.f32 0.0, %v492
      %494 = vmatmul.bf16.gmra.mxu0 %v419
      %v495 = vpop.f32.mrf.mxu0
      %v496 = vadd.f32 0.0, %v495
      %v497 = vpop.f32.mrf.mxu0
      %v498 = vadd.f32 0.0, %v497
      %499 = vmatmul.bf16.gmra.mxu0 %v422
      %v500 = vpop.f32.mrf.mxu0
      %v501 = vadd.f32 0.0, %v500
      %v502 = vpop.f32.mrf.mxu0
      %v503 = vadd.f32 0.0, %v502
      %504 = vmatmul.bf16.gmra.mxu0 %v425
      %v505 = vpop.f32.mrf.mxu0
      %v506 = vadd.f32 0.0, %v505
      %v507 = vpop.f32.mrf.mxu0
      %v508 = vadd.f32 0.0, %v507
      %509 = vmatmul.bf16.gmra.mxu0 %v428
      %v510 = vpop.f32.mrf.mxu0
      %v511 = vadd.f32 0.0, %v510
      %v512 = vpop.f32.mrf.mxu0
      %v513 = vadd.f32 0.0, %v512
      %514 = vmatmul.bf16.gmra.mxu0 %v431
      %v515 = vpop.f32.mrf.mxu0
      %v516 = vadd.f32 0.0, %v515
      %v517 = vpop.f32.mrf.mxu0
      %v518 = vadd.f32 0.0, %v517
      %519 = vmatmul.bf16.gmra.mxu0 %v434
      %v520 = vpop.f32.mrf.mxu0
      %v521 = vadd.f32 0.0, %v520
      %v522 = vpop.f32.mrf.mxu0
      %v523 = vadd.f32 0.0, %v522
      %524 = vdwg.mxu0
      %v525 = vld [vmem:[%s2] sm:$0x1]
      %v527 = vperm.slane %v525, 0
      %v529 = vmul.f32 %v446, %v527
      %v530 = vmul.f32 %v448, %v527
      %v531 = vmul.f32 %v451, %v527
      %v532 = vmul.f32 %v453, %v527
      %v533 = vmul.f32 %v456, %v527
      %v534 = vmul.f32 %v458, %v527
      %v535 = vmul.f32 %v461, %v527
      %v536 = vmul.f32 %v463, %v527
      %v537 = vmul.f32 %v466, %v527
      %v538 = vmul.f32 %v468, %v527
      %v539 = vmul.f32 %v471, %v527
      %v540 = vmul.f32 %v473, %v527
      %v541 = vmul.f32 %v476, %v527
      %v542 = vmul.f32 %v478, %v527
      %v543 = vmul.f32 %v481, %v527
      %v544 = vmul.f32 %v483, %v527
      %v545 = vmul.f32 %v486, %v527
      %v546 = vmul.f32 %v488, %v527
      %v547 = vmul.f32 %v491, %v527
      %v548 = vmul.f32 %v493, %v527
      %v549 = vmul.f32 %v496, %v527
      %v550 = vmul.f32 %v498, %v527
      %v551 = vmul.f32 %v501, %v527
      %v552 = vmul.f32 %v503, %v527
      %v553 = vmul.f32 %v506, %v527
      %v554 = vmul.f32 %v508, %v527
      %v555 = vmul.f32 %v511, %v527
      %v556 = vmul.f32 %v513, %v527
      %v557 = vmul.f32 %v516, %v527
      %v558 = vmul.f32 %v518, %v527
      %v559 = vmul.f32 %v521, %v527
      %v560 = vmul.f32 %v523, %v527
      %v561 = vld [vmem:[%s3] sm:$0x1]
      %v563 = vperm.slane %v561, 0
      %v565 = vadd.f32 %v529, %v563
      %v566 = vadd.f32 %v530, %v563
      %v567 = vadd.f32 %v531, %v563
      %v568 = vadd.f32 %v532, %v563
      %v569 = vadd.f32 %v533, %v563
      %v570 = vadd.f32 %v534, %v563
      %v571 = vadd.f32 %v535, %v563
      %v572 = vadd.f32 %v536, %v563
      %v573 = vadd.f32 %v537, %v563
      %v574 = vadd.f32 %v538, %v563
      %v575 = vadd.f32 %v539, %v563
      %v576 = vadd.f32 %v540, %v563
      %v577 = vadd.f32 %v541, %v563
      %v578 = vadd.f32 %v542, %v563
      %v579 = vadd.f32 %v543, %v563
      %v580 = vadd.f32 %v544, %v563
      %v581 = vadd.f32 %v545, %v563
      %v582 = vadd.f32 %v546, %v563
      %v583 = vadd.f32 %v547, %v563
      %v584 = vadd.f32 %v548, %v563
      %v585 = vadd.f32 %v549, %v563
      %v586 = vadd.f32 %v550, %v563
      %v587 = vadd.f32 %v551, %v563
      %v588 = vadd.f32 %v552, %v563
      %v589 = vadd.f32 %v553, %v563
      %v590 = vadd.f32 %v554, %v563
      %v591 = vadd.f32 %v555, %v563
      %v592 = vadd.f32 %v556, %v563
      %v593 = vadd.f32 %v557, %v563
      %v594 = vadd.f32 %v558, %v563
      %v595 = vadd.f32 %v559, %v563
      %v596 = vadd.f32 %v560, %v563
      %v597 = vld [vmem:[%s242] sm:$0xf]
      %v598 = vld [vmem:[%s242 + $0x4] sm:$0xf]
      %v599 = vld [vmem:[%s242 + $0x8] sm:$0xf]
      %v600 = vld [vmem:[%s242 + $0xc] sm:$0xf]
      %v601 = vld [vmem:[%s242 + $0x10] sm:$0xf]
      %v602 = vld [vmem:[%s242 + $0x14] sm:$0xf]
      %v603 = vld [vmem:[%s242 + $0x18] sm:$0xf]
      %v604 = vld [vmem:[%s242 + $0x1c] sm:$0xf]
      %v605 = vld [vmem:[%s242 + $0x20] sm:$0xf]
      %v606 = vld [vmem:[%s242 + $0x24] sm:$0xf]
      %v607 = vld [vmem:[%s242 + $0x28] sm:$0xf]
      %v608 = vld [vmem:[%s242 + $0x2c] sm:$0xf]
      %v609 = vld [vmem:[%s242 + $0x30] sm:$0xf]
      %v610 = vld [vmem:[%s242 + $0x34] sm:$0xf]
      %v611 = vld [vmem:[%s242 + $0x38] sm:$0xf]
      %v612 = vld [vmem:[%s242 + $0x3c] sm:$0xf]
      %v613 = vld [vmem:[%s242 + $0x40] sm:$0xf]
      %v614 = vld [vmem:[%s242 + $0x44] sm:$0xf]
      %v615 = vld [vmem:[%s242 + $0x48] sm:$0xf]
      %v616 = vld [vmem:[%s242 + $0x4c] sm:$0xf]
      %v617 = vld [vmem:[%s242 + $0x50] sm:$0xf]
      %v618 = vld [vmem:[%s242 + $0x54] sm:$0xf]
      %v619 = vld [vmem:[%s242 + $0x58] sm:$0xf]
      %v620 = vld [vmem:[%s242 + $0x5c] sm:$0xf]
      %v621 = vld [vmem:[%s242 + $0x60] sm:$0xf]
      %v622 = vld [vmem:[%s242 + $0x64] sm:$0xf]
      %v623 = vld [vmem:[%s242 + $0x68] sm:$0xf]
      %v624 = vld [vmem:[%s242 + $0x6c] sm:$0xf]
      %v625 = vld [vmem:[%s242 + $0x70] sm:$0xf]
      %v626 = vld [vmem:[%s242 + $0x74] sm:$0xf]
      %v627 = vld [vmem:[%s242 + $0x78] sm:$0xf]
      %v628 = vld [vmem:[%s242 + $0x7c] sm:$0xf]
      %v629 = vunpack.c.l.bf16 %v597
      %v630 = vunpack.c.l.bf16 %v598
      %v631 = vunpack.c.l.bf16 %v599
      %v632 = vunpack.c.l.bf16 %v600
      %v633 = vunpack.c.l.bf16 %v601
      %v634 = vunpack.c.l.bf16 %v602
      %v635 = vunpack.c.l.bf16 %v603
      %v636 = vunpack.c.l.bf16 %v604
      %v637 = vunpack.c.l.bf16 %v605
      %v638 = vunpack.c.l.bf16 %v606
      %v639 = vunpack.c.l.bf16 %v607
      %v640 = vunpack.c.l.bf16 %v608
      %v641 = vunpack.c.l.bf16 %v609
      %v642 = vunpack.c.l.bf16 %v610
      %v643 = vunpack.c.l.bf16 %v611
      %v644 = vunpack.c.l.bf16 %v612
      %v645 = vunpack.c.l.bf16 %v613
      %v646 = vunpack.c.l.bf16 %v614
      %v647 = vunpack.c.l.bf16 %v615
      %v648 = vunpack.c.l.bf16 %v616
      %v649 = vunpack.c.l.bf16 %v617
      %v650 = vunpack.c.l.bf16 %v618
      %v651 = vunpack.c.l.bf16 %v619
      %v652 = vunpack.c.l.bf16 %v620
      %v653 = vunpack.c.l.bf16 %v621
      %v654 = vunpack.c.l.bf16 %v622
      %v655 = vunpack.c.l.bf16 %v623
      %v656 = vunpack.c.l.bf16 %v624
      %v657 = vunpack.c.l.bf16 %v625
      %v658 = vunpack.c.l.bf16 %v626
      %v659 = vunpack.c.l.bf16 %v627
      %v660 = vunpack.c.l.bf16 %v628
      %v661 = vadd.f32 %v565, %v629
      %v662 = vadd.f32 %v566, %v630
      %v663 = vadd.f32 %v567, %v631
      %v664 = vadd.f32 %v568, %v632
      %v665 = vadd.f32 %v569, %v633
      %v666 = vadd.f32 %v570, %v634
      %v667 = vadd.f32 %v571, %v635
      %v668 = vadd.f32 %v572, %v636
      %v669 = vadd.f32 %v573, %v637
      %v670 = vadd.f32 %v574, %v638
      %v671 = vadd.f32 %v575, %v639
      %v672 = vadd.f32 %v576, %v640
      %v673 = vadd.f32 %v577, %v641
      %v674 = vadd.f32 %v578, %v642
      %v675 = vadd.f32 %v579, %v643
      %v676 = vadd.f32 %v580, %v644
      %v677 = vadd.f32 %v581, %v645
      %v678 = vadd.f32 %v582, %v646
      %v679 = vadd.f32 %v583, %v647
      %v680 = vadd.f32 %v584, %v648
      %v681 = vadd.f32 %v585, %v649
      %v682 = vadd.f32 %v586, %v650
      %v683 = vadd.f32 %v587, %v651
      %v684 = vadd.f32 %v588, %v652
      %v685 = vadd.f32 %v589, %v653
      %v686 = vadd.f32 %v590, %v654
      %v687 = vadd.f32 %v591, %v655
      %v688 = vadd.f32 %v592, %v656
      %v689 = vadd.f32 %v593, %v657
      %v690 = vadd.f32 %v594, %v658
      %v691 = vadd.f32 %v595, %v659
      %v692 = vadd.f32 %v596, %v660
      %v693 = vmax.f32 %v661, 0.0
      %v694 = vmax.f32 %v662, 0.0
      %v695 = vmax.f32 %v663, 0.0
      %v696 = vmax.f32 %v664, 0.0
      %v697 = vmax.f32 %v665, 0.0
      %v698 = vmax.f32 %v666, 0.0
      %v699 = vmax.f32 %v667, 0.0
      %v700 = vmax.f32 %v668, 0.0
      %v701 = vmax.f32 %v669, 0.0
      %v702 = vmax.f32 %v670, 0.0
      %v703 = vmax.f32 %v671, 0.0
      %v704 = vmax.f32 %v672, 0.0
      %v705 = vmax.f32 %v673, 0.0
      %v706 = vmax.f32 %v674, 0.0
      %v707 = vmax.f32 %v675, 0.0
      %v708 = vmax.f32 %v676, 0.0
      %v709 = vmax.f32 %v677, 0.0
      %v710 = vmax.f32 %v678, 0.0
      %v711 = vmax.f32 %v679, 0.0
      %v712 = vmax.f32 %v680, 0.0
      %v713 = vmax.f32 %v681, 0.0
      %v714 = vmax.f32 %v682, 0.0
      %v715 = vmax.f32 %v683, 0.0
      %v716 = vmax.f32 %v684, 0.0
      %v717 = vmax.f32 %v685, 0.0
      %v718 = vmax.f32 %v686, 0.0
      %v719 = vmax.f32 %v687, 0.0
      %v720 = vmax.f32 %v688, 0.0
      %v721 = vmax.f32 %v689, 0.0
      %v722 = vmax.f32 %v690, 0.0
      %v723 = vmax.f32 %v691, 0.0
      %v724 = vmax.f32 %v692, 0.0
      %v725 = vpack.c.bf16 %v693, %v693
      %v726 = vpack.c.bf16 %v694, %v694
      %v727 = vpack.c.bf16 %v695, %v695
      %v728 = vpack.c.bf16 %v696, %v696
      %v729 = vpack.c.bf16 %v697, %v697
      %v730 = vpack.c.bf16 %v698, %v698
      %v731 = vpack.c.bf16 %v699, %v699
      %v732 = vpack.c.bf16 %v700, %v700
      %v733 = vpack.c.bf16 %v701, %v701
      %v734 = vpack.c.bf16 %v702, %v702
      %v735 = vpack.c.bf16 %v703, %v703
      %v736 = vpack.c.bf16 %v704, %v704
      %v737 = vpack.c.bf16 %v705, %v705
      %v738 = vpack.c.bf16 %v706, %v706
      %v739 = vpack.c.bf16 %v707, %v707
      %v740 = vpack.c.bf16 %v708, %v708
      %v741 = vpack.c.bf16 %v709, %v709
      %v742 = vpack.c.bf16 %v710, %v710
      %v743 = vpack.c.bf16 %v711, %v711
      %v744 = vpack.c.bf16 %v712, %v712
      %v745 = vpack.c.bf16 %v713, %v713
      %v746 = vpack.c.bf16 %v714, %v714
      %v747 = vpack.c.bf16 %v715, %v715
      %v748 = vpack.c.bf16 %v716, %v716
      %v749 = vpack.c.bf16 %v717, %v717
      %v750 = vpack.c.bf16 %v718, %v718
      %v751 = vpack.c.bf16 %v719, %v719
      %v752 = vpack.c.bf16 %v720, %v720
      %v753 = vpack.c.bf16 %v721, %v721
      %v754 = vpack.c.bf16 %v722, %v722
      %v755 = vpack.c.bf16 %v723, %v723
      %v756 = vpack.c.bf16 %v724, %v724
      %757 = vst [vmem:[%s248] sm:$0xf] %v725
      %758 = vst [vmem:[%s248 + $0x4] sm:$0xf] %v726
      %759 = vst [vmem:[%s248 + $0x8] sm:$0xf] %v727
      %760 = vst [vmem:[%s248 + $0xc] sm:$0xf] %v728
      %761 = vst [vmem:[%s248 + $0x10] sm:$0xf] %v729
      %762 = vst [vmem:[%s248 + $0x14] sm:$0xf] %v730
      %763 = vst [vmem:[%s248 + $0x18] sm:$0xf] %v731
      %764 = vst [vmem:[%s248 + $0x1c] sm:$0xf] %v732
      %765 = vst [vmem:[%s248 + $0x20] sm:$0xf] %v733
      %766 = vst [vmem:[%s248 + $0x24] sm:$0xf] %v734
      %767 = vst [vmem:[%s248 + $0x28] sm:$0xf] %v735
      %768 = vst [vmem:[%s248 + $0x2c] sm:$0xf] %v736
      %769 = vst [vmem:[%s248 + $0x30] sm:$0xf] %v737
      %770 = vst [vmem:[%s248 + $0x34] sm:$0xf] %v738
      %771 = vst [vmem:[%s248 + $0x38] sm:$0xf] %v739
      %772 = vst [vmem:[%s248 + $0x3c] sm:$0xf] %v740
      %773 = vst [vmem:[%s248 + $0x40] sm:$0xf] %v741
      %774 = vst [vmem:[%s248 + $0x44] sm:$0xf] %v742
      %775 = vst [vmem:[%s248 + $0x48] sm:$0xf] %v743
      %776 = vst [vmem:[%s248 + $0x4c] sm:$0xf] %v744
      %777 = vst [vmem:[%s248 + $0x50] sm:$0xf] %v745
      %778 = vst [vmem:[%s248 + $0x54] sm:$0xf] %v746
      %779 = vst [vmem:[%s248 + $0x58] sm:$0xf] %v747
      %780 = vst [vmem:[%s248 + $0x5c] sm:$0xf] %v748
      %781 = vst [vmem:[%s248 + $0x60] sm:$0xf] %v749
      %782 = vst [vmem:[%s248 + $0x64] sm:$0xf] %v750
      %783 = vst [vmem:[%s248 + $0x68] sm:$0xf] %v751
      %784 = vst [vmem:[%s248 + $0x6c] sm:$0xf] %v752
      %785 = vst [vmem:[%s248 + $0x70] sm:$0xf] %v753
      %786 = vst [vmem:[%s248 + $0x74] sm:$0xf] %v754
      %787 = vst [vmem:[%s248 + $0x78] sm:$0xf] %v755
      %788 = vst [vmem:[%s248 + $0x7c] sm:$0xf] %v756
      %s789 = smul.u32 32, %s16
      %p790 = scmp.lt.s32.totalorder %s789, 63
      %s791 = scalar_select %p790, %s789, 63
      %s792 = smul.addr %s791, 4
      %s793 = scalar_lea.vmem %s5, %s792
      // Predicated region
      $region41: #{_lambda_.142} parent=39 // pred_check
        %p794 = pneg %p149
      $region42: #{_lambda_.142} parent=39 // pred_check_branch
        %796 = sbr.rel (%p794) target = $region44
      $region43: #{_lambda_.142} parent=39 // pred_region
        %s797 = smul.u32 32, %s16
      $region44: #{_lambda_.142} parent=39 // pred_fallthru
        _
    $region40: #{_lambda_.142} parent=5 // pred_fallthru
      _
    %p798 = scmp.le.s32.totalorder 2, %s11
    // Predicated region
    $region45: #{_lambda_.142} parent=5 // pred_check
      %p799 = pneg %p798
    $region46: #{_lambda_.142} parent=5 // pred_check_branch
      %801 = sbr.rel (%p799) target = $region48
    $region47: #{_lambda_.142} parent=5 // pred_region
      %s802 = ssub.s32 %s11, 2
      // Predicated region
      $region49: #{_lambda_.142} parent=47 // pred_check
        %p803 = pneg %p155
      $region50: #{_lambda_.142} parent=47 // pred_check_branch
        %805 = sbr.rel (%p803) target = $region52
      $region51: #{_lambda_.142} parent=47 // pred_region
        %s806 = smul.u32 32, %s17
        %p807 = scmp.lt.s32.totalorder %s806, 63
        %s808 = scalar_select %p807, %s806, 63
        %s809 = smul.addr %s808, 4
        %s810 = scalar_lea.vmem %s5, %s809
      $region52: #{_lambda_.142} parent=47 // pred_fallthru
        _
    $region48: #{_lambda_.142} parent=5 // pred_fallthru
      _
  $region6: #{_lambda_.142} parent=0 // loop_footer
    %s15 = sadd.s32 1, %s11
  $region7: #{_lambda_.142} parent=0 // loop_footer_branch
    %10 = sbr.rel target = $region3
  $region8: #{_lambda_.142} parent=0 // loop_exit
    _

// kernel: _lambda_.147
$region0: #{_lambda_.147}
  #allocation0 [shape = 'u32[]', space=smem, size = 0x4, offset = 0x4, fixed_abs, tag = 'smem constant byte address 0x4 - core index']
  #allocation1 [shape = 'u32[72,128]{1,0:T(1,128)}', space=vmem, size = 0x9000, scoped, tag = 'internal scratch']
  %s0 = inlined_call_operand.vmem [shape: bf16[512,16], index: 0, kind: input, shape index: {}]
  %s1 = inlined_call_operand.vmem [shape: bf16[16,128], index: 1, kind: input, shape index: {}]
  %s2 = inlined_call_operand.vmem [shape: f32[1,128], index: 2, kind: input, shape index: {}]
  %s3 = inlined_call_operand.vmem [shape: f32[1,128], index: 3, kind: input, shape index: {}]
  %s4 = inlined_call_operand.vmem [shape: f32[512,128], index: 4, kind: output, shape index: {}]
  %s5 = sld [smem:[#allocation0]]
  $region49: #{_lambda_.147} parent=0
    _
  %s7 = ssub.s32 1, %s5
  %s8 = scalar_select 0, %s7, %s5
  loop: start=0, step=1, limit=4
  $region2: #{_lambda_.147} parent=0 // loop_pre_header
    _
  $region3: #{_lambda_.147} parent=0 // loop_header
    %s10 = sphi 0, %s14
    %p11 = scmp.ge.s32.totalorder %s10, 4
    %s20 = sphi 0, %s22
    %s23 = sphi 0, %s20
    %s24 = sphi 0, %s23
    %s40 = sphi 0, %s24
    %s44 = sphi 0, %s44
    %s46 = sphi 0, %s44
    %s47 = sphi 0, %s46
    %s61 = sphi 0, %s47
    %s65 = sphi 0, %s65
    %s67 = sphi 0, %s65
    %s68 = sphi 0, %s67
    %s82 = sphi 0, %s68
    %s86 = sphi 0, %s86
    %s88 = sphi 0, %s86
    %s89 = sphi 0, %s88
    %s103 = sphi 0, %s89
    %s109 = sphi 0, %s111
    %s112 = sphi 0, %s109
    %s113 = sphi 0, %s112
    %s129 = sphi 0, %s113
  $region4: #{_lambda_.147} parent=0 // loop_header_branch
    %13 = sbr.rel (%p11) target = $region8
  $region5: #{_lambda_.147} parent=0 // loop_body
    %s15 = ssub.s32 %s10, 1
    %s16 = ssub.s32 %s10, 2
    %s17 = sadd.s32 %s10, 1
    %s18 = ssub.s32 %s10, %s17
    %p19 = scmp.eq.s32.totalorder %s18, 0
    %s21 = sadd.s32 %s20, 1
    %s22 = scalar_select %p19, %s20, %s21
    %p25 = pneg %p19
    %p26 = scmp.eq.s32.totalorder %s10, 1
    %p27 = por %p25, %p26
    %p28 = scmp.ne.s32.totalorder %s20, %s23
    %p29 = scmp.eq.s32.totalorder %s10, 0
    %p30 = por %p28, %p29
    %p31 = scmp.ne.s32.totalorder %s20, %s23
    %p32 = scmp.eq.s32.totalorder %s15, 1
    %p33 = por %p31, %p32
    %p34 = scmp.ne.s32.totalorder %s23, %s24
    %p35 = scmp.eq.s32.totalorder %s15, 0
    %p36 = por %p34, %p35
    %p37 = scmp.ne.s32.totalorder %s23, %s24
    %p38 = scmp.eq.s32.totalorder %s16, 1
    %p39 = por %p37, %p38
    %p41 = scmp.ne.s32.totalorder %s24, %s40
    %p42 = scmp.eq.s32.totalorder %s16, 0
    %p43 = por %p41, %p42
    %s45 = sadd.s32 %s44, 1
    %p48 = scmp.eq.s32.totalorder %s10, 1
    %p49 = scmp.ne.s32.totalorder %s44, %s46
    %p50 = scmp.eq.s32.totalorder %s10, 0
    %p51 = por %p49, %p50
    %p52 = scmp.ne.s32.totalorder %s44, %s46
    %p53 = scmp.eq.s32.totalorder %s15, 1
    %p54 = por %p52, %p53
    %p55 = scmp.ne.s32.totalorder %s46, %s47
    %p56 = scmp.eq.s32.totalorder %s15, 0
    %p57 = por %p55, %p56
    %p58 = scmp.ne.s32.totalorder %s46, %s47
    %p59 = scmp.eq.s32.totalorder %s16, 1
    %p60 = por %p58, %p59
    %p62 = scmp.ne.s32.totalorder %s47, %s61
    %p63 = scmp.eq.s32.totalorder %s16, 0
    %p64 = por %p62, %p63
    %s66 = sadd.s32 %s65, 1
    %p69 = scmp.eq.s32.totalorder %s10, 1
    %p70 = scmp.ne.s32.totalorder %s65, %s67
    %p71 = scmp.eq.s32.totalorder %s10, 0
    %p72 = por %p70, %p71
    %p73 = scmp.ne.s32.totalorder %s65, %s67
    %p74 = scmp.eq.s32.totalorder %s15, 1
    %p75 = por %p73, %p74
    %p76 = scmp.ne.s32.totalorder %s67, %s68
    %p77 = scmp.eq.s32.totalorder %s15, 0
    %p78 = por %p76, %p77
    %p79 = scmp.ne.s32.totalorder %s67, %s68
    %p80 = scmp.eq.s32.totalorder %s16, 1
    %p81 = por %p79, %p80
    %p83 = scmp.ne.s32.totalorder %s68, %s82
    %p84 = scmp.eq.s32.totalorder %s16, 0
    %p85 = por %p83, %p84
    %s87 = sadd.s32 %s86, 1
    %p90 = scmp.eq.s32.totalorder %s10, 1
    %p91 = scmp.ne.s32.totalorder %s86, %s88
    %p92 = scmp.eq.s32.totalorder %s10, 0
    %p93 = por %p91, %p92
    %p94 = scmp.ne.s32.totalorder %s86, %s88
    %p95 = scmp.eq.s32.totalorder %s15, 1
    %p96 = por %p94, %p95
    %p97 = scmp.ne.s32.totalorder %s88, %s89
    %p98 = scmp.eq.s32.totalorder %s15, 0
    %p99 = por %p97, %p98
    %p100 = scmp.ne.s32.totalorder %s88, %s89
    %p101 = scmp.eq.s32.totalorder %s16, 1
    %p102 = por %p100, %p101
    %p104 = scmp.ne.s32.totalorder %s89, %s103
    %p105 = scmp.eq.s32.totalorder %s16, 0
    %p106 = por %p104, %p105
    %s107 = ssub.s32 %s10, %s17
    %p108 = scmp.eq.s32.totalorder %s107, 0
    %s110 = sadd.s32 %s109, 1
    %s111 = scalar_select %p108, %s109, %s110
    %p114 = pneg %p108
    %p115 = scmp.eq.s32.totalorder %s10, 1
    %p116 = por %p114, %p115
    %p117 = scmp.ne.s32.totalorder %s109, %s112
    %p118 = scmp.eq.s32.totalorder %s10, 0
    %p119 = por %p117, %p118
    %p120 = scmp.ne.s32.totalorder %s109, %s112
    %p121 = scmp.eq.s32.totalorder %s15, 1
    %p122 = por %p120, %p121
    %p123 = scmp.ne.s32.totalorder %s112, %s113
    %p124 = scmp.eq.s32.totalorder %s15, 0
    %p125 = por %p123, %p124
    %p126 = scmp.ne.s32.totalorder %s112, %s113
    %p127 = scmp.eq.s32.totalorder %s16, 1
    %p128 = por %p126, %p127
    %p130 = scmp.ne.s32.totalorder %s113, %s129
    %p131 = scmp.eq.s32.totalorder %s16, 0
    %p132 = por %p130, %p131
    %p133 = scmp.le.s32.totalorder 1, %s10
    %p134 = scmp.lt.s32.totalorder %s10, 3
    %p135 = pnand %p133, %p134
    %p136 = pneg %p135
    // Predicated region
    $region9: #{_lambda_.147} parent=5 // pred_check
      _
    $region10: #{_lambda_.147} parent=5 // pred_check_branch
      %138 = sbr.rel (%p135) target = $region12
    $region11: #{_lambda_.147} parent=5 // pred_region
      %s139 = ssub.s32 %s10, 1
      // Predicated region
      $region13: #{_lambda_.147} parent=11 // pred_check
        %p140 = pneg %p57
      $region14: #{_lambda_.147} parent=11 // pred_check_branch
        %142 = sbr.rel (%p140) target = $region16
      $region15: #{_lambda_.147} parent=11 // pred_region
        _
      $region16: #{_lambda_.147} parent=11 // pred_fallthru
        _
      // Predicated region
      $region17: #{_lambda_.147} parent=11 // pred_check
        %p143 = pneg %p78
      $region18: #{_lambda_.147} parent=11 // pred_check_branch
        %145 = sbr.rel (%p143) target = $region20
      $region19: #{_lambda_.147} parent=11 // pred_region
        _
      $region20: #{_lambda_.147} parent=11 // pred_fallthru
        _
      // Predicated region
      $region21: #{_lambda_.147} parent=11 // pred_check
        %p146 = pneg %p99
      $region22: #{_lambda_.147} parent=11 // pred_check_branch
        %148 = sbr.rel (%p146) target = $region24
      $region23: #{_lambda_.147} parent=11 // pred_region
        _
      $region24: #{_lambda_.147} parent=11 // pred_fallthru
        _
    $region12: #{_lambda_.147} parent=5 // pred_fallthru
      _
    %p149 = scmp.lt.s32.totalorder %s10, 2
    // Predicated region
    $region25: #{_lambda_.147} parent=5 // pred_check
      %p150 = pneg %p149
    $region26: #{_lambda_.147} parent=5 // pred_check_branch
      %152 = sbr.rel (%p150) target = $region28
    $region27: #{_lambda_.147} parent=5 // pred_region
      // Predicated region
      $region29: #{_lambda_.147} parent=27 // pred_check
        %p153 = pneg %p30
      $region30: #{_lambda_.147} parent=27 // pred_check_branch
        %155 = sbr.rel (%p153) target = $region32
      $region31: #{_lambda_.147} parent=27 // pred_region
        %s156 = smul.u32 32, %s10
        %p157 = scmp.lt.s32.totalorder %s156, 63
        %s158 = scalar_select %p157, %s156, 63
        %s159 = smul.addr %s158, 4
        %s160 = scalar_lea.vmem %s0, %s159
        %s161 = smul.u32 32, %s10
      $region32: #{_lambda_.147} parent=27 // pred_fallthru
        _
    $region28: #{_lambda_.147} parent=5 // pred_fallthru
      _
    %p162 = scmp.le.s32.totalorder 1, %s10
    %p163 = scmp.lt.s32.totalorder %s10, 3
    %p164 = pnand %p162, %p163
    %p165 = pneg %p164
    // Predicated region
    $region33: #{_lambda_.147} parent=5 // pred_check
      _
    $region34: #{_lambda_.147} parent=5 // pred_check_branch
      %167 = sbr.rel (%p164) target = $region36
    $region35: #{_lambda_.147} parent=5 // pred_region
      %s168 = ssub.s32 %s10, 1
      %s169 = smul.u32 32, %s15
      %p170 = scmp.lt.s32.totalorder %s169, 63
      %s171 = scalar_select %p170, %s169, 63
      %s172 = smul.addr %s171, 4
      %s173 = scalar_lea.vmem %s0, %s172
      %p174 = pneg %p36
      %p175 = pneg %p33
      %p176 = pneg %p57
      %p177 = pneg %p54
      %p178 = pneg %p78
      %p179 = pneg %p75
      %p180 = pneg %p99
      %p181 = pneg %p96
      %p182 = pneg %p125
      %p183 = pneg %p122
      %s184 = smul.u32 32, %s15
      %p185 = scmp.lt.s32.totalorder %s184, 63
      %s186 = scalar_select %p185, %s184, 63
      %s187 = smul.addr %s186, 8
      %s188 = scalar_lea.vmem %s4, %s187
      %s189 = smul.u32 32, %s15
      %p190 = scmp.lt.s32.totalorder %s189, 63
      %s191 = scalar_select %p190, %s189, 63
      %s192 = smul.addr %s191, 4
      %s193 = scalar_lea.vmem %s0, %s192
      %s194 = smul.u32 32, %s15
      %s195 = smul.u32 32, %s15
      %p196 = scmp.lt.s32.totalorder %s195, 63
      %s197 = scalar_select %p196, %s195, 63
      %s198 = smul.addr %s197, 8
      %s199 = scalar_lea.vmem %s4, %s198
      %s200 = smul.u32 32, %s15
      %v202 = vld [vmem:[%s193] sm:$0xf]
      %v203 = vld [vmem:[%s193 + $0x4] sm:$0xf]
      %v204 = vld [vmem:[%s193 + $0x8] sm:$0xf]
      %v205 = vld [vmem:[%s193 + $0xc] sm:$0xf]
      %v206 = vld [vmem:[%s193 + $0x10] sm:$0xf]
      %v207 = vld [vmem:[%s193 + $0x14] sm:$0xf]
      %v208 = vld [vmem:[%s193 + $0x18] sm:$0xf]
      %v209 = vld [vmem:[%s193 + $0x1c] sm:$0xf]
      %v210 = vld [vmem:[%s193 + $0x20] sm:$0xf]
      %v211 = vld [vmem:[%s193 + $0x24] sm:$0xf]
      %v212 = vld [vmem:[%s193 + $0x28] sm:$0xf]
      %v213 = vld [vmem:[%s193 + $0x2c] sm:$0xf]
      %v214 = vld [vmem:[%s193 + $0x30] sm:$0xf]
      %v215 = vld [vmem:[%s193 + $0x34] sm:$0xf]
      %v216 = vld [vmem:[%s193 + $0x38] sm:$0xf]
      %v217 = vld [vmem:[%s193 + $0x3c] sm:$0xf]
      %v218 = vld [vmem:[%s193 + $0x40] sm:$0xf]
      %v219 = vld [vmem:[%s193 + $0x44] sm:$0xf]
      %v220 = vld [vmem:[%s193 + $0x48] sm:$0xf]
      %v221 = vld [vmem:[%s193 + $0x4c] sm:$0xf]
      %v222 = vld [vmem:[%s193 + $0x50] sm:$0xf]
      %v223 = vld [vmem:[%s193 + $0x54] sm:$0xf]
      %v224 = vld [vmem:[%s193 + $0x58] sm:$0xf]
      %v225 = vld [vmem:[%s193 + $0x5c] sm:$0xf]
      %v226 = vld [vmem:[%s193 + $0x60] sm:$0xf]
      %v227 = vld [vmem:[%s193 + $0x64] sm:$0xf]
      %v228 = vld [vmem:[%s193 + $0x68] sm:$0xf]
      %v229 = vld [vmem:[%s193 + $0x6c] sm:$0xf]
      %v230 = vld [vmem:[%s193 + $0x70] sm:$0xf]
      %v231 = vld [vmem:[%s193 + $0x74] sm:$0xf]
      %v232 = vld [vmem:[%s193 + $0x78] sm:$0xf]
      %v233 = vld [vmem:[%s193 + $0x7c] sm:$0xf]
      %v234 = vld [vmem:[%s1] sm:$0xf]
      %v235 = vld [vmem:[%s1 + $0x4] sm:$0xf]
      %v268 = vunpack.c.l.b16 %v202
      %v269 = vunpack.c.l.b16 %v203
      %v270 = vunpack.c.l.b16 %v204
      %v271 = vunpack.c.l.b16 %v205
      %v272 = vunpack.c.l.b16 %v206
      %v273 = vunpack.c.l.b16 %v207
      %v274 = vunpack.c.l.b16 %v208
      %v275 = vunpack.c.l.b16 %v209
      %v276 = vunpack.c.l.b16 %v210
      %v277 = vunpack.c.l.b16 %v211
      %v278 = vunpack.c.l.b16 %v212
      %v279 = vunpack.c.l.b16 %v213
      %v280 = vunpack.c.l.b16 %v214
      %v281 = vunpack.c.l.b16 %v215
      %v282 = vunpack.c.l.b16 %v216
      %v283 = vunpack.c.l.b16 %v217
      %v284 = vunpack.c.l.b16 %v218
      %v285 = vunpack.c.l.b16 %v219
      %v286 = vunpack.c.l.b16 %v220
      %v287 = vunpack.c.l.b16 %v221
      %v288 = vunpack.c.l.b16 %v222
      %v289 = vunpack.c.l.b16 %v223
      %v290 = vunpack.c.l.b16 %v224
      %v291 = vunpack.c.l.b16 %v225
      %v292 = vunpack.c.l.b16 %v226
      %v293 = vunpack.c.l.b16 %v227
      %v294 = vunpack.c.l.b16 %v228
      %v295 = vunpack.c.l.b16 %v229
      %v296 = vunpack.c.l.b16 %v230
      %v297 = vunpack.c.l.b16 %v231
      %v298 = vunpack.c.l.b16 %v232
      %v299 = vunpack.c.l.b16 %v233
      %v300 = vpack.c.b16 %v269, %v268
      %v301 = vpack.c.b16 %v271, %v270
      %v302 = vpack.c.b16 %v273, %v272
      %v303 = vpack.c.b16 %v275, %v274
      %v304 = vpack.c.b16 %v277, %v276
      %v305 = vpack.c.b16 %v279, %v278
      %v306 = vpack.c.b16 %v281, %v280
      %v307 = vpack.c.b16 %v283, %v282
      %v308 = vpack.c.b16 %v285, %v284
      %v309 = vpack.c.b16 %v287, %v286
      %v310 = vpack.c.b16 %v289, %v288
      %v311 = vpack.c.b16 %v291, %v290
      %v312 = vpack.c.b16 %v293, %v292
      %v313 = vpack.c.b16 %v295, %v294
      %v314 = vpack.c.b16 %v297, %v296
      %v315 = vpack.c.b16 %v299, %v298
      %v318 = vunpack.c.l.b16 %v234
      %v319 = vunpack.c.l.b16 %v235
      %v320 = vpack.c.b16 %v319, %v318
      %vm322 = vcmask 130048
      %v324 = vsel %vm322, %v300, 0
      %v327 = vsel %vm322, %v301, 0
      %v330 = vsel %vm322, %v302, 0
      %v333 = vsel %vm322, %v303, 0
      %v336 = vsel %vm322, %v304, 0
      %v339 = vsel %vm322, %v305, 0
      %v342 = vsel %vm322, %v306, 0
      %v345 = vsel %vm322, %v307, 0
      %v348 = vsel %vm322, %v308, 0
      %v351 = vsel %vm322, %v309, 0
      %v354 = vsel %vm322, %v310, 0
      %v357 = vsel %vm322, %v311, 0
      %v360 = vsel %vm322, %v312, 0
      %v363 = vsel %vm322, %v313, 0
      %v366 = vsel %vm322, %v314, 0
      %v369 = vsel %vm322, %v315, 0
      %371 = vmatpush.bf16.msra.mxu0 0
      %372 = vmatpush.bf16.msra.mxu0 0
      %373 = vmatpush.bf16.msra.mxu0 0
      %374 = vmatpush.bf16.msra.mxu0 0
      %375 = vmatpush.bf16.msra.mxu0 0
      %376 = vmatpush.bf16.msra.mxu0 0
      %377 = vmatpush.bf16.msra.mxu0 0
      %378 = vmatpush.bf16.msra.mxu0 %v320
      %379 = vmatmul.bf16.gmra.mxu0 %v324
      %v380 = vpop.f32.mrf.mxu0
      %v381 = vadd.f32 0.0, %v380
      %v382 = vpop.f32.mrf.mxu0
      %v383 = vadd.f32 0.0, %v382
      %384 = vmatmul.bf16.gmra.mxu0 %v327
      %v385 = vpop.f32.mrf.mxu0
      %v386 = vadd.f32 0.0, %v385
      %v387 = vpop.f32.mrf.mxu0
      %v388 = vadd.f32 0.0, %v387
      %389 = vmatmul.bf16.gmra.mxu0 %v330
      %v390 = vpop.f32.mrf.mxu0
      %v391 = vadd.f32 0.0, %v390
      %v392 = vpop.f32.mrf.mxu0
      %v393 = vadd.f32 0.0, %v392
      %394 = vmatmul.bf16.gmra.mxu0 %v333
      %v395 = vpop.f32.mrf.mxu0
      %v396 = vadd.f32 0.0, %v395
      %v397 = vpop.f32.mrf.mxu0
      %v398 = vadd.f32 0.0, %v397
      %399 = vmatmul.bf16.gmra.mxu0 %v336
      %v400 = vpop.f32.mrf.mxu0
      %v401 = vadd.f32 0.0, %v400
      %v402 = vpop.f32.mrf.mxu0
      %v403 = vadd.f32 0.0, %v402
      %404 = vmatmul.bf16.gmra.mxu0 %v339
      %v405 = vpop.f32.mrf.mxu0
      %v406 = vadd.f32 0.0, %v405
      %v407 = vpop.f32.mrf.mxu0
      %v408 = vadd.f32 0.0, %v407
      %409 = vmatmul.bf16.gmra.mxu0 %v342
      %v410 = vpop.f32.mrf.mxu0
      %v411 = vadd.f32 0.0, %v410
      %v412 = vpop.f32.mrf.mxu0
      %v413 = vadd.f32 0.0, %v412
      %414 = vmatmul.bf16.gmra.mxu0 %v345
      %v415 = vpop.f32.mrf.mxu0
      %v416 = vadd.f32 0.0, %v415
      %v417 = vpop.f32.mrf.mxu0
      %v418 = vadd.f32 0.0, %v417
      %419 = vmatmul.bf16.gmra.mxu0 %v348
      %v420 = vpop.f32.mrf.mxu0
      %v421 = vadd.f32 0.0, %v420
      %v422 = vpop.f32.mrf.mxu0
      %v423 = vadd.f32 0.0, %v422
      %424 = vmatmul.bf16.gmra.mxu0 %v351
      %v425 = vpop.f32.mrf.mxu0
      %v426 = vadd.f32 0.0, %v425
      %v427 = vpop.f32.mrf.mxu0
      %v428 = vadd.f32 0.0, %v427
      %429 = vmatmul.bf16.gmra.mxu0 %v354
      %v430 = vpop.f32.mrf.mxu0
      %v431 = vadd.f32 0.0, %v430
      %v432 = vpop.f32.mrf.mxu0
      %v433 = vadd.f32 0.0, %v432
      %434 = vmatmul.bf16.gmra.mxu0 %v357
      %v435 = vpop.f32.mrf.mxu0
      %v436 = vadd.f32 0.0, %v435
      %v437 = vpop.f32.mrf.mxu0
      %v438 = vadd.f32 0.0, %v437
      %439 = vmatmul.bf16.gmra.mxu0 %v360
      %v440 = vpop.f32.mrf.mxu0
      %v441 = vadd.f32 0.0, %v440
      %v442 = vpop.f32.mrf.mxu0
      %v443 = vadd.f32 0.0, %v442
      %444 = vmatmul.bf16.gmra.mxu0 %v363
      %v445 = vpop.f32.mrf.mxu0
      %v446 = vadd.f32 0.0, %v445
      %v447 = vpop.f32.mrf.mxu0
      %v448 = vadd.f32 0.0, %v447
      %449 = vmatmul.bf16.gmra.mxu0 %v366
      %v450 = vpop.f32.mrf.mxu0
      %v451 = vadd.f32 0.0, %v450
      %v452 = vpop.f32.mrf.mxu0
      %v453 = vadd.f32 0.0, %v452
      %454 = vmatmul.bf16.gmra.mxu0 %v369
      %v455 = vpop.f32.mrf.mxu0
      %v456 = vadd.f32 0.0, %v455
      %v457 = vpop.f32.mrf.mxu0
      %v458 = vadd.f32 0.0, %v457
      %459 = vdwg.mxu0
      %v460 = vld [vmem:[%s2] sm:$0x1]
      %v462 = vperm.slane %v460, 0
      %v464 = vmul.f32 %v381, %v462
      %v465 = vmul.f32 %v383, %v462
      %v466 = vmul.f32 %v386, %v462
      %v467 = vmul.f32 %v388, %v462
      %v468 = vmul.f32 %v391, %v462
      %v469 = vmul.f32 %v393, %v462
      %v470 = vmul.f32 %v396, %v462
      %v471 = vmul.f32 %v398, %v462
      %v472 = vmul.f32 %v401, %v462
      %v473 = vmul.f32 %v403, %v462
      %v474 = vmul.f32 %v406, %v462
      %v475 = vmul.f32 %v408, %v462
      %v476 = vmul.f32 %v411, %v462
      %v477 = vmul.f32 %v413, %v462
      %v478 = vmul.f32 %v416, %v462
      %v479 = vmul.f32 %v418, %v462
      %v480 = vmul.f32 %v421, %v462
      %v481 = vmul.f32 %v423, %v462
      %v482 = vmul.f32 %v426, %v462
      %v483 = vmul.f32 %v428, %v462
      %v484 = vmul.f32 %v431, %v462
      %v485 = vmul.f32 %v433, %v462
      %v486 = vmul.f32 %v436, %v462
      %v487 = vmul.f32 %v438, %v462
      %v488 = vmul.f32 %v441, %v462
      %v489 = vmul.f32 %v443, %v462
      %v490 = vmul.f32 %v446, %v462
      %v491 = vmul.f32 %v448, %v462
      %v492 = vmul.f32 %v451, %v462
      %v493 = vmul.f32 %v453, %v462
      %v494 = vmul.f32 %v456, %v462
      %v495 = vmul.f32 %v458, %v462
      %v496 = vld [vmem:[%s3] sm:$0x1]
      %v498 = vperm.slane %v496, 0
      %v500 = vadd.f32 %v464, %v498
      %v501 = vadd.f32 %v465, %v498
      %v502 = vadd.f32 %v466, %v498
      %v503 = vadd.f32 %v467, %v498
      %v504 = vadd.f32 %v468, %v498
      %v505 = vadd.f32 %v469, %v498
      %v506 = vadd.f32 %v470, %v498
      %v507 = vadd.f32 %v471, %v498
      %v508 = vadd.f32 %v472, %v498
      %v509 = vadd.f32 %v473, %v498
      %v510 = vadd.f32 %v474, %v498
      %v511 = vadd.f32 %v475, %v498
      %v512 = vadd.f32 %v476, %v498
      %v513 = vadd.f32 %v477, %v498
      %v514 = vadd.f32 %v478, %v498
      %v515 = vadd.f32 %v479, %v498
      %v516 = vadd.f32 %v480, %v498
      %v517 = vadd.f32 %v481, %v498
      %v518 = vadd.f32 %v482, %v498
      %v519 = vadd.f32 %v483, %v498
      %v520 = vadd.f32 %v484, %v498
      %v521 = vadd.f32 %v485, %v498
      %v522 = vadd.f32 %v486, %v498
      %v523 = vadd.f32 %v487, %v498
      %v524 = vadd.f32 %v488, %v498
      %v525 = vadd.f32 %v489, %v498
      %v526 = vadd.f32 %v490, %v498
      %v527 = vadd.f32 %v491, %v498
      %v528 = vadd.f32 %v492, %v498
      %v529 = vadd.f32 %v493, %v498
      %v530 = vadd.f32 %v494, %v498
      %v531 = vadd.f32 %v495, %v498
      %532 = vst [vmem:[%s199] sm:$0xff] %v500
      %533 = vst [vmem:[%s199 + $0x8] sm:$0xff] %v501
      %534 = vst [vmem:[%s199 + $0x10] sm:$0xff] %v502
      %535 = vst [vmem:[%s199 + $0x18] sm:$0xff] %v503
      %536 = vst [vmem:[%s199 + $0x20] sm:$0xff] %v504
      %537 = vst [vmem:[%s199 + $0x28] sm:$0xff] %v505
      %538 = vst [vmem:[%s199 + $0x30] sm:$0xff] %v506
      %539 = vst [vmem:[%s199 + $0x38] sm:$0xff] %v507
      %540 = vst [vmem:[%s199 + $0x40] sm:$0xff] %v508
      %541 = vst [vmem:[%s199 + $0x48] sm:$0xff] %v509
      %542 = vst [vmem:[%s199 + $0x50] sm:$0xff] %v510
      %543 = vst [vmem:[%s199 + $0x58] sm:$0xff] %v511
      %544 = vst [vmem:[%s199 + $0x60] sm:$0xff] %v512
      %545 = vst [vmem:[%s199 + $0x68] sm:$0xff] %v513
      %546 = vst [vmem:[%s199 + $0x70] sm:$0xff] %v514
      %547 = vst [vmem:[%s199 + $0x78] sm:$0xff] %v515
      %548 = vst [vmem:[%s199 + $0x80] sm:$0xff] %v516
      %549 = vst [vmem:[%s199 + $0x88] sm:$0xff] %v517
      %550 = vst [vmem:[%s199 + $0x90] sm:$0xff] %v518
      %551 = vst [vmem:[%s199 + $0x98] sm:$0xff] %v519
      %552 = vst [vmem:[%s199 + $0xa0] sm:$0xff] %v520
      %553 = vst [vmem:[%s199 + $0xa8] sm:$0xff] %v521
      %554 = vst [vmem:[%s199 + $0xb0] sm:$0xff] %v522
      %555 = vst [vmem:[%s199 + $0xb8] sm:$0xff] %v523
      %556 = vst [vmem:[%s199 + $0xc0] sm:$0xff] %v524
      %557 = vst [vmem:[%s199 + $0xc8] sm:$0xff] %v525
      %558 = vst [vmem:[%s199 + $0xd0] sm:$0xff] %v526
      %559 = vst [vmem:[%s199 + $0xd8] sm:$0xff] %v527
      %560 = vst [vmem:[%s199 + $0xe0] sm:$0xff] %v528
      %561 = vst [vmem:[%s199 + $0xe8] sm:$0xff] %v529
      %562 = vst [vmem:[%s199 + $0xf0] sm:$0xff] %v530
      %563 = vst [vmem:[%s199 + $0xf8] sm:$0xff] %v531
      %s564 = smul.u32 32, %s15
      %p565 = scmp.lt.s32.totalorder %s564, 63
      %s566 = scalar_select %p565, %s564, 63
      %s567 = smul.addr %s566, 8
      %s568 = scalar_lea.vmem %s4, %s567
      // Predicated region
      $region37: #{_lambda_.147} parent=35 // pred_check
        %p569 = pneg %p122
      $region38: #{_lambda_.147} parent=35 // pred_check_branch
        %571 = sbr.rel (%p569) target = $region40
      $region39: #{_lambda_.147} parent=35 // pred_region
        %s572 = smul.u32 32, %s15
      $region40: #{_lambda_.147} parent=35 // pred_fallthru
        _
    $region36: #{_lambda_.147} parent=5 // pred_fallthru
      _
    %p573 = scmp.le.s32.totalorder 2, %s10
    // Predicated region
    $region41: #{_lambda_.147} parent=5 // pred_check
      %p574 = pneg %p573
    $region42: #{_lambda_.147} parent=5 // pred_check_branch
      %576 = sbr.rel (%p574) target = $region44
    $region43: #{_lambda_.147} parent=5 // pred_region
      %s577 = ssub.s32 %s10, 2
      // Predicated region
      $region45: #{_lambda_.147} parent=43 // pred_check
        %p578 = pneg %p128
      $region46: #{_lambda_.147} parent=43 // pred_check_branch
        %580 = sbr.rel (%p578) target = $region48
      $region47: #{_lambda_.147} parent=43 // pred_region
        %s581 = smul.u32 32, %s16
        %p582 = scmp.lt.s32.totalorder %s581, 63
        %s583 = scalar_select %p582, %s581, 63
        %s584 = smul.addr %s583, 8
        %s585 = scalar_lea.vmem %s4, %s584
      $region48: #{_lambda_.147} parent=43 // pred_fallthru
        _
    $region44: #{_lambda_.147} parent=5 // pred_fallthru
      _
  $region6: #{_lambda_.147} parent=0 // loop_footer
    %s14 = sadd.s32 1, %s10
  $region7: #{_lambda_.147} parent=0 // loop_footer_branch
    %9 = sbr.rel target = $region3
  $region8: #{_lambda_.147} parent=0 // loop_exit
    _

</llo_original>
